<compile_context>
chip_gen: v6e
topology: v6e:2x2x1
jax: 0.10.0
libtpu: 0.0.40
codegen_flags: <defaults>
</compile_context>

<pallas_src>
import jax
import jax.numpy as jnp
from jax import lax
from jax.experimental import pallas as pl
from jax.experimental.pallas import tpu as pltpu

HIDDEN = 256
IN_FEATURES = 2592  # 32 * 9 * 9


def _round_up(n, m):
    return (n + m - 1) // m * m


# ----------------------------- fused Pallas kernel -----------------------------

def fused_kernel(x_ref, lar_ref, w_lin_ref, b_lin_ref,
                 wih0f_ref, wih0l_ref, b0_ref, b1_ref,
                 h_init_ref, c_init_ref,
                 whh0_hbm, w1_hbm,
                 ys_ref, h_out_ref, c_out_ref,
                 gin0_ref, whh0_vmem, w1_vmem, dma_sems):
    """Linear(2592->256)+ReLU, concat, and 2-layer LSTM (seq=T, batch=1), fused.

    x:      (T, K_pad)  f32   flattened/zero-padded image features
    lar:    (T, 128)    f32   zero-padded last_action_reward
    w_lin:  (K_pad,256) f32   transposed linear weight
    b_lin:  (1, 256)    f32
    wih0f:  (256, 4H)   bf16  rows of W_ih0^T multiplying the linear features  [i,f,o,g]
    wih0l:  (128, 4H)   bf16  rows of W_ih0^T multiplying last_action_reward   [i,f,o,g]
    b0/b1:  (1, 4H)     f32   fused (b_ih + b_hh), gate order [i,f,o,g]
    whh0_hbm: (256, 4H) bf16  HBM ref (manual async copy)
    w1_hbm: (512, 4H)   bf16  HBM ref, stacked [W_ih1^T; W_hh1^T]
    h/c init/out: (2, H) f32  per-layer states
    ys:     (T, H)      f32   layer-1 hidden state per step
    """
    H = HIDDEN
    T = ys_ref.shape[0]

    # 1) Kick off the recurrent-weight DMAs; they overlap the batched matmuls below.
    cp_whh0 = pltpu.make_async_copy(whh0_hbm, whh0_vmem, dma_sems.at[0])
    cp_w1 = pltpu.make_async_copy(w1_hbm, w1_vmem, dma_sems.at[1])
    cp_whh0.start()
    cp_w1.start()

    # 2) Linear + ReLU, batched over all T rows (full MXU sublane occupancy, f32).
    feat = jnp.maximum(
        jnp.dot(x_ref[...], w_lin_ref[...], preferred_element_type=jnp.float32)
        + b_lin_ref[...], 0.0)                                     # (T, 256)

    # 3) Hoisted layer-0 input projection (+ fused bias).  The torch.cat is expressed as
    #    two matmuls against the split W_ih0 — no concatenated activation ever exists.
    gin0_ref[...] = (
        jnp.dot(feat.astype(jnp.bfloat16), wih0f_ref[...],
                preferred_element_type=jnp.float32)
        + jnp.dot(lar_ref[...].astype(jnp.bfloat16), wih0l_ref[...],
                  preferred_element_type=jnp.float32)
        + b0_ref[...])                                             # (T, 4H)

    # 4) Recurrent weights must be resident before the serial loop.
    cp_whh0.wait()
    cp_w1.wait()

    # Hoist loop-invariant loads.
    whh0 = whh0_vmem[...]        # (256, 4H) bf16
    w1 = w1_vmem[...]            # (512, 4H) bf16
    b1 = b1_ref[...]             # (1, 4H)   f32

    def gates(g, c_prev):
        # Gate order is [i, f, o, g]: one sigmoid over the contiguous first 3H slab,
        # one tanh over the last H — no dead EUP work on the candidate slice.
        s = jax.nn.sigmoid(g[:, 0:3 * H])
        i = s[:, 0 * H:1 * H]
        f = s[:, 1 * H:2 * H]
        o = s[:, 2 * H:3 * H]
        gg = jnp.tanh(g[:, 3 * H:4 * H])
        c_new = f * c_prev + i * gg
        h_new = o * jnp.tanh(c_new)
        return h_new, c_new

    def step(t, carry):
        h0, c0, h1, c1 = carry
        # Layer 0: input gates precomputed; only the recurrent matvec remains (bf16 MXU).
        g0 = gin0_ref[pl.ds(t, 1), :] + jnp.dot(
            h0.astype(jnp.bfloat16), whh0, preferred_element_type=jnp.float32)
        h0, c0 = gates(g0, c0)
        # Layer 1: single fused matvec against stacked [W_ih1; W_hh1].
        lhs1 = jnp.concatenate([h0, h1], axis=1).astype(jnp.bfloat16)   # (1, 2H)
        g1 = jnp.dot(lhs1, w1, preferred_element_type=jnp.float32) + b1
        h1, c1 = gates(g1, c1)
        ys_ref[pl.ds(t, 1), :] = h1
        return (h0, c0, h1, c1)

    init = (h_init_ref[0:1, :], c_init_ref[0:1, :],
            h_init_ref[1:2, :], c_init_ref[1:2, :])
    # Static trip count; unroll capped at 8 so large T doesn't blow up code size.
    h0, c0, h1, c1 = lax.fori_loop(0, T, step, init, unroll=min(T, 8))

    h_out_ref[0:1, :] = h0
    h_out_ref[1:2, :] = h1
    c_out_ref[0:1, :] = c0
    c_out_ref[1:2, :] = c1


# ------------------------------- wrappers ----------------------------------

def make_params(action_size, key):
    """PyTorch-style parameter shapes, deterministic uniform init."""
    ks = jax.random.split(key, 10)
    k_lin = 1.0 / jnp.sqrt(IN_FEATURES)
    k_lstm = 1.0 / jnp.sqrt(HIDDEN)
    in0 = HIDDEN + action_size + 1
    u = lambda k, shape, b: jax.random.uniform(k, shape, jnp.float32, -b, b)
    return {
        "w_lin": u(ks[0], (HIDDEN, IN_FEATURES), k_lin),
        "b_lin": u(ks[1], (HIDDEN,), k_lin),
        "w_ih0": u(ks[2], (4 * HIDDEN, in0), k_lstm),
        "w_hh0": u(ks[3], (4 * HIDDEN, HIDDEN), k_lstm),
        "b_ih0": u(ks[4], (4 * HIDDEN,), k_lstm),
        "b_hh0": u(ks[5], (4 * HIDDEN,), k_lstm),
        "w_ih1": u(ks[6], (4 * HIDDEN, HIDDEN), k_lstm),
        "w_hh1": u(ks[7], (4 * HIDDEN, HIDDEN), k_lstm),
        "b_ih1": u(ks[8], (4 * HIDDEN,), k_lstm),
        "b_hh1": u(ks[9], (4 * HIDDEN,), k_lstm),
    }


def prepare_weights(params, action_size):
    """One-time layout prep: transpose / pad / split / gate-permute / fuse-bias / bf16.

    Done once (outside the per-call forward) so the forward never re-reads ~7 MB of
    weights through XLA transpose/pad ops, and LSTM weights travel as bf16 (half DMA).
    The Linear weight (K=2592 reduction) stays f32 for numerics.
    """
    H = HIDDEN
    A1 = action_size + 1
    k_pad = _round_up(IN_FEATURES, 128)      # 2688
    lar_pad = _round_up(A1, 128)             # 128

    def reorder(w):  # columns [i, f, g, o] (torch) -> [i, f, o, g]
        return jnp.concatenate(
            [w[..., 0 * H:2 * H], w[..., 3 * H:4 * H], w[..., 2 * H:3 * H]], axis=-1)

    wih0_t = reorder(params["w_ih0"].T)      # (256 + A1, 4H)
    whh0_t = reorder(params["w_hh0"].T)      # (256, 4H)
    wih1_t = reorder(params["w_ih1"].T)      # (256, 4H)
    whh1_t = reorder(params["w_hh1"].T)      # (256, 4H)
    b0 = reorder((params["b_ih0"] + params["b_hh0"]).reshape(1, 4 * H))
    b1 = reorder((params["b_ih1"] + params["b_hh1"]).reshape(1, 4 * H))

    prepped = {
        "w_lin_t": jnp.pad(params["w_lin"].T, ((0, k_pad - IN_FEATURES), (0, 0))),  # f32
        "b_lin": params["b_lin"].reshape(1, H),
        "wih0_feat": wih0_t[:H].astype(jnp.bfloat16),                               # (256, 4H)
        "wih0_lar": jnp.pad(wih0_t[H:], ((0, lar_pad - A1), (0, 0))).astype(jnp.bfloat16),
        "whh0_t": whh0_t.astype(jnp.bfloat16),                                      # (256, 4H)
        "w1_stacked": jnp.concatenate([wih1_t, whh1_t], axis=0).astype(jnp.bfloat16),  # (512, 4H)
        "b0": b0,
        "b1": b1,
    }
    return jax.tree_util.tree_map(jnp.asarray, prepped)


def base_lstm_net_forward(prepped, x, last_action_reward, lstm_state=None):
    B = x.shape[0]
    xf = x.reshape(B, -1).astype(jnp.float32)                 # (B, 2592) == torch x.view(B, -1)

    k_pad = prepped["w_lin_t"].shape[0]
    xf_p = jnp.pad(xf, ((0, 0), (0, k_pad - xf.shape[1])))    # (B, 2688) — tiny activation pad

    lar = last_action_reward.astype(jnp.float32)
    lar_pad = prepped["wih0_lar"].shape[0]
    lar_p = jnp.pad(lar, ((0, 0), (0, lar_pad - lar.shape[1])))  # (B, 128)

    if lstm_state is None:
        h_init = jnp.zeros((2, HIDDEN), jnp.float32)
        c_init = jnp.zeros((2, HIDDEN), jnp.float32)
    else:
        h_init = lstm_state[0].reshape(2, HIDDEN).astype(jnp.float32)
        c_init = lstm_state[1].reshape(2, HIDDEN).astype(jnp.float32)

    ys, h_n, c_n = pl.pallas_call(
        fused_kernel,
        out_shape=(jax.ShapeDtypeStruct((B, HIDDEN), jnp.float32),
                   jax.ShapeDtypeStruct((2, HIDDEN), jnp.float32),
                   jax.ShapeDtypeStruct((2, HIDDEN), jnp.float32)),
        in_specs=([pl.BlockSpec(memory_space=pltpu.MemorySpace.VMEM)] * 10
                  + [pl.BlockSpec(memory_space=pl.ANY)] * 2),
        out_specs=(pl.BlockSpec(memory_space=pltpu.MemorySpace.VMEM),) * 3,
        scratch_shapes=[
            pltpu.VMEM((B, 4 * HIDDEN), jnp.float32),            # hoisted layer-0 input gates
            pltpu.VMEM((HIDDEN, 4 * HIDDEN), jnp.bfloat16),      # whh0 landing buffer
            pltpu.VMEM((2 * HIDDEN, 4 * HIDDEN), jnp.bfloat16),  # [wih1; whh1] landing buffer
            pltpu.SemaphoreType.DMA((2,)),
        ],
        compiler_params=pltpu.CompilerParams(vmem_limit_bytes=32 * 1024 * 1024),
    )(xf_p, lar_p,
      prepped["w_lin_t"], prepped["b_lin"],
      prepped["wih0_feat"], prepped["wih0_lar"], prepped["b0"], prepped["b1"],
      h_init, c_init,
      prepped["whh0_t"], prepped["w1_stacked"])

    # PyTorch returns: output (B, 256), (h_n, c_n) each (num_layers=2, batch=1, 256)
    return ys, (h_n.reshape(2, 1, HIDDEN), c_n.reshape(2, 1, HIDDEN))


# --------------------------- pure-JAX reference ----------------------------

def reference_forward(params, x, last_action_reward, lstm_state=None):
    B = x.shape[0]
    H = HIDDEN
    hp = lax.Precision.HIGHEST
    xf = x.reshape(B, -1)
    feat = jnp.maximum(jnp.dot(xf, params["w_lin"].T, precision=hp) + params["b_lin"], 0.0)
    xs = jnp.concatenate([feat, last_action_reward], axis=1)
    if lstm_state is None:
        h = [jnp.zeros((H,)), jnp.zeros((H,))]
        c = [jnp.zeros((H,)), jnp.zeros((H,))]
    else:
        h = [lstm_state[0][l, 0] for l in range(2)]
        c = [lstm_state[1][l, 0] for l in range(2)]
    layers = [
        (params["w_ih0"], params["w_hh0"], params["b_ih0"], params["b_hh0"]),
        (params["w_ih1"], params["w_hh1"], params["b_ih1"], params["b_hh1"]),
    ]
    outs = []
    for t in range(B):
        inp = xs[t]
        for l, (wih, whh, bih, bhh) in enumerate(layers):
            g = (jnp.dot(wih, inp, precision=hp) + bih
                 + jnp.dot(whh, h[l], precision=hp) + bhh)
            i = jax.nn.sigmoid(g[0 * H:1 * H])
            f = jax.nn.sigmoid(g[1 * H:2 * H])
            gg = jnp.tanh(g[2 * H:3 * H])
            o = jax.nn.sigmoid(g[3 * H:4 * H])
            c[l] = f * c[l] + i * gg
            h[l] = o * jnp.tanh(c[l])
            inp = h[l]
        outs.append(h[1])
    ys = jnp.stack(outs, axis=0)
    return ys, (jnp.stack(h, 0).reshape(2, 1, H), jnp.stack(c, 0).reshape(2, 1, H))


if __name__ == "__main__":
    key = jax.random.PRNGKey(0)
    k_p, k_x, k_a = jax.random.split(key, 3)

    action_size = 7
    B = 8                                            # acts as LSTM seq length (batch=1)
    params = make_params(action_size, k_p)
    prepped = prepare_weights(params, action_size)   # one-time weight layout prep

    x = jax.random.normal(k_x, (B, 32, 9, 9), jnp.float32)           # NCHW, 32*9*9 = 2592
    lar = jax.random.normal(k_a, (B, action_size + 1), jnp.float32)  # (B, A+1)

    out, (h_n, c_n) = base_lstm_net_forward(prepped, x, lar, None)
    jax.block_until_ready((out, h_n, c_n))

    ref_out, (ref_h, ref_c) = reference_forward(params, x, lar, None)
    assert out.shape == (B, HIDDEN)
    assert h_n.shape == (2, 1, HIDDEN) and c_n.shape == (2, 1, HIDDEN)
    assert jnp.allclose(out, ref_out, atol=5e-3, rtol=5e-3)
    assert jnp.allclose(h_n, ref_h, atol=5e-3, rtol=5e-3)
    assert jnp.allclose(c_n, ref_c, atol=5e-3, rtol=5e-3)

    print("KERNEL_OK")
</pallas_src>

<mosaic_0001>
module attributes {stable_mosaic.version = 11 : i64} {
  func.func @fused_kernel(%arg0: memref<8x2688xf32, #tpu.memory_space<vmem>>, %arg1: memref<8x128xf32, #tpu.memory_space<vmem>>, %arg2: memref<2688x256xf32, #tpu.memory_space<vmem>>, %arg3: memref<1x256xf32, #tpu.memory_space<vmem>>, %arg4: memref<256x1024xbf16, #tpu.memory_space<vmem>>, %arg5: memref<128x1024xbf16, #tpu.memory_space<vmem>>, %arg6: memref<1x1024xf32, #tpu.memory_space<vmem>>, %arg7: memref<1x1024xf32, #tpu.memory_space<vmem>>, %arg8: memref<2x256xf32, #tpu.memory_space<vmem>>, %arg9: memref<2x256xf32, #tpu.memory_space<vmem>>, %arg10: memref<256x1024xbf16, #tpu.memory_space<any>>, %arg11: memref<512x1024xbf16, #tpu.memory_space<any>>, %arg12: memref<8x256xf32, #tpu.memory_space<vmem>>, %arg13: memref<2x256xf32, #tpu.memory_space<vmem>>, %arg14: memref<2x256xf32, #tpu.memory_space<vmem>>, %arg15: memref<8x1024xf32, #tpu.memory_space<vmem>>, %arg16: memref<256x1024xbf16, #tpu.memory_space<vmem>>, %arg17: memref<512x1024xbf16, #tpu.memory_space<vmem>>, %arg18: memref<2x!tpu.dma_semaphore, #tpu.memory_space<semaphore_mem>>) attributes {dimension_semantics = [], scalar_prefetch = 0 : i64, scratch_operands = 4 : i64, tpu.core_type = #tpu.core_type<tc>} {
    %c0_i32 = arith.constant 0 : i32
    %0 = tpu.memref_slice %arg18[%c0_i32] : memref<2x!tpu.dma_semaphore, #tpu.memory_space<semaphore_mem>> -> memref<1x!tpu.dma_semaphore, #tpu.memory_space<semaphore_mem>>
    %1 = tpu.memref_squeeze %0 : memref<1x!tpu.dma_semaphore, #tpu.memory_space<semaphore_mem>> -> memref<!tpu.dma_semaphore, #tpu.memory_space<semaphore_mem>>
    tpu.enqueue_dma source(%arg10 : memref<256x1024xbf16, #tpu.memory_space<any>>) target(%arg16 : memref<256x1024xbf16, #tpu.memory_space<vmem>>) target_semaphore(%1 : memref<!tpu.dma_semaphore, #tpu.memory_space<semaphore_mem>>)
    %c1_i32 = arith.constant 1 : i32
    %2 = tpu.memref_slice %arg18[%c1_i32] : memref<2x!tpu.dma_semaphore, #tpu.memory_space<semaphore_mem>> -> memref<1x!tpu.dma_semaphore, #tpu.memory_space<semaphore_mem>>
    %3 = tpu.memref_squeeze %2 : memref<1x!tpu.dma_semaphore, #tpu.memory_space<semaphore_mem>> -> memref<!tpu.dma_semaphore, #tpu.memory_space<semaphore_mem>>
    tpu.enqueue_dma source(%arg11 : memref<512x1024xbf16, #tpu.memory_space<any>>) target(%arg17 : memref<512x1024xbf16, #tpu.memory_space<vmem>>) target_semaphore(%3 : memref<!tpu.dma_semaphore, #tpu.memory_space<semaphore_mem>>)
    %c0 = arith.constant 0 : index
    %c0_0 = arith.constant 0 : index
    %4 = vector.load %arg0[%c0, %c0_0] : memref<8x2688xf32, #tpu.memory_space<vmem>>, vector<8x2688xf32>
    %c0_1 = arith.constant 0 : index
    %c0_2 = arith.constant 0 : index
    %5 = vector.load %arg2[%c0_1, %c0_2] : memref<2688x256xf32, #tpu.memory_space<vmem>>, vector<2688x256xf32>
    %cst = arith.constant dense<0.000000e+00> : vector<8x256xf32>
    %6 = tpu.matmul %4, %5, %cst {dimension_numbers = #tpu.dot_dimension_numbers<[1], [0], [0], [1], [0, 0, 1, 1], [], []>} : vector<8x2688xf32>, vector<2688x256xf32>, vector<8x256xf32> -> vector<8x256xf32>
    %c0_3 = arith.constant 0 : index
    %c0_4 = arith.constant 0 : index
    %7 = vector.load %arg3[%c0_3, %c0_4] : memref<1x256xf32, #tpu.memory_space<vmem>>, vector<1x256xf32>
    %8 = vector.broadcast %7 : vector<1x256xf32> to vector<8x256xf32>
    %9 = arith.addf %6, %8 : vector<8x256xf32>
    %cst_5 = arith.constant 0.000000e+00 : f32
    %10 = vector.broadcast %cst_5 : f32 to vector<8x256xf32>
    %11 = arith.maximumf %9, %10 : vector<8x256xf32>
    %12 = arith.truncf %11 : vector<8x256xf32> to vector<8x256xbf16>
    %c0_6 = arith.constant 0 : index
    %c0_7 = arith.constant 0 : index
    %13 = vector.load %arg4[%c0_6, %c0_7] : memref<256x1024xbf16, #tpu.memory_space<vmem>>, vector<256x1024xbf16>
    %cst_8 = arith.constant dense<0.000000e+00> : vector<8x1024xf32>
    %14 = tpu.matmul %12, %13, %cst_8 {dimension_numbers = #tpu.dot_dimension_numbers<[1], [0], [0], [1], [0, 0, 1, 1], [], []>} : vector<8x256xbf16>, vector<256x1024xbf16>, vector<8x1024xf32> -> vector<8x1024xf32>
    %c0_9 = arith.constant 0 : index
    %c0_10 = arith.constant 0 : index
    %15 = vector.load %arg1[%c0_9, %c0_10] : memref<8x128xf32, #tpu.memory_space<vmem>>, vector<8x128xf32>
    %16 = arith.truncf %15 : vector<8x128xf32> to vector<8x128xbf16>
    %c0_11 = arith.constant 0 : index
    %c0_12 = arith.constant 0 : index
    %17 = vector.load %arg5[%c0_11, %c0_12] : memref<128x1024xbf16, #tpu.memory_space<vmem>>, vector<128x1024xbf16>
    %cst_13 = arith.constant dense<0.000000e+00> : vector<8x1024xf32>
    %18 = tpu.matmul %16, %17, %cst_13 {dimension_numbers = #tpu.dot_dimension_numbers<[1], [0], [0], [1], [0, 0, 1, 1], [], []>} : vector<8x128xbf16>, vector<128x1024xbf16>, vector<8x1024xf32> -> vector<8x1024xf32>
    %19 = arith.addf %14, %18 : vector<8x1024xf32>
    %c0_14 = arith.constant 0 : index
    %c0_15 = arith.constant 0 : index
    %20 = vector.load %arg6[%c0_14, %c0_15] : memref<1x1024xf32, #tpu.memory_space<vmem>>, vector<1x1024xf32>
    %21 = vector.broadcast %20 : vector<1x1024xf32> to vector<8x1024xf32>
    %22 = arith.addf %19, %21 : vector<8x1024xf32>
    %c0_16 = arith.constant 0 : index
    %c0_17 = arith.constant 0 : index
    %23 = vector.load %arg15[%c0_16, %c0_17] : memref<8x1024xf32, #tpu.memory_space<vmem>>, vector<8x1024xf32>
    tpu.vector_store %arg15[%c0_16, %c0_17], %22 {strides = array<i32>} : memref<8x1024xf32, #tpu.memory_space<vmem>>, vector<8x1024xf32>,
    %c0_i32_18 = arith.constant 0 : i32
    %24 = tpu.memref_slice %arg18[%c0_i32_18] : memref<2x!tpu.dma_semaphore, #tpu.memory_space<semaphore_mem>> -> memref<1x!tpu.dma_semaphore, #tpu.memory_space<semaphore_mem>>
    %25 = tpu.memref_squeeze %24 : memref<1x!tpu.dma_semaphore, #tpu.memory_space<semaphore_mem>> -> memref<!tpu.dma_semaphore, #tpu.memory_space<semaphore_mem>>
    tpu.wait_dma2 semaphore(%25 : memref<!tpu.dma_semaphore, #tpu.memory_space<semaphore_mem>>) src(%arg10 : memref<256x1024xbf16, #tpu.memory_space<any>>) dst(%arg16 : memref<256x1024xbf16, #tpu.memory_space<vmem>>)
    %c1_i32_19 = arith.constant 1 : i32
    %26 = tpu.memref_slice %arg18[%c1_i32_19] : memref<2x!tpu.dma_semaphore, #tpu.memory_space<semaphore_mem>> -> memref<1x!tpu.dma_semaphore, #tpu.memory_space<semaphore_mem>>
    %27 = tpu.memref_squeeze %26 : memref<1x!tpu.dma_semaphore, #tpu.memory_space<semaphore_mem>> -> memref<!tpu.dma_semaphore, #tpu.memory_space<semaphore_mem>>
    tpu.wait_dma2 semaphore(%27 : memref<!tpu.dma_semaphore, #tpu.memory_space<semaphore_mem>>) src(%arg11 : memref<512x1024xbf16, #tpu.memory_space<any>>) dst(%arg17 : memref<512x1024xbf16, #tpu.memory_space<vmem>>)
    %c0_20 = arith.constant 0 : index
    %c0_21 = arith.constant 0 : index
    %28 = vector.load %arg16[%c0_20, %c0_21] : memref<256x1024xbf16, #tpu.memory_space<vmem>>, vector<256x1024xbf16>
    %c0_22 = arith.constant 0 : index
    %c0_23 = arith.constant 0 : index
    %29 = vector.load %arg17[%c0_22, %c0_23] : memref<512x1024xbf16, #tpu.memory_space<vmem>>, vector<512x1024xbf16>
    %c0_24 = arith.constant 0 : index
    %c0_25 = arith.constant 0 : index
    %30 = vector.load %arg7[%c0_24, %c0_25] : memref<1x1024xf32, #tpu.memory_space<vmem>>, vector<1x1024xf32>
    %c0_26 = arith.constant 0 : index
    %c0_27 = arith.constant 0 : index
    %31 = vector.load %arg8[%c0_26, %c0_27] : memref<2x256xf32, #tpu.memory_space<vmem>>, vector<1x256xf32>
    %c0_28 = arith.constant 0 : index
    %c0_29 = arith.constant 0 : index
    %32 = vector.load %arg9[%c0_28, %c0_29] : memref<2x256xf32, #tpu.memory_space<vmem>>, vector<1x256xf32>
    %c1 = arith.constant 1 : index
    %c0_30 = arith.constant 0 : index
    %33 = vector.load %arg8[%c1, %c0_30] : memref<2x256xf32, #tpu.memory_space<vmem>>, vector<1x256xf32>
    %c1_31 = arith.constant 1 : index
    %c0_32 = arith.constant 0 : index
    %34 = vector.load %arg9[%c1_31, %c0_32] : memref<2x256xf32, #tpu.memory_space<vmem>>, vector<1x256xf32>
    %c0_i32_33 = arith.constant 0 : i32
    %35 = arith.index_cast %c0_i32_33 : i32 to index
    %c0_34 = arith.constant 0 : index
    %36 = vector.load %arg15[%35, %c0_34] : memref<8x1024xf32, #tpu.memory_space<vmem>>, vector<1x1024xf32>
    %37 = arith.truncf %31 : vector<1x256xf32> to vector<1x256xbf16>
    %cst_35 = arith.constant dense<0.000000e+00> : vector<1x1024xf32>
    %38 = tpu.matmul %37, %28, %cst_35 {dimension_numbers = #tpu.dot_dimension_numbers<[1], [0], [0], [1], [0, 0, 1, 1], [], []>} : vector<1x256xbf16>, vector<256x1024xbf16>, vector<1x1024xf32> -> vector<1x1024xf32>
    %39 = arith.addf %36, %38 : vector<1x1024xf32>
    %40 = vector.extract_strided_slice %39 {offsets = [0, 0], sizes = [1, 768], strides = [1, 1]} : vector<1x1024xf32> to vector<1x768xf32>
    %41 = arith.negf %40 : vector<1x768xf32>
    %42 = math.exp %41 : vector<1x768xf32>
    %cst_36 = arith.constant 1.000000e+00 : f32
    %43 = vector.broadcast %cst_36 : f32 to vector<1x768xf32>
    %44 = arith.addf %43, %42 : vector<1x768xf32>
    %45 = arith.divf %43, %44 : vector<1x768xf32>
    %46 = vector.extract_strided_slice %45 {offsets = [0, 0], sizes = [1, 256], strides = [1, 1]} : vector<1x768xf32> to vector<1x256xf32>
    %47 = vector.extract_strided_slice %45 {offsets = [0, 256], sizes = [1, 256], strides = [1, 1]} : vector<1x768xf32> to vector<1x256xf32>
    %48 = vector.extract_strided_slice %45 {offsets = [0, 512], sizes = [1, 256], strides = [1, 1]} : vector<1x768xf32> to vector<1x256xf32>
    %49 = vector.extract_strided_slice %39 {offsets = [0, 768], sizes = [1, 256], strides = [1, 1]} : vector<1x1024xf32> to vector<1x256xf32>
    %50 = math.tanh %49 : vector<1x256xf32>
    %51 = arith.mulf %47, %32 : vector<1x256xf32>
    %52 = arith.mulf %46, %50 : vector<1x256xf32>
    %53 = arith.addf %51, %52 : vector<1x256xf32>
    %54 = math.tanh %53 : vector<1x256xf32>
    %55 = arith.mulf %48, %54 : vector<1x256xf32>
    %56 = tpu.concatenate %55, %33 in 1 : vector<1x256xf32>, vector<1x256xf32> -> vector<1x512xf32>
    %57 = arith.truncf %56 : vector<1x512xf32> to vector<1x512xbf16>
    %cst_37 = arith.constant dense<0.000000e+00> : vector<1x1024xf32>
    %58 = tpu.matmul %57, %29, %cst_37 {dimension_numbers = #tpu.dot_dimension_numbers<[1], [0], [0], [1], [0, 0, 1, 1], [], []>} : vector<1x512xbf16>, vector<512x1024xbf16>, vector<1x1024xf32> -> vector<1x1024xf32>
    %59 = arith.addf %58, %30 : vector<1x1024xf32>
    %60 = vector.extract_strided_slice %59 {offsets = [0, 0], sizes = [1, 768], strides = [1, 1]} : vector<1x1024xf32> to vector<1x768xf32>
    %61 = arith.negf %60 : vector<1x768xf32>
    %62 = math.exp %61 : vector<1x768xf32>
    %cst_38 = arith.constant 1.000000e+00 : f32
    %63 = vector.broadcast %cst_38 : f32 to vector<1x768xf32>
    %64 = arith.addf %63, %62 : vector<1x768xf32>
    %65 = arith.divf %63, %64 : vector<1x768xf32>
    %66 = vector.extract_strided_slice %65 {offsets = [0, 0], sizes = [1, 256], strides = [1, 1]} : vector<1x768xf32> to vector<1x256xf32>
    %67 = vector.extract_strided_slice %65 {offsets = [0, 256], sizes = [1, 256], strides = [1, 1]} : vector<1x768xf32> to vector<1x256xf32>
    %68 = vector.extract_strided_slice %65 {offsets = [0, 512], sizes = [1, 256], strides = [1, 1]} : vector<1x768xf32> to vector<1x256xf32>
    %69 = vector.extract_strided_slice %59 {offsets = [0, 768], sizes = [1, 256], strides = [1, 1]} : vector<1x1024xf32> to vector<1x256xf32>
    %70 = math.tanh %69 : vector<1x256xf32>
    %71 = arith.mulf %67, %34 : vector<1x256xf32>
    %72 = arith.mulf %66, %70 : vector<1x256xf32>
    %73 = arith.addf %71, %72 : vector<1x256xf32>
    %74 = math.tanh %73 : vector<1x256xf32>
    %75 = arith.mulf %68, %74 : vector<1x256xf32>
    %76 = arith.index_cast %c0_i32_33 : i32 to index
    %c0_39 = arith.constant 0 : index
    %77 = vector.load %arg12[%76, %c0_39] : memref<8x256xf32, #tpu.memory_space<vmem>>, vector<1x256xf32>
    tpu.vector_store %arg12[%76, %c0_39], %75 {strides = array<i32>} : memref<8x256xf32, #tpu.memory_space<vmem>>, vector<1x256xf32>,
    %c1_i32_40 = arith.constant 1 : i32
    %78 = arith.index_cast %c1_i32_40 : i32 to index
    %c0_41 = arith.constant 0 : index
    %79 = vector.load %arg15[%78, %c0_41] : memref<8x1024xf32, #tpu.memory_space<vmem>>, vector<1x1024xf32>
    %80 = arith.truncf %55 : vector<1x256xf32> to vector<1x256xbf16>
    %cst_42 = arith.constant dense<0.000000e+00> : vector<1x1024xf32>
    %81 = tpu.matmul %80, %28, %cst_42 {dimension_numbers = #tpu.dot_dimension_numbers<[1], [0], [0], [1], [0, 0, 1, 1], [], []>} : vector<1x256xbf16>, vector<256x1024xbf16>, vector<1x1024xf32> -> vector<1x1024xf32>
    %82 = arith.addf %79, %81 : vector<1x1024xf32>
    %83 = vector.extract_strided_slice %82 {offsets = [0, 0], sizes = [1, 768], strides = [1, 1]} : vector<1x1024xf32> to vector<1x768xf32>
    %84 = arith.negf %83 : vector<1x768xf32>
    %85 = math.exp %84 : vector<1x768xf32>
    %cst_43 = arith.constant 1.000000e+00 : f32
    %86 = vector.broadcast %cst_43 : f32 to vector<1x768xf32>
    %87 = arith.addf %86, %85 : vector<1x768xf32>
    %88 = arith.divf %86, %87 : vector<1x768xf32>
    %89 = vector.extract_strided_slice %88 {offsets = [0, 0], sizes = [1, 256], strides = [1, 1]} : vector<1x768xf32> to vector<1x256xf32>
    %90 = vector.extract_strided_slice %88 {offsets = [0, 256], sizes = [1, 256], strides = [1, 1]} : vector<1x768xf32> to vector<1x256xf32>
    %91 = vector.extract_strided_slice %88 {offsets = [0, 512], sizes = [1, 256], strides = [1, 1]} : vector<1x768xf32> to vector<1x256xf32>
    %92 = vector.extract_strided_slice %82 {offsets = [0, 768], sizes = [1, 256], strides = [1, 1]} : vector<1x1024xf32> to vector<1x256xf32>
    %93 = math.tanh %92 : vector<1x256xf32>
    %94 = arith.mulf %90, %53 : vector<1x256xf32>
    %95 = arith.mulf %89, %93 : vector<1x256xf32>
    %96 = arith.addf %94, %95 : vector<1x256xf32>
    %97 = math.tanh %96 : vector<1x256xf32>
    %98 = arith.mulf %91, %97 : vector<1x256xf32>
    %99 = tpu.concatenate %98, %75 in 1 : vector<1x256xf32>, vector<1x256xf32> -> vector<1x512xf32>
    %100 = arith.truncf %99 : vector<1x512xf32> to vector<1x512xbf16>
    %cst_44 = arith.constant dense<0.000000e+00> : vector<1x1024xf32>
    %101 = tpu.matmul %100, %29, %cst_44 {dimension_numbers = #tpu.dot_dimension_numbers<[1], [0], [0], [1], [0, 0, 1, 1], [], []>} : vector<1x512xbf16>, vector<512x1024xbf16>, vector<1x1024xf32> -> vector<1x1024xf32>
    %102 = arith.addf %101, %30 : vector<1x1024xf32>
    %103 = vector.extract_strided_slice %102 {offsets = [0, 0], sizes = [1, 768], strides = [1, 1]} : vector<1x1024xf32> to vector<1x768xf32>
    %104 = arith.negf %103 : vector<1x768xf32>
    %105 = math.exp %104 : vector<1x768xf32>
    %cst_45 = arith.constant 1.000000e+00 : f32
    %106 = vector.broadcast %cst_45 : f32 to vector<1x768xf32>
    %107 = arith.addf %106, %105 : vector<1x768xf32>
    %108 = arith.divf %106, %107 : vector<1x768xf32>
    %109 = vector.extract_strided_slice %108 {offsets = [0, 0], sizes = [1, 256], strides = [1, 1]} : vector<1x768xf32> to vector<1x256xf32>
    %110 = vector.extract_strided_slice %108 {offsets = [0, 256], sizes = [1, 256], strides = [1, 1]} : vector<1x768xf32> to vector<1x256xf32>
    %111 = vector.extract_strided_slice %108 {offsets = [0, 512], sizes = [1, 256], strides = [1, 1]} : vector<1x768xf32> to vector<1x256xf32>
    %112 = vector.extract_strided_slice %102 {offsets = [0, 768], sizes = [1, 256], strides = [1, 1]} : vector<1x1024xf32> to vector<1x256xf32>
    %113 = math.tanh %112 : vector<1x256xf32>
    %114 = arith.mulf %110, %73 : vector<1x256xf32>
    %115 = arith.mulf %109, %113 : vector<1x256xf32>
    %116 = arith.addf %114, %115 : vector<1x256xf32>
    %117 = math.tanh %116 : vector<1x256xf32>
    %118 = arith.mulf %111, %117 : vector<1x256xf32>
    %119 = arith.index_cast %c1_i32_40 : i32 to index
    %c0_46 = arith.constant 0 : index
    %120 = vector.load %arg12[%119, %c0_46] : memref<8x256xf32, #tpu.memory_space<vmem>>, vector<1x256xf32>
    tpu.vector_store %arg12[%119, %c0_46], %118 {strides = array<i32>} : memref<8x256xf32, #tpu.memory_space<vmem>>, vector<1x256xf32>,
    %c2_i32 = arith.constant 2 : i32
    %121 = arith.index_cast %c2_i32 : i32 to index
    %c0_47 = arith.constant 0 : index
    %122 = vector.load %arg15[%121, %c0_47] : memref<8x1024xf32, #tpu.memory_space<vmem>>, vector<1x1024xf32>
    %123 = arith.truncf %98 : vector<1x256xf32> to vector<1x256xbf16>
    %cst_48 = arith.constant dense<0.000000e+00> : vector<1x1024xf32>
    %124 = tpu.matmul %123, %28, %cst_48 {dimension_numbers = #tpu.dot_dimension_numbers<[1], [0], [0], [1], [0, 0, 1, 1], [], []>} : vector<1x256xbf16>, vector<256x1024xbf16>, vector<1x1024xf32> -> vector<1x1024xf32>
    %125 = arith.addf %122, %124 : vector<1x1024xf32>
    %126 = vector.extract_strided_slice %125 {offsets = [0, 0], sizes = [1, 768], strides = [1, 1]} : vector<1x1024xf32> to vector<1x768xf32>
    %127 = arith.negf %126 : vector<1x768xf32>
    %128 = math.exp %127 : vector<1x768xf32>
    %cst_49 = arith.constant 1.000000e+00 : f32
    %129 = vector.broadcast %cst_49 : f32 to vector<1x768xf32>
    %130 = arith.addf %129, %128 : vector<1x768xf32>
    %131 = arith.divf %129, %130 : vector<1x768xf32>
    %132 = vector.extract_strided_slice %131 {offsets = [0, 0], sizes = [1, 256], strides = [1, 1]} : vector<1x768xf32> to vector<1x256xf32>
    %133 = vector.extract_strided_slice %131 {offsets = [0, 256], sizes = [1, 256], strides = [1, 1]} : vector<1x768xf32> to vector<1x256xf32>
    %134 = vector.extract_strided_slice %131 {offsets = [0, 512], sizes = [1, 256], strides = [1, 1]} : vector<1x768xf32> to vector<1x256xf32>
    %135 = vector.extract_strided_slice %125 {offsets = [0, 768], sizes = [1, 256], strides = [1, 1]} : vector<1x1024xf32> to vector<1x256xf32>
    %136 = math.tanh %135 : vector<1x256xf32>
    %137 = arith.mulf %133, %96 : vector<1x256xf32>
    %138 = arith.mulf %132, %136 : vector<1x256xf32>
    %139 = arith.addf %137, %138 : vector<1x256xf32>
    %140 = math.tanh %139 : vector<1x256xf32>
    %141 = arith.mulf %134, %140 : vector<1x256xf32>
    %142 = tpu.concatenate %141, %118 in 1 : vector<1x256xf32>, vector<1x256xf32> -> vector<1x512xf32>
    %143 = arith.truncf %142 : vector<1x512xf32> to vector<1x512xbf16>
    %cst_50 = arith.constant dense<0.000000e+00> : vector<1x1024xf32>
    %144 = tpu.matmul %143, %29, %cst_50 {dimension_numbers = #tpu.dot_dimension_numbers<[1], [0], [0], [1], [0, 0, 1, 1], [], []>} : vector<1x512xbf16>, vector<512x1024xbf16>, vector<1x1024xf32> -> vector<1x1024xf32>
    %145 = arith.addf %144, %30 : vector<1x1024xf32>
    %146 = vector.extract_strided_slice %145 {offsets = [0, 0], sizes = [1, 768], strides = [1, 1]} : vector<1x1024xf32> to vector<1x768xf32>
    %147 = arith.negf %146 : vector<1x768xf32>
    %148 = math.exp %147 : vector<1x768xf32>
    %cst_51 = arith.constant 1.000000e+00 : f32
    %149 = vector.broadcast %cst_51 : f32 to vector<1x768xf32>
    %150 = arith.addf %149, %148 : vector<1x768xf32>
    %151 = arith.divf %149, %150 : vector<1x768xf32>
    %152 = vector.extract_strided_slice %151 {offsets = [0, 0], sizes = [1, 256], strides = [1, 1]} : vector<1x768xf32> to vector<1x256xf32>
    %153 = vector.extract_strided_slice %151 {offsets = [0, 256], sizes = [1, 256], strides = [1, 1]} : vector<1x768xf32> to vector<1x256xf32>
    %154 = vector.extract_strided_slice %151 {offsets = [0, 512], sizes = [1, 256], strides = [1, 1]} : vector<1x768xf32> to vector<1x256xf32>
    %155 = vector.extract_strided_slice %145 {offsets = [0, 768], sizes = [1, 256], strides = [1, 1]} : vector<1x1024xf32> to vector<1x256xf32>
    %156 = math.tanh %155 : vector<1x256xf32>
    %157 = arith.mulf %153, %116 : vector<1x256xf32>
    %158 = arith.mulf %152, %156 : vector<1x256xf32>
    %159 = arith.addf %157, %158 : vector<1x256xf32>
    %160 = math.tanh %159 : vector<1x256xf32>
    %161 = arith.mulf %154, %160 : vector<1x256xf32>
    %162 = arith.index_cast %c2_i32 : i32 to index
    %c0_52 = arith.constant 0 : index
    %163 = vector.load %arg12[%162, %c0_52] : memref<8x256xf32, #tpu.memory_space<vmem>>, vector<1x256xf32>
    tpu.vector_store %arg12[%162, %c0_52], %161 {strides = array<i32>} : memref<8x256xf32, #tpu.memory_space<vmem>>, vector<1x256xf32>,
    %c3_i32 = arith.constant 3 : i32
    %164 = arith.index_cast %c3_i32 : i32 to index
    %c0_53 = arith.constant 0 : index
    %165 = vector.load %arg15[%164, %c0_53] : memref<8x1024xf32, #tpu.memory_space<vmem>>, vector<1x1024xf32>
    %166 = arith.truncf %141 : vector<1x256xf32> to vector<1x256xbf16>
    %cst_54 = arith.constant dense<0.000000e+00> : vector<1x1024xf32>
    %167 = tpu.matmul %166, %28, %cst_54 {dimension_numbers = #tpu.dot_dimension_numbers<[1], [0], [0], [1], [0, 0, 1, 1], [], []>} : vector<1x256xbf16>, vector<256x1024xbf16>, vector<1x1024xf32> -> vector<1x1024xf32>
    %168 = arith.addf %165, %167 : vector<1x1024xf32>
    %169 = vector.extract_strided_slice %168 {offsets = [0, 0], sizes = [1, 768], strides = [1, 1]} : vector<1x1024xf32> to vector<1x768xf32>
    %170 = arith.negf %169 : vector<1x768xf32>
    %171 = math.exp %170 : vector<1x768xf32>
    %cst_55 = arith.constant 1.000000e+00 : f32
    %172 = vector.broadcast %cst_55 : f32 to vector<1x768xf32>
    %173 = arith.addf %172, %171 : vector<1x768xf32>
    %174 = arith.divf %172, %173 : vector<1x768xf32>
    %175 = vector.extract_strided_slice %174 {offsets = [0, 0], sizes = [1, 256], strides = [1, 1]} : vector<1x768xf32> to vector<1x256xf32>
    %176 = vector.extract_strided_slice %174 {offsets = [0, 256], sizes = [1, 256], strides = [1, 1]} : vector<1x768xf32> to vector<1x256xf32>
    %177 = vector.extract_strided_slice %174 {offsets = [0, 512], sizes = [1, 256], strides = [1, 1]} : vector<1x768xf32> to vector<1x256xf32>
    %178 = vector.extract_strided_slice %168 {offsets = [0, 768], sizes = [1, 256], strides = [1, 1]} : vector<1x1024xf32> to vector<1x256xf32>
    %179 = math.tanh %178 : vector<1x256xf32>
    %180 = arith.mulf %176, %139 : vector<1x256xf32>
    %181 = arith.mulf %175, %179 : vector<1x256xf32>
    %182 = arith.addf %180, %181 : vector<1x256xf32>
    %183 = math.tanh %182 : vector<1x256xf32>
    %184 = arith.mulf %177, %183 : vector<1x256xf32>
    %185 = tpu.concatenate %184, %161 in 1 : vector<1x256xf32>, vector<1x256xf32> -> vector<1x512xf32>
    %186 = arith.truncf %185 : vector<1x512xf32> to vector<1x512xbf16>
    %cst_56 = arith.constant dense<0.000000e+00> : vector<1x1024xf32>
    %187 = tpu.matmul %186, %29, %cst_56 {dimension_numbers = #tpu.dot_dimension_numbers<[1], [0], [0], [1], [0, 0, 1, 1], [], []>} : vector<1x512xbf16>, vector<512x1024xbf16>, vector<1x1024xf32> -> vector<1x1024xf32>
    %188 = arith.addf %187, %30 : vector<1x1024xf32>
    %189 = vector.extract_strided_slice %188 {offsets = [0, 0], sizes = [1, 768], strides = [1, 1]} : vector<1x1024xf32> to vector<1x768xf32>
    %190 = arith.negf %189 : vector<1x768xf32>
    %191 = math.exp %190 : vector<1x768xf32>
    %cst_57 = arith.constant 1.000000e+00 : f32
    %192 = vector.broadcast %cst_57 : f32 to vector<1x768xf32>
    %193 = arith.addf %192, %191 : vector<1x768xf32>
    %194 = arith.divf %192, %193 : vector<1x768xf32>
    %195 = vector.extract_strided_slice %194 {offsets = [0, 0], sizes = [1, 256], strides = [1, 1]} : vector<1x768xf32> to vector<1x256xf32>
    %196 = vector.extract_strided_slice %194 {offsets = [0, 256], sizes = [1, 256], strides = [1, 1]} : vector<1x768xf32> to vector<1x256xf32>
    %197 = vector.extract_strided_slice %194 {offsets = [0, 512], sizes = [1, 256], strides = [1, 1]} : vector<1x768xf32> to vector<1x256xf32>
    %198 = vector.extract_strided_slice %188 {offsets = [0, 768], sizes = [1, 256], strides = [1, 1]} : vector<1x1024xf32> to vector<1x256xf32>
    %199 = math.tanh %198 : vector<1x256xf32>
    %200 = arith.mulf %196, %159 : vector<1x256xf32>
    %201 = arith.mulf %195, %199 : vector<1x256xf32>
    %202 = arith.addf %200, %201 : vector<1x256xf32>
    %203 = math.tanh %202 : vector<1x256xf32>
    %204 = arith.mulf %197, %203 : vector<1x256xf32>
    %205 = arith.index_cast %c3_i32 : i32 to index
    %c0_58 = arith.constant 0 : index
    %206 = vector.load %arg12[%205, %c0_58] : memref<8x256xf32, #tpu.memory_space<vmem>>, vector<1x256xf32>
    tpu.vector_store %arg12[%205, %c0_58], %204 {strides = array<i32>} : memref<8x256xf32, #tpu.memory_space<vmem>>, vector<1x256xf32>,
    %c4_i32 = arith.constant 4 : i32
    %207 = arith.index_cast %c4_i32 : i32 to index
    %c0_59 = arith.constant 0 : index
    %208 = vector.load %arg15[%207, %c0_59] : memref<8x1024xf32, #tpu.memory_space<vmem>>, vector<1x1024xf32>
    %209 = arith.truncf %184 : vector<1x256xf32> to vector<1x256xbf16>
    %cst_60 = arith.constant dense<0.000000e+00> : vector<1x1024xf32>
    %210 = tpu.matmul %209, %28, %cst_60 {dimension_numbers = #tpu.dot_dimension_numbers<[1], [0], [0], [1], [0, 0, 1, 1], [], []>} : vector<1x256xbf16>, vector<256x1024xbf16>, vector<1x1024xf32> -> vector<1x1024xf32>
    %211 = arith.addf %208, %210 : vector<1x1024xf32>
    %212 = vector.extract_strided_slice %211 {offsets = [0, 0], sizes = [1, 768], strides = [1, 1]} : vector<1x1024xf32> to vector<1x768xf32>
    %213 = arith.negf %212 : vector<1x768xf32>
    %214 = math.exp %213 : vector<1x768xf32>
    %cst_61 = arith.constant 1.000000e+00 : f32
    %215 = vector.broadcast %cst_61 : f32 to vector<1x768xf32>
    %216 = arith.addf %215, %214 : vector<1x768xf32>
    %217 = arith.divf %215, %216 : vector<1x768xf32>
    %218 = vector.extract_strided_slice %217 {offsets = [0, 0], sizes = [1, 256], strides = [1, 1]} : vector<1x768xf32> to vector<1x256xf32>
    %219 = vector.extract_strided_slice %217 {offsets = [0, 256], sizes = [1, 256], strides = [1, 1]} : vector<1x768xf32> to vector<1x256xf32>
    %220 = vector.extract_strided_slice %217 {offsets = [0, 512], sizes = [1, 256], strides = [1, 1]} : vector<1x768xf32> to vector<1x256xf32>
    %221 = vector.extract_strided_slice %211 {offsets = [0, 768], sizes = [1, 256], strides = [1, 1]} : vector<1x1024xf32> to vector<1x256xf32>
    %222 = math.tanh %221 : vector<1x256xf32>
    %223 = arith.mulf %219, %182 : vector<1x256xf32>
    %224 = arith.mulf %218, %222 : vector<1x256xf32>
    %225 = arith.addf %223, %224 : vector<1x256xf32>
    %226 = math.tanh %225 : vector<1x256xf32>
    %227 = arith.mulf %220, %226 : vector<1x256xf32>
    %228 = tpu.concatenate %227, %204 in 1 : vector<1x256xf32>, vector<1x256xf32> -> vector<1x512xf32>
    %229 = arith.truncf %228 : vector<1x512xf32> to vector<1x512xbf16>
    %cst_62 = arith.constant dense<0.000000e+00> : vector<1x1024xf32>
    %230 = tpu.matmul %229, %29, %cst_62 {dimension_numbers = #tpu.dot_dimension_numbers<[1], [0], [0], [1], [0, 0, 1, 1], [], []>} : vector<1x512xbf16>, vector<512x1024xbf16>, vector<1x1024xf32> -> vector<1x1024xf32>
    %231 = arith.addf %230, %30 : vector<1x1024xf32>
    %232 = vector.extract_strided_slice %231 {offsets = [0, 0], sizes = [1, 768], strides = [1, 1]} : vector<1x1024xf32> to vector<1x768xf32>
    %233 = arith.negf %232 : vector<1x768xf32>
    %234 = math.exp %233 : vector<1x768xf32>
    %cst_63 = arith.constant 1.000000e+00 : f32
    %235 = vector.broadcast %cst_63 : f32 to vector<1x768xf32>
    %236 = arith.addf %235, %234 : vector<1x768xf32>
    %237 = arith.divf %235, %236 : vector<1x768xf32>
    %238 = vector.extract_strided_slice %237 {offsets = [0, 0], sizes = [1, 256], strides = [1, 1]} : vector<1x768xf32> to vector<1x256xf32>
    %239 = vector.extract_strided_slice %237 {offsets = [0, 256], sizes = [1, 256], strides = [1, 1]} : vector<1x768xf32> to vector<1x256xf32>
    %240 = vector.extract_strided_slice %237 {offsets = [0, 512], sizes = [1, 256], strides = [1, 1]} : vector<1x768xf32> to vector<1x256xf32>
    %241 = vector.extract_strided_slice %231 {offsets = [0, 768], sizes = [1, 256], strides = [1, 1]} : vector<1x1024xf32> to vector<1x256xf32>
    %242 = math.tanh %241 : vector<1x256xf32>
    %243 = arith.mulf %239, %202 : vector<1x256xf32>
    %244 = arith.mulf %238, %242 : vector<1x256xf32>
    %245 = arith.addf %243, %244 : vector<1x256xf32>
    %246 = math.tanh %245 : vector<1x256xf32>
    %247 = arith.mulf %240, %246 : vector<1x256xf32>
    %248 = arith.index_cast %c4_i32 : i32 to index
    %c0_64 = arith.constant 0 : index
    %249 = vector.load %arg12[%248, %c0_64] : memref<8x256xf32, #tpu.memory_space<vmem>>, vector<1x256xf32>
    tpu.vector_store %arg12[%248, %c0_64], %247 {strides = array<i32>} : memref<8x256xf32, #tpu.memory_space<vmem>>, vector<1x256xf32>,
    %c5_i32 = arith.constant 5 : i32
    %250 = arith.index_cast %c5_i32 : i32 to index
    %c0_65 = arith.constant 0 : index
    %251 = vector.load %arg15[%250, %c0_65] : memref<8x1024xf32, #tpu.memory_space<vmem>>, vector<1x1024xf32>
    %252 = arith.truncf %227 : vector<1x256xf32> to vector<1x256xbf16>
    %cst_66 = arith.constant dense<0.000000e+00> : vector<1x1024xf32>
    %253 = tpu.matmul %252, %28, %cst_66 {dimension_numbers = #tpu.dot_dimension_numbers<[1], [0], [0], [1], [0, 0, 1, 1], [], []>} : vector<1x256xbf16>, vector<256x1024xbf16>, vector<1x1024xf32> -> vector<1x1024xf32>
    %254 = arith.addf %251, %253 : vector<1x1024xf32>
    %255 = vector.extract_strided_slice %254 {offsets = [0, 0], sizes = [1, 768], strides = [1, 1]} : vector<1x1024xf32> to vector<1x768xf32>
    %256 = arith.negf %255 : vector<1x768xf32>
    %257 = math.exp %256 : vector<1x768xf32>
    %cst_67 = arith.constant 1.000000e+00 : f32
    %258 = vector.broadcast %cst_67 : f32 to vector<1x768xf32>
    %259 = arith.addf %258, %257 : vector<1x768xf32>
    %260 = arith.divf %258, %259 : vector<1x768xf32>
    %261 = vector.extract_strided_slice %260 {offsets = [0, 0], sizes = [1, 256], strides = [1, 1]} : vector<1x768xf32> to vector<1x256xf32>
    %262 = vector.extract_strided_slice %260 {offsets = [0, 256], sizes = [1, 256], strides = [1, 1]} : vector<1x768xf32> to vector<1x256xf32>
    %263 = vector.extract_strided_slice %260 {offsets = [0, 512], sizes = [1, 256], strides = [1, 1]} : vector<1x768xf32> to vector<1x256xf32>
    %264 = vector.extract_strided_slice %254 {offsets = [0, 768], sizes = [1, 256], strides = [1, 1]} : vector<1x1024xf32> to vector<1x256xf32>
    %265 = math.tanh %264 : vector<1x256xf32>
    %266 = arith.mulf %262, %225 : vector<1x256xf32>
    %267 = arith.mulf %261, %265 : vector<1x256xf32>
    %268 = arith.addf %266, %267 : vector<1x256xf32>
    %269 = math.tanh %268 : vector<1x256xf32>
    %270 = arith.mulf %263, %269 : vector<1x256xf32>
    %271 = tpu.concatenate %270, %247 in 1 : vector<1x256xf32>, vector<1x256xf32> -> vector<1x512xf32>
    %272 = arith.truncf %271 : vector<1x512xf32> to vector<1x512xbf16>
    %cst_68 = arith.constant dense<0.000000e+00> : vector<1x1024xf32>
    %273 = tpu.matmul %272, %29, %cst_68 {dimension_numbers = #tpu.dot_dimension_numbers<[1], [0], [0], [1], [0, 0, 1, 1], [], []>} : vector<1x512xbf16>, vector<512x1024xbf16>, vector<1x1024xf32> -> vector<1x1024xf32>
    %274 = arith.addf %273, %30 : vector<1x1024xf32>
    %275 = vector.extract_strided_slice %274 {offsets = [0, 0], sizes = [1, 768], strides = [1, 1]} : vector<1x1024xf32> to vector<1x768xf32>
    %276 = arith.negf %275 : vector<1x768xf32>
    %277 = math.exp %276 : vector<1x768xf32>
    %cst_69 = arith.constant 1.000000e+00 : f32
    %278 = vector.broadcast %cst_69 : f32 to vector<1x768xf32>
    %279 = arith.addf %278, %277 : vector<1x768xf32>
    %280 = arith.divf %278, %279 : vector<1x768xf32>
    %281 = vector.extract_strided_slice %280 {offsets = [0, 0], sizes = [1, 256], strides = [1, 1]} : vector<1x768xf32> to vector<1x256xf32>
    %282 = vector.extract_strided_slice %280 {offsets = [0, 256], sizes = [1, 256], strides = [1, 1]} : vector<1x768xf32> to vector<1x256xf32>
    %283 = vector.extract_strided_slice %280 {offsets = [0, 512], sizes = [1, 256], strides = [1, 1]} : vector<1x768xf32> to vector<1x256xf32>
    %284 = vector.extract_strided_slice %274 {offsets = [0, 768], sizes = [1, 256], strides = [1, 1]} : vector<1x1024xf32> to vector<1x256xf32>
    %285 = math.tanh %284 : vector<1x256xf32>
    %286 = arith.mulf %282, %245 : vector<1x256xf32>
    %287 = arith.mulf %281, %285 : vector<1x256xf32>
    %288 = arith.addf %286, %287 : vector<1x256xf32>
    %289 = math.tanh %288 : vector<1x256xf32>
    %290 = arith.mulf %283, %289 : vector<1x256xf32>
    %291 = arith.index_cast %c5_i32 : i32 to index
    %c0_70 = arith.constant 0 : index
    %292 = vector.load %arg12[%291, %c0_70] : memref<8x256xf32, #tpu.memory_space<vmem>>, vector<1x256xf32>
    tpu.vector_store %arg12[%291, %c0_70], %290 {strides = array<i32>} : memref<8x256xf32, #tpu.memory_space<vmem>>, vector<1x256xf32>,
    %c6_i32 = arith.constant 6 : i32
    %293 = arith.index_cast %c6_i32 : i32 to index
    %c0_71 = arith.constant 0 : index
    %294 = vector.load %arg15[%293, %c0_71] : memref<8x1024xf32, #tpu.memory_space<vmem>>, vector<1x1024xf32>
    %295 = arith.truncf %270 : vector<1x256xf32> to vector<1x256xbf16>
    %cst_72 = arith.constant dense<0.000000e+00> : vector<1x1024xf32>
    %296 = tpu.matmul %295, %28, %cst_72 {dimension_numbers = #tpu.dot_dimension_numbers<[1], [0], [0], [1], [0, 0, 1, 1], [], []>} : vector<1x256xbf16>, vector<256x1024xbf16>, vector<1x1024xf32> -> vector<1x1024xf32>
    %297 = arith.addf %294, %296 : vector<1x1024xf32>
    %298 = vector.extract_strided_slice %297 {offsets = [0, 0], sizes = [1, 768], strides = [1, 1]} : vector<1x1024xf32> to vector<1x768xf32>
    %299 = arith.negf %298 : vector<1x768xf32>
    %300 = math.exp %299 : vector<1x768xf32>
    %cst_73 = arith.constant 1.000000e+00 : f32
    %301 = vector.broadcast %cst_73 : f32 to vector<1x768xf32>
    %302 = arith.addf %301, %300 : vector<1x768xf32>
    %303 = arith.divf %301, %302 : vector<1x768xf32>
    %304 = vector.extract_strided_slice %303 {offsets = [0, 0], sizes = [1, 256], strides = [1, 1]} : vector<1x768xf32> to vector<1x256xf32>
    %305 = vector.extract_strided_slice %303 {offsets = [0, 256], sizes = [1, 256], strides = [1, 1]} : vector<1x768xf32> to vector<1x256xf32>
    %306 = vector.extract_strided_slice %303 {offsets = [0, 512], sizes = [1, 256], strides = [1, 1]} : vector<1x768xf32> to vector<1x256xf32>
    %307 = vector.extract_strided_slice %297 {offsets = [0, 768], sizes = [1, 256], strides = [1, 1]} : vector<1x1024xf32> to vector<1x256xf32>
    %308 = math.tanh %307 : vector<1x256xf32>
    %309 = arith.mulf %305, %268 : vector<1x256xf32>
    %310 = arith.mulf %304, %308 : vector<1x256xf32>
    %311 = arith.addf %309, %310 : vector<1x256xf32>
    %312 = math.tanh %311 : vector<1x256xf32>
    %313 = arith.mulf %306, %312 : vector<1x256xf32>
    %314 = tpu.concatenate %313, %290 in 1 : vector<1x256xf32>, vector<1x256xf32> -> vector<1x512xf32>
    %315 = arith.truncf %314 : vector<1x512xf32> to vector<1x512xbf16>
    %cst_74 = arith.constant dense<0.000000e+00> : vector<1x1024xf32>
    %316 = tpu.matmul %315, %29, %cst_74 {dimension_numbers = #tpu.dot_dimension_numbers<[1], [0], [0], [1], [0, 0, 1, 1], [], []>} : vector<1x512xbf16>, vector<512x1024xbf16>, vector<1x1024xf32> -> vector<1x1024xf32>
    %317 = arith.addf %316, %30 : vector<1x1024xf32>
    %318 = vector.extract_strided_slice %317 {offsets = [0, 0], sizes = [1, 768], strides = [1, 1]} : vector<1x1024xf32> to vector<1x768xf32>
    %319 = arith.negf %318 : vector<1x768xf32>
    %320 = math.exp %319 : vector<1x768xf32>
    %cst_75 = arith.constant 1.000000e+00 : f32
    %321 = vector.broadcast %cst_75 : f32 to vector<1x768xf32>
    %322 = arith.addf %321, %320 : vector<1x768xf32>
    %323 = arith.divf %321, %322 : vector<1x768xf32>
    %324 = vector.extract_strided_slice %323 {offsets = [0, 0], sizes = [1, 256], strides = [1, 1]} : vector<1x768xf32> to vector<1x256xf32>
    %325 = vector.extract_strided_slice %323 {offsets = [0, 256], sizes = [1, 256], strides = [1, 1]} : vector<1x768xf32> to vector<1x256xf32>
    %326 = vector.extract_strided_slice %323 {offsets = [0, 512], sizes = [1, 256], strides = [1, 1]} : vector<1x768xf32> to vector<1x256xf32>
    %327 = vector.extract_strided_slice %317 {offsets = [0, 768], sizes = [1, 256], strides = [1, 1]} : vector<1x1024xf32> to vector<1x256xf32>
    %328 = math.tanh %327 : vector<1x256xf32>
    %329 = arith.mulf %325, %288 : vector<1x256xf32>
    %330 = arith.mulf %324, %328 : vector<1x256xf32>
    %331 = arith.addf %329, %330 : vector<1x256xf32>
    %332 = math.tanh %331 : vector<1x256xf32>
    %333 = arith.mulf %326, %332 : vector<1x256xf32>
    %334 = arith.index_cast %c6_i32 : i32 to index
    %c0_76 = arith.constant 0 : index
    %335 = vector.load %arg12[%334, %c0_76] : memref<8x256xf32, #tpu.memory_space<vmem>>, vector<1x256xf32>
    tpu.vector_store %arg12[%334, %c0_76], %333 {strides = array<i32>} : memref<8x256xf32, #tpu.memory_space<vmem>>, vector<1x256xf32>,
    %c7_i32 = arith.constant 7 : i32
    %336 = arith.index_cast %c7_i32 : i32 to index
    %c0_77 = arith.constant 0 : index
    %337 = vector.load %arg15[%336, %c0_77] : memref<8x1024xf32, #tpu.memory_space<vmem>>, vector<1x1024xf32>
    %338 = arith.truncf %313 : vector<1x256xf32> to vector<1x256xbf16>
    %cst_78 = arith.constant dense<0.000000e+00> : vector<1x1024xf32>
    %339 = tpu.matmul %338, %28, %cst_78 {dimension_numbers = #tpu.dot_dimension_numbers<[1], [0], [0], [1], [0, 0, 1, 1], [], []>} : vector<1x256xbf16>, vector<256x1024xbf16>, vector<1x1024xf32> -> vector<1x1024xf32>
    %340 = arith.addf %337, %339 : vector<1x1024xf32>
    %341 = vector.extract_strided_slice %340 {offsets = [0, 0], sizes = [1, 768], strides = [1, 1]} : vector<1x1024xf32> to vector<1x768xf32>
    %342 = arith.negf %341 : vector<1x768xf32>
    %343 = math.exp %342 : vector<1x768xf32>
    %cst_79 = arith.constant 1.000000e+00 : f32
    %344 = vector.broadcast %cst_79 : f32 to vector<1x768xf32>
    %345 = arith.addf %344, %343 : vector<1x768xf32>
    %346 = arith.divf %344, %345 : vector<1x768xf32>
    %347 = vector.extract_strided_slice %346 {offsets = [0, 0], sizes = [1, 256], strides = [1, 1]} : vector<1x768xf32> to vector<1x256xf32>
    %348 = vector.extract_strided_slice %346 {offsets = [0, 256], sizes = [1, 256], strides = [1, 1]} : vector<1x768xf32> to vector<1x256xf32>
    %349 = vector.extract_strided_slice %346 {offsets = [0, 512], sizes = [1, 256], strides = [1, 1]} : vector<1x768xf32> to vector<1x256xf32>
    %350 = vector.extract_strided_slice %340 {offsets = [0, 768], sizes = [1, 256], strides = [1, 1]} : vector<1x1024xf32> to vector<1x256xf32>
    %351 = math.tanh %350 : vector<1x256xf32>
    %352 = arith.mulf %348, %311 : vector<1x256xf32>
    %353 = arith.mulf %347, %351 : vector<1x256xf32>
    %354 = arith.addf %352, %353 : vector<1x256xf32>
    %355 = math.tanh %354 : vector<1x256xf32>
    %356 = arith.mulf %349, %355 : vector<1x256xf32>
    %357 = tpu.concatenate %356, %333 in 1 : vector<1x256xf32>, vector<1x256xf32> -> vector<1x512xf32>
    %358 = arith.truncf %357 : vector<1x512xf32> to vector<1x512xbf16>
    %cst_80 = arith.constant dense<0.000000e+00> : vector<1x1024xf32>
    %359 = tpu.matmul %358, %29, %cst_80 {dimension_numbers = #tpu.dot_dimension_numbers<[1], [0], [0], [1], [0, 0, 1, 1], [], []>} : vector<1x512xbf16>, vector<512x1024xbf16>, vector<1x1024xf32> -> vector<1x1024xf32>
    %360 = arith.addf %359, %30 : vector<1x1024xf32>
    %361 = vector.extract_strided_slice %360 {offsets = [0, 0], sizes = [1, 768], strides = [1, 1]} : vector<1x1024xf32> to vector<1x768xf32>
    %362 = arith.negf %361 : vector<1x768xf32>
    %363 = math.exp %362 : vector<1x768xf32>
    %cst_81 = arith.constant 1.000000e+00 : f32
    %364 = vector.broadcast %cst_81 : f32 to vector<1x768xf32>
    %365 = arith.addf %364, %363 : vector<1x768xf32>
    %366 = arith.divf %364, %365 : vector<1x768xf32>
    %367 = vector.extract_strided_slice %366 {offsets = [0, 0], sizes = [1, 256], strides = [1, 1]} : vector<1x768xf32> to vector<1x256xf32>
    %368 = vector.extract_strided_slice %366 {offsets = [0, 256], sizes = [1, 256], strides = [1, 1]} : vector<1x768xf32> to vector<1x256xf32>
    %369 = vector.extract_strided_slice %366 {offsets = [0, 512], sizes = [1, 256], strides = [1, 1]} : vector<1x768xf32> to vector<1x256xf32>
    %370 = vector.extract_strided_slice %360 {offsets = [0, 768], sizes = [1, 256], strides = [1, 1]} : vector<1x1024xf32> to vector<1x256xf32>
    %371 = math.tanh %370 : vector<1x256xf32>
    %372 = arith.mulf %368, %331 : vector<1x256xf32>
    %373 = arith.mulf %367, %371 : vector<1x256xf32>
    %374 = arith.addf %372, %373 : vector<1x256xf32>
    %375 = math.tanh %374 : vector<1x256xf32>
    %376 = arith.mulf %369, %375 : vector<1x256xf32>
    %377 = arith.index_cast %c7_i32 : i32 to index
    %c0_82 = arith.constant 0 : index
    %378 = vector.load %arg12[%377, %c0_82] : memref<8x256xf32, #tpu.memory_space<vmem>>, vector<1x256xf32>
    tpu.vector_store %arg12[%377, %c0_82], %376 {strides = array<i32>} : memref<8x256xf32, #tpu.memory_space<vmem>>, vector<1x256xf32>,
    %c8_i32 = arith.constant 8 : i32
    %c0_83 = arith.constant 0 : index
    %c0_84 = arith.constant 0 : index
    %379 = vector.load %arg13[%c0_83, %c0_84] : memref<2x256xf32, #tpu.memory_space<vmem>>, vector<1x256xf32>
    tpu.vector_store %arg13[%c0_83, %c0_84], %356 {strides = array<i32>} : memref<2x256xf32, #tpu.memory_space<vmem>>, vector<1x256xf32>,
    %c1_85 = arith.constant 1 : index
    %c0_86 = arith.constant 0 : index
    %380 = vector.load %arg13[%c1_85, %c0_86] : memref<2x256xf32, #tpu.memory_space<vmem>>, vector<1x256xf32>
    tpu.vector_store %arg13[%c1_85, %c0_86], %376 {strides = array<i32>} : memref<2x256xf32, #tpu.memory_space<vmem>>, vector<1x256xf32>,
    %c0_87 = arith.constant 0 : index
    %c0_88 = arith.constant 0 : index
    %381 = vector.load %arg14[%c0_87, %c0_88] : memref<2x256xf32, #tpu.memory_space<vmem>>, vector<1x256xf32>
    tpu.vector_store %arg14[%c0_87, %c0_88], %354 {strides = array<i32>} : memref<2x256xf32, #tpu.memory_space<vmem>>, vector<1x256xf32>,
    %c1_89 = arith.constant 1 : index
    %c0_90 = arith.constant 0 : index
    %382 = vector.load %arg14[%c1_89, %c0_90] : memref<2x256xf32, #tpu.memory_space<vmem>>, vector<1x256xf32>
    tpu.vector_store %arg14[%c1_89, %c0_90], %374 {strides = array<i32>} : memref<2x256xf32, #tpu.memory_space<vmem>>, vector<1x256xf32>,
    return
  }
}

</mosaic_0001>

<llo_original>
// kernel: tpu_custom_call.1
$region0: #{tpu_custom_call.1}
  #allocation0 [shape = 'u32[]', space=smem, size = 0x4, offset = 0x4, fixed_abs, tag = 'smem constant byte address 0x4 - core index']
  #allocation1 [shape = 'u32[144,128]{1,0:T(1,128)}', space=vmem, size = 0x12000, scoped, tag = 'internal scratch']
  #allocation2 [shape = 'f32[8,1024]{1,0:T(8,128)}', space=vmem, size = 0x8000, scoped, tag = 'scratch operand']
  #allocation3 [shape = 'bf16[256,1024]{1,0:T(8,128)(2,1)}', space=vmem, size = 0x80000, scoped, tag = 'scratch operand']
  #allocation4 [shape = 'bf16[512,1024]{1,0:T(8,128)(2,1)}', space=vmem, size = 0x100000, scoped, tag = 'scratch operand']
  #allocation5 [shape = 's32[2]{0}', space=sflag, size = 0x8, scoped, tag = 'scratch operand']
  #allocation27 [shape = 's32[]', space=sflag, size = 0x4, offset = 0, fixed_abs, tag = 'sflag constant byte address 0x0 - dummy sync flag']
  #allocation28 [shape = 's32[]', space=sflag, size = 0x4, offset = 0, fixed_abs, tag = 'sflag constant byte address 0x0 - dummy sync flag']
  #allocation29 [shape = 'u32[]', space=smem, size = 0x4, offset = 0x44, fixed_abs, tag = 'smem constant byte address 0x44 - assertion arg 0']
  #allocation30 [shape = 'u32[]', space=smem, size = 0x4, offset = 0x48, fixed_abs, tag = 'smem constant byte address 0x48 - assertion arg 1']
  #allocation31 [shape = 's32[]', space=sflag, size = 0x4, offset = 0, fixed_abs, tag = 'sflag constant byte address 0x0 - dummy sync flag']
  #allocation32 [shape = 's32[]', space=sflag, size = 0x4, offset = 0, fixed_abs, tag = 'sflag constant byte address 0x0 - dummy sync flag']
  %s0 = inlined_call_operand.hbm [shape: f32[8,2688], index: 0, kind: input, shape index: {}]
  %s1 = inlined_call_operand.hbm [shape: f32[8,128], index: 1, kind: input, shape index: {}]
  %s2 = inlined_call_operand.hbm [shape: f32[2688,256], index: 2, kind: input, shape index: {}]
  %s3 = inlined_call_operand.hbm [shape: f32[1,256], index: 3, kind: input, shape index: {}]
  %s4 = inlined_call_operand.hbm [shape: bf16[256,1024], index: 4, kind: input, shape index: {}]
  %s5 = inlined_call_operand.hbm [shape: bf16[128,1024], index: 5, kind: input, shape index: {}]
  %s6 = inlined_call_operand.hbm [shape: f32[1,1024], index: 6, kind: input, shape index: {}]
  %s7 = inlined_call_operand.hbm [shape: f32[1,1024], index: 7, kind: input, shape index: {}]
  %s8 = inlined_call_operand.hbm [shape: f32[2,256], index: 8, kind: input, shape index: {}]
  %s9 = inlined_call_operand.hbm [shape: f32[2,256], index: 9, kind: input, shape index: {}]
  %s10 = inlined_call_operand.hbm [shape: bf16[256,1024], index: 10, kind: input, shape index: {}]
  %s11 = inlined_call_operand.hbm [shape: bf16[512,1024], index: 11, kind: input, shape index: {}]
  %s12 = inlined_call_operand.hbm [shape: f32[8,256], index: 12, kind: output, shape index: {0}]
  %s13 = inlined_call_operand.hbm [shape: f32[2,256], index: 13, kind: output, shape index: {1}]
  %s14 = inlined_call_operand.hbm [shape: f32[2,256], index: 14, kind: output, shape index: {2}]
  %15 = xla_tuple %s12, %s13, %s14
  %s16 = sld [smem:[#allocation0]]
  $region114: #{tpu_custom_call.1} parent=0
    _
  %s18 = ssub.s32 1, %s16
  %s19 = scalar_select 0, %s18, %s16
  $region1: #{tpu_custom_call.1} parent=0
    #allocation6 [shape = 'u8[86016]{0}', space=vmem, size = 0x15000, scoped, tag = 'input window, operand 0, single buffered']
    #allocation7 [shape = 's32[1]{0}', space=sflag, size = 0x4, scoped, tag = 'scoped memory for tpu_custom_call.1']
    #allocation8 [shape = 's32[1]{0}', space=sflag, size = 0x4, scoped, tag = 'scoped memory for tpu_custom_call.1']
    #allocation9 [shape = 'u8[4096]{0}', space=vmem, size = 0x1000, scoped, tag = 'input window, operand 1, single buffered']
    #allocation10 [shape = 's32[1]{0}', space=sflag, size = 0x4, scoped, tag = 'scoped memory for tpu_custom_call.1']
    #allocation11 [shape = 'u8[2752512]{0}', space=vmem, size = 0x2a0000, scoped, tag = 'input window, operand 2, single buffered']
    #allocation12 [shape = 'u8[1024]{0}', space=vmem, size = 0x400, scoped, tag = 'input window, operand 3, single buffered']
    #allocation13 [shape = 's32[1]{0}', space=sflag, size = 0x4, scoped, tag = 'scoped memory for tpu_custom_call.1']
    #allocation14 [shape = 'u8[524288]{0}', space=vmem, size = 0x80000, scoped, tag = 'input window, operand 4, single buffered']
    #allocation15 [shape = 'u8[262144]{0}', space=vmem, size = 0x40000, scoped, tag = 'input window, operand 5, single buffered']
    #allocation16 [shape = 's32[1]{0}', space=sflag, size = 0x4, scoped, tag = 'scoped memory for tpu_custom_call.1']
    #allocation17 [shape = 'u8[4096]{0}', space=vmem, size = 0x1000, scoped, tag = 'input window, operand 6, single buffered']
    #allocation18 [shape = 'u8[4096]{0}', space=vmem, size = 0x1000, scoped, tag = 'input window, operand 7, single buffered']
    #allocation19 [shape = 's32[1]{0}', space=sflag, size = 0x4, scoped, tag = 'scoped memory for tpu_custom_call.1']
    #allocation20 [shape = 'u8[2048]{0}', space=vmem, size = 0x800, scoped, tag = 'input window, operand 8, single buffered']
    #allocation21 [shape = 'u8[2048]{0}', space=vmem, size = 0x800, scoped, tag = 'input window, operand 9, single buffered']
    #allocation22 [shape = 's32[1]{0}', space=sflag, size = 0x4, scoped, tag = 'scoped memory for tpu_custom_call.1']
    #allocation23 [shape = 'u8[8192]{0}', space=vmem, size = 0x2000, scoped, tag = 'output window, operand 0, single buffered']
    #allocation24 [shape = 'u8[2048]{0}', space=vmem, size = 0x800, scoped, tag = 'output window, operand 1, single buffered']
    #allocation25 [shape = 's32[1]{0}', space=sflag, size = 0x4, scoped, tag = 'scoped memory for tpu_custom_call.1']
    #allocation26 [shape = 'u8[2048]{0}', space=vmem, size = 0x800, scoped, tag = 'output window, operand 2, single buffered']
    %20 = vsyncpa [#allocation7], 0
    %21 = vsyncpa [#allocation10], 0
    %22 = vsyncpa [#allocation13], 0
    %23 = vsyncpa [#allocation16], 0
    %24 = vsyncpa [#allocation19], 0
    %25 = vsyncpa [#allocation22], 0
    %26 = vsyncpa [#allocation8], 0
    %27 = vsyncpa [#allocation25], 0
    // Predicated region
    $region2: #{tpu_custom_call.1} parent=1 // pred_check
      _
    $region3: #{tpu_custom_call.1} parent=1 // pred_check_branch
      %29 = sbr.rel (0) target = $region5
    $region4: #{tpu_custom_call.1} parent=1 // pred_region
      %s31 = ssub.s32 2688, 2688
      %32 = vsyncadd [#allocation7], %s31
      %s34 = sshll.u32 [#allocation6], 4
      %s35 = int_to_ptr.vmem [resolvable:$true] %s34
      %37 = dma.hbm_to_vmem [thread:$0]  %s0, 2688, %s35, [#allocation7]
    $region5: #{tpu_custom_call.1} parent=1 // pred_fallthru
      _
    // Predicated region
    $region6: #{tpu_custom_call.1} parent=1 // pred_check
      _
    $region7: #{tpu_custom_call.1} parent=1 // pred_check_branch
      %39 = sbr.rel (0) target = $region9
    $region8: #{tpu_custom_call.1} parent=1 // pred_region
      %s41 = ssub.s32 128, 128
      %42 = vsyncadd [#allocation10], %s41
      %s44 = sshll.u32 [#allocation9], 4
      %s45 = int_to_ptr.vmem [resolvable:$true] %s44
      %47 = dma.hbm_to_vmem [thread:$0]  %s1, 128, %s45, [#allocation10]
    $region9: #{tpu_custom_call.1} parent=1 // pred_fallthru
      _
    // Predicated region
    $region10: #{tpu_custom_call.1} parent=1 // pred_check
      _
    $region11: #{tpu_custom_call.1} parent=1 // pred_check_branch
      %49 = sbr.rel (0) target = $region13
    $region12: #{tpu_custom_call.1} parent=1 // pred_region
      %s51 = ssub.s32 86016, 86016
      %52 = vsyncadd [#allocation10], %s51
      %s53 = sshll.u32 [#allocation11], 4
      %s54 = int_to_ptr.vmem [resolvable:$true] %s53
      %59 = dma.hbm_to_vmem [thread:$0]  %s2, 86016, %s54, [#allocation10], 256, 256, 16
    $region13: #{tpu_custom_call.1} parent=1 // pred_fallthru
      _
    // Predicated region
    $region14: #{tpu_custom_call.1} parent=1 // pred_check
      _
    $region15: #{tpu_custom_call.1} parent=1 // pred_check_branch
      %61 = sbr.rel (0) target = $region17
    $region16: #{tpu_custom_call.1} parent=1 // pred_region
      %s63 = ssub.s32 32, 32
      %64 = vsyncadd [#allocation13], %s63
      %s66 = sshll.u32 [#allocation12], 4
      %s67 = int_to_ptr.vmem [resolvable:$true] %s66
      %69 = dma.hbm_to_vmem [thread:$0]  %s3, 32, %s67, [#allocation13]
    $region17: #{tpu_custom_call.1} parent=1 // pred_fallthru
      _
    // Predicated region
    $region18: #{tpu_custom_call.1} parent=1 // pred_check
      _
    $region19: #{tpu_custom_call.1} parent=1 // pred_check_branch
      %71 = sbr.rel (0) target = $region21
    $region20: #{tpu_custom_call.1} parent=1 // pred_region
      %s73 = ssub.s32 16384, 16384
      %74 = vsyncadd [#allocation13], %s73
      %s75 = sshll.u32 [#allocation14], 4
      %s76 = int_to_ptr.vmem [resolvable:$true] %s75
      %81 = dma.hbm_to_vmem [thread:$0]  %s4, 16384, %s76, [#allocation13], 512, 512, 32
    $region21: #{tpu_custom_call.1} parent=1 // pred_fallthru
      _
    // Predicated region
    $region22: #{tpu_custom_call.1} parent=1 // pred_check
      _
    $region23: #{tpu_custom_call.1} parent=1 // pred_check_branch
      %83 = sbr.rel (0) target = $region25
    $region24: #{tpu_custom_call.1} parent=1 // pred_region
      %s85 = ssub.s32 8192, 8192
      %86 = vsyncadd [#allocation16], %s85
      %s87 = sshll.u32 [#allocation15], 4
      %s88 = int_to_ptr.vmem [resolvable:$true] %s87
      %93 = dma.hbm_to_vmem [thread:$0]  %s5, 8192, %s88, [#allocation16], 512, 512, 32
    $region25: #{tpu_custom_call.1} parent=1 // pred_fallthru
      _
    // Predicated region
    $region26: #{tpu_custom_call.1} parent=1 // pred_check
      _
    $region27: #{tpu_custom_call.1} parent=1 // pred_check_branch
      %95 = sbr.rel (0) target = $region29
    $region28: #{tpu_custom_call.1} parent=1 // pred_region
      %s97 = ssub.s32 128, 128
      %98 = vsyncadd [#allocation16], %s97
      %s100 = sshll.u32 [#allocation17], 4
      %s101 = int_to_ptr.vmem [resolvable:$true] %s100
      %103 = dma.hbm_to_vmem [thread:$0]  %s6, 128, %s101, [#allocation16]
    $region29: #{tpu_custom_call.1} parent=1 // pred_fallthru
      _
    // Predicated region
    $region30: #{tpu_custom_call.1} parent=1 // pred_check
      _
    $region31: #{tpu_custom_call.1} parent=1 // pred_check_branch
      %105 = sbr.rel (0) target = $region33
    $region32: #{tpu_custom_call.1} parent=1 // pred_region
      %s107 = ssub.s32 128, 128
      %108 = vsyncadd [#allocation19], %s107
      %s110 = sshll.u32 [#allocation18], 4
      %s111 = int_to_ptr.vmem [resolvable:$true] %s110
      %113 = dma.hbm_to_vmem [thread:$0]  %s7, 128, %s111, [#allocation19]
    $region33: #{tpu_custom_call.1} parent=1 // pred_fallthru
      _
    // Predicated region
    $region34: #{tpu_custom_call.1} parent=1 // pred_check
      _
    $region35: #{tpu_custom_call.1} parent=1 // pred_check_branch
      %115 = sbr.rel (0) target = $region37
    $region36: #{tpu_custom_call.1} parent=1 // pred_region
      %s117 = ssub.s32 64, 64
      %118 = vsyncadd [#allocation19], %s117
      %s120 = sshll.u32 [#allocation20], 4
      %s121 = int_to_ptr.vmem [resolvable:$true] %s120
      %123 = dma.hbm_to_vmem [thread:$0]  %s8, 64, %s121, [#allocation19]
    $region37: #{tpu_custom_call.1} parent=1 // pred_fallthru
      _
    // Predicated region
    $region38: #{tpu_custom_call.1} parent=1 // pred_check
      _
    $region39: #{tpu_custom_call.1} parent=1 // pred_check_branch
      %125 = sbr.rel (0) target = $region41
    $region40: #{tpu_custom_call.1} parent=1 // pred_region
      %s127 = ssub.s32 64, 64
      %128 = vsyncadd [#allocation22], %s127
      %s130 = sshll.u32 [#allocation21], 4
      %s131 = int_to_ptr.vmem [resolvable:$true] %s130
      %133 = dma.hbm_to_vmem [thread:$0]  %s9, 64, %s131, [#allocation22]
    $region41: #{tpu_custom_call.1} parent=1 // pred_fallthru
      _
    // Predicated region
    $region42: #{tpu_custom_call.1} parent=1 // pred_check
      _
    $region43: #{tpu_custom_call.1} parent=1 // pred_check_branch
      %135 = sbr.rel (0) target = $region45
    $region44: #{tpu_custom_call.1} parent=1 // pred_region
      %136 = dma.done [#allocation7], 2688
    $region45: #{tpu_custom_call.1} parent=1 // pred_fallthru
      _
    // Predicated region
    $region46: #{tpu_custom_call.1} parent=1 // pred_check
      _
    $region47: #{tpu_custom_call.1} parent=1 // pred_check_branch
      %138 = sbr.rel (0) target = $region49
    $region48: #{tpu_custom_call.1} parent=1 // pred_region
      %139 = dma.done [#allocation10], 128
    $region49: #{tpu_custom_call.1} parent=1 // pred_fallthru
      _
    // Predicated region
    $region50: #{tpu_custom_call.1} parent=1 // pred_check
      _
    $region51: #{tpu_custom_call.1} parent=1 // pred_check_branch
      %141 = sbr.rel (0) target = $region53
    $region52: #{tpu_custom_call.1} parent=1 // pred_region
      %142 = dma.done [#allocation10], 86016
    $region53: #{tpu_custom_call.1} parent=1 // pred_fallthru
      _
    // Predicated region
    $region54: #{tpu_custom_call.1} parent=1 // pred_check
      _
    $region55: #{tpu_custom_call.1} parent=1 // pred_check_branch
      %144 = sbr.rel (0) target = $region57
    $region56: #{tpu_custom_call.1} parent=1 // pred_region
      %145 = dma.done [#allocation13], 32
    $region57: #{tpu_custom_call.1} parent=1 // pred_fallthru
      _
    // Predicated region
    $region58: #{tpu_custom_call.1} parent=1 // pred_check
      _
    $region59: #{tpu_custom_call.1} parent=1 // pred_check_branch
      %147 = sbr.rel (0) target = $region61
    $region60: #{tpu_custom_call.1} parent=1 // pred_region
      %148 = dma.done [#allocation13], 16384
    $region61: #{tpu_custom_call.1} parent=1 // pred_fallthru
      _
    // Predicated region
    $region62: #{tpu_custom_call.1} parent=1 // pred_check
      _
    $region63: #{tpu_custom_call.1} parent=1 // pred_check_branch
      %150 = sbr.rel (0) target = $region65
    $region64: #{tpu_custom_call.1} parent=1 // pred_region
      %151 = dma.done [#allocation16], 8192
    $region65: #{tpu_custom_call.1} parent=1 // pred_fallthru
      _
    // Predicated region
    $region66: #{tpu_custom_call.1} parent=1 // pred_check
      _
    $region67: #{tpu_custom_call.1} parent=1 // pred_check_branch
      %153 = sbr.rel (0) target = $region69
    $region68: #{tpu_custom_call.1} parent=1 // pred_region
      %154 = dma.done [#allocation16], 128
    $region69: #{tpu_custom_call.1} parent=1 // pred_fallthru
      _
    // Predicated region
    $region70: #{tpu_custom_call.1} parent=1 // pred_check
      _
    $region71: #{tpu_custom_call.1} parent=1 // pred_check_branch
      %156 = sbr.rel (0) target = $region73
    $region72: #{tpu_custom_call.1} parent=1 // pred_region
      %157 = dma.done [#allocation19], 128
    $region73: #{tpu_custom_call.1} parent=1 // pred_fallthru
      _
    // Predicated region
    $region74: #{tpu_custom_call.1} parent=1 // pred_check
      _
    $region75: #{tpu_custom_call.1} parent=1 // pred_check_branch
      %159 = sbr.rel (0) target = $region77
    $region76: #{tpu_custom_call.1} parent=1 // pred_region
      %160 = dma.done [#allocation19], 64
    $region77: #{tpu_custom_call.1} parent=1 // pred_fallthru
      _
    // Predicated region
    $region78: #{tpu_custom_call.1} parent=1 // pred_check
      _
    $region79: #{tpu_custom_call.1} parent=1 // pred_check_branch
      %162 = sbr.rel (0) target = $region81
    $region80: #{tpu_custom_call.1} parent=1 // pred_region
      %163 = dma.done [#allocation22], 64
    $region81: #{tpu_custom_call.1} parent=1 // pred_fallthru
      _
    // Predicated region
    $region82: #{tpu_custom_call.1} parent=1 // pred_check
      _
    $region83: #{tpu_custom_call.1} parent=1 // pred_check_branch
      %166 = sbr.rel target = $region85
    $region84: #{tpu_custom_call.1} parent=1 // pred_region
      %167 = sst [smem:[#allocation29]] [#allocation28]
      %168 = sst [smem:[#allocation30]] [#allocation27]
    $region85: #{tpu_custom_call.1} parent=1 // pred_fallthru
      _
    %170 = shalt.err (0)
    %s172 = sshll.u32 [#allocation3], 4
    %s173 = int_to_ptr.vmem [resolvable:$true] %s172
    %175 = dma.hbm_to_vmem [thread:$0]  %s10, 16384, %s173, [#allocation5]
    %s176 = scalar_lea.sflag [#allocation5], 1
    // Predicated region
    $region86: #{tpu_custom_call.1} parent=1 // pred_check
      _
    $region87: #{tpu_custom_call.1} parent=1 // pred_check_branch
      %178 = sbr.rel target = $region89
    $region88: #{tpu_custom_call.1} parent=1 // pred_region
      %179 = sst [smem:[#allocation29]] [#allocation32]
      %180 = sst [smem:[#allocation30]] [#allocation31]
    $region89: #{tpu_custom_call.1} parent=1 // pred_fallthru
      _
    %182 = shalt.err (0)
    %s184 = sshll.u32 [#allocation4], 4
    %s185 = int_to_ptr.vmem [resolvable:$true] %s184
    %187 = dma.hbm_to_vmem [thread:$0]  %s11, 32768, %s185, %s176
    %v188 = vld [vmem:[#allocation6] sm:$0xff]
    %v189 = vld [vmem:[#allocation6 + $0x8] sm:$0xff]
    %v190 = vld [vmem:[#allocation6 + $0x10] sm:$0xff]
    %v191 = vld [vmem:[#allocation6 + $0x18] sm:$0xff]
    %v192 = vld [vmem:[#allocation6 + $0x20] sm:$0xff]
    %v193 = vld [vmem:[#allocation6 + $0x28] sm:$0xff]
    %v194 = vld [vmem:[#allocation6 + $0x30] sm:$0xff]
    %v195 = vld [vmem:[#allocation6 + $0x38] sm:$0xff]
    %v196 = vld [vmem:[#allocation6 + $0x40] sm:$0xff]
    %v197 = vld [vmem:[#allocation6 + $0x48] sm:$0xff]
    %v198 = vld [vmem:[#allocation6 + $0x50] sm:$0xff]
    %v199 = vld [vmem:[#allocation6 + $0x58] sm:$0xff]
    %v200 = vld [vmem:[#allocation6 + $0x60] sm:$0xff]
    %v201 = vld [vmem:[#allocation6 + $0x68] sm:$0xff]
    %v202 = vld [vmem:[#allocation6 + $0x70] sm:$0xff]
    %v203 = vld [vmem:[#allocation6 + $0x78] sm:$0xff]
    %v204 = vld [vmem:[#allocation6 + $0x80] sm:$0xff]
    %v205 = vld [vmem:[#allocation6 + $0x88] sm:$0xff]
    %v206 = vld [vmem:[#allocation6 + $0x90] sm:$0xff]
    %v207 = vld [vmem:[#allocation6 + $0x98] sm:$0xff]
    %v208 = vld [vmem:[#allocation6 + $0xa0] sm:$0xff]
    %v209 = vld [vmem:[#allocation11] sm:$0xff]
    %v210 = vld [vmem:[#allocation11 + $0x8] sm:$0xff]
    %v211 = vld [vmem:[#allocation11 + $0x10] sm:$0xff]
    %v212 = vld [vmem:[#allocation11 + $0x18] sm:$0xff]
    %v213 = vld [vmem:[#allocation11 + $0x20] sm:$0xff]
    %v214 = vld [vmem:[#allocation11 + $0x28] sm:$0xff]
    %v215 = vld [vmem:[#allocation11 + $0x30] sm:$0xff]
    %v216 = vld [vmem:[#allocation11 + $0x38] sm:$0xff]
    %v217 = vld [vmem:[#allocation11 + $0x40] sm:$0xff]
    %v218 = vld [vmem:[#allocation11 + $0x48] sm:$0xff]
    %v219 = vld [vmem:[#allocation11 + $0x50] sm:$0xff]
    %v220 = vld [vmem:[#allocation11 + $0x58] sm:$0xff]
    %v221 = vld [vmem:[#allocation11 + $0x60] sm:$0xff]
    %v222 = vld [vmem:[#allocation11 + $0x68] sm:$0xff]
    %v223 = vld [vmem:[#allocation11 + $0x70] sm:$0xff]
    %v224 = vld [vmem:[#allocation11 + $0x78] sm:$0xff]
    %v225 = vld [vmem:[#allocation11 + $0x80] sm:$0xff]
    %v226 = vld [vmem:[#allocation11 + $0x88] sm:$0xff]
    %v227 = vld [vmem:[#allocation11 + $0x90] sm:$0xff]
    %v228 = vld [vmem:[#allocation11 + $0x98] sm:$0xff]
    %v229 = vld [vmem:[#allocation11 + $0xa0] sm:$0xff]
    %v230 = vld [vmem:[#allocation11 + $0xa8] sm:$0xff]
    %v231 = vld [vmem:[#allocation11 + $0xb0] sm:$0xff]
    %v232 = vld [vmem:[#allocation11 + $0xb8] sm:$0xff]
    %v233 = vld [vmem:[#allocation11 + $0xc0] sm:$0xff]
    %v234 = vld [vmem:[#allocation11 + $0xc8] sm:$0xff]
    %v235 = vld [vmem:[#allocation11 + $0xd0] sm:$0xff]
    %v236 = vld [vmem:[#allocation11 + $0xd8] sm:$0xff]
    %v237 = vld [vmem:[#allocation11 + $0xe0] sm:$0xff]
    %v238 = vld [vmem:[#allocation11 + $0xe8] sm:$0xff]
    %v239 = vld [vmem:[#allocation11 + $0xf0] sm:$0xff]
    %v240 = vld [vmem:[#allocation11 + $0xf8] sm:$0xff]
    %v241 = vld [vmem:[#allocation11 + $0x100] sm:$0xff]
    %v242 = vld [vmem:[#allocation11 + $0x108] sm:$0xff]
    %v243 = vld [vmem:[#allocation11 + $0x110] sm:$0xff]
    %v244 = vld [vmem:[#allocation11 + $0x118] sm:$0xff]
    %v245 = vld [vmem:[#allocation11 + $0x120] sm:$0xff]
    %v246 = vld [vmem:[#allocation11 + $0x128] sm:$0xff]
    %v247 = vld [vmem:[#allocation11 + $0x130] sm:$0xff]
    %v248 = vld [vmem:[#allocation11 + $0x138] sm:$0xff]
    %v249 = vld [vmem:[#allocation11 + $0x140] sm:$0xff]
    %v250 = vld [vmem:[#allocation11 + $0x148] sm:$0xff]
    %v251 = vld [vmem:[#allocation11 + $0x150] sm:$0xff]
    %v252 = vld [vmem:[#allocation11 + $0x158] sm:$0xff]
    %v253 = vld [vmem:[#allocation11 + $0x160] sm:$0xff]
    %v254 = vld [vmem:[#allocation11 + $0x168] sm:$0xff]
    %v255 = vld [vmem:[#allocation11 + $0x170] sm:$0xff]
    %v256 = vld [vmem:[#allocation11 + $0x178] sm:$0xff]
    %v257 = vld [vmem:[#allocation11 + $0x180] sm:$0xff]
    %v258 = vld [vmem:[#allocation11 + $0x188] sm:$0xff]
    %v259 = vld [vmem:[#allocation11 + $0x190] sm:$0xff]
    %v260 = vld [vmem:[#allocation11 + $0x198] sm:$0xff]
    %v261 = vld [vmem:[#allocation11 + $0x1a0] sm:$0xff]
    %v262 = vld [vmem:[#allocation11 + $0x1a8] sm:$0xff]
    %v263 = vld [vmem:[#allocation11 + $0x1b0] sm:$0xff]
    %v264 = vld [vmem:[#allocation11 + $0x1b8] sm:$0xff]
    %v265 = vld [vmem:[#allocation11 + $0x1c0] sm:$0xff]
    %v266 = vld [vmem:[#allocation11 + $0x1c8] sm:$0xff]
    %v267 = vld [vmem:[#allocation11 + $0x1d0] sm:$0xff]
    %v268 = vld [vmem:[#allocation11 + $0x1d8] sm:$0xff]
    %v269 = vld [vmem:[#allocation11 + $0x1e0] sm:$0xff]
    %v270 = vld [vmem:[#allocation11 + $0x1e8] sm:$0xff]
    %v271 = vld [vmem:[#allocation11 + $0x1f0] sm:$0xff]
    %v272 = vld [vmem:[#allocation11 + $0x1f8] sm:$0xff]
    %v273 = vld [vmem:[#allocation11 + $0x200] sm:$0xff]
    %v274 = vld [vmem:[#allocation11 + $0x208] sm:$0xff]
    %v275 = vld [vmem:[#allocation11 + $0x210] sm:$0xff]
    %v276 = vld [vmem:[#allocation11 + $0x218] sm:$0xff]
    %v277 = vld [vmem:[#allocation11 + $0x220] sm:$0xff]
    %v278 = vld [vmem:[#allocation11 + $0x228] sm:$0xff]
    %v279 = vld [vmem:[#allocation11 + $0x230] sm:$0xff]
    %v280 = vld [vmem:[#allocation11 + $0x238] sm:$0xff]
    %v281 = vld [vmem:[#allocation11 + $0x240] sm:$0xff]
    %v282 = vld [vmem:[#allocation11 + $0x248] sm:$0xff]
    %v283 = vld [vmem:[#allocation11 + $0x250] sm:$0xff]
    %v284 = vld [vmem:[#allocation11 + $0x258] sm:$0xff]
    %v285 = vld [vmem:[#allocation11 + $0x260] sm:$0xff]
    %v286 = vld [vmem:[#allocation11 + $0x268] sm:$0xff]
    %v287 = vld [vmem:[#allocation11 + $0x270] sm:$0xff]
    %v288 = vld [vmem:[#allocation11 + $0x278] sm:$0xff]
    %v289 = vld [vmem:[#allocation11 + $0x280] sm:$0xff]
    %v290 = vld [vmem:[#allocation11 + $0x288] sm:$0xff]
    %v291 = vld [vmem:[#allocation11 + $0x290] sm:$0xff]
    %v292 = vld [vmem:[#allocation11 + $0x298] sm:$0xff]
    %v293 = vld [vmem:[#allocation11 + $0x2a0] sm:$0xff]
    %v294 = vld [vmem:[#allocation11 + $0x2a8] sm:$0xff]
    %v295 = vld [vmem:[#allocation11 + $0x2b0] sm:$0xff]
    %v296 = vld [vmem:[#allocation11 + $0x2b8] sm:$0xff]
    %v297 = vld [vmem:[#allocation11 + $0x2c0] sm:$0xff]
    %v298 = vld [vmem:[#allocation11 + $0x2c8] sm:$0xff]
    %v299 = vld [vmem:[#allocation11 + $0x2d0] sm:$0xff]
    %v300 = vld [vmem:[#allocation11 + $0x2d8] sm:$0xff]
    %v301 = vld [vmem:[#allocation11 + $0x2e0] sm:$0xff]
    %v302 = vld [vmem:[#allocation11 + $0x2e8] sm:$0xff]
    %v303 = vld [vmem:[#allocation11 + $0x2f0] sm:$0xff]
    %v304 = vld [vmem:[#allocation11 + $0x2f8] sm:$0xff]
    %v305 = vld [vmem:[#allocation11 + $0x300] sm:$0xff]
    %v306 = vld [vmem:[#allocation11 + $0x308] sm:$0xff]
    %v307 = vld [vmem:[#allocation11 + $0x310] sm:$0xff]
    %v308 = vld [vmem:[#allocation11 + $0x318] sm:$0xff]
    %v309 = vld [vmem:[#allocation11 + $0x320] sm:$0xff]
    %v310 = vld [vmem:[#allocation11 + $0x328] sm:$0xff]
    %v311 = vld [vmem:[#allocation11 + $0x330] sm:$0xff]
    %v312 = vld [vmem:[#allocation11 + $0x338] sm:$0xff]
    %v313 = vld [vmem:[#allocation11 + $0x340] sm:$0xff]
    %v314 = vld [vmem:[#allocation11 + $0x348] sm:$0xff]
    %v315 = vld [vmem:[#allocation11 + $0x350] sm:$0xff]
    %v316 = vld [vmem:[#allocation11 + $0x358] sm:$0xff]
    %v317 = vld [vmem:[#allocation11 + $0x360] sm:$0xff]
    %v318 = vld [vmem:[#allocation11 + $0x368] sm:$0xff]
    %v319 = vld [vmem:[#allocation11 + $0x370] sm:$0xff]
    %v320 = vld [vmem:[#allocation11 + $0x378] sm:$0xff]
    %v321 = vld [vmem:[#allocation11 + $0x380] sm:$0xff]
    %v322 = vld [vmem:[#allocation11 + $0x388] sm:$0xff]
    %v323 = vld [vmem:[#allocation11 + $0x390] sm:$0xff]
    %v324 = vld [vmem:[#allocation11 + $0x398] sm:$0xff]
    %v325 = vld [vmem:[#allocation11 + $0x3a0] sm:$0xff]
    %v326 = vld [vmem:[#allocation11 + $0x3a8] sm:$0xff]
    %v327 = vld [vmem:[#allocation11 + $0x3b0] sm:$0xff]
    %v328 = vld [vmem:[#allocation11 + $0x3b8] sm:$0xff]
    %v329 = vld [vmem:[#allocation11 + $0x3c0] sm:$0xff]
    %v330 = vld [vmem:[#allocation11 + $0x3c8] sm:$0xff]
    %v331 = vld [vmem:[#allocation11 + $0x3d0] sm:$0xff]
    %v332 = vld [vmem:[#allocation11 + $0x3d8] sm:$0xff]
    %v333 = vld [vmem:[#allocation11 + $0x3e0] sm:$0xff]
    %v334 = vld [vmem:[#allocation11 + $0x3e8] sm:$0xff]
    %v335 = vld [vmem:[#allocation11 + $0x3f0] sm:$0xff]
    %v336 = vld [vmem:[#allocation11 + $0x3f8] sm:$0xff]
    %v337 = vld [vmem:[#allocation11 + $0x400] sm:$0xff]
    %v338 = vld [vmem:[#allocation11 + $0x408] sm:$0xff]
    %v339 = vld [vmem:[#allocation11 + $0x410] sm:$0xff]
    %v340 = vld [vmem:[#allocation11 + $0x418] sm:$0xff]
    %v341 = vld [vmem:[#allocation11 + $0x420] sm:$0xff]
    %v342 = vld [vmem:[#allocation11 + $0x428] sm:$0xff]
    %v343 = vld [vmem:[#allocation11 + $0x430] sm:$0xff]
    %v344 = vld [vmem:[#allocation11 + $0x438] sm:$0xff]
    %v345 = vld [vmem:[#allocation11 + $0x440] sm:$0xff]
    %v346 = vld [vmem:[#allocation11 + $0x448] sm:$0xff]
    %v347 = vld [vmem:[#allocation11 + $0x450] sm:$0xff]
    %v348 = vld [vmem:[#allocation11 + $0x458] sm:$0xff]
    %v349 = vld [vmem:[#allocation11 + $0x460] sm:$0xff]
    %v350 = vld [vmem:[#allocation11 + $0x468] sm:$0xff]
    %v351 = vld [vmem:[#allocation11 + $0x470] sm:$0xff]
    %v352 = vld [vmem:[#allocation11 + $0x478] sm:$0xff]
    %v353 = vld [vmem:[#allocation11 + $0x480] sm:$0xff]
    %v354 = vld [vmem:[#allocation11 + $0x488] sm:$0xff]
    %v355 = vld [vmem:[#allocation11 + $0x490] sm:$0xff]
    %v356 = vld [vmem:[#allocation11 + $0x498] sm:$0xff]
    %v357 = vld [vmem:[#allocation11 + $0x4a0] sm:$0xff]
    %v358 = vld [vmem:[#allocation11 + $0x4a8] sm:$0xff]
    %v359 = vld [vmem:[#allocation11 + $0x4b0] sm:$0xff]
    %v360 = vld [vmem:[#allocation11 + $0x4b8] sm:$0xff]
    %v361 = vld [vmem:[#allocation11 + $0x4c0] sm:$0xff]
    %v362 = vld [vmem:[#allocation11 + $0x4c8] sm:$0xff]
    %v363 = vld [vmem:[#allocation11 + $0x4d0] sm:$0xff]
    %v364 = vld [vmem:[#allocation11 + $0x4d8] sm:$0xff]
    %v365 = vld [vmem:[#allocation11 + $0x4e0] sm:$0xff]
    %v366 = vld [vmem:[#allocation11 + $0x4e8] sm:$0xff]
    %v367 = vld [vmem:[#allocation11 + $0x4f0] sm:$0xff]
    %v368 = vld [vmem:[#allocation11 + $0x4f8] sm:$0xff]
    %v369 = vld [vmem:[#allocation11 + $0x500] sm:$0xff]
    %v370 = vld [vmem:[#allocation11 + $0x508] sm:$0xff]
    %v371 = vld [vmem:[#allocation11 + $0x510] sm:$0xff]
    %v372 = vld [vmem:[#allocation11 + $0x518] sm:$0xff]
    %v373 = vld [vmem:[#allocation11 + $0x520] sm:$0xff]
    %v374 = vld [vmem:[#allocation11 + $0x528] sm:$0xff]
    %v375 = vld [vmem:[#allocation11 + $0x530] sm:$0xff]
    %v376 = vld [vmem:[#allocation11 + $0x538] sm:$0xff]
    %v377 = vld [vmem:[#allocation11 + $0x540] sm:$0xff]
    %v378 = vld [vmem:[#allocation11 + $0x548] sm:$0xff]
    %v379 = vld [vmem:[#allocation11 + $0x550] sm:$0xff]
    %v380 = vld [vmem:[#allocation11 + $0x558] sm:$0xff]
    %v381 = vld [vmem:[#allocation11 + $0x560] sm:$0xff]
    %v382 = vld [vmem:[#allocation11 + $0x568] sm:$0xff]
    %v383 = vld [vmem:[#allocation11 + $0x570] sm:$0xff]
    %v384 = vld [vmem:[#allocation11 + $0x578] sm:$0xff]
    %v385 = vld [vmem:[#allocation11 + $0x580] sm:$0xff]
    %v386 = vld [vmem:[#allocation11 + $0x588] sm:$0xff]
    %v387 = vld [vmem:[#allocation11 + $0x590] sm:$0xff]
    %v388 = vld [vmem:[#allocation11 + $0x598] sm:$0xff]
    %v389 = vld [vmem:[#allocation11 + $0x5a0] sm:$0xff]
    %v390 = vld [vmem:[#allocation11 + $0x5a8] sm:$0xff]
    %v391 = vld [vmem:[#allocation11 + $0x5b0] sm:$0xff]
    %v392 = vld [vmem:[#allocation11 + $0x5b8] sm:$0xff]
    %v393 = vld [vmem:[#allocation11 + $0x5c0] sm:$0xff]
    %v394 = vld [vmem:[#allocation11 + $0x5c8] sm:$0xff]
    %v395 = vld [vmem:[#allocation11 + $0x5d0] sm:$0xff]
    %v396 = vld [vmem:[#allocation11 + $0x5d8] sm:$0xff]
    %v397 = vld [vmem:[#allocation11 + $0x5e0] sm:$0xff]
    %v398 = vld [vmem:[#allocation11 + $0x5e8] sm:$0xff]
    %v399 = vld [vmem:[#allocation11 + $0x5f0] sm:$0xff]
    %v400 = vld [vmem:[#allocation11 + $0x5f8] sm:$0xff]
    %v401 = vld [vmem:[#allocation11 + $0x600] sm:$0xff]
    %v402 = vld [vmem:[#allocation11 + $0x608] sm:$0xff]
    %v403 = vld [vmem:[#allocation11 + $0x610] sm:$0xff]
    %v404 = vld [vmem:[#allocation11 + $0x618] sm:$0xff]
    %v405 = vld [vmem:[#allocation11 + $0x620] sm:$0xff]
    %v406 = vld [vmem:[#allocation11 + $0x628] sm:$0xff]
    %v407 = vld [vmem:[#allocation11 + $0x630] sm:$0xff]
    %v408 = vld [vmem:[#allocation11 + $0x638] sm:$0xff]
    %v409 = vld [vmem:[#allocation11 + $0x640] sm:$0xff]
    %v410 = vld [vmem:[#allocation11 + $0x648] sm:$0xff]
    %v411 = vld [vmem:[#allocation11 + $0x650] sm:$0xff]
    %v412 = vld [vmem:[#allocation11 + $0x658] sm:$0xff]
    %v413 = vld [vmem:[#allocation11 + $0x660] sm:$0xff]
    %v414 = vld [vmem:[#allocation11 + $0x668] sm:$0xff]
    %v415 = vld [vmem:[#allocation11 + $0x670] sm:$0xff]
    %v416 = vld [vmem:[#allocation11 + $0x678] sm:$0xff]
    %v417 = vld [vmem:[#allocation11 + $0x680] sm:$0xff]
    %v418 = vld [vmem:[#allocation11 + $0x688] sm:$0xff]
    %v419 = vld [vmem:[#allocation11 + $0x690] sm:$0xff]
    %v420 = vld [vmem:[#allocation11 + $0x698] sm:$0xff]
    %v421 = vld [vmem:[#allocation11 + $0x6a0] sm:$0xff]
    %v422 = vld [vmem:[#allocation11 + $0x6a8] sm:$0xff]
    %v423 = vld [vmem:[#allocation11 + $0x6b0] sm:$0xff]
    %v424 = vld [vmem:[#allocation11 + $0x6b8] sm:$0xff]
    %v425 = vld [vmem:[#allocation11 + $0x6c0] sm:$0xff]
    %v426 = vld [vmem:[#allocation11 + $0x6c8] sm:$0xff]
    %v427 = vld [vmem:[#allocation11 + $0x6d0] sm:$0xff]
    %v428 = vld [vmem:[#allocation11 + $0x6d8] sm:$0xff]
    %v429 = vld [vmem:[#allocation11 + $0x6e0] sm:$0xff]
    %v430 = vld [vmem:[#allocation11 + $0x6e8] sm:$0xff]
    %v431 = vld [vmem:[#allocation11 + $0x6f0] sm:$0xff]
    %v432 = vld [vmem:[#allocation11 + $0x6f8] sm:$0xff]
    %v433 = vld [vmem:[#allocation11 + $0x700] sm:$0xff]
    %v434 = vld [vmem:[#allocation11 + $0x708] sm:$0xff]
    %v435 = vld [vmem:[#allocation11 + $0x710] sm:$0xff]
    %v436 = vld [vmem:[#allocation11 + $0x718] sm:$0xff]
    %v437 = vld [vmem:[#allocation11 + $0x720] sm:$0xff]
    %v438 = vld [vmem:[#allocation11 + $0x728] sm:$0xff]
    %v439 = vld [vmem:[#allocation11 + $0x730] sm:$0xff]
    %v440 = vld [vmem:[#allocation11 + $0x738] sm:$0xff]
    %v441 = vld [vmem:[#allocation11 + $0x740] sm:$0xff]
    %v442 = vld [vmem:[#allocation11 + $0x748] sm:$0xff]
    %v443 = vld [vmem:[#allocation11 + $0x750] sm:$0xff]
    %v444 = vld [vmem:[#allocation11 + $0x758] sm:$0xff]
    %v445 = vld [vmem:[#allocation11 + $0x760] sm:$0xff]
    %v446 = vld [vmem:[#allocation11 + $0x768] sm:$0xff]
    %v447 = vld [vmem:[#allocation11 + $0x770] sm:$0xff]
    %v448 = vld [vmem:[#allocation11 + $0x778] sm:$0xff]
    %v449 = vld [vmem:[#allocation11 + $0x780] sm:$0xff]
    %v450 = vld [vmem:[#allocation11 + $0x788] sm:$0xff]
    %v451 = vld [vmem:[#allocation11 + $0x790] sm:$0xff]
    %v452 = vld [vmem:[#allocation11 + $0x798] sm:$0xff]
    %v453 = vld [vmem:[#allocation11 + $0x7a0] sm:$0xff]
    %v454 = vld [vmem:[#allocation11 + $0x7a8] sm:$0xff]
    %v455 = vld [vmem:[#allocation11 + $0x7b0] sm:$0xff]
    %v456 = vld [vmem:[#allocation11 + $0x7b8] sm:$0xff]
    %v457 = vld [vmem:[#allocation11 + $0x7c0] sm:$0xff]
    %v458 = vld [vmem:[#allocation11 + $0x7c8] sm:$0xff]
    %v459 = vld [vmem:[#allocation11 + $0x7d0] sm:$0xff]
    %v460 = vld [vmem:[#allocation11 + $0x7d8] sm:$0xff]
    %v461 = vld [vmem:[#allocation11 + $0x7e0] sm:$0xff]
    %v462 = vld [vmem:[#allocation11 + $0x7e8] sm:$0xff]
    %v463 = vld [vmem:[#allocation11 + $0x7f0] sm:$0xff]
    %v464 = vld [vmem:[#allocation11 + $0x7f8] sm:$0xff]
    %v465 = vld [vmem:[#allocation11 + $0x800] sm:$0xff]
    %v466 = vld [vmem:[#allocation11 + $0x808] sm:$0xff]
    %v467 = vld [vmem:[#allocation11 + $0x810] sm:$0xff]
    %v468 = vld [vmem:[#allocation11 + $0x818] sm:$0xff]
    %v469 = vld [vmem:[#allocation11 + $0x820] sm:$0xff]
    %v470 = vld [vmem:[#allocation11 + $0x828] sm:$0xff]
    %v471 = vld [vmem:[#allocation11 + $0x830] sm:$0xff]
    %v472 = vld [vmem:[#allocation11 + $0x838] sm:$0xff]
    %v473 = vld [vmem:[#allocation11 + $0x840] sm:$0xff]
    %v474 = vld [vmem:[#allocation11 + $0x848] sm:$0xff]
    %v475 = vld [vmem:[#allocation11 + $0x850] sm:$0xff]
    %v476 = vld [vmem:[#allocation11 + $0x858] sm:$0xff]
    %v477 = vld [vmem:[#allocation11 + $0x860] sm:$0xff]
    %v478 = vld [vmem:[#allocation11 + $0x868] sm:$0xff]
    %v479 = vld [vmem:[#allocation11 + $0x870] sm:$0xff]
    %v480 = vld [vmem:[#allocation11 + $0x878] sm:$0xff]
    %v481 = vld [vmem:[#allocation11 + $0x880] sm:$0xff]
    %v482 = vld [vmem:[#allocation11 + $0x888] sm:$0xff]
    %v483 = vld [vmem:[#allocation11 + $0x890] sm:$0xff]
    %v484 = vld [vmem:[#allocation11 + $0x898] sm:$0xff]
    %v485 = vld [vmem:[#allocation11 + $0x8a0] sm:$0xff]
    %v486 = vld [vmem:[#allocation11 + $0x8a8] sm:$0xff]
    %v487 = vld [vmem:[#allocation11 + $0x8b0] sm:$0xff]
    %v488 = vld [vmem:[#allocation11 + $0x8b8] sm:$0xff]
    %v489 = vld [vmem:[#allocation11 + $0x8c0] sm:$0xff]
    %v490 = vld [vmem:[#allocation11 + $0x8c8] sm:$0xff]
    %v491 = vld [vmem:[#allocation11 + $0x8d0] sm:$0xff]
    %v492 = vld [vmem:[#allocation11 + $0x8d8] sm:$0xff]
    %v493 = vld [vmem:[#allocation11 + $0x8e0] sm:$0xff]
    %v494 = vld [vmem:[#allocation11 + $0x8e8] sm:$0xff]
    %v495 = vld [vmem:[#allocation11 + $0x8f0] sm:$0xff]
    %v496 = vld [vmem:[#allocation11 + $0x8f8] sm:$0xff]
    %v497 = vld [vmem:[#allocation11 + $0x900] sm:$0xff]
    %v498 = vld [vmem:[#allocation11 + $0x908] sm:$0xff]
    %v499 = vld [vmem:[#allocation11 + $0x910] sm:$0xff]
    %v500 = vld [vmem:[#allocation11 + $0x918] sm:$0xff]
    %v501 = vld [vmem:[#allocation11 + $0x920] sm:$0xff]
    %v502 = vld [vmem:[#allocation11 + $0x928] sm:$0xff]
    %v503 = vld [vmem:[#allocation11 + $0x930] sm:$0xff]
    %v504 = vld [vmem:[#allocation11 + $0x938] sm:$0xff]
    %v505 = vld [vmem:[#allocation11 + $0x940] sm:$0xff]
    %v506 = vld [vmem:[#allocation11 + $0x948] sm:$0xff]
    %v507 = vld [vmem:[#allocation11 + $0x950] sm:$0xff]
    %v508 = vld [vmem:[#allocation11 + $0x958] sm:$0xff]
    %v509 = vld [vmem:[#allocation11 + $0x960] sm:$0xff]
    %v510 = vld [vmem:[#allocation11 + $0x968] sm:$0xff]
    %v511 = vld [vmem:[#allocation11 + $0x970] sm:$0xff]
    %v512 = vld [vmem:[#allocation11 + $0x978] sm:$0xff]
    %v513 = vld [vmem:[#allocation11 + $0x980] sm:$0xff]
    %v514 = vld [vmem:[#allocation11 + $0x988] sm:$0xff]
    %v515 = vld [vmem:[#allocation11 + $0x990] sm:$0xff]
    %v516 = vld [vmem:[#allocation11 + $0x998] sm:$0xff]
    %v517 = vld [vmem:[#allocation11 + $0x9a0] sm:$0xff]
    %v518 = vld [vmem:[#allocation11 + $0x9a8] sm:$0xff]
    %v519 = vld [vmem:[#allocation11 + $0x9b0] sm:$0xff]
    %v520 = vld [vmem:[#allocation11 + $0x9b8] sm:$0xff]
    %v521 = vld [vmem:[#allocation11 + $0x9c0] sm:$0xff]
    %v522 = vld [vmem:[#allocation11 + $0x9c8] sm:$0xff]
    %v523 = vld [vmem:[#allocation11 + $0x9d0] sm:$0xff]
    %v524 = vld [vmem:[#allocation11 + $0x9d8] sm:$0xff]
    %v525 = vld [vmem:[#allocation11 + $0x9e0] sm:$0xff]
    %v526 = vld [vmem:[#allocation11 + $0x9e8] sm:$0xff]
    %v527 = vld [vmem:[#allocation11 + $0x9f0] sm:$0xff]
    %v528 = vld [vmem:[#allocation11 + $0x9f8] sm:$0xff]
    %v529 = vld [vmem:[#allocation11 + $0xa00] sm:$0xff]
    %v530 = vld [vmem:[#allocation11 + $0xa08] sm:$0xff]
    %v531 = vld [vmem:[#allocation11 + $0xa10] sm:$0xff]
    %v532 = vld [vmem:[#allocation11 + $0xa18] sm:$0xff]
    %v533 = vld [vmem:[#allocation11 + $0xa20] sm:$0xff]
    %v534 = vld [vmem:[#allocation11 + $0xa28] sm:$0xff]
    %v535 = vld [vmem:[#allocation11 + $0xa30] sm:$0xff]
    %v536 = vld [vmem:[#allocation11 + $0xa38] sm:$0xff]
    %v537 = vld [vmem:[#allocation11 + $0xa40] sm:$0xff]
    %v538 = vld [vmem:[#allocation11 + $0xa48] sm:$0xff]
    %v539 = vld [vmem:[#allocation11 + $0xa50] sm:$0xff]
    %v540 = vld [vmem:[#allocation11 + $0xa58] sm:$0xff]
    %v541 = vld [vmem:[#allocation11 + $0xa60] sm:$0xff]
    %v542 = vld [vmem:[#allocation11 + $0xa68] sm:$0xff]
    %v543 = vld [vmem:[#allocation11 + $0xa70] sm:$0xff]
    %v544 = vld [vmem:[#allocation11 + $0xa78] sm:$0xff]
    %v545 = vld [vmem:[#allocation11 + $0xa80] sm:$0xff]
    %v546 = vld [vmem:[#allocation11 + $0xa88] sm:$0xff]
    %v547 = vld [vmem:[#allocation11 + $0xa90] sm:$0xff]
    %v548 = vld [vmem:[#allocation11 + $0xa98] sm:$0xff]
    %v549 = vld [vmem:[#allocation11 + $0xaa0] sm:$0xff]
    %v550 = vld [vmem:[#allocation11 + $0xaa8] sm:$0xff]
    %v551 = vld [vmem:[#allocation11 + $0xab0] sm:$0xff]
    %v552 = vld [vmem:[#allocation11 + $0xab8] sm:$0xff]
    %v553 = vld [vmem:[#allocation11 + $0xac0] sm:$0xff]
    %v554 = vld [vmem:[#allocation11 + $0xac8] sm:$0xff]
    %v555 = vld [vmem:[#allocation11 + $0xad0] sm:$0xff]
    %v556 = vld [vmem:[#allocation11 + $0xad8] sm:$0xff]
    %v557 = vld [vmem:[#allocation11 + $0xae0] sm:$0xff]
    %v558 = vld [vmem:[#allocation11 + $0xae8] sm:$0xff]
    %v559 = vld [vmem:[#allocation11 + $0xaf0] sm:$0xff]
    %v560 = vld [vmem:[#allocation11 + $0xaf8] sm:$0xff]
    %v561 = vld [vmem:[#allocation11 + $0xb00] sm:$0xff]
    %v562 = vld [vmem:[#allocation11 + $0xb08] sm:$0xff]
    %v563 = vld [vmem:[#allocation11 + $0xb10] sm:$0xff]
    %v564 = vld [vmem:[#allocation11 + $0xb18] sm:$0xff]
    %v565 = vld [vmem:[#allocation11 + $0xb20] sm:$0xff]
    %v566 = vld [vmem:[#allocation11 + $0xb28] sm:$0xff]
    %v567 = vld [vmem:[#allocation11 + $0xb30] sm:$0xff]
    %v568 = vld [vmem:[#allocation11 + $0xb38] sm:$0xff]
    %v569 = vld [vmem:[#allocation11 + $0xb40] sm:$0xff]
    %v570 = vld [vmem:[#allocation11 + $0xb48] sm:$0xff]
    %v571 = vld [vmem:[#allocation11 + $0xb50] sm:$0xff]
    %v572 = vld [vmem:[#allocation11 + $0xb58] sm:$0xff]
    %v573 = vld [vmem:[#allocation11 + $0xb60] sm:$0xff]
    %v574 = vld [vmem:[#allocation11 + $0xb68] sm:$0xff]
    %v575 = vld [vmem:[#allocation11 + $0xb70] sm:$0xff]
    %v576 = vld [vmem:[#allocation11 + $0xb78] sm:$0xff]
    %v577 = vld [vmem:[#allocation11 + $0xb80] sm:$0xff]
    %v578 = vld [vmem:[#allocation11 + $0xb88] sm:$0xff]
    %v579 = vld [vmem:[#allocation11 + $0xb90] sm:$0xff]
    %v580 = vld [vmem:[#allocation11 + $0xb98] sm:$0xff]
    %v581 = vld [vmem:[#allocation11 + $0xba0] sm:$0xff]
    %v582 = vld [vmem:[#allocation11 + $0xba8] sm:$0xff]
    %v583 = vld [vmem:[#allocation11 + $0xbb0] sm:$0xff]
    %v584 = vld [vmem:[#allocation11 + $0xbb8] sm:$0xff]
    %v585 = vld [vmem:[#allocation11 + $0xbc0] sm:$0xff]
    %v586 = vld [vmem:[#allocation11 + $0xbc8] sm:$0xff]
    %v587 = vld [vmem:[#allocation11 + $0xbd0] sm:$0xff]
    %v588 = vld [vmem:[#allocation11 + $0xbd8] sm:$0xff]
    %v589 = vld [vmem:[#allocation11 + $0xbe0] sm:$0xff]
    %v590 = vld [vmem:[#allocation11 + $0xbe8] sm:$0xff]
    %v591 = vld [vmem:[#allocation11 + $0xbf0] sm:$0xff]
    %v592 = vld [vmem:[#allocation11 + $0xbf8] sm:$0xff]
    %v593 = vld [vmem:[#allocation11 + $0xc00] sm:$0xff]
    %v594 = vld [vmem:[#allocation11 + $0xc08] sm:$0xff]
    %v595 = vld [vmem:[#allocation11 + $0xc10] sm:$0xff]
    %v596 = vld [vmem:[#allocation11 + $0xc18] sm:$0xff]
    %v597 = vld [vmem:[#allocation11 + $0xc20] sm:$0xff]
    %v598 = vld [vmem:[#allocation11 + $0xc28] sm:$0xff]
    %v599 = vld [vmem:[#allocation11 + $0xc30] sm:$0xff]
    %v600 = vld [vmem:[#allocation11 + $0xc38] sm:$0xff]
    %v601 = vld [vmem:[#allocation11 + $0xc40] sm:$0xff]
    %v602 = vld [vmem:[#allocation11 + $0xc48] sm:$0xff]
    %v603 = vld [vmem:[#allocation11 + $0xc50] sm:$0xff]
    %v604 = vld [vmem:[#allocation11 + $0xc58] sm:$0xff]
    %v605 = vld [vmem:[#allocation11 + $0xc60] sm:$0xff]
    %v606 = vld [vmem:[#allocation11 + $0xc68] sm:$0xff]
    %v607 = vld [vmem:[#allocation11 + $0xc70] sm:$0xff]
    %v608 = vld [vmem:[#allocation11 + $0xc78] sm:$0xff]
    %v609 = vld [vmem:[#allocation11 + $0xc80] sm:$0xff]
    %v610 = vld [vmem:[#allocation11 + $0xc88] sm:$0xff]
    %v611 = vld [vmem:[#allocation11 + $0xc90] sm:$0xff]
    %v612 = vld [vmem:[#allocation11 + $0xc98] sm:$0xff]
    %v613 = vld [vmem:[#allocation11 + $0xca0] sm:$0xff]
    %v614 = vld [vmem:[#allocation11 + $0xca8] sm:$0xff]
    %v615 = vld [vmem:[#allocation11 + $0xcb0] sm:$0xff]
    %v616 = vld [vmem:[#allocation11 + $0xcb8] sm:$0xff]
    %v617 = vld [vmem:[#allocation11 + $0xcc0] sm:$0xff]
    %v618 = vld [vmem:[#allocation11 + $0xcc8] sm:$0xff]
    %v619 = vld [vmem:[#allocation11 + $0xcd0] sm:$0xff]
    %v620 = vld [vmem:[#allocation11 + $0xcd8] sm:$0xff]
    %v621 = vld [vmem:[#allocation11 + $0xce0] sm:$0xff]
    %v622 = vld [vmem:[#allocation11 + $0xce8] sm:$0xff]
    %v623 = vld [vmem:[#allocation11 + $0xcf0] sm:$0xff]
    %v624 = vld [vmem:[#allocation11 + $0xcf8] sm:$0xff]
    %v625 = vld [vmem:[#allocation11 + $0xd00] sm:$0xff]
    %v626 = vld [vmem:[#allocation11 + $0xd08] sm:$0xff]
    %v627 = vld [vmem:[#allocation11 + $0xd10] sm:$0xff]
    %v628 = vld [vmem:[#allocation11 + $0xd18] sm:$0xff]
    %v629 = vld [vmem:[#allocation11 + $0xd20] sm:$0xff]
    %v630 = vld [vmem:[#allocation11 + $0xd28] sm:$0xff]
    %v631 = vld [vmem:[#allocation11 + $0xd30] sm:$0xff]
    %v632 = vld [vmem:[#allocation11 + $0xd38] sm:$0xff]
    %v633 = vld [vmem:[#allocation11 + $0xd40] sm:$0xff]
    %v634 = vld [vmem:[#allocation11 + $0xd48] sm:$0xff]
    %v635 = vld [vmem:[#allocation11 + $0xd50] sm:$0xff]
    %v636 = vld [vmem:[#allocation11 + $0xd58] sm:$0xff]
    %v637 = vld [vmem:[#allocation11 + $0xd60] sm:$0xff]
    %v638 = vld [vmem:[#allocation11 + $0xd68] sm:$0xff]
    %v639 = vld [vmem:[#allocation11 + $0xd70] sm:$0xff]
    %v640 = vld [vmem:[#allocation11 + $0xd78] sm:$0xff]
    %v641 = vld [vmem:[#allocation11 + $0xd80] sm:$0xff]
    %v642 = vld [vmem:[#allocation11 + $0xd88] sm:$0xff]
    %v643 = vld [vmem:[#allocation11 + $0xd90] sm:$0xff]
    %v644 = vld [vmem:[#allocation11 + $0xd98] sm:$0xff]
    %v645 = vld [vmem:[#allocation11 + $0xda0] sm:$0xff]
    %v646 = vld [vmem:[#allocation11 + $0xda8] sm:$0xff]
    %v647 = vld [vmem:[#allocation11 + $0xdb0] sm:$0xff]
    %v648 = vld [vmem:[#allocation11 + $0xdb8] sm:$0xff]
    %v649 = vld [vmem:[#allocation11 + $0xdc0] sm:$0xff]
    %v650 = vld [vmem:[#allocation11 + $0xdc8] sm:$0xff]
    %v651 = vld [vmem:[#allocation11 + $0xdd0] sm:$0xff]
    %v652 = vld [vmem:[#allocation11 + $0xdd8] sm:$0xff]
    %v653 = vld [vmem:[#allocation11 + $0xde0] sm:$0xff]
    %v654 = vld [vmem:[#allocation11 + $0xde8] sm:$0xff]
    %v655 = vld [vmem:[#allocation11 + $0xdf0] sm:$0xff]
    %v656 = vld [vmem:[#allocation11 + $0xdf8] sm:$0xff]
    %v657 = vld [vmem:[#allocation11 + $0xe00] sm:$0xff]
    %v658 = vld [vmem:[#allocation11 + $0xe08] sm:$0xff]
    %v659 = vld [vmem:[#allocation11 + $0xe10] sm:$0xff]
    %v660 = vld [vmem:[#allocation11 + $0xe18] sm:$0xff]
    %v661 = vld [vmem:[#allocation11 + $0xe20] sm:$0xff]
    %v662 = vld [vmem:[#allocation11 + $0xe28] sm:$0xff]
    %v663 = vld [vmem:[#allocation11 + $0xe30] sm:$0xff]
    %v664 = vld [vmem:[#allocation11 + $0xe38] sm:$0xff]
    %v665 = vld [vmem:[#allocation11 + $0xe40] sm:$0xff]
    %v666 = vld [vmem:[#allocation11 + $0xe48] sm:$0xff]
    %v667 = vld [vmem:[#allocation11 + $0xe50] sm:$0xff]
    %v668 = vld [vmem:[#allocation11 + $0xe58] sm:$0xff]
    %v669 = vld [vmem:[#allocation11 + $0xe60] sm:$0xff]
    %v670 = vld [vmem:[#allocation11 + $0xe68] sm:$0xff]
    %v671 = vld [vmem:[#allocation11 + $0xe70] sm:$0xff]
    %v672 = vld [vmem:[#allocation11 + $0xe78] sm:$0xff]
    %v673 = vld [vmem:[#allocation11 + $0xe80] sm:$0xff]
    %v674 = vld [vmem:[#allocation11 + $0xe88] sm:$0xff]
    %v675 = vld [vmem:[#allocation11 + $0xe90] sm:$0xff]
    %v676 = vld [vmem:[#allocation11 + $0xe98] sm:$0xff]
    %v677 = vld [vmem:[#allocation11 + $0xea0] sm:$0xff]
    %v678 = vld [vmem:[#allocation11 + $0xea8] sm:$0xff]
    %v679 = vld [vmem:[#allocation11 + $0xeb0] sm:$0xff]
    %v680 = vld [vmem:[#allocation11 + $0xeb8] sm:$0xff]
    %v681 = vld [vmem:[#allocation11 + $0xec0] sm:$0xff]
    %v682 = vld [vmem:[#allocation11 + $0xec8] sm:$0xff]
    %v683 = vld [vmem:[#allocation11 + $0xed0] sm:$0xff]
    %v684 = vld [vmem:[#allocation11 + $0xed8] sm:$0xff]
    %v685 = vld [vmem:[#allocation11 + $0xee0] sm:$0xff]
    %v686 = vld [vmem:[#allocation11 + $0xee8] sm:$0xff]
    %v687 = vld [vmem:[#allocation11 + $0xef0] sm:$0xff]
    %v688 = vld [vmem:[#allocation11 + $0xef8] sm:$0xff]
    %v689 = vld [vmem:[#allocation11 + $0xf00] sm:$0xff]
    %v690 = vld [vmem:[#allocation11 + $0xf08] sm:$0xff]
    %v691 = vld [vmem:[#allocation11 + $0xf10] sm:$0xff]
    %v692 = vld [vmem:[#allocation11 + $0xf18] sm:$0xff]
    %v693 = vld [vmem:[#allocation11 + $0xf20] sm:$0xff]
    %v694 = vld [vmem:[#allocation11 + $0xf28] sm:$0xff]
    %v695 = vld [vmem:[#allocation11 + $0xf30] sm:$0xff]
    %v696 = vld [vmem:[#allocation11 + $0xf38] sm:$0xff]
    %v697 = vld [vmem:[#allocation11 + $0xf40] sm:$0xff]
    %v698 = vld [vmem:[#allocation11 + $0xf48] sm:$0xff]
    %v699 = vld [vmem:[#allocation11 + $0xf50] sm:$0xff]
    %v700 = vld [vmem:[#allocation11 + $0xf58] sm:$0xff]
    %v701 = vld [vmem:[#allocation11 + $0xf60] sm:$0xff]
    %v702 = vld [vmem:[#allocation11 + $0xf68] sm:$0xff]
    %v703 = vld [vmem:[#allocation11 + $0xf70] sm:$0xff]
    %v704 = vld [vmem:[#allocation11 + $0xf78] sm:$0xff]
    %v705 = vld [vmem:[#allocation11 + $0xf80] sm:$0xff]
    %v706 = vld [vmem:[#allocation11 + $0xf88] sm:$0xff]
    %v707 = vld [vmem:[#allocation11 + $0xf90] sm:$0xff]
    %v708 = vld [vmem:[#allocation11 + $0xf98] sm:$0xff]
    %v709 = vld [vmem:[#allocation11 + $0xfa0] sm:$0xff]
    %v710 = vld [vmem:[#allocation11 + $0xfa8] sm:$0xff]
    %v711 = vld [vmem:[#allocation11 + $0xfb0] sm:$0xff]
    %v712 = vld [vmem:[#allocation11 + $0xfb8] sm:$0xff]
    %v713 = vld [vmem:[#allocation11 + $0xfc0] sm:$0xff]
    %v714 = vld [vmem:[#allocation11 + $0xfc8] sm:$0xff]
    %v715 = vld [vmem:[#allocation11 + $0xfd0] sm:$0xff]
    %v716 = vld [vmem:[#allocation11 + $0xfd8] sm:$0xff]
    %v717 = vld [vmem:[#allocation11 + $0xfe0] sm:$0xff]
    %v718 = vld [vmem:[#allocation11 + $0xfe8] sm:$0xff]
    %v719 = vld [vmem:[#allocation11 + $0xff0] sm:$0xff]
    %v720 = vld [vmem:[#allocation11 + $0xff8] sm:$0xff]
    %v721 = vld [vmem:[#allocation11 + $0x1000] sm:$0xff]
    %v722 = vld [vmem:[#allocation11 + $0x1008] sm:$0xff]
    %v723 = vld [vmem:[#allocation11 + $0x1010] sm:$0xff]
    %v724 = vld [vmem:[#allocation11 + $0x1018] sm:$0xff]
    %v725 = vld [vmem:[#allocation11 + $0x1020] sm:$0xff]
    %v726 = vld [vmem:[#allocation11 + $0x1028] sm:$0xff]
    %v727 = vld [vmem:[#allocation11 + $0x1030] sm:$0xff]
    %v728 = vld [vmem:[#allocation11 + $0x1038] sm:$0xff]
    %v729 = vld [vmem:[#allocation11 + $0x1040] sm:$0xff]
    %v730 = vld [vmem:[#allocation11 + $0x1048] sm:$0xff]
    %v731 = vld [vmem:[#allocation11 + $0x1050] sm:$0xff]
    %v732 = vld [vmem:[#allocation11 + $0x1058] sm:$0xff]
    %v733 = vld [vmem:[#allocation11 + $0x1060] sm:$0xff]
    %v734 = vld [vmem:[#allocation11 + $0x1068] sm:$0xff]
    %v735 = vld [vmem:[#allocation11 + $0x1070] sm:$0xff]
    %v736 = vld [vmem:[#allocation11 + $0x1078] sm:$0xff]
    %v737 = vld [vmem:[#allocation11 + $0x1080] sm:$0xff]
    %v738 = vld [vmem:[#allocation11 + $0x1088] sm:$0xff]
    %v739 = vld [vmem:[#allocation11 + $0x1090] sm:$0xff]
    %v740 = vld [vmem:[#allocation11 + $0x1098] sm:$0xff]
    %v741 = vld [vmem:[#allocation11 + $0x10a0] sm:$0xff]
    %v742 = vld [vmem:[#allocation11 + $0x10a8] sm:$0xff]
    %v743 = vld [vmem:[#allocation11 + $0x10b0] sm:$0xff]
    %v744 = vld [vmem:[#allocation11 + $0x10b8] sm:$0xff]
    %v745 = vld [vmem:[#allocation11 + $0x10c0] sm:$0xff]
    %v746 = vld [vmem:[#allocation11 + $0x10c8] sm:$0xff]
    %v747 = vld [vmem:[#allocation11 + $0x10d0] sm:$0xff]
    %v748 = vld [vmem:[#allocation11 + $0x10d8] sm:$0xff]
    %v749 = vld [vmem:[#allocation11 + $0x10e0] sm:$0xff]
    %v750 = vld [vmem:[#allocation11 + $0x10e8] sm:$0xff]
    %v751 = vld [vmem:[#allocation11 + $0x10f0] sm:$0xff]
    %v752 = vld [vmem:[#allocation11 + $0x10f8] sm:$0xff]
    %v753 = vld [vmem:[#allocation11 + $0x1100] sm:$0xff]
    %v754 = vld [vmem:[#allocation11 + $0x1108] sm:$0xff]
    %v755 = vld [vmem:[#allocation11 + $0x1110] sm:$0xff]
    %v756 = vld [vmem:[#allocation11 + $0x1118] sm:$0xff]
    %v757 = vld [vmem:[#allocation11 + $0x1120] sm:$0xff]
    %v758 = vld [vmem:[#allocation11 + $0x1128] sm:$0xff]
    %v759 = vld [vmem:[#allocation11 + $0x1130] sm:$0xff]
    %v760 = vld [vmem:[#allocation11 + $0x1138] sm:$0xff]
    %v761 = vld [vmem:[#allocation11 + $0x1140] sm:$0xff]
    %v762 = vld [vmem:[#allocation11 + $0x1148] sm:$0xff]
    %v763 = vld [vmem:[#allocation11 + $0x1150] sm:$0xff]
    %v764 = vld [vmem:[#allocation11 + $0x1158] sm:$0xff]
    %v765 = vld [vmem:[#allocation11 + $0x1160] sm:$0xff]
    %v766 = vld [vmem:[#allocation11 + $0x1168] sm:$0xff]
    %v767 = vld [vmem:[#allocation11 + $0x1170] sm:$0xff]
    %v768 = vld [vmem:[#allocation11 + $0x1178] sm:$0xff]
    %v769 = vld [vmem:[#allocation11 + $0x1180] sm:$0xff]
    %v770 = vld [vmem:[#allocation11 + $0x1188] sm:$0xff]
    %v771 = vld [vmem:[#allocation11 + $0x1190] sm:$0xff]
    %v772 = vld [vmem:[#allocation11 + $0x1198] sm:$0xff]
    %v773 = vld [vmem:[#allocation11 + $0x11a0] sm:$0xff]
    %v774 = vld [vmem:[#allocation11 + $0x11a8] sm:$0xff]
    %v775 = vld [vmem:[#allocation11 + $0x11b0] sm:$0xff]
    %v776 = vld [vmem:[#allocation11 + $0x11b8] sm:$0xff]
    %v777 = vld [vmem:[#allocation11 + $0x11c0] sm:$0xff]
    %v778 = vld [vmem:[#allocation11 + $0x11c8] sm:$0xff]
    %v779 = vld [vmem:[#allocation11 + $0x11d0] sm:$0xff]
    %v780 = vld [vmem:[#allocation11 + $0x11d8] sm:$0xff]
    %v781 = vld [vmem:[#allocation11 + $0x11e0] sm:$0xff]
    %v782 = vld [vmem:[#allocation11 + $0x11e8] sm:$0xff]
    %v783 = vld [vmem:[#allocation11 + $0x11f0] sm:$0xff]
    %v784 = vld [vmem:[#allocation11 + $0x11f8] sm:$0xff]
    %v785 = vld [vmem:[#allocation11 + $0x1200] sm:$0xff]
    %v786 = vld [vmem:[#allocation11 + $0x1208] sm:$0xff]
    %v787 = vld [vmem:[#allocation11 + $0x1210] sm:$0xff]
    %v788 = vld [vmem:[#allocation11 + $0x1218] sm:$0xff]
    %v789 = vld [vmem:[#allocation11 + $0x1220] sm:$0xff]
    %v790 = vld [vmem:[#allocation11 + $0x1228] sm:$0xff]
    %v791 = vld [vmem:[#allocation11 + $0x1230] sm:$0xff]
    %v792 = vld [vmem:[#allocation11 + $0x1238] sm:$0xff]
    %v793 = vld [vmem:[#allocation11 + $0x1240] sm:$0xff]
    %v794 = vld [vmem:[#allocation11 + $0x1248] sm:$0xff]
    %v795 = vld [vmem:[#allocation11 + $0x1250] sm:$0xff]
    %v796 = vld [vmem:[#allocation11 + $0x1258] sm:$0xff]
    %v797 = vld [vmem:[#allocation11 + $0x1260] sm:$0xff]
    %v798 = vld [vmem:[#allocation11 + $0x1268] sm:$0xff]
    %v799 = vld [vmem:[#allocation11 + $0x1270] sm:$0xff]
    %v800 = vld [vmem:[#allocation11 + $0x1278] sm:$0xff]
    %v801 = vld [vmem:[#allocation11 + $0x1280] sm:$0xff]
    %v802 = vld [vmem:[#allocation11 + $0x1288] sm:$0xff]
    %v803 = vld [vmem:[#allocation11 + $0x1290] sm:$0xff]
    %v804 = vld [vmem:[#allocation11 + $0x1298] sm:$0xff]
    %v805 = vld [vmem:[#allocation11 + $0x12a0] sm:$0xff]
    %v806 = vld [vmem:[#allocation11 + $0x12a8] sm:$0xff]
    %v807 = vld [vmem:[#allocation11 + $0x12b0] sm:$0xff]
    %v808 = vld [vmem:[#allocation11 + $0x12b8] sm:$0xff]
    %v809 = vld [vmem:[#allocation11 + $0x12c0] sm:$0xff]
    %v810 = vld [vmem:[#allocation11 + $0x12c8] sm:$0xff]
    %v811 = vld [vmem:[#allocation11 + $0x12d0] sm:$0xff]
    %v812 = vld [vmem:[#allocation11 + $0x12d8] sm:$0xff]
    %v813 = vld [vmem:[#allocation11 + $0x12e0] sm:$0xff]
    %v814 = vld [vmem:[#allocation11 + $0x12e8] sm:$0xff]
    %v815 = vld [vmem:[#allocation11 + $0x12f0] sm:$0xff]
    %v816 = vld [vmem:[#allocation11 + $0x12f8] sm:$0xff]
    %v817 = vld [vmem:[#allocation11 + $0x1300] sm:$0xff]
    %v818 = vld [vmem:[#allocation11 + $0x1308] sm:$0xff]
    %v819 = vld [vmem:[#allocation11 + $0x1310] sm:$0xff]
    %v820 = vld [vmem:[#allocation11 + $0x1318] sm:$0xff]
    %v821 = vld [vmem:[#allocation11 + $0x1320] sm:$0xff]
    %v822 = vld [vmem:[#allocation11 + $0x1328] sm:$0xff]
    %v823 = vld [vmem:[#allocation11 + $0x1330] sm:$0xff]
    %v824 = vld [vmem:[#allocation11 + $0x1338] sm:$0xff]
    %v825 = vld [vmem:[#allocation11 + $0x1340] sm:$0xff]
    %v826 = vld [vmem:[#allocation11 + $0x1348] sm:$0xff]
    %v827 = vld [vmem:[#allocation11 + $0x1350] sm:$0xff]
    %v828 = vld [vmem:[#allocation11 + $0x1358] sm:$0xff]
    %v829 = vld [vmem:[#allocation11 + $0x1360] sm:$0xff]
    %v830 = vld [vmem:[#allocation11 + $0x1368] sm:$0xff]
    %v831 = vld [vmem:[#allocation11 + $0x1370] sm:$0xff]
    %v832 = vld [vmem:[#allocation11 + $0x1378] sm:$0xff]
    %v833 = vld [vmem:[#allocation11 + $0x1380] sm:$0xff]
    %v834 = vld [vmem:[#allocation11 + $0x1388] sm:$0xff]
    %v835 = vld [vmem:[#allocation11 + $0x1390] sm:$0xff]
    %v836 = vld [vmem:[#allocation11 + $0x1398] sm:$0xff]
    %v837 = vld [vmem:[#allocation11 + $0x13a0] sm:$0xff]
    %v838 = vld [vmem:[#allocation11 + $0x13a8] sm:$0xff]
    %v839 = vld [vmem:[#allocation11 + $0x13b0] sm:$0xff]
    %v840 = vld [vmem:[#allocation11 + $0x13b8] sm:$0xff]
    %v841 = vld [vmem:[#allocation11 + $0x13c0] sm:$0xff]
    %v842 = vld [vmem:[#allocation11 + $0x13c8] sm:$0xff]
    %v843 = vld [vmem:[#allocation11 + $0x13d0] sm:$0xff]
    %v844 = vld [vmem:[#allocation11 + $0x13d8] sm:$0xff]
    %v845 = vld [vmem:[#allocation11 + $0x13e0] sm:$0xff]
    %v846 = vld [vmem:[#allocation11 + $0x13e8] sm:$0xff]
    %v847 = vld [vmem:[#allocation11 + $0x13f0] sm:$0xff]
    %v848 = vld [vmem:[#allocation11 + $0x13f8] sm:$0xff]
    %v849 = vld [vmem:[#allocation11 + $0x1400] sm:$0xff]
    %v850 = vld [vmem:[#allocation11 + $0x1408] sm:$0xff]
    %v851 = vld [vmem:[#allocation11 + $0x1410] sm:$0xff]
    %v852 = vld [vmem:[#allocation11 + $0x1418] sm:$0xff]
    %v853 = vld [vmem:[#allocation11 + $0x1420] sm:$0xff]
    %v854 = vld [vmem:[#allocation11 + $0x1428] sm:$0xff]
    %v855 = vld [vmem:[#allocation11 + $0x1430] sm:$0xff]
    %v856 = vld [vmem:[#allocation11 + $0x1438] sm:$0xff]
    %v857 = vld [vmem:[#allocation11 + $0x1440] sm:$0xff]
    %v858 = vld [vmem:[#allocation11 + $0x1448] sm:$0xff]
    %v859 = vld [vmem:[#allocation11 + $0x1450] sm:$0xff]
    %v860 = vld [vmem:[#allocation11 + $0x1458] sm:$0xff]
    %v861 = vld [vmem:[#allocation11 + $0x1460] sm:$0xff]
    %v862 = vld [vmem:[#allocation11 + $0x1468] sm:$0xff]
    %v863 = vld [vmem:[#allocation11 + $0x1470] sm:$0xff]
    %v864 = vld [vmem:[#allocation11 + $0x1478] sm:$0xff]
    %v865 = vld [vmem:[#allocation11 + $0x1480] sm:$0xff]
    %v866 = vld [vmem:[#allocation11 + $0x1488] sm:$0xff]
    %v867 = vld [vmem:[#allocation11 + $0x1490] sm:$0xff]
    %v868 = vld [vmem:[#allocation11 + $0x1498] sm:$0xff]
    %v869 = vld [vmem:[#allocation11 + $0x14a0] sm:$0xff]
    %v870 = vld [vmem:[#allocation11 + $0x14a8] sm:$0xff]
    %v871 = vld [vmem:[#allocation11 + $0x14b0] sm:$0xff]
    %v872 = vld [vmem:[#allocation11 + $0x14b8] sm:$0xff]
    %v873 = vld [vmem:[#allocation11 + $0x14c0] sm:$0xff]
    %v874 = vld [vmem:[#allocation11 + $0x14c8] sm:$0xff]
    %v875 = vld [vmem:[#allocation11 + $0x14d0] sm:$0xff]
    %v876 = vld [vmem:[#allocation11 + $0x14d8] sm:$0xff]
    %v877 = vld [vmem:[#allocation11 + $0x14e0] sm:$0xff]
    %v878 = vld [vmem:[#allocation11 + $0x14e8] sm:$0xff]
    %v879 = vld [vmem:[#allocation11 + $0x14f0] sm:$0xff]
    %v880 = vld [vmem:[#allocation11 + $0x14f8] sm:$0xff]
    %v881 = vld [vmem:[#allocation12] sm:$0x3]
    %v883 = vlaneseq
    %v884 = vshrl.u32 %v883, 7
    %v885 = vsub.s32 0, %v884
    %v886 = vrot.slane %v881, %v885
    %v887 = vlaneseq
    %v888 = vshrl.u32 %v887, 7
    %v889 = vsub.s32 1, %v888
    %v890 = vrot.slane %v881, %v889
    %893 = vmatprep.subr.mxu0 %v240
    %894 = vmatpush1.msra.mxu0 %v239
    %895 = vmatprep.subr.mxu0 %v238
    %896 = vmatpush1.msra.mxu0 %v237
    %897 = vmatprep.subr.mxu0 %v236
    %898 = vmatpush1.msra.mxu0 %v235
    %899 = vmatprep.subr.mxu0 %v234
    %900 = vmatpush1.msra.mxu0 %v233
    %901 = vmatprep.subr.mxu0 %v232
    %902 = vmatpush1.msra.mxu0 %v231
    %903 = vmatprep.subr.mxu0 %v230
    %904 = vmatpush1.msra.mxu0 %v229
    %905 = vmatprep.subr.mxu0 %v228
    %906 = vmatpush1.msra.mxu0 %v227
    %907 = vmatprep.subr.mxu0 %v226
    %908 = vmatpush1.msra.mxu0 %v225
    %909 = vmatprep.subr.mxu0 %v224
    %910 = vmatpush1.msra.mxu0 %v223
    %911 = vmatprep.subr.mxu0 %v222
    %912 = vmatpush1.msra.mxu0 %v221
    %913 = vmatprep.subr.mxu0 %v220
    %914 = vmatpush1.msra.mxu0 %v219
    %915 = vmatprep.subr.mxu0 %v218
    %916 = vmatpush1.msra.mxu0 %v217
    %917 = vmatprep.subr.mxu0 %v216
    %918 = vmatpush1.msra.mxu0 %v215
    %919 = vmatprep.subr.mxu0 %v214
    %920 = vmatpush1.msra.mxu0 %v213
    %921 = vmatprep.subr.mxu0 %v212
    %922 = vmatpush1.msra.mxu0 %v211
    %923 = vmatprep.subr.mxu0 %v210
    %924 = vmatpush1.msra.mxu0 %v209
    %925 = vmatprep.subr.mxu0 %v272
    %926 = vmatpush2.msra.mxu0 %v271
    %927 = vmatprep.subr.mxu0 %v270
    %928 = vmatpush2.msra.mxu0 %v269
    %929 = vmatprep.subr.mxu0 %v268
    %930 = vmatpush2.msra.mxu0 %v267
    %931 = vmatprep.subr.mxu0 %v266
    %932 = vmatpush2.msra.mxu0 %v265
    %933 = vmatprep.subr.mxu0 %v264
    %934 = vmatpush2.msra.mxu0 %v263
    %935 = vmatprep.subr.mxu0 %v262
    %936 = vmatpush2.msra.mxu0 %v261
    %937 = vmatprep.subr.mxu0 %v260
    %938 = vmatpush2.msra.mxu0 %v259
    %939 = vmatprep.subr.mxu0 %v258
    %940 = vmatpush2.msra.mxu0 %v257
    %941 = vmatprep.subr.mxu0 %v256
    %942 = vmatpush2.msra.mxu0 %v255
    %943 = vmatprep.subr.mxu0 %v254
    %944 = vmatpush2.msra.mxu0 %v253
    %945 = vmatprep.subr.mxu0 %v252
    %946 = vmatpush2.msra.mxu0 %v251
    %947 = vmatprep.subr.mxu0 %v250
    %948 = vmatpush2.msra.mxu0 %v249
    %949 = vmatprep.subr.mxu0 %v248
    %950 = vmatpush2.msra.mxu0 %v247
    %951 = vmatprep.subr.mxu0 %v246
    %952 = vmatpush2.msra.mxu0 %v245
    %953 = vmatprep.subr.mxu0 %v244
    %954 = vmatpush2.msra.mxu0 %v243
    %955 = vmatprep.subr.mxu0 %v242
    %956 = vmatpush2.msra.mxu0 %v241
    %957 = vmatprep.mubr.f32.mxu0 %v189
    %958 = vmatmul.mubr.f32.gmra.mxu0 %v188
    %v959 = vpop.f32.mrf.mxu0
    %v960 = vadd.f32 %v886, %v959
    %v961 = vpop.f32.mrf.mxu0
    %v962 = vadd.f32 %v890, %v961
    %963 = vdwg.mxu0
    %964 = vmatprep.subr.mxu0 %v304
    %965 = vmatpush1.msra.mxu0 %v303
    %966 = vmatprep.subr.mxu0 %v302
    %967 = vmatpush1.msra.mxu0 %v301
    %968 = vmatprep.subr.mxu0 %v300
    %969 = vmatpush1.msra.mxu0 %v299
    %970 = vmatprep.subr.mxu0 %v298
    %971 = vmatpush1.msra.mxu0 %v297
    %972 = vmatprep.subr.mxu0 %v296
    %973 = vmatpush1.msra.mxu0 %v295
    %974 = vmatprep.subr.mxu0 %v294
    %975 = vmatpush1.msra.mxu0 %v293
    %976 = vmatprep.subr.mxu0 %v292
    %977 = vmatpush1.msra.mxu0 %v291
    %978 = vmatprep.subr.mxu0 %v290
    %979 = vmatpush1.msra.mxu0 %v289
    %980 = vmatprep.subr.mxu0 %v288
    %981 = vmatpush1.msra.mxu0 %v287
    %982 = vmatprep.subr.mxu0 %v286
    %983 = vmatpush1.msra.mxu0 %v285
    %984 = vmatprep.subr.mxu0 %v284
    %985 = vmatpush1.msra.mxu0 %v283
    %986 = vmatprep.subr.mxu0 %v282
    %987 = vmatpush1.msra.mxu0 %v281
    %988 = vmatprep.subr.mxu0 %v280
    %989 = vmatpush1.msra.mxu0 %v279
    %990 = vmatprep.subr.mxu0 %v278
    %991 = vmatpush1.msra.mxu0 %v277
    %992 = vmatprep.subr.mxu0 %v276
    %993 = vmatpush1.msra.mxu0 %v275
    %994 = vmatprep.subr.mxu0 %v274
    %995 = vmatpush1.msra.mxu0 %v273
    %996 = vmatprep.subr.mxu0 %v336
    %997 = vmatpush2.msra.mxu0 %v335
    %998 = vmatprep.subr.mxu0 %v334
    %999 = vmatpush2.msra.mxu0 %v333
    %1000 = vmatprep.subr.mxu0 %v332
    %1001 = vmatpush2.msra.mxu0 %v331
    %1002 = vmatprep.subr.mxu0 %v330
    %1003 = vmatpush2.msra.mxu0 %v329
    %1004 = vmatprep.subr.mxu0 %v328
    %1005 = vmatpush2.msra.mxu0 %v327
    %1006 = vmatprep.subr.mxu0 %v326
    %1007 = vmatpush2.msra.mxu0 %v325
    %1008 = vmatprep.subr.mxu0 %v324
    %1009 = vmatpush2.msra.mxu0 %v323
    %1010 = vmatprep.subr.mxu0 %v322
    %1011 = vmatpush2.msra.mxu0 %v321
    %1012 = vmatprep.subr.mxu0 %v320
    %1013 = vmatpush2.msra.mxu0 %v319
    %1014 = vmatprep.subr.mxu0 %v318
    %1015 = vmatpush2.msra.mxu0 %v317
    %1016 = vmatprep.subr.mxu0 %v316
    %1017 = vmatpush2.msra.mxu0 %v315
    %1018 = vmatprep.subr.mxu0 %v314
    %1019 = vmatpush2.msra.mxu0 %v313
    %1020 = vmatprep.subr.mxu0 %v312
    %1021 = vmatpush2.msra.mxu0 %v311
    %1022 = vmatprep.subr.mxu0 %v310
    %1023 = vmatpush2.msra.mxu0 %v309
    %1024 = vmatprep.subr.mxu0 %v308
    %1025 = vmatpush2.msra.mxu0 %v307
    %1026 = vmatprep.subr.mxu0 %v306
    %1027 = vmatpush2.msra.mxu0 %v305
    %1028 = vmatprep.mubr.f32.mxu0 %v191
    %1029 = vmatmul.mubr.f32.gmra.mxu0 %v190
    %v1030 = vpop.f32.mrf.mxu0
    %v1031 = vadd.f32 %v960, %v1030
    %v1032 = vpop.f32.mrf.mxu0
    %v1033 = vadd.f32 %v962, %v1032
    %1034 = vdwg.mxu0
    %1035 = vmatprep.subr.mxu0 %v368
    %1036 = vmatpush1.msra.mxu0 %v367
    %1037 = vmatprep.subr.mxu0 %v366
    %1038 = vmatpush1.msra.mxu0 %v365
    %1039 = vmatprep.subr.mxu0 %v364
    %1040 = vmatpush1.msra.mxu0 %v363
    %1041 = vmatprep.subr.mxu0 %v362
    %1042 = vmatpush1.msra.mxu0 %v361
    %1043 = vmatprep.subr.mxu0 %v360
    %1044 = vmatpush1.msra.mxu0 %v359
    %1045 = vmatprep.subr.mxu0 %v358
    %1046 = vmatpush1.msra.mxu0 %v357
    %1047 = vmatprep.subr.mxu0 %v356
    %1048 = vmatpush1.msra.mxu0 %v355
    %1049 = vmatprep.subr.mxu0 %v354
    %1050 = vmatpush1.msra.mxu0 %v353
    %1051 = vmatprep.subr.mxu0 %v352
    %1052 = vmatpush1.msra.mxu0 %v351
    %1053 = vmatprep.subr.mxu0 %v350
    %1054 = vmatpush1.msra.mxu0 %v349
    %1055 = vmatprep.subr.mxu0 %v348
    %1056 = vmatpush1.msra.mxu0 %v347
    %1057 = vmatprep.subr.mxu0 %v346
    %1058 = vmatpush1.msra.mxu0 %v345
    %1059 = vmatprep.subr.mxu0 %v344
    %1060 = vmatpush1.msra.mxu0 %v343
    %1061 = vmatprep.subr.mxu0 %v342
    %1062 = vmatpush1.msra.mxu0 %v341
    %1063 = vmatprep.subr.mxu0 %v340
    %1064 = vmatpush1.msra.mxu0 %v339
    %1065 = vmatprep.subr.mxu0 %v338
    %1066 = vmatpush1.msra.mxu0 %v337
    %1067 = vmatprep.subr.mxu0 %v400
    %1068 = vmatpush2.msra.mxu0 %v399
    %1069 = vmatprep.subr.mxu0 %v398
    %1070 = vmatpush2.msra.mxu0 %v397
    %1071 = vmatprep.subr.mxu0 %v396
    %1072 = vmatpush2.msra.mxu0 %v395
    %1073 = vmatprep.subr.mxu0 %v394
    %1074 = vmatpush2.msra.mxu0 %v393
    %1075 = vmatprep.subr.mxu0 %v392
    %1076 = vmatpush2.msra.mxu0 %v391
    %1077 = vmatprep.subr.mxu0 %v390
    %1078 = vmatpush2.msra.mxu0 %v389
    %1079 = vmatprep.subr.mxu0 %v388
    %1080 = vmatpush2.msra.mxu0 %v387
    %1081 = vmatprep.subr.mxu0 %v386
    %1082 = vmatpush2.msra.mxu0 %v385
    %1083 = vmatprep.subr.mxu0 %v384
    %1084 = vmatpush2.msra.mxu0 %v383
    %1085 = vmatprep.subr.mxu0 %v382
    %1086 = vmatpush2.msra.mxu0 %v381
    %1087 = vmatprep.subr.mxu0 %v380
    %1088 = vmatpush2.msra.mxu0 %v379
    %1089 = vmatprep.subr.mxu0 %v378
    %1090 = vmatpush2.msra.mxu0 %v377
    %1091 = vmatprep.subr.mxu0 %v376
    %1092 = vmatpush2.msra.mxu0 %v375
    %1093 = vmatprep.subr.mxu0 %v374
    %1094 = vmatpush2.msra.mxu0 %v373
    %1095 = vmatprep.subr.mxu0 %v372
    %1096 = vmatpush2.msra.mxu0 %v371
    %1097 = vmatprep.subr.mxu0 %v370
    %1098 = vmatpush2.msra.mxu0 %v369
    %1099 = vmatprep.mubr.f32.mxu0 %v193
    %1100 = vmatmul.mubr.f32.gmra.mxu0 %v192
    %v1101 = vpop.f32.mrf.mxu0
    %v1102 = vadd.f32 %v1031, %v1101
    %v1103 = vpop.f32.mrf.mxu0
    %v1104 = vadd.f32 %v1033, %v1103
    %1105 = vdwg.mxu0
    %1106 = vmatprep.subr.mxu0 %v432
    %1107 = vmatpush1.msra.mxu0 %v431
    %1108 = vmatprep.subr.mxu0 %v430
    %1109 = vmatpush1.msra.mxu0 %v429
    %1110 = vmatprep.subr.mxu0 %v428
    %1111 = vmatpush1.msra.mxu0 %v427
    %1112 = vmatprep.subr.mxu0 %v426
    %1113 = vmatpush1.msra.mxu0 %v425
    %1114 = vmatprep.subr.mxu0 %v424
    %1115 = vmatpush1.msra.mxu0 %v423
    %1116 = vmatprep.subr.mxu0 %v422
    %1117 = vmatpush1.msra.mxu0 %v421
    %1118 = vmatprep.subr.mxu0 %v420
    %1119 = vmatpush1.msra.mxu0 %v419
    %1120 = vmatprep.subr.mxu0 %v418
    %1121 = vmatpush1.msra.mxu0 %v417
    %1122 = vmatprep.subr.mxu0 %v416
    %1123 = vmatpush1.msra.mxu0 %v415
    %1124 = vmatprep.subr.mxu0 %v414
    %1125 = vmatpush1.msra.mxu0 %v413
    %1126 = vmatprep.subr.mxu0 %v412
    %1127 = vmatpush1.msra.mxu0 %v411
    %1128 = vmatprep.subr.mxu0 %v410
    %1129 = vmatpush1.msra.mxu0 %v409
    %1130 = vmatprep.subr.mxu0 %v408
    %1131 = vmatpush1.msra.mxu0 %v407
    %1132 = vmatprep.subr.mxu0 %v406
    %1133 = vmatpush1.msra.mxu0 %v405
    %1134 = vmatprep.subr.mxu0 %v404
    %1135 = vmatpush1.msra.mxu0 %v403
    %1136 = vmatprep.subr.mxu0 %v402
    %1137 = vmatpush1.msra.mxu0 %v401
    %1138 = vmatprep.subr.mxu0 %v464
    %1139 = vmatpush2.msra.mxu0 %v463
    %1140 = vmatprep.subr.mxu0 %v462
    %1141 = vmatpush2.msra.mxu0 %v461
    %1142 = vmatprep.subr.mxu0 %v460
    %1143 = vmatpush2.msra.mxu0 %v459
    %1144 = vmatprep.subr.mxu0 %v458
    %1145 = vmatpush2.msra.mxu0 %v457
    %1146 = vmatprep.subr.mxu0 %v456
    %1147 = vmatpush2.msra.mxu0 %v455
    %1148 = vmatprep.subr.mxu0 %v454
    %1149 = vmatpush2.msra.mxu0 %v453
    %1150 = vmatprep.subr.mxu0 %v452
    %1151 = vmatpush2.msra.mxu0 %v451
    %1152 = vmatprep.subr.mxu0 %v450
    %1153 = vmatpush2.msra.mxu0 %v449
    %1154 = vmatprep.subr.mxu0 %v448
    %1155 = vmatpush2.msra.mxu0 %v447
    %1156 = vmatprep.subr.mxu0 %v446
    %1157 = vmatpush2.msra.mxu0 %v445
    %1158 = vmatprep.subr.mxu0 %v444
    %1159 = vmatpush2.msra.mxu0 %v443
    %1160 = vmatprep.subr.mxu0 %v442
    %1161 = vmatpush2.msra.mxu0 %v441
    %1162 = vmatprep.subr.mxu0 %v440
    %1163 = vmatpush2.msra.mxu0 %v439
    %1164 = vmatprep.subr.mxu0 %v438
    %1165 = vmatpush2.msra.mxu0 %v437
    %1166 = vmatprep.subr.mxu0 %v436
    %1167 = vmatpush2.msra.mxu0 %v435
    %1168 = vmatprep.subr.mxu0 %v434
    %1169 = vmatpush2.msra.mxu0 %v433
    %1170 = vmatprep.mubr.f32.mxu0 %v195
    %1171 = vmatmul.mubr.f32.gmra.mxu0 %v194
    %v1172 = vpop.f32.mrf.mxu0
    %v1173 = vadd.f32 %v1102, %v1172
    %v1174 = vpop.f32.mrf.mxu0
    %v1175 = vadd.f32 %v1104, %v1174
    %1176 = vdwg.mxu0
    %1177 = vmatprep.subr.mxu0 %v496
    %1178 = vmatpush1.msra.mxu0 %v495
    %1179 = vmatprep.subr.mxu0 %v494
    %1180 = vmatpush1.msra.mxu0 %v493
    %1181 = vmatprep.subr.mxu0 %v492
    %1182 = vmatpush1.msra.mxu0 %v491
    %1183 = vmatprep.subr.mxu0 %v490
    %1184 = vmatpush1.msra.mxu0 %v489
    %1185 = vmatprep.subr.mxu0 %v488
    %1186 = vmatpush1.msra.mxu0 %v487
    %1187 = vmatprep.subr.mxu0 %v486
    %1188 = vmatpush1.msra.mxu0 %v485
    %1189 = vmatprep.subr.mxu0 %v484
    %1190 = vmatpush1.msra.mxu0 %v483
    %1191 = vmatprep.subr.mxu0 %v482
    %1192 = vmatpush1.msra.mxu0 %v481
    %1193 = vmatprep.subr.mxu0 %v480
    %1194 = vmatpush1.msra.mxu0 %v479
    %1195 = vmatprep.subr.mxu0 %v478
    %1196 = vmatpush1.msra.mxu0 %v477
    %1197 = vmatprep.subr.mxu0 %v476
    %1198 = vmatpush1.msra.mxu0 %v475
    %1199 = vmatprep.subr.mxu0 %v474
    %1200 = vmatpush1.msra.mxu0 %v473
    %1201 = vmatprep.subr.mxu0 %v472
    %1202 = vmatpush1.msra.mxu0 %v471
    %1203 = vmatprep.subr.mxu0 %v470
    %1204 = vmatpush1.msra.mxu0 %v469
    %1205 = vmatprep.subr.mxu0 %v468
    %1206 = vmatpush1.msra.mxu0 %v467
    %1207 = vmatprep.subr.mxu0 %v466
    %1208 = vmatpush1.msra.mxu0 %v465
    %1209 = vmatprep.subr.mxu0 %v528
    %1210 = vmatpush2.msra.mxu0 %v527
    %1211 = vmatprep.subr.mxu0 %v526
    %1212 = vmatpush2.msra.mxu0 %v525
    %1213 = vmatprep.subr.mxu0 %v524
    %1214 = vmatpush2.msra.mxu0 %v523
    %1215 = vmatprep.subr.mxu0 %v522
    %1216 = vmatpush2.msra.mxu0 %v521
    %1217 = vmatprep.subr.mxu0 %v520
    %1218 = vmatpush2.msra.mxu0 %v519
    %1219 = vmatprep.subr.mxu0 %v518
    %1220 = vmatpush2.msra.mxu0 %v517
    %1221 = vmatprep.subr.mxu0 %v516
    %1222 = vmatpush2.msra.mxu0 %v515
    %1223 = vmatprep.subr.mxu0 %v514
    %1224 = vmatpush2.msra.mxu0 %v513
    %1225 = vmatprep.subr.mxu0 %v512
    %1226 = vmatpush2.msra.mxu0 %v511
    %1227 = vmatprep.subr.mxu0 %v510
    %1228 = vmatpush2.msra.mxu0 %v509
    %1229 = vmatprep.subr.mxu0 %v508
    %1230 = vmatpush2.msra.mxu0 %v507
    %1231 = vmatprep.subr.mxu0 %v506
    %1232 = vmatpush2.msra.mxu0 %v505
    %1233 = vmatprep.subr.mxu0 %v504
    %1234 = vmatpush2.msra.mxu0 %v503
    %1235 = vmatprep.subr.mxu0 %v502
    %1236 = vmatpush2.msra.mxu0 %v501
    %1237 = vmatprep.subr.mxu0 %v500
    %1238 = vmatpush2.msra.mxu0 %v499
    %1239 = vmatprep.subr.mxu0 %v498
    %1240 = vmatpush2.msra.mxu0 %v497
    %1241 = vmatprep.mubr.f32.mxu0 %v197
    %1242 = vmatmul.mubr.f32.gmra.mxu0 %v196
    %v1243 = vpop.f32.mrf.mxu0
    %v1244 = vadd.f32 %v1173, %v1243
    %v1245 = vpop.f32.mrf.mxu0
    %v1246 = vadd.f32 %v1175, %v1245
    %1247 = vdwg.mxu0
    %1248 = vmatprep.subr.mxu0 %v560
    %1249 = vmatpush1.msra.mxu0 %v559
    %1250 = vmatprep.subr.mxu0 %v558
    %1251 = vmatpush1.msra.mxu0 %v557
    %1252 = vmatprep.subr.mxu0 %v556
    %1253 = vmatpush1.msra.mxu0 %v555
    %1254 = vmatprep.subr.mxu0 %v554
    %1255 = vmatpush1.msra.mxu0 %v553
    %1256 = vmatprep.subr.mxu0 %v552
    %1257 = vmatpush1.msra.mxu0 %v551
    %1258 = vmatprep.subr.mxu0 %v550
    %1259 = vmatpush1.msra.mxu0 %v549
    %1260 = vmatprep.subr.mxu0 %v548
    %1261 = vmatpush1.msra.mxu0 %v547
    %1262 = vmatprep.subr.mxu0 %v546
    %1263 = vmatpush1.msra.mxu0 %v545
    %1264 = vmatprep.subr.mxu0 %v544
    %1265 = vmatpush1.msra.mxu0 %v543
    %1266 = vmatprep.subr.mxu0 %v542
    %1267 = vmatpush1.msra.mxu0 %v541
    %1268 = vmatprep.subr.mxu0 %v540
    %1269 = vmatpush1.msra.mxu0 %v539
    %1270 = vmatprep.subr.mxu0 %v538
    %1271 = vmatpush1.msra.mxu0 %v537
    %1272 = vmatprep.subr.mxu0 %v536
    %1273 = vmatpush1.msra.mxu0 %v535
    %1274 = vmatprep.subr.mxu0 %v534
    %1275 = vmatpush1.msra.mxu0 %v533
    %1276 = vmatprep.subr.mxu0 %v532
    %1277 = vmatpush1.msra.mxu0 %v531
    %1278 = vmatprep.subr.mxu0 %v530
    %1279 = vmatpush1.msra.mxu0 %v529
    %1280 = vmatprep.subr.mxu0 %v592
    %1281 = vmatpush2.msra.mxu0 %v591
    %1282 = vmatprep.subr.mxu0 %v590
    %1283 = vmatpush2.msra.mxu0 %v589
    %1284 = vmatprep.subr.mxu0 %v588
    %1285 = vmatpush2.msra.mxu0 %v587
    %1286 = vmatprep.subr.mxu0 %v586
    %1287 = vmatpush2.msra.mxu0 %v585
    %1288 = vmatprep.subr.mxu0 %v584
    %1289 = vmatpush2.msra.mxu0 %v583
    %1290 = vmatprep.subr.mxu0 %v582
    %1291 = vmatpush2.msra.mxu0 %v581
    %1292 = vmatprep.subr.mxu0 %v580
    %1293 = vmatpush2.msra.mxu0 %v579
    %1294 = vmatprep.subr.mxu0 %v578
    %1295 = vmatpush2.msra.mxu0 %v577
    %1296 = vmatprep.subr.mxu0 %v576
    %1297 = vmatpush2.msra.mxu0 %v575
    %1298 = vmatprep.subr.mxu0 %v574
    %1299 = vmatpush2.msra.mxu0 %v573
    %1300 = vmatprep.subr.mxu0 %v572
    %1301 = vmatpush2.msra.mxu0 %v571
    %1302 = vmatprep.subr.mxu0 %v570
    %1303 = vmatpush2.msra.mxu0 %v569
    %1304 = vmatprep.subr.mxu0 %v568
    %1305 = vmatpush2.msra.mxu0 %v567
    %1306 = vmatprep.subr.mxu0 %v566
    %1307 = vmatpush2.msra.mxu0 %v565
    %1308 = vmatprep.subr.mxu0 %v564
    %1309 = vmatpush2.msra.mxu0 %v563
    %1310 = vmatprep.subr.mxu0 %v562
    %1311 = vmatpush2.msra.mxu0 %v561
    %1312 = vmatprep.mubr.f32.mxu0 %v199
    %1313 = vmatmul.mubr.f32.gmra.mxu0 %v198
    %v1314 = vpop.f32.mrf.mxu0
    %v1315 = vadd.f32 %v1244, %v1314
    %v1316 = vpop.f32.mrf.mxu0
    %v1317 = vadd.f32 %v1246, %v1316
    %1318 = vdwg.mxu0
    %1319 = vmatprep.subr.mxu0 %v624
    %1320 = vmatpush1.msra.mxu0 %v623
    %1321 = vmatprep.subr.mxu0 %v622
    %1322 = vmatpush1.msra.mxu0 %v621
    %1323 = vmatprep.subr.mxu0 %v620
    %1324 = vmatpush1.msra.mxu0 %v619
    %1325 = vmatprep.subr.mxu0 %v618
    %1326 = vmatpush1.msra.mxu0 %v617
    %1327 = vmatprep.subr.mxu0 %v616
    %1328 = vmatpush1.msra.mxu0 %v615
    %1329 = vmatprep.subr.mxu0 %v614
    %1330 = vmatpush1.msra.mxu0 %v613
    %1331 = vmatprep.subr.mxu0 %v612
    %1332 = vmatpush1.msra.mxu0 %v611
    %1333 = vmatprep.subr.mxu0 %v610
    %1334 = vmatpush1.msra.mxu0 %v609
    %1335 = vmatprep.subr.mxu0 %v608
    %1336 = vmatpush1.msra.mxu0 %v607
    %1337 = vmatprep.subr.mxu0 %v606
    %1338 = vmatpush1.msra.mxu0 %v605
    %1339 = vmatprep.subr.mxu0 %v604
    %1340 = vmatpush1.msra.mxu0 %v603
    %1341 = vmatprep.subr.mxu0 %v602
    %1342 = vmatpush1.msra.mxu0 %v601
    %1343 = vmatprep.subr.mxu0 %v600
    %1344 = vmatpush1.msra.mxu0 %v599
    %1345 = vmatprep.subr.mxu0 %v598
    %1346 = vmatpush1.msra.mxu0 %v597
    %1347 = vmatprep.subr.mxu0 %v596
    %1348 = vmatpush1.msra.mxu0 %v595
    %1349 = vmatprep.subr.mxu0 %v594
    %1350 = vmatpush1.msra.mxu0 %v593
    %1351 = vmatprep.subr.mxu0 %v656
    %1352 = vmatpush2.msra.mxu0 %v655
    %1353 = vmatprep.subr.mxu0 %v654
    %1354 = vmatpush2.msra.mxu0 %v653
    %1355 = vmatprep.subr.mxu0 %v652
    %1356 = vmatpush2.msra.mxu0 %v651
    %1357 = vmatprep.subr.mxu0 %v650
    %1358 = vmatpush2.msra.mxu0 %v649
    %1359 = vmatprep.subr.mxu0 %v648
    %1360 = vmatpush2.msra.mxu0 %v647
    %1361 = vmatprep.subr.mxu0 %v646
    %1362 = vmatpush2.msra.mxu0 %v645
    %1363 = vmatprep.subr.mxu0 %v644
    %1364 = vmatpush2.msra.mxu0 %v643
    %1365 = vmatprep.subr.mxu0 %v642
    %1366 = vmatpush2.msra.mxu0 %v641
    %1367 = vmatprep.subr.mxu0 %v640
    %1368 = vmatpush2.msra.mxu0 %v639
    %1369 = vmatprep.subr.mxu0 %v638
    %1370 = vmatpush2.msra.mxu0 %v637
    %1371 = vmatprep.subr.mxu0 %v636
    %1372 = vmatpush2.msra.mxu0 %v635
    %1373 = vmatprep.subr.mxu0 %v634
    %1374 = vmatpush2.msra.mxu0 %v633
    %1375 = vmatprep.subr.mxu0 %v632
    %1376 = vmatpush2.msra.mxu0 %v631
    %1377 = vmatprep.subr.mxu0 %v630
    %1378 = vmatpush2.msra.mxu0 %v629
    %1379 = vmatprep.subr.mxu0 %v628
    %1380 = vmatpush2.msra.mxu0 %v627
    %1381 = vmatprep.subr.mxu0 %v626
    %1382 = vmatpush2.msra.mxu0 %v625
    %1383 = vmatprep.mubr.f32.mxu0 %v201
    %1384 = vmatmul.mubr.f32.gmra.mxu0 %v200
    %v1385 = vpop.f32.mrf.mxu0
    %v1386 = vadd.f32 %v1315, %v1385
    %v1387 = vpop.f32.mrf.mxu0
    %v1388 = vadd.f32 %v1317, %v1387
    %1389 = vdwg.mxu0
    %1390 = vmatprep.subr.mxu0 %v688
    %1391 = vmatpush1.msra.mxu0 %v687
    %1392 = vmatprep.subr.mxu0 %v686
    %1393 = vmatpush1.msra.mxu0 %v685
    %1394 = vmatprep.subr.mxu0 %v684
    %1395 = vmatpush1.msra.mxu0 %v683
    %1396 = vmatprep.subr.mxu0 %v682
    %1397 = vmatpush1.msra.mxu0 %v681
    %1398 = vmatprep.subr.mxu0 %v680
    %1399 = vmatpush1.msra.mxu0 %v679
    %1400 = vmatprep.subr.mxu0 %v678
    %1401 = vmatpush1.msra.mxu0 %v677
    %1402 = vmatprep.subr.mxu0 %v676
    %1403 = vmatpush1.msra.mxu0 %v675
    %1404 = vmatprep.subr.mxu0 %v674
    %1405 = vmatpush1.msra.mxu0 %v673
    %1406 = vmatprep.subr.mxu0 %v672
    %1407 = vmatpush1.msra.mxu0 %v671
    %1408 = vmatprep.subr.mxu0 %v670
    %1409 = vmatpush1.msra.mxu0 %v669
    %1410 = vmatprep.subr.mxu0 %v668
    %1411 = vmatpush1.msra.mxu0 %v667
    %1412 = vmatprep.subr.mxu0 %v666
    %1413 = vmatpush1.msra.mxu0 %v665
    %1414 = vmatprep.subr.mxu0 %v664
    %1415 = vmatpush1.msra.mxu0 %v663
    %1416 = vmatprep.subr.mxu0 %v662
    %1417 = vmatpush1.msra.mxu0 %v661
    %1418 = vmatprep.subr.mxu0 %v660
    %1419 = vmatpush1.msra.mxu0 %v659
    %1420 = vmatprep.subr.mxu0 %v658
    %1421 = vmatpush1.msra.mxu0 %v657
    %1422 = vmatprep.subr.mxu0 %v720
    %1423 = vmatpush2.msra.mxu0 %v719
    %1424 = vmatprep.subr.mxu0 %v718
    %1425 = vmatpush2.msra.mxu0 %v717
    %1426 = vmatprep.subr.mxu0 %v716
    %1427 = vmatpush2.msra.mxu0 %v715
    %1428 = vmatprep.subr.mxu0 %v714
    %1429 = vmatpush2.msra.mxu0 %v713
    %1430 = vmatprep.subr.mxu0 %v712
    %1431 = vmatpush2.msra.mxu0 %v711
    %1432 = vmatprep.subr.mxu0 %v710
    %1433 = vmatpush2.msra.mxu0 %v709
    %1434 = vmatprep.subr.mxu0 %v708
    %1435 = vmatpush2.msra.mxu0 %v707
    %1436 = vmatprep.subr.mxu0 %v706
    %1437 = vmatpush2.msra.mxu0 %v705
    %1438 = vmatprep.subr.mxu0 %v704
    %1439 = vmatpush2.msra.mxu0 %v703
    %1440 = vmatprep.subr.mxu0 %v702
    %1441 = vmatpush2.msra.mxu0 %v701
    %1442 = vmatprep.subr.mxu0 %v700
    %1443 = vmatpush2.msra.mxu0 %v699
    %1444 = vmatprep.subr.mxu0 %v698
    %1445 = vmatpush2.msra.mxu0 %v697
    %1446 = vmatprep.subr.mxu0 %v696
    %1447 = vmatpush2.msra.mxu0 %v695
    %1448 = vmatprep.subr.mxu0 %v694
    %1449 = vmatpush2.msra.mxu0 %v693
    %1450 = vmatprep.subr.mxu0 %v692
    %1451 = vmatpush2.msra.mxu0 %v691
    %1452 = vmatprep.subr.mxu0 %v690
    %1453 = vmatpush2.msra.mxu0 %v689
    %1454 = vmatprep.mubr.f32.mxu0 %v203
    %1455 = vmatmul.mubr.f32.gmra.mxu0 %v202
    %v1456 = vpop.f32.mrf.mxu0
    %v1457 = vadd.f32 %v1386, %v1456
    %v1458 = vpop.f32.mrf.mxu0
    %v1459 = vadd.f32 %v1388, %v1458
    %1460 = vdwg.mxu0
    %1461 = vmatprep.subr.mxu0 %v752
    %1462 = vmatpush1.msra.mxu0 %v751
    %1463 = vmatprep.subr.mxu0 %v750
    %1464 = vmatpush1.msra.mxu0 %v749
    %1465 = vmatprep.subr.mxu0 %v748
    %1466 = vmatpush1.msra.mxu0 %v747
    %1467 = vmatprep.subr.mxu0 %v746
    %1468 = vmatpush1.msra.mxu0 %v745
    %1469 = vmatprep.subr.mxu0 %v744
    %1470 = vmatpush1.msra.mxu0 %v743
    %1471 = vmatprep.subr.mxu0 %v742
    %1472 = vmatpush1.msra.mxu0 %v741
    %1473 = vmatprep.subr.mxu0 %v740
    %1474 = vmatpush1.msra.mxu0 %v739
    %1475 = vmatprep.subr.mxu0 %v738
    %1476 = vmatpush1.msra.mxu0 %v737
    %1477 = vmatprep.subr.mxu0 %v736
    %1478 = vmatpush1.msra.mxu0 %v735
    %1479 = vmatprep.subr.mxu0 %v734
    %1480 = vmatpush1.msra.mxu0 %v733
    %1481 = vmatprep.subr.mxu0 %v732
    %1482 = vmatpush1.msra.mxu0 %v731
    %1483 = vmatprep.subr.mxu0 %v730
    %1484 = vmatpush1.msra.mxu0 %v729
    %1485 = vmatprep.subr.mxu0 %v728
    %1486 = vmatpush1.msra.mxu0 %v727
    %1487 = vmatprep.subr.mxu0 %v726
    %1488 = vmatpush1.msra.mxu0 %v725
    %1489 = vmatprep.subr.mxu0 %v724
    %1490 = vmatpush1.msra.mxu0 %v723
    %1491 = vmatprep.subr.mxu0 %v722
    %1492 = vmatpush1.msra.mxu0 %v721
    %1493 = vmatprep.subr.mxu0 %v784
    %1494 = vmatpush2.msra.mxu0 %v783
    %1495 = vmatprep.subr.mxu0 %v782
    %1496 = vmatpush2.msra.mxu0 %v781
    %1497 = vmatprep.subr.mxu0 %v780
    %1498 = vmatpush2.msra.mxu0 %v779
    %1499 = vmatprep.subr.mxu0 %v778
    %1500 = vmatpush2.msra.mxu0 %v777
    %1501 = vmatprep.subr.mxu0 %v776
    %1502 = vmatpush2.msra.mxu0 %v775
    %1503 = vmatprep.subr.mxu0 %v774
    %1504 = vmatpush2.msra.mxu0 %v773
    %1505 = vmatprep.subr.mxu0 %v772
    %1506 = vmatpush2.msra.mxu0 %v771
    %1507 = vmatprep.subr.mxu0 %v770
    %1508 = vmatpush2.msra.mxu0 %v769
    %1509 = vmatprep.subr.mxu0 %v768
    %1510 = vmatpush2.msra.mxu0 %v767
    %1511 = vmatprep.subr.mxu0 %v766
    %1512 = vmatpush2.msra.mxu0 %v765
    %1513 = vmatprep.subr.mxu0 %v764
    %1514 = vmatpush2.msra.mxu0 %v763
    %1515 = vmatprep.subr.mxu0 %v762
    %1516 = vmatpush2.msra.mxu0 %v761
    %1517 = vmatprep.subr.mxu0 %v760
    %1518 = vmatpush2.msra.mxu0 %v759
    %1519 = vmatprep.subr.mxu0 %v758
    %1520 = vmatpush2.msra.mxu0 %v757
    %1521 = vmatprep.subr.mxu0 %v756
    %1522 = vmatpush2.msra.mxu0 %v755
    %1523 = vmatprep.subr.mxu0 %v754
    %1524 = vmatpush2.msra.mxu0 %v753
    %1525 = vmatprep.mubr.f32.mxu0 %v205
    %1526 = vmatmul.mubr.f32.gmra.mxu0 %v204
    %v1527 = vpop.f32.mrf.mxu0
    %v1528 = vadd.f32 %v1457, %v1527
    %v1529 = vpop.f32.mrf.mxu0
    %v1530 = vadd.f32 %v1459, %v1529
    %1531 = vdwg.mxu0
    %1532 = vmatprep.subr.mxu0 %v816
    %1533 = vmatpush1.msra.mxu0 %v815
    %1534 = vmatprep.subr.mxu0 %v814
    %1535 = vmatpush1.msra.mxu0 %v813
    %1536 = vmatprep.subr.mxu0 %v812
    %1537 = vmatpush1.msra.mxu0 %v811
    %1538 = vmatprep.subr.mxu0 %v810
    %1539 = vmatpush1.msra.mxu0 %v809
    %1540 = vmatprep.subr.mxu0 %v808
    %1541 = vmatpush1.msra.mxu0 %v807
    %1542 = vmatprep.subr.mxu0 %v806
    %1543 = vmatpush1.msra.mxu0 %v805
    %1544 = vmatprep.subr.mxu0 %v804
    %1545 = vmatpush1.msra.mxu0 %v803
    %1546 = vmatprep.subr.mxu0 %v802
    %1547 = vmatpush1.msra.mxu0 %v801
    %1548 = vmatprep.subr.mxu0 %v800
    %1549 = vmatpush1.msra.mxu0 %v799
    %1550 = vmatprep.subr.mxu0 %v798
    %1551 = vmatpush1.msra.mxu0 %v797
    %1552 = vmatprep.subr.mxu0 %v796
    %1553 = vmatpush1.msra.mxu0 %v795
    %1554 = vmatprep.subr.mxu0 %v794
    %1555 = vmatpush1.msra.mxu0 %v793
    %1556 = vmatprep.subr.mxu0 %v792
    %1557 = vmatpush1.msra.mxu0 %v791
    %1558 = vmatprep.subr.mxu0 %v790
    %1559 = vmatpush1.msra.mxu0 %v789
    %1560 = vmatprep.subr.mxu0 %v788
    %1561 = vmatpush1.msra.mxu0 %v787
    %1562 = vmatprep.subr.mxu0 %v786
    %1563 = vmatpush1.msra.mxu0 %v785
    %1564 = vmatprep.subr.mxu0 %v848
    %1565 = vmatpush2.msra.mxu0 %v847
    %1566 = vmatprep.subr.mxu0 %v846
    %1567 = vmatpush2.msra.mxu0 %v845
    %1568 = vmatprep.subr.mxu0 %v844
    %1569 = vmatpush2.msra.mxu0 %v843
    %1570 = vmatprep.subr.mxu0 %v842
    %1571 = vmatpush2.msra.mxu0 %v841
    %1572 = vmatprep.subr.mxu0 %v840
    %1573 = vmatpush2.msra.mxu0 %v839
    %1574 = vmatprep.subr.mxu0 %v838
    %1575 = vmatpush2.msra.mxu0 %v837
    %1576 = vmatprep.subr.mxu0 %v836
    %1577 = vmatpush2.msra.mxu0 %v835
    %1578 = vmatprep.subr.mxu0 %v834
    %1579 = vmatpush2.msra.mxu0 %v833
    %1580 = vmatprep.subr.mxu0 %v832
    %1581 = vmatpush2.msra.mxu0 %v831
    %1582 = vmatprep.subr.mxu0 %v830
    %1583 = vmatpush2.msra.mxu0 %v829
    %1584 = vmatprep.subr.mxu0 %v828
    %1585 = vmatpush2.msra.mxu0 %v827
    %1586 = vmatprep.subr.mxu0 %v826
    %1587 = vmatpush2.msra.mxu0 %v825
    %1588 = vmatprep.subr.mxu0 %v824
    %1589 = vmatpush2.msra.mxu0 %v823
    %1590 = vmatprep.subr.mxu0 %v822
    %1591 = vmatpush2.msra.mxu0 %v821
    %1592 = vmatprep.subr.mxu0 %v820
    %1593 = vmatpush2.msra.mxu0 %v819
    %1594 = vmatprep.subr.mxu0 %v818
    %1595 = vmatpush2.msra.mxu0 %v817
    %1596 = vmatprep.mubr.f32.mxu0 %v207
    %1597 = vmatmul.mubr.f32.gmra.mxu0 %v206
    %v1598 = vpop.f32.mrf.mxu0
    %v1599 = vadd.f32 %v1528, %v1598
    %v1600 = vpop.f32.mrf.mxu0
    %v1601 = vadd.f32 %v1530, %v1600
    %1602 = vdwg.mxu0
    %1603 = vmatprep.subr.mxu0 %v880
    %1604 = vmatpush1.msra.mxu0 %v879
    %1605 = vmatprep.subr.mxu0 %v878
    %1606 = vmatpush1.msra.mxu0 %v877
    %1607 = vmatprep.subr.mxu0 %v876
    %1608 = vmatpush1.msra.mxu0 %v875
    %1609 = vmatprep.subr.mxu0 %v874
    %1610 = vmatpush1.msra.mxu0 %v873
    %1611 = vmatprep.subr.mxu0 %v872
    %1612 = vmatpush1.msra.mxu0 %v871
    %1613 = vmatprep.subr.mxu0 %v870
    %1614 = vmatpush1.msra.mxu0 %v869
    %1615 = vmatprep.subr.mxu0 %v868
    %1616 = vmatpush1.msra.mxu0 %v867
    %1617 = vmatprep.subr.mxu0 %v866
    %1618 = vmatpush1.msra.mxu0 %v865
    %1619 = vmatprep.subr.mxu0 %v864
    %1620 = vmatpush1.msra.mxu0 %v863
    %1621 = vmatprep.subr.mxu0 %v862
    %1622 = vmatpush1.msra.mxu0 %v861
    %1623 = vmatprep.subr.mxu0 %v860
    %1624 = vmatpush1.msra.mxu0 %v859
    %1625 = vmatprep.subr.mxu0 %v858
    %1626 = vmatpush1.msra.mxu0 %v857
    %1627 = vmatprep.subr.mxu0 %v856
    %1628 = vmatpush1.msra.mxu0 %v855
    %1629 = vmatprep.subr.mxu0 %v854
    %1630 = vmatpush1.msra.mxu0 %v853
    %1631 = vmatprep.subr.mxu0 %v852
    %1632 = vmatpush1.msra.mxu0 %v851
    %1633 = vmatprep.subr.mxu0 %v850
    %1634 = vmatpush1.msra.mxu0 %v849
    %1635 = vmatprep.subr.mxu0 0.0
    %1636 = vmatpush2.msra.mxu0 0.0
    %1637 = vmatprep.subr.mxu0 0.0
    %1638 = vmatpush2.msra.mxu0 0.0
    %1639 = vmatprep.subr.mxu0 0.0
    %1640 = vmatpush2.msra.mxu0 0.0
    %1641 = vmatprep.subr.mxu0 0.0
    %1642 = vmatpush2.msra.mxu0 0.0
    %1643 = vmatprep.subr.mxu0 0.0
    %1644 = vmatpush2.msra.mxu0 0.0
    %1645 = vmatprep.subr.mxu0 0.0
    %1646 = vmatpush2.msra.mxu0 0.0
    %1647 = vmatprep.subr.mxu0 0.0
    %1648 = vmatpush2.msra.mxu0 0.0
    %1649 = vmatprep.subr.mxu0 0.0
    %1650 = vmatpush2.msra.mxu0 0.0
    %1651 = vmatprep.subr.mxu0 0.0
    %1652 = vmatpush2.msra.mxu0 0.0
    %1653 = vmatprep.subr.mxu0 0.0
    %1654 = vmatpush2.msra.mxu0 0.0
    %1655 = vmatprep.subr.mxu0 0.0
    %1656 = vmatpush2.msra.mxu0 0.0
    %1657 = vmatprep.subr.mxu0 0.0
    %1658 = vmatpush2.msra.mxu0 0.0
    %1659 = vmatprep.subr.mxu0 0.0
    %1660 = vmatpush2.msra.mxu0 0.0
    %1661 = vmatprep.subr.mxu0 0.0
    %1662 = vmatpush2.msra.mxu0 0.0
    %1663 = vmatprep.subr.mxu0 0.0
    %1664 = vmatpush2.msra.mxu0 0.0
    %1665 = vmatprep.subr.mxu0 0.0
    %1666 = vmatpush2.msra.mxu0 0.0
    %1667 = vmatprep.mubr.f32.mxu0 0.0
    %1668 = vmatmul.mubr.f32.gmra.mxu0 %v208
    %v1669 = vpop.f32.mrf.mxu0
    %v1670 = vadd.f32 %v1599, %v1669
    %v1671 = vpop.f32.mrf.mxu0
    %v1672 = vadd.f32 %v1601, %v1671
    %1673 = vdwg.mxu0
    %v1674 = vmax.f32 %v1670, 0.0
    %v1675 = vmax.f32 %v1672, 0.0
    %v1676 = vpack.c.bf16 %v1674, %v1674
    %v1677 = vpack.c.bf16 %v1675, %v1675
    %v1678 = vld [vmem:[#allocation14] sm:$0xff]
    %v1679 = vld [vmem:[#allocation14 + $0x8] sm:$0xff]
    %v1680 = vld [vmem:[#allocation14 + $0x10] sm:$0xff]
    %v1681 = vld [vmem:[#allocation14 + $0x18] sm:$0xff]
    %v1682 = vld [vmem:[#allocation14 + $0x20] sm:$0xff]
    %v1683 = vld [vmem:[#allocation14 + $0x28] sm:$0xff]
    %v1684 = vld [vmem:[#allocation14 + $0x30] sm:$0xff]
    %v1685 = vld [vmem:[#allocation14 + $0x38] sm:$0xff]
    %v1686 = vld [vmem:[#allocation14 + $0x40] sm:$0xff]
    %v1687 = vld [vmem:[#allocation14 + $0x48] sm:$0xff]
    %v1688 = vld [vmem:[#allocation14 + $0x50] sm:$0xff]
    %v1689 = vld [vmem:[#allocation14 + $0x58] sm:$0xff]
    %v1690 = vld [vmem:[#allocation14 + $0x60] sm:$0xff]
    %v1691 = vld [vmem:[#allocation14 + $0x68] sm:$0xff]
    %v1692 = vld [vmem:[#allocation14 + $0x70] sm:$0xff]
    %v1693 = vld [vmem:[#allocation14 + $0x78] sm:$0xff]
    %v1694 = vld [vmem:[#allocation14 + $0x80] sm:$0xff]
    %v1695 = vld [vmem:[#allocation14 + $0x88] sm:$0xff]
    %v1696 = vld [vmem:[#allocation14 + $0x90] sm:$0xff]
    %v1697 = vld [vmem:[#allocation14 + $0x98] sm:$0xff]
    %v1698 = vld [vmem:[#allocation14 + $0xa0] sm:$0xff]
    %v1699 = vld [vmem:[#allocation14 + $0xa8] sm:$0xff]
    %v1700 = vld [vmem:[#allocation14 + $0xb0] sm:$0xff]
    %v1701 = vld [vmem:[#allocation14 + $0xb8] sm:$0xff]
    %v1702 = vld [vmem:[#allocation14 + $0xc0] sm:$0xff]
    %v1703 = vld [vmem:[#allocation14 + $0xc8] sm:$0xff]
    %v1704 = vld [vmem:[#allocation14 + $0xd0] sm:$0xff]
    %v1705 = vld [vmem:[#allocation14 + $0xd8] sm:$0xff]
    %v1706 = vld [vmem:[#allocation14 + $0xe0] sm:$0xff]
    %v1707 = vld [vmem:[#allocation14 + $0xe8] sm:$0xff]
    %v1708 = vld [vmem:[#allocation14 + $0xf0] sm:$0xff]
    %v1709 = vld [vmem:[#allocation14 + $0xf8] sm:$0xff]
    %v1710 = vld [vmem:[#allocation14 + $0x100] sm:$0xff]
    %v1711 = vld [vmem:[#allocation14 + $0x108] sm:$0xff]
    %v1712 = vld [vmem:[#allocation14 + $0x110] sm:$0xff]
    %v1713 = vld [vmem:[#allocation14 + $0x118] sm:$0xff]
    %v1714 = vld [vmem:[#allocation14 + $0x120] sm:$0xff]
    %v1715 = vld [vmem:[#allocation14 + $0x128] sm:$0xff]
    %v1716 = vld [vmem:[#allocation14 + $0x130] sm:$0xff]
    %v1717 = vld [vmem:[#allocation14 + $0x138] sm:$0xff]
    %v1718 = vld [vmem:[#allocation14 + $0x140] sm:$0xff]
    %v1719 = vld [vmem:[#allocation14 + $0x148] sm:$0xff]
    %v1720 = vld [vmem:[#allocation14 + $0x150] sm:$0xff]
    %v1721 = vld [vmem:[#allocation14 + $0x158] sm:$0xff]
    %v1722 = vld [vmem:[#allocation14 + $0x160] sm:$0xff]
    %v1723 = vld [vmem:[#allocation14 + $0x168] sm:$0xff]
    %v1724 = vld [vmem:[#allocation14 + $0x170] sm:$0xff]
    %v1725 = vld [vmem:[#allocation14 + $0x178] sm:$0xff]
    %v1726 = vld [vmem:[#allocation14 + $0x180] sm:$0xff]
    %v1727 = vld [vmem:[#allocation14 + $0x188] sm:$0xff]
    %v1728 = vld [vmem:[#allocation14 + $0x190] sm:$0xff]
    %v1729 = vld [vmem:[#allocation14 + $0x198] sm:$0xff]
    %v1730 = vld [vmem:[#allocation14 + $0x1a0] sm:$0xff]
    %v1731 = vld [vmem:[#allocation14 + $0x1a8] sm:$0xff]
    %v1732 = vld [vmem:[#allocation14 + $0x1b0] sm:$0xff]
    %v1733 = vld [vmem:[#allocation14 + $0x1b8] sm:$0xff]
    %v1734 = vld [vmem:[#allocation14 + $0x1c0] sm:$0xff]
    %v1735 = vld [vmem:[#allocation14 + $0x1c8] sm:$0xff]
    %v1736 = vld [vmem:[#allocation14 + $0x1d0] sm:$0xff]
    %v1737 = vld [vmem:[#allocation14 + $0x1d8] sm:$0xff]
    %v1738 = vld [vmem:[#allocation14 + $0x1e0] sm:$0xff]
    %v1739 = vld [vmem:[#allocation14 + $0x1e8] sm:$0xff]
    %v1740 = vld [vmem:[#allocation14 + $0x1f0] sm:$0xff]
    %v1741 = vld [vmem:[#allocation14 + $0x1f8] sm:$0xff]
    %v1742 = vld [vmem:[#allocation14 + $0x200] sm:$0xff]
    %v1743 = vld [vmem:[#allocation14 + $0x208] sm:$0xff]
    %v1744 = vld [vmem:[#allocation14 + $0x210] sm:$0xff]
    %v1745 = vld [vmem:[#allocation14 + $0x218] sm:$0xff]
    %v1746 = vld [vmem:[#allocation14 + $0x220] sm:$0xff]
    %v1747 = vld [vmem:[#allocation14 + $0x228] sm:$0xff]
    %v1748 = vld [vmem:[#allocation14 + $0x230] sm:$0xff]
    %v1749 = vld [vmem:[#allocation14 + $0x238] sm:$0xff]
    %v1750 = vld [vmem:[#allocation14 + $0x240] sm:$0xff]
    %v1751 = vld [vmem:[#allocation14 + $0x248] sm:$0xff]
    %v1752 = vld [vmem:[#allocation14 + $0x250] sm:$0xff]
    %v1753 = vld [vmem:[#allocation14 + $0x258] sm:$0xff]
    %v1754 = vld [vmem:[#allocation14 + $0x260] sm:$0xff]
    %v1755 = vld [vmem:[#allocation14 + $0x268] sm:$0xff]
    %v1756 = vld [vmem:[#allocation14 + $0x270] sm:$0xff]
    %v1757 = vld [vmem:[#allocation14 + $0x278] sm:$0xff]
    %v1758 = vld [vmem:[#allocation14 + $0x280] sm:$0xff]
    %v1759 = vld [vmem:[#allocation14 + $0x288] sm:$0xff]
    %v1760 = vld [vmem:[#allocation14 + $0x290] sm:$0xff]
    %v1761 = vld [vmem:[#allocation14 + $0x298] sm:$0xff]
    %v1762 = vld [vmem:[#allocation14 + $0x2a0] sm:$0xff]
    %v1763 = vld [vmem:[#allocation14 + $0x2a8] sm:$0xff]
    %v1764 = vld [vmem:[#allocation14 + $0x2b0] sm:$0xff]
    %v1765 = vld [vmem:[#allocation14 + $0x2b8] sm:$0xff]
    %v1766 = vld [vmem:[#allocation14 + $0x2c0] sm:$0xff]
    %v1767 = vld [vmem:[#allocation14 + $0x2c8] sm:$0xff]
    %v1768 = vld [vmem:[#allocation14 + $0x2d0] sm:$0xff]
    %v1769 = vld [vmem:[#allocation14 + $0x2d8] sm:$0xff]
    %v1770 = vld [vmem:[#allocation14 + $0x2e0] sm:$0xff]
    %v1771 = vld [vmem:[#allocation14 + $0x2e8] sm:$0xff]
    %v1772 = vld [vmem:[#allocation14 + $0x2f0] sm:$0xff]
    %v1773 = vld [vmem:[#allocation14 + $0x2f8] sm:$0xff]
    %v1774 = vld [vmem:[#allocation14 + $0x300] sm:$0xff]
    %v1775 = vld [vmem:[#allocation14 + $0x308] sm:$0xff]
    %v1776 = vld [vmem:[#allocation14 + $0x310] sm:$0xff]
    %v1777 = vld [vmem:[#allocation14 + $0x318] sm:$0xff]
    %v1778 = vld [vmem:[#allocation14 + $0x320] sm:$0xff]
    %v1779 = vld [vmem:[#allocation14 + $0x328] sm:$0xff]
    %v1780 = vld [vmem:[#allocation14 + $0x330] sm:$0xff]
    %v1781 = vld [vmem:[#allocation14 + $0x338] sm:$0xff]
    %v1782 = vld [vmem:[#allocation14 + $0x340] sm:$0xff]
    %v1783 = vld [vmem:[#allocation14 + $0x348] sm:$0xff]
    %v1784 = vld [vmem:[#allocation14 + $0x350] sm:$0xff]
    %v1785 = vld [vmem:[#allocation14 + $0x358] sm:$0xff]
    %v1786 = vld [vmem:[#allocation14 + $0x360] sm:$0xff]
    %v1787 = vld [vmem:[#allocation14 + $0x368] sm:$0xff]
    %v1788 = vld [vmem:[#allocation14 + $0x370] sm:$0xff]
    %v1789 = vld [vmem:[#allocation14 + $0x378] sm:$0xff]
    %v1790 = vld [vmem:[#allocation14 + $0x380] sm:$0xff]
    %v1791 = vld [vmem:[#allocation14 + $0x388] sm:$0xff]
    %v1792 = vld [vmem:[#allocation14 + $0x390] sm:$0xff]
    %v1793 = vld [vmem:[#allocation14 + $0x398] sm:$0xff]
    %v1794 = vld [vmem:[#allocation14 + $0x3a0] sm:$0xff]
    %v1795 = vld [vmem:[#allocation14 + $0x3a8] sm:$0xff]
    %v1796 = vld [vmem:[#allocation14 + $0x3b0] sm:$0xff]
    %v1797 = vld [vmem:[#allocation14 + $0x3b8] sm:$0xff]
    %v1798 = vld [vmem:[#allocation14 + $0x3c0] sm:$0xff]
    %v1799 = vld [vmem:[#allocation14 + $0x3c8] sm:$0xff]
    %v1800 = vld [vmem:[#allocation14 + $0x3d0] sm:$0xff]
    %v1801 = vld [vmem:[#allocation14 + $0x3d8] sm:$0xff]
    %v1802 = vld [vmem:[#allocation14 + $0x3e0] sm:$0xff]
    %v1803 = vld [vmem:[#allocation14 + $0x3e8] sm:$0xff]
    %v1804 = vld [vmem:[#allocation14 + $0x3f0] sm:$0xff]
    %v1805 = vld [vmem:[#allocation14 + $0x3f8] sm:$0xff]
    %v1806 = vld [vmem:[#allocation9] sm:$0xff]
    %v1807 = vpack.c.bf16 %v1806, %v1806
    %v1808 = vld [vmem:[#allocation15] sm:$0xff]
    %v1809 = vld [vmem:[#allocation15 + $0x8] sm:$0xff]
    %v1810 = vld [vmem:[#allocation15 + $0x10] sm:$0xff]
    %v1811 = vld [vmem:[#allocation15 + $0x18] sm:$0xff]
    %v1812 = vld [vmem:[#allocation15 + $0x20] sm:$0xff]
    %v1813 = vld [vmem:[#allocation15 + $0x28] sm:$0xff]
    %v1814 = vld [vmem:[#allocation15 + $0x30] sm:$0xff]
    %v1815 = vld [vmem:[#allocation15 + $0x38] sm:$0xff]
    %v1816 = vld [vmem:[#allocation15 + $0x40] sm:$0xff]
    %v1817 = vld [vmem:[#allocation15 + $0x48] sm:$0xff]
    %v1818 = vld [vmem:[#allocation15 + $0x50] sm:$0xff]
    %v1819 = vld [vmem:[#allocation15 + $0x58] sm:$0xff]
    %v1820 = vld [vmem:[#allocation15 + $0x60] sm:$0xff]
    %v1821 = vld [vmem:[#allocation15 + $0x68] sm:$0xff]
    %v1822 = vld [vmem:[#allocation15 + $0x70] sm:$0xff]
    %v1823 = vld [vmem:[#allocation15 + $0x78] sm:$0xff]
    %v1824 = vld [vmem:[#allocation15 + $0x80] sm:$0xff]
    %v1825 = vld [vmem:[#allocation15 + $0x88] sm:$0xff]
    %v1826 = vld [vmem:[#allocation15 + $0x90] sm:$0xff]
    %v1827 = vld [vmem:[#allocation15 + $0x98] sm:$0xff]
    %v1828 = vld [vmem:[#allocation15 + $0xa0] sm:$0xff]
    %v1829 = vld [vmem:[#allocation15 + $0xa8] sm:$0xff]
    %v1830 = vld [vmem:[#allocation15 + $0xb0] sm:$0xff]
    %v1831 = vld [vmem:[#allocation15 + $0xb8] sm:$0xff]
    %v1832 = vld [vmem:[#allocation15 + $0xc0] sm:$0xff]
    %v1833 = vld [vmem:[#allocation15 + $0xc8] sm:$0xff]
    %v1834 = vld [vmem:[#allocation15 + $0xd0] sm:$0xff]
    %v1835 = vld [vmem:[#allocation15 + $0xd8] sm:$0xff]
    %v1836 = vld [vmem:[#allocation15 + $0xe0] sm:$0xff]
    %v1837 = vld [vmem:[#allocation15 + $0xe8] sm:$0xff]
    %v1838 = vld [vmem:[#allocation15 + $0xf0] sm:$0xff]
    %v1839 = vld [vmem:[#allocation15 + $0xf8] sm:$0xff]
    %v1840 = vld [vmem:[#allocation15 + $0x100] sm:$0xff]
    %v1841 = vld [vmem:[#allocation15 + $0x108] sm:$0xff]
    %v1842 = vld [vmem:[#allocation15 + $0x110] sm:$0xff]
    %v1843 = vld [vmem:[#allocation15 + $0x118] sm:$0xff]
    %v1844 = vld [vmem:[#allocation15 + $0x120] sm:$0xff]
    %v1845 = vld [vmem:[#allocation15 + $0x128] sm:$0xff]
    %v1846 = vld [vmem:[#allocation15 + $0x130] sm:$0xff]
    %v1847 = vld [vmem:[#allocation15 + $0x138] sm:$0xff]
    %v1848 = vld [vmem:[#allocation15 + $0x140] sm:$0xff]
    %v1849 = vld [vmem:[#allocation15 + $0x148] sm:$0xff]
    %v1850 = vld [vmem:[#allocation15 + $0x150] sm:$0xff]
    %v1851 = vld [vmem:[#allocation15 + $0x158] sm:$0xff]
    %v1852 = vld [vmem:[#allocation15 + $0x160] sm:$0xff]
    %v1853 = vld [vmem:[#allocation15 + $0x168] sm:$0xff]
    %v1854 = vld [vmem:[#allocation15 + $0x170] sm:$0xff]
    %v1855 = vld [vmem:[#allocation15 + $0x178] sm:$0xff]
    %v1856 = vld [vmem:[#allocation15 + $0x180] sm:$0xff]
    %v1857 = vld [vmem:[#allocation15 + $0x188] sm:$0xff]
    %v1858 = vld [vmem:[#allocation15 + $0x190] sm:$0xff]
    %v1859 = vld [vmem:[#allocation15 + $0x198] sm:$0xff]
    %v1860 = vld [vmem:[#allocation15 + $0x1a0] sm:$0xff]
    %v1861 = vld [vmem:[#allocation15 + $0x1a8] sm:$0xff]
    %v1862 = vld [vmem:[#allocation15 + $0x1b0] sm:$0xff]
    %v1863 = vld [vmem:[#allocation15 + $0x1b8] sm:$0xff]
    %v1864 = vld [vmem:[#allocation15 + $0x1c0] sm:$0xff]
    %v1865 = vld [vmem:[#allocation15 + $0x1c8] sm:$0xff]
    %v1866 = vld [vmem:[#allocation15 + $0x1d0] sm:$0xff]
    %v1867 = vld [vmem:[#allocation15 + $0x1d8] sm:$0xff]
    %v1868 = vld [vmem:[#allocation15 + $0x1e0] sm:$0xff]
    %v1869 = vld [vmem:[#allocation15 + $0x1e8] sm:$0xff]
    %v1870 = vld [vmem:[#allocation15 + $0x1f0] sm:$0xff]
    %v1871 = vld [vmem:[#allocation15 + $0x1f8] sm:$0xff]
    %v1936 = vunpack.c.l.b16 %v1808
    %v1937 = vunpack.c.h.b16 %v1808
    %v1938 = vunpack.c.l.b16 %v1809
    %v1939 = vunpack.c.h.b16 %v1809
    %v1940 = vunpack.c.l.b16 %v1810
    %v1941 = vunpack.c.h.b16 %v1810
    %v1942 = vunpack.c.l.b16 %v1811
    %v1943 = vunpack.c.h.b16 %v1811
    %v1944 = vunpack.c.l.b16 %v1812
    %v1945 = vunpack.c.h.b16 %v1812
    %v1946 = vunpack.c.l.b16 %v1813
    %v1947 = vunpack.c.h.b16 %v1813
    %v1948 = vunpack.c.l.b16 %v1814
    %v1949 = vunpack.c.h.b16 %v1814
    %v1950 = vunpack.c.l.b16 %v1815
    %v1951 = vunpack.c.h.b16 %v1815
    %v1952 = vunpack.c.l.b16 %v1816
    %v1953 = vunpack.c.h.b16 %v1816
    %v1954 = vunpack.c.l.b16 %v1817
    %v1955 = vunpack.c.h.b16 %v1817
    %v1956 = vunpack.c.l.b16 %v1818
    %v1957 = vunpack.c.h.b16 %v1818
    %v1958 = vunpack.c.l.b16 %v1819
    %v1959 = vunpack.c.h.b16 %v1819
    %v1960 = vunpack.c.l.b16 %v1820
    %v1961 = vunpack.c.h.b16 %v1820
    %v1962 = vunpack.c.l.b16 %v1821
    %v1963 = vunpack.c.h.b16 %v1821
    %v1964 = vunpack.c.l.b16 %v1822
    %v1965 = vunpack.c.h.b16 %v1822
    %v1966 = vunpack.c.l.b16 %v1823
    %v1967 = vunpack.c.h.b16 %v1823
    %v1968 = vunpack.c.l.b16 %v1824
    %v1969 = vunpack.c.h.b16 %v1824
    %v1970 = vunpack.c.l.b16 %v1825
    %v1971 = vunpack.c.h.b16 %v1825
    %v1972 = vunpack.c.l.b16 %v1826
    %v1973 = vunpack.c.h.b16 %v1826
    %v1974 = vunpack.c.l.b16 %v1827
    %v1975 = vunpack.c.h.b16 %v1827
    %v1976 = vunpack.c.l.b16 %v1828
    %v1977 = vunpack.c.h.b16 %v1828
    %v1978 = vunpack.c.l.b16 %v1829
    %v1979 = vunpack.c.h.b16 %v1829
    %v1980 = vunpack.c.l.b16 %v1830
    %v1981 = vunpack.c.h.b16 %v1830
    %v1982 = vunpack.c.l.b16 %v1831
    %v1983 = vunpack.c.h.b16 %v1831
    %v1984 = vunpack.c.l.b16 %v1832
    %v1985 = vunpack.c.h.b16 %v1832
    %v1986 = vunpack.c.l.b16 %v1833
    %v1987 = vunpack.c.h.b16 %v1833
    %v1988 = vunpack.c.l.b16 %v1834
    %v1989 = vunpack.c.h.b16 %v1834
    %v1990 = vunpack.c.l.b16 %v1835
    %v1991 = vunpack.c.h.b16 %v1835
    %v1992 = vunpack.c.l.b16 %v1836
    %v1993 = vunpack.c.h.b16 %v1836
    %v1994 = vunpack.c.l.b16 %v1837
    %v1995 = vunpack.c.h.b16 %v1837
    %v1996 = vunpack.c.l.b16 %v1838
    %v1997 = vunpack.c.h.b16 %v1838
    %v1998 = vunpack.c.l.b16 %v1839
    %v1999 = vunpack.c.h.b16 %v1839
    %v2000 = vunpack.c.l.b16 %v1840
    %v2001 = vunpack.c.h.b16 %v1840
    %v2002 = vunpack.c.l.b16 %v1841
    %v2003 = vunpack.c.h.b16 %v1841
    %v2004 = vunpack.c.l.b16 %v1842
    %v2005 = vunpack.c.h.b16 %v1842
    %v2006 = vunpack.c.l.b16 %v1843
    %v2007 = vunpack.c.h.b16 %v1843
    %v2008 = vunpack.c.l.b16 %v1844
    %v2009 = vunpack.c.h.b16 %v1844
    %v2010 = vunpack.c.l.b16 %v1845
    %v2011 = vunpack.c.h.b16 %v1845
    %v2012 = vunpack.c.l.b16 %v1846
    %v2013 = vunpack.c.h.b16 %v1846
    %v2014 = vunpack.c.l.b16 %v1847
    %v2015 = vunpack.c.h.b16 %v1847
    %v2016 = vunpack.c.l.b16 %v1848
    %v2017 = vunpack.c.h.b16 %v1848
    %v2018 = vunpack.c.l.b16 %v1849
    %v2019 = vunpack.c.h.b16 %v1849
    %v2020 = vunpack.c.l.b16 %v1850
    %v2021 = vunpack.c.h.b16 %v1850
    %v2022 = vunpack.c.l.b16 %v1851
    %v2023 = vunpack.c.h.b16 %v1851
    %v2024 = vunpack.c.l.b16 %v1852
    %v2025 = vunpack.c.h.b16 %v1852
    %v2026 = vunpack.c.l.b16 %v1853
    %v2027 = vunpack.c.h.b16 %v1853
    %v2028 = vunpack.c.l.b16 %v1854
    %v2029 = vunpack.c.h.b16 %v1854
    %v2030 = vunpack.c.l.b16 %v1855
    %v2031 = vunpack.c.h.b16 %v1855
    %v2032 = vunpack.c.l.b16 %v1856
    %v2033 = vunpack.c.h.b16 %v1856
    %v2034 = vunpack.c.l.b16 %v1857
    %v2035 = vunpack.c.h.b16 %v1857
    %v2036 = vunpack.c.l.b16 %v1858
    %v2037 = vunpack.c.h.b16 %v1858
    %v2038 = vunpack.c.l.b16 %v1859
    %v2039 = vunpack.c.h.b16 %v1859
    %v2040 = vunpack.c.l.b16 %v1860
    %v2041 = vunpack.c.h.b16 %v1860
    %v2042 = vunpack.c.l.b16 %v1861
    %v2043 = vunpack.c.h.b16 %v1861
    %v2044 = vunpack.c.l.b16 %v1862
    %v2045 = vunpack.c.h.b16 %v1862
    %v2046 = vunpack.c.l.b16 %v1863
    %v2047 = vunpack.c.h.b16 %v1863
    %v2048 = vunpack.c.l.b16 %v1864
    %v2049 = vunpack.c.h.b16 %v1864
    %v2050 = vunpack.c.l.b16 %v1865
    %v2051 = vunpack.c.h.b16 %v1865
    %v2052 = vunpack.c.l.b16 %v1866
    %v2053 = vunpack.c.h.b16 %v1866
    %v2054 = vunpack.c.l.b16 %v1867
    %v2055 = vunpack.c.h.b16 %v1867
    %v2056 = vunpack.c.l.b16 %v1868
    %v2057 = vunpack.c.h.b16 %v1868
    %v2058 = vunpack.c.l.b16 %v1869
    %v2059 = vunpack.c.h.b16 %v1869
    %v2060 = vunpack.c.l.b16 %v1870
    %v2061 = vunpack.c.h.b16 %v1870
    %v2062 = vunpack.c.l.b16 %v1871
    %v2063 = vunpack.c.h.b16 %v1871
    %v2064 = vpack.c.b16 %v1944, %v1936
    %v2065 = vpack.c.b16 %v1945, %v1937
    %v2066 = vpack.c.b16 %v1946, %v1938
    %v2067 = vpack.c.b16 %v1947, %v1939
    %v2068 = vpack.c.b16 %v1948, %v1940
    %v2069 = vpack.c.b16 %v1949, %v1941
    %v2070 = vpack.c.b16 %v1950, %v1942
    %v2071 = vpack.c.b16 %v1951, %v1943
    %v2072 = vpack.c.b16 %v1960, %v1952
    %v2073 = vpack.c.b16 %v1961, %v1953
    %v2074 = vpack.c.b16 %v1962, %v1954
    %v2075 = vpack.c.b16 %v1963, %v1955
    %v2076 = vpack.c.b16 %v1964, %v1956
    %v2077 = vpack.c.b16 %v1965, %v1957
    %v2078 = vpack.c.b16 %v1966, %v1958
    %v2079 = vpack.c.b16 %v1967, %v1959
    %v2080 = vpack.c.b16 %v1976, %v1968
    %v2081 = vpack.c.b16 %v1977, %v1969
    %v2082 = vpack.c.b16 %v1978, %v1970
    %v2083 = vpack.c.b16 %v1979, %v1971
    %v2084 = vpack.c.b16 %v1980, %v1972
    %v2085 = vpack.c.b16 %v1981, %v1973
    %v2086 = vpack.c.b16 %v1982, %v1974
    %v2087 = vpack.c.b16 %v1983, %v1975
    %v2088 = vpack.c.b16 %v1992, %v1984
    %v2089 = vpack.c.b16 %v1993, %v1985
    %v2090 = vpack.c.b16 %v1994, %v1986
    %v2091 = vpack.c.b16 %v1995, %v1987
    %v2092 = vpack.c.b16 %v1996, %v1988
    %v2093 = vpack.c.b16 %v1997, %v1989
    %v2094 = vpack.c.b16 %v1998, %v1990
    %v2095 = vpack.c.b16 %v1999, %v1991
    %v2096 = vpack.c.b16 %v2008, %v2000
    %v2097 = vpack.c.b16 %v2009, %v2001
    %v2098 = vpack.c.b16 %v2010, %v2002
    %v2099 = vpack.c.b16 %v2011, %v2003
    %v2100 = vpack.c.b16 %v2012, %v2004
    %v2101 = vpack.c.b16 %v2013, %v2005
    %v2102 = vpack.c.b16 %v2014, %v2006
    %v2103 = vpack.c.b16 %v2015, %v2007
    %v2104 = vpack.c.b16 %v2024, %v2016
    %v2105 = vpack.c.b16 %v2025, %v2017
    %v2106 = vpack.c.b16 %v2026, %v2018
    %v2107 = vpack.c.b16 %v2027, %v2019
    %v2108 = vpack.c.b16 %v2028, %v2020
    %v2109 = vpack.c.b16 %v2029, %v2021
    %v2110 = vpack.c.b16 %v2030, %v2022
    %v2111 = vpack.c.b16 %v2031, %v2023
    %v2112 = vpack.c.b16 %v2040, %v2032
    %v2113 = vpack.c.b16 %v2041, %v2033
    %v2114 = vpack.c.b16 %v2042, %v2034
    %v2115 = vpack.c.b16 %v2043, %v2035
    %v2116 = vpack.c.b16 %v2044, %v2036
    %v2117 = vpack.c.b16 %v2045, %v2037
    %v2118 = vpack.c.b16 %v2046, %v2038
    %v2119 = vpack.c.b16 %v2047, %v2039
    %v2120 = vpack.c.b16 %v2056, %v2048
    %v2121 = vpack.c.b16 %v2057, %v2049
    %v2122 = vpack.c.b16 %v2058, %v2050
    %v2123 = vpack.c.b16 %v2059, %v2051
    %v2124 = vpack.c.b16 %v2060, %v2052
    %v2125 = vpack.c.b16 %v2061, %v2053
    %v2126 = vpack.c.b16 %v2062, %v2054
    %v2127 = vpack.c.b16 %v2063, %v2055
    %2192 = vmatprep.subr.bf16.mxu0 %v2121
    %2193 = vmatpush1.bf16.msra.mxu0 %v2120
    %2194 = vmatprep.subr.bf16.mxu0 %v2113
    %2195 = vmatpush1.bf16.msra.mxu0 %v2112
    %2196 = vmatprep.subr.bf16.mxu0 %v2105
    %2197 = vmatpush1.bf16.msra.mxu0 %v2104
    %2198 = vmatprep.subr.bf16.mxu0 %v2097
    %2199 = vmatpush1.bf16.msra.mxu0 %v2096
    %2200 = vmatprep.subr.bf16.mxu0 %v2089
    %2201 = vmatpush1.bf16.msra.mxu0 %v2088
    %2202 = vmatprep.subr.bf16.mxu0 %v2081
    %2203 = vmatpush1.bf16.msra.mxu0 %v2080
    %2204 = vmatprep.subr.bf16.mxu0 %v2073
    %2205 = vmatpush1.bf16.msra.mxu0 %v2072
    %2206 = vmatprep.subr.bf16.mxu0 %v2065
    %2207 = vmatpush1.bf16.msra.mxu0 %v2064
    %2208 = vmatprep.subr.bf16.mxu0 0
    %2209 = vmatpush2.bf16.msra.mxu0 0
    %2210 = vmatprep.subr.bf16.mxu0 0
    %2211 = vmatpush2.bf16.msra.mxu0 0
    %2212 = vmatprep.subr.bf16.mxu0 0
    %2213 = vmatpush2.bf16.msra.mxu0 0
    %2214 = vmatprep.subr.bf16.mxu0 0
    %2215 = vmatpush2.bf16.msra.mxu0 0
    %2216 = vmatprep.subr.bf16.mxu0 0
    %2217 = vmatpush2.bf16.msra.mxu0 0
    %2218 = vmatprep.subr.bf16.mxu0 0
    %2219 = vmatpush2.bf16.msra.mxu0 0
    %2220 = vmatprep.subr.bf16.mxu0 0
    %2221 = vmatpush2.bf16.msra.mxu0 0
    %2222 = vmatprep.subr.bf16.mxu0 0
    %2223 = vmatpush2.bf16.msra.mxu0 0
    %2224 = vmatprep.mubr.bf16.mxu0 0
    %2225 = vmatmul.mubr.bf16.gmra.mxu0 %v1807
    %v2226 = vpop.f32.mrf.mxu0
    %v2227 = vadd.f32 0.0, %v2226
    %v2228 = vpop.f32.mrf.mxu0
    %v2229 = vadd.f32 0.0, %v2228
    %v2230 = vpop.f32.mrf.mxu0
    %v2231 = vpop.f32.mrf.mxu0
    %2232 = vdwg.mxu0
    %2233 = vmatprep.subr.bf16.mxu0 %v2123
    %2234 = vmatpush1.bf16.msra.mxu0 %v2122
    %2235 = vmatprep.subr.bf16.mxu0 %v2115
    %2236 = vmatpush1.bf16.msra.mxu0 %v2114
    %2237 = vmatprep.subr.bf16.mxu0 %v2107
    %2238 = vmatpush1.bf16.msra.mxu0 %v2106
    %2239 = vmatprep.subr.bf16.mxu0 %v2099
    %2240 = vmatpush1.bf16.msra.mxu0 %v2098
    %2241 = vmatprep.subr.bf16.mxu0 %v2091
    %2242 = vmatpush1.bf16.msra.mxu0 %v2090
    %2243 = vmatprep.subr.bf16.mxu0 %v2083
    %2244 = vmatpush1.bf16.msra.mxu0 %v2082
    %2245 = vmatprep.subr.bf16.mxu0 %v2075
    %2246 = vmatpush1.bf16.msra.mxu0 %v2074
    %2247 = vmatprep.subr.bf16.mxu0 %v2067
    %2248 = vmatpush1.bf16.msra.mxu0 %v2066
    %2249 = vmatprep.subr.bf16.mxu0 0
    %2250 = vmatpush2.bf16.msra.mxu0 0
    %2251 = vmatprep.subr.bf16.mxu0 0
    %2252 = vmatpush2.bf16.msra.mxu0 0
    %2253 = vmatprep.subr.bf16.mxu0 0
    %2254 = vmatpush2.bf16.msra.mxu0 0
    %2255 = vmatprep.subr.bf16.mxu0 0
    %2256 = vmatpush2.bf16.msra.mxu0 0
    %2257 = vmatprep.subr.bf16.mxu0 0
    %2258 = vmatpush2.bf16.msra.mxu0 0
    %2259 = vmatprep.subr.bf16.mxu0 0
    %2260 = vmatpush2.bf16.msra.mxu0 0
    %2261 = vmatprep.subr.bf16.mxu0 0
    %2262 = vmatpush2.bf16.msra.mxu0 0
    %2263 = vmatprep.subr.bf16.mxu0 0
    %2264 = vmatpush2.bf16.msra.mxu0 0
    %2265 = vmatprep.mubr.bf16.mxu0 0
    %2266 = vmatmul.mubr.bf16.gmra.mxu0 %v1807
    %v2267 = vpop.f32.mrf.mxu0
    %v2268 = vadd.f32 0.0, %v2267
    %v2269 = vpop.f32.mrf.mxu0
    %v2270 = vadd.f32 0.0, %v2269
    %v2271 = vpop.f32.mrf.mxu0
    %v2272 = vpop.f32.mrf.mxu0
    %2273 = vdwg.mxu0
    %2274 = vmatprep.subr.bf16.mxu0 %v2125
    %2275 = vmatpush1.bf16.msra.mxu0 %v2124
    %2276 = vmatprep.subr.bf16.mxu0 %v2117
    %2277 = vmatpush1.bf16.msra.mxu0 %v2116
    %2278 = vmatprep.subr.bf16.mxu0 %v2109
    %2279 = vmatpush1.bf16.msra.mxu0 %v2108
    %2280 = vmatprep.subr.bf16.mxu0 %v2101
    %2281 = vmatpush1.bf16.msra.mxu0 %v2100
    %2282 = vmatprep.subr.bf16.mxu0 %v2093
    %2283 = vmatpush1.bf16.msra.mxu0 %v2092
    %2284 = vmatprep.subr.bf16.mxu0 %v2085
    %2285 = vmatpush1.bf16.msra.mxu0 %v2084
    %2286 = vmatprep.subr.bf16.mxu0 %v2077
    %2287 = vmatpush1.bf16.msra.mxu0 %v2076
    %2288 = vmatprep.subr.bf16.mxu0 %v2069
    %2289 = vmatpush1.bf16.msra.mxu0 %v2068
    %2290 = vmatprep.subr.bf16.mxu0 0
    %2291 = vmatpush2.bf16.msra.mxu0 0
    %2292 = vmatprep.subr.bf16.mxu0 0
    %2293 = vmatpush2.bf16.msra.mxu0 0
    %2294 = vmatprep.subr.bf16.mxu0 0
    %2295 = vmatpush2.bf16.msra.mxu0 0
    %2296 = vmatprep.subr.bf16.mxu0 0
    %2297 = vmatpush2.bf16.msra.mxu0 0
    %2298 = vmatprep.subr.bf16.mxu0 0
    %2299 = vmatpush2.bf16.msra.mxu0 0
    %2300 = vmatprep.subr.bf16.mxu0 0
    %2301 = vmatpush2.bf16.msra.mxu0 0
    %2302 = vmatprep.subr.bf16.mxu0 0
    %2303 = vmatpush2.bf16.msra.mxu0 0
    %2304 = vmatprep.subr.bf16.mxu0 0
    %2305 = vmatpush2.bf16.msra.mxu0 0
    %2306 = vmatprep.mubr.bf16.mxu0 0
    %2307 = vmatmul.mubr.bf16.gmra.mxu0 %v1807
    %v2308 = vpop.f32.mrf.mxu0
    %v2309 = vadd.f32 0.0, %v2308
    %v2310 = vpop.f32.mrf.mxu0
    %v2311 = vadd.f32 0.0, %v2310
    %v2312 = vpop.f32.mrf.mxu0
    %v2313 = vpop.f32.mrf.mxu0
    %2314 = vdwg.mxu0
    %2315 = vmatprep.subr.bf16.mxu0 %v2127
    %2316 = vmatpush1.bf16.msra.mxu0 %v2126
    %2317 = vmatprep.subr.bf16.mxu0 %v2119
    %2318 = vmatpush1.bf16.msra.mxu0 %v2118
    %2319 = vmatprep.subr.bf16.mxu0 %v2111
    %2320 = vmatpush1.bf16.msra.mxu0 %v2110
    %2321 = vmatprep.subr.bf16.mxu0 %v2103
    %2322 = vmatpush1.bf16.msra.mxu0 %v2102
    %2323 = vmatprep.subr.bf16.mxu0 %v2095
    %2324 = vmatpush1.bf16.msra.mxu0 %v2094
    %2325 = vmatprep.subr.bf16.mxu0 %v2087
    %2326 = vmatpush1.bf16.msra.mxu0 %v2086
    %2327 = vmatprep.subr.bf16.mxu0 %v2079
    %2328 = vmatpush1.bf16.msra.mxu0 %v2078
    %2329 = vmatprep.subr.bf16.mxu0 %v2071
    %2330 = vmatpush1.bf16.msra.mxu0 %v2070
    %2331 = vmatprep.subr.bf16.mxu0 0
    %2332 = vmatpush2.bf16.msra.mxu0 0
    %2333 = vmatprep.subr.bf16.mxu0 0
    %2334 = vmatpush2.bf16.msra.mxu0 0
    %2335 = vmatprep.subr.bf16.mxu0 0
    %2336 = vmatpush2.bf16.msra.mxu0 0
    %2337 = vmatprep.subr.bf16.mxu0 0
    %2338 = vmatpush2.bf16.msra.mxu0 0
    %2339 = vmatprep.subr.bf16.mxu0 0
    %2340 = vmatpush2.bf16.msra.mxu0 0
    %2341 = vmatprep.subr.bf16.mxu0 0
    %2342 = vmatpush2.bf16.msra.mxu0 0
    %2343 = vmatprep.subr.bf16.mxu0 0
    %2344 = vmatpush2.bf16.msra.mxu0 0
    %2345 = vmatprep.subr.bf16.mxu0 0
    %2346 = vmatpush2.bf16.msra.mxu0 0
    %2347 = vmatprep.mubr.bf16.mxu0 0
    %2348 = vmatmul.mubr.bf16.gmra.mxu0 %v1807
    %v2349 = vpop.f32.mrf.mxu0
    %v2350 = vadd.f32 0.0, %v2349
    %v2351 = vpop.f32.mrf.mxu0
    %v2352 = vadd.f32 0.0, %v2351
    %v2353 = vpop.f32.mrf.mxu0
    %v2354 = vpop.f32.mrf.mxu0
    %2355 = vdwg.mxu0
    %v2484 = vunpack.c.l.b16 %v1678
    %v2485 = vunpack.c.h.b16 %v1678
    %v2486 = vunpack.c.l.b16 %v1679
    %v2487 = vunpack.c.h.b16 %v1679
    %v2488 = vunpack.c.l.b16 %v1680
    %v2489 = vunpack.c.h.b16 %v1680
    %v2490 = vunpack.c.l.b16 %v1681
    %v2491 = vunpack.c.h.b16 %v1681
    %v2492 = vunpack.c.l.b16 %v1682
    %v2493 = vunpack.c.h.b16 %v1682
    %v2494 = vunpack.c.l.b16 %v1683
    %v2495 = vunpack.c.h.b16 %v1683
    %v2496 = vunpack.c.l.b16 %v1684
    %v2497 = vunpack.c.h.b16 %v1684
    %v2498 = vunpack.c.l.b16 %v1685
    %v2499 = vunpack.c.h.b16 %v1685
    %v2500 = vunpack.c.l.b16 %v1686
    %v2501 = vunpack.c.h.b16 %v1686
    %v2502 = vunpack.c.l.b16 %v1687
    %v2503 = vunpack.c.h.b16 %v1687
    %v2504 = vunpack.c.l.b16 %v1688
    %v2505 = vunpack.c.h.b16 %v1688
    %v2506 = vunpack.c.l.b16 %v1689
    %v2507 = vunpack.c.h.b16 %v1689
    %v2508 = vunpack.c.l.b16 %v1690
    %v2509 = vunpack.c.h.b16 %v1690
    %v2510 = vunpack.c.l.b16 %v1691
    %v2511 = vunpack.c.h.b16 %v1691
    %v2512 = vunpack.c.l.b16 %v1692
    %v2513 = vunpack.c.h.b16 %v1692
    %v2514 = vunpack.c.l.b16 %v1693
    %v2515 = vunpack.c.h.b16 %v1693
    %v2516 = vunpack.c.l.b16 %v1694
    %v2517 = vunpack.c.h.b16 %v1694
    %v2518 = vunpack.c.l.b16 %v1695
    %v2519 = vunpack.c.h.b16 %v1695
    %v2520 = vunpack.c.l.b16 %v1696
    %v2521 = vunpack.c.h.b16 %v1696
    %v2522 = vunpack.c.l.b16 %v1697
    %v2523 = vunpack.c.h.b16 %v1697
    %v2524 = vunpack.c.l.b16 %v1698
    %v2525 = vunpack.c.h.b16 %v1698
    %v2526 = vunpack.c.l.b16 %v1699
    %v2527 = vunpack.c.h.b16 %v1699
    %v2528 = vunpack.c.l.b16 %v1700
    %v2529 = vunpack.c.h.b16 %v1700
    %v2530 = vunpack.c.l.b16 %v1701
    %v2531 = vunpack.c.h.b16 %v1701
    %v2532 = vunpack.c.l.b16 %v1702
    %v2533 = vunpack.c.h.b16 %v1702
    %v2534 = vunpack.c.l.b16 %v1703
    %v2535 = vunpack.c.h.b16 %v1703
    %v2536 = vunpack.c.l.b16 %v1704
    %v2537 = vunpack.c.h.b16 %v1704
    %v2538 = vunpack.c.l.b16 %v1705
    %v2539 = vunpack.c.h.b16 %v1705
    %v2540 = vunpack.c.l.b16 %v1706
    %v2541 = vunpack.c.h.b16 %v1706
    %v2542 = vunpack.c.l.b16 %v1707
    %v2543 = vunpack.c.h.b16 %v1707
    %v2544 = vunpack.c.l.b16 %v1708
    %v2545 = vunpack.c.h.b16 %v1708
    %v2546 = vunpack.c.l.b16 %v1709
    %v2547 = vunpack.c.h.b16 %v1709
    %v2548 = vunpack.c.l.b16 %v1710
    %v2549 = vunpack.c.h.b16 %v1710
    %v2550 = vunpack.c.l.b16 %v1711
    %v2551 = vunpack.c.h.b16 %v1711
    %v2552 = vunpack.c.l.b16 %v1712
    %v2553 = vunpack.c.h.b16 %v1712
    %v2554 = vunpack.c.l.b16 %v1713
    %v2555 = vunpack.c.h.b16 %v1713
    %v2556 = vunpack.c.l.b16 %v1714
    %v2557 = vunpack.c.h.b16 %v1714
    %v2558 = vunpack.c.l.b16 %v1715
    %v2559 = vunpack.c.h.b16 %v1715
    %v2560 = vunpack.c.l.b16 %v1716
    %v2561 = vunpack.c.h.b16 %v1716
    %v2562 = vunpack.c.l.b16 %v1717
    %v2563 = vunpack.c.h.b16 %v1717
    %v2564 = vunpack.c.l.b16 %v1718
    %v2565 = vunpack.c.h.b16 %v1718
    %v2566 = vunpack.c.l.b16 %v1719
    %v2567 = vunpack.c.h.b16 %v1719
    %v2568 = vunpack.c.l.b16 %v1720
    %v2569 = vunpack.c.h.b16 %v1720
    %v2570 = vunpack.c.l.b16 %v1721
    %v2571 = vunpack.c.h.b16 %v1721
    %v2572 = vunpack.c.l.b16 %v1722
    %v2573 = vunpack.c.h.b16 %v1722
    %v2574 = vunpack.c.l.b16 %v1723
    %v2575 = vunpack.c.h.b16 %v1723
    %v2576 = vunpack.c.l.b16 %v1724
    %v2577 = vunpack.c.h.b16 %v1724
    %v2578 = vunpack.c.l.b16 %v1725
    %v2579 = vunpack.c.h.b16 %v1725
    %v2580 = vunpack.c.l.b16 %v1726
    %v2581 = vunpack.c.h.b16 %v1726
    %v2582 = vunpack.c.l.b16 %v1727
    %v2583 = vunpack.c.h.b16 %v1727
    %v2584 = vunpack.c.l.b16 %v1728
    %v2585 = vunpack.c.h.b16 %v1728
    %v2586 = vunpack.c.l.b16 %v1729
    %v2587 = vunpack.c.h.b16 %v1729
    %v2588 = vunpack.c.l.b16 %v1730
    %v2589 = vunpack.c.h.b16 %v1730
    %v2590 = vunpack.c.l.b16 %v1731
    %v2591 = vunpack.c.h.b16 %v1731
    %v2592 = vunpack.c.l.b16 %v1732
    %v2593 = vunpack.c.h.b16 %v1732
    %v2594 = vunpack.c.l.b16 %v1733
    %v2595 = vunpack.c.h.b16 %v1733
    %v2596 = vunpack.c.l.b16 %v1734
    %v2597 = vunpack.c.h.b16 %v1734
    %v2598 = vunpack.c.l.b16 %v1735
    %v2599 = vunpack.c.h.b16 %v1735
    %v2600 = vunpack.c.l.b16 %v1736
    %v2601 = vunpack.c.h.b16 %v1736
    %v2602 = vunpack.c.l.b16 %v1737
    %v2603 = vunpack.c.h.b16 %v1737
    %v2604 = vunpack.c.l.b16 %v1738
    %v2605 = vunpack.c.h.b16 %v1738
    %v2606 = vunpack.c.l.b16 %v1739
    %v2607 = vunpack.c.h.b16 %v1739
    %v2608 = vunpack.c.l.b16 %v1740
    %v2609 = vunpack.c.h.b16 %v1740
    %v2610 = vunpack.c.l.b16 %v1741
    %v2611 = vunpack.c.h.b16 %v1741
    %v2612 = vunpack.c.l.b16 %v1742
    %v2613 = vunpack.c.h.b16 %v1742
    %v2614 = vunpack.c.l.b16 %v1743
    %v2615 = vunpack.c.h.b16 %v1743
    %v2616 = vunpack.c.l.b16 %v1744
    %v2617 = vunpack.c.h.b16 %v1744
    %v2618 = vunpack.c.l.b16 %v1745
    %v2619 = vunpack.c.h.b16 %v1745
    %v2620 = vunpack.c.l.b16 %v1746
    %v2621 = vunpack.c.h.b16 %v1746
    %v2622 = vunpack.c.l.b16 %v1747
    %v2623 = vunpack.c.h.b16 %v1747
    %v2624 = vunpack.c.l.b16 %v1748
    %v2625 = vunpack.c.h.b16 %v1748
    %v2626 = vunpack.c.l.b16 %v1749
    %v2627 = vunpack.c.h.b16 %v1749
    %v2628 = vunpack.c.l.b16 %v1750
    %v2629 = vunpack.c.h.b16 %v1750
    %v2630 = vunpack.c.l.b16 %v1751
    %v2631 = vunpack.c.h.b16 %v1751
    %v2632 = vunpack.c.l.b16 %v1752
    %v2633 = vunpack.c.h.b16 %v1752
    %v2634 = vunpack.c.l.b16 %v1753
    %v2635 = vunpack.c.h.b16 %v1753
    %v2636 = vunpack.c.l.b16 %v1754
    %v2637 = vunpack.c.h.b16 %v1754
    %v2638 = vunpack.c.l.b16 %v1755
    %v2639 = vunpack.c.h.b16 %v1755
    %v2640 = vunpack.c.l.b16 %v1756
    %v2641 = vunpack.c.h.b16 %v1756
    %v2642 = vunpack.c.l.b16 %v1757
    %v2643 = vunpack.c.h.b16 %v1757
    %v2644 = vunpack.c.l.b16 %v1758
    %v2645 = vunpack.c.h.b16 %v1758
    %v2646 = vunpack.c.l.b16 %v1759
    %v2647 = vunpack.c.h.b16 %v1759
    %v2648 = vunpack.c.l.b16 %v1760
    %v2649 = vunpack.c.h.b16 %v1760
    %v2650 = vunpack.c.l.b16 %v1761
    %v2651 = vunpack.c.h.b16 %v1761
    %v2652 = vunpack.c.l.b16 %v1762
    %v2653 = vunpack.c.h.b16 %v1762
    %v2654 = vunpack.c.l.b16 %v1763
    %v2655 = vunpack.c.h.b16 %v1763
    %v2656 = vunpack.c.l.b16 %v1764
    %v2657 = vunpack.c.h.b16 %v1764
    %v2658 = vunpack.c.l.b16 %v1765
    %v2659 = vunpack.c.h.b16 %v1765
    %v2660 = vunpack.c.l.b16 %v1766
    %v2661 = vunpack.c.h.b16 %v1766
    %v2662 = vunpack.c.l.b16 %v1767
    %v2663 = vunpack.c.h.b16 %v1767
    %v2664 = vunpack.c.l.b16 %v1768
    %v2665 = vunpack.c.h.b16 %v1768
    %v2666 = vunpack.c.l.b16 %v1769
    %v2667 = vunpack.c.h.b16 %v1769
    %v2668 = vunpack.c.l.b16 %v1770
    %v2669 = vunpack.c.h.b16 %v1770
    %v2670 = vunpack.c.l.b16 %v1771
    %v2671 = vunpack.c.h.b16 %v1771
    %v2672 = vunpack.c.l.b16 %v1772
    %v2673 = vunpack.c.h.b16 %v1772
    %v2674 = vunpack.c.l.b16 %v1773
    %v2675 = vunpack.c.h.b16 %v1773
    %v2676 = vunpack.c.l.b16 %v1774
    %v2677 = vunpack.c.h.b16 %v1774
    %v2678 = vunpack.c.l.b16 %v1775
    %v2679 = vunpack.c.h.b16 %v1775
    %v2680 = vunpack.c.l.b16 %v1776
    %v2681 = vunpack.c.h.b16 %v1776
    %v2682 = vunpack.c.l.b16 %v1777
    %v2683 = vunpack.c.h.b16 %v1777
    %v2684 = vunpack.c.l.b16 %v1778
    %v2685 = vunpack.c.h.b16 %v1778
    %v2686 = vunpack.c.l.b16 %v1779
    %v2687 = vunpack.c.h.b16 %v1779
    %v2688 = vunpack.c.l.b16 %v1780
    %v2689 = vunpack.c.h.b16 %v1780
    %v2690 = vunpack.c.l.b16 %v1781
    %v2691 = vunpack.c.h.b16 %v1781
    %v2692 = vunpack.c.l.b16 %v1782
    %v2693 = vunpack.c.h.b16 %v1782
    %v2694 = vunpack.c.l.b16 %v1783
    %v2695 = vunpack.c.h.b16 %v1783
    %v2696 = vunpack.c.l.b16 %v1784
    %v2697 = vunpack.c.h.b16 %v1784
    %v2698 = vunpack.c.l.b16 %v1785
    %v2699 = vunpack.c.h.b16 %v1785
    %v2700 = vunpack.c.l.b16 %v1786
    %v2701 = vunpack.c.h.b16 %v1786
    %v2702 = vunpack.c.l.b16 %v1787
    %v2703 = vunpack.c.h.b16 %v1787
    %v2704 = vunpack.c.l.b16 %v1788
    %v2705 = vunpack.c.h.b16 %v1788
    %v2706 = vunpack.c.l.b16 %v1789
    %v2707 = vunpack.c.h.b16 %v1789
    %v2708 = vunpack.c.l.b16 %v1790
    %v2709 = vunpack.c.h.b16 %v1790
    %v2710 = vunpack.c.l.b16 %v1791
    %v2711 = vunpack.c.h.b16 %v1791
    %v2712 = vunpack.c.l.b16 %v1792
    %v2713 = vunpack.c.h.b16 %v1792
    %v2714 = vunpack.c.l.b16 %v1793
    %v2715 = vunpack.c.h.b16 %v1793
    %v2716 = vunpack.c.l.b16 %v1794
    %v2717 = vunpack.c.h.b16 %v1794
    %v2718 = vunpack.c.l.b16 %v1795
    %v2719 = vunpack.c.h.b16 %v1795
    %v2720 = vunpack.c.l.b16 %v1796
    %v2721 = vunpack.c.h.b16 %v1796
    %v2722 = vunpack.c.l.b16 %v1797
    %v2723 = vunpack.c.h.b16 %v1797
    %v2724 = vunpack.c.l.b16 %v1798
    %v2725 = vunpack.c.h.b16 %v1798
    %v2726 = vunpack.c.l.b16 %v1799
    %v2727 = vunpack.c.h.b16 %v1799
    %v2728 = vunpack.c.l.b16 %v1800
    %v2729 = vunpack.c.h.b16 %v1800
    %v2730 = vunpack.c.l.b16 %v1801
    %v2731 = vunpack.c.h.b16 %v1801
    %v2732 = vunpack.c.l.b16 %v1802
    %v2733 = vunpack.c.h.b16 %v1802
    %v2734 = vunpack.c.l.b16 %v1803
    %v2735 = vunpack.c.h.b16 %v1803
    %v2736 = vunpack.c.l.b16 %v1804
    %v2737 = vunpack.c.h.b16 %v1804
    %v2738 = vunpack.c.l.b16 %v1805
    %v2739 = vunpack.c.h.b16 %v1805
    %v2740 = vpack.c.b16 %v2492, %v2484
    %v2741 = vpack.c.b16 %v2493, %v2485
    %v2742 = vpack.c.b16 %v2494, %v2486
    %v2743 = vpack.c.b16 %v2495, %v2487
    %v2744 = vpack.c.b16 %v2496, %v2488
    %v2745 = vpack.c.b16 %v2497, %v2489
    %v2746 = vpack.c.b16 %v2498, %v2490
    %v2747 = vpack.c.b16 %v2499, %v2491
    %v2748 = vpack.c.b16 %v2508, %v2500
    %v2749 = vpack.c.b16 %v2509, %v2501
    %v2750 = vpack.c.b16 %v2510, %v2502
    %v2751 = vpack.c.b16 %v2511, %v2503
    %v2752 = vpack.c.b16 %v2512, %v2504
    %v2753 = vpack.c.b16 %v2513, %v2505
    %v2754 = vpack.c.b16 %v2514, %v2506
    %v2755 = vpack.c.b16 %v2515, %v2507
    %v2756 = vpack.c.b16 %v2524, %v2516
    %v2757 = vpack.c.b16 %v2525, %v2517
    %v2758 = vpack.c.b16 %v2526, %v2518
    %v2759 = vpack.c.b16 %v2527, %v2519
    %v2760 = vpack.c.b16 %v2528, %v2520
    %v2761 = vpack.c.b16 %v2529, %v2521
    %v2762 = vpack.c.b16 %v2530, %v2522
    %v2763 = vpack.c.b16 %v2531, %v2523
    %v2764 = vpack.c.b16 %v2540, %v2532
    %v2765 = vpack.c.b16 %v2541, %v2533
    %v2766 = vpack.c.b16 %v2542, %v2534
    %v2767 = vpack.c.b16 %v2543, %v2535
    %v2768 = vpack.c.b16 %v2544, %v2536
    %v2769 = vpack.c.b16 %v2545, %v2537
    %v2770 = vpack.c.b16 %v2546, %v2538
    %v2771 = vpack.c.b16 %v2547, %v2539
    %v2772 = vpack.c.b16 %v2556, %v2548
    %v2773 = vpack.c.b16 %v2557, %v2549
    %v2774 = vpack.c.b16 %v2558, %v2550
    %v2775 = vpack.c.b16 %v2559, %v2551
    %v2776 = vpack.c.b16 %v2560, %v2552
    %v2777 = vpack.c.b16 %v2561, %v2553
    %v2778 = vpack.c.b16 %v2562, %v2554
    %v2779 = vpack.c.b16 %v2563, %v2555
    %v2780 = vpack.c.b16 %v2572, %v2564
    %v2781 = vpack.c.b16 %v2573, %v2565
    %v2782 = vpack.c.b16 %v2574, %v2566
    %v2783 = vpack.c.b16 %v2575, %v2567
    %v2784 = vpack.c.b16 %v2576, %v2568
    %v2785 = vpack.c.b16 %v2577, %v2569
    %v2786 = vpack.c.b16 %v2578, %v2570
    %v2787 = vpack.c.b16 %v2579, %v2571
    %v2788 = vpack.c.b16 %v2588, %v2580
    %v2789 = vpack.c.b16 %v2589, %v2581
    %v2790 = vpack.c.b16 %v2590, %v2582
    %v2791 = vpack.c.b16 %v2591, %v2583
    %v2792 = vpack.c.b16 %v2592, %v2584
    %v2793 = vpack.c.b16 %v2593, %v2585
    %v2794 = vpack.c.b16 %v2594, %v2586
    %v2795 = vpack.c.b16 %v2595, %v2587
    %v2796 = vpack.c.b16 %v2604, %v2596
    %v2797 = vpack.c.b16 %v2605, %v2597
    %v2798 = vpack.c.b16 %v2606, %v2598
    %v2799 = vpack.c.b16 %v2607, %v2599
    %v2800 = vpack.c.b16 %v2608, %v2600
    %v2801 = vpack.c.b16 %v2609, %v2601
    %v2802 = vpack.c.b16 %v2610, %v2602
    %v2803 = vpack.c.b16 %v2611, %v2603
    %v2804 = vpack.c.b16 %v2620, %v2612
    %v2805 = vpack.c.b16 %v2621, %v2613
    %v2806 = vpack.c.b16 %v2622, %v2614
    %v2807 = vpack.c.b16 %v2623, %v2615
    %v2808 = vpack.c.b16 %v2624, %v2616
    %v2809 = vpack.c.b16 %v2625, %v2617
    %v2810 = vpack.c.b16 %v2626, %v2618
    %v2811 = vpack.c.b16 %v2627, %v2619
    %v2812 = vpack.c.b16 %v2636, %v2628
    %v2813 = vpack.c.b16 %v2637, %v2629
    %v2814 = vpack.c.b16 %v2638, %v2630
    %v2815 = vpack.c.b16 %v2639, %v2631
    %v2816 = vpack.c.b16 %v2640, %v2632
    %v2817 = vpack.c.b16 %v2641, %v2633
    %v2818 = vpack.c.b16 %v2642, %v2634
    %v2819 = vpack.c.b16 %v2643, %v2635
    %v2820 = vpack.c.b16 %v2652, %v2644
    %v2821 = vpack.c.b16 %v2653, %v2645
    %v2822 = vpack.c.b16 %v2654, %v2646
    %v2823 = vpack.c.b16 %v2655, %v2647
    %v2824 = vpack.c.b16 %v2656, %v2648
    %v2825 = vpack.c.b16 %v2657, %v2649
    %v2826 = vpack.c.b16 %v2658, %v2650
    %v2827 = vpack.c.b16 %v2659, %v2651
    %v2828 = vpack.c.b16 %v2668, %v2660
    %v2829 = vpack.c.b16 %v2669, %v2661
    %v2830 = vpack.c.b16 %v2670, %v2662
    %v2831 = vpack.c.b16 %v2671, %v2663
    %v2832 = vpack.c.b16 %v2672, %v2664
    %v2833 = vpack.c.b16 %v2673, %v2665
    %v2834 = vpack.c.b16 %v2674, %v2666
    %v2835 = vpack.c.b16 %v2675, %v2667
    %v2836 = vpack.c.b16 %v2684, %v2676
    %v2837 = vpack.c.b16 %v2685, %v2677
    %v2838 = vpack.c.b16 %v2686, %v2678
    %v2839 = vpack.c.b16 %v2687, %v2679
    %v2840 = vpack.c.b16 %v2688, %v2680
    %v2841 = vpack.c.b16 %v2689, %v2681
    %v2842 = vpack.c.b16 %v2690, %v2682
    %v2843 = vpack.c.b16 %v2691, %v2683
    %v2844 = vpack.c.b16 %v2700, %v2692
    %v2845 = vpack.c.b16 %v2701, %v2693
    %v2846 = vpack.c.b16 %v2702, %v2694
    %v2847 = vpack.c.b16 %v2703, %v2695
    %v2848 = vpack.c.b16 %v2704, %v2696
    %v2849 = vpack.c.b16 %v2705, %v2697
    %v2850 = vpack.c.b16 %v2706, %v2698
    %v2851 = vpack.c.b16 %v2707, %v2699
    %v2852 = vpack.c.b16 %v2716, %v2708
    %v2853 = vpack.c.b16 %v2717, %v2709
    %v2854 = vpack.c.b16 %v2718, %v2710
    %v2855 = vpack.c.b16 %v2719, %v2711
    %v2856 = vpack.c.b16 %v2720, %v2712
    %v2857 = vpack.c.b16 %v2721, %v2713
    %v2858 = vpack.c.b16 %v2722, %v2714
    %v2859 = vpack.c.b16 %v2723, %v2715
    %v2860 = vpack.c.b16 %v2732, %v2724
    %v2861 = vpack.c.b16 %v2733, %v2725
    %v2862 = vpack.c.b16 %v2734, %v2726
    %v2863 = vpack.c.b16 %v2735, %v2727
    %v2864 = vpack.c.b16 %v2736, %v2728
    %v2865 = vpack.c.b16 %v2737, %v2729
    %v2866 = vpack.c.b16 %v2738, %v2730
    %v2867 = vpack.c.b16 %v2739, %v2731
    %2996 = vmatprep.subr.bf16.mxu0 %v2797
    %2997 = vmatpush1.bf16.msra.mxu0 %v2796
    %2998 = vmatprep.subr.bf16.mxu0 %v2789
    %2999 = vmatpush1.bf16.msra.mxu0 %v2788
    %3000 = vmatprep.subr.bf16.mxu0 %v2781
    %3001 = vmatpush1.bf16.msra.mxu0 %v2780
    %3002 = vmatprep.subr.bf16.mxu0 %v2773
    %3003 = vmatpush1.bf16.msra.mxu0 %v2772
    %3004 = vmatprep.subr.bf16.mxu0 %v2765
    %3005 = vmatpush1.bf16.msra.mxu0 %v2764
    %3006 = vmatprep.subr.bf16.mxu0 %v2757
    %3007 = vmatpush1.bf16.msra.mxu0 %v2756
    %3008 = vmatprep.subr.bf16.mxu0 %v2749
    %3009 = vmatpush1.bf16.msra.mxu0 %v2748
    %3010 = vmatprep.subr.bf16.mxu0 %v2741
    %3011 = vmatpush1.bf16.msra.mxu0 %v2740
    %3012 = vmatprep.subr.bf16.mxu0 %v2861
    %3013 = vmatpush2.bf16.msra.mxu0 %v2860
    %3014 = vmatprep.subr.bf16.mxu0 %v2853
    %3015 = vmatpush2.bf16.msra.mxu0 %v2852
    %3016 = vmatprep.subr.bf16.mxu0 %v2845
    %3017 = vmatpush2.bf16.msra.mxu0 %v2844
    %3018 = vmatprep.subr.bf16.mxu0 %v2837
    %3019 = vmatpush2.bf16.msra.mxu0 %v2836
    %3020 = vmatprep.subr.bf16.mxu0 %v2829
    %3021 = vmatpush2.bf16.msra.mxu0 %v2828
    %3022 = vmatprep.subr.bf16.mxu0 %v2821
    %3023 = vmatpush2.bf16.msra.mxu0 %v2820
    %3024 = vmatprep.subr.bf16.mxu0 %v2813
    %3025 = vmatpush2.bf16.msra.mxu0 %v2812
    %3026 = vmatprep.subr.bf16.mxu0 %v2805
    %3027 = vmatpush2.bf16.msra.mxu0 %v2804
    %3028 = vmatprep.mubr.bf16.mxu0 %v1677
    %3029 = vmatmul.mubr.bf16.gmra.mxu0 %v1676
    %v3030 = vpop.f32.mrf.mxu0
    %v3031 = vadd.f32 %v2227, %v3030
    %v3032 = vpop.f32.mrf.mxu0
    %v3033 = vadd.f32 %v2229, %v3032
    %v3034 = vpop.f32.mrf.mxu0
    %v3035 = vpop.f32.mrf.mxu0
    %3036 = vdwg.mxu0
    %3037 = vmatprep.subr.bf16.mxu0 %v2799
    %3038 = vmatpush1.bf16.msra.mxu0 %v2798
    %3039 = vmatprep.subr.bf16.mxu0 %v2791
    %3040 = vmatpush1.bf16.msra.mxu0 %v2790
    %3041 = vmatprep.subr.bf16.mxu0 %v2783
    %3042 = vmatpush1.bf16.msra.mxu0 %v2782
    %3043 = vmatprep.subr.bf16.mxu0 %v2775
    %3044 = vmatpush1.bf16.msra.mxu0 %v2774
    %3045 = vmatprep.subr.bf16.mxu0 %v2767
    %3046 = vmatpush1.bf16.msra.mxu0 %v2766
    %3047 = vmatprep.subr.bf16.mxu0 %v2759
    %3048 = vmatpush1.bf16.msra.mxu0 %v2758
    %3049 = vmatprep.subr.bf16.mxu0 %v2751
    %3050 = vmatpush1.bf16.msra.mxu0 %v2750
    %3051 = vmatprep.subr.bf16.mxu0 %v2743
    %3052 = vmatpush1.bf16.msra.mxu0 %v2742
    %3053 = vmatprep.subr.bf16.mxu0 %v2863
    %3054 = vmatpush2.bf16.msra.mxu0 %v2862
    %3055 = vmatprep.subr.bf16.mxu0 %v2855
    %3056 = vmatpush2.bf16.msra.mxu0 %v2854
    %3057 = vmatprep.subr.bf16.mxu0 %v2847
    %3058 = vmatpush2.bf16.msra.mxu0 %v2846
    %3059 = vmatprep.subr.bf16.mxu0 %v2839
    %3060 = vmatpush2.bf16.msra.mxu0 %v2838
    %3061 = vmatprep.subr.bf16.mxu0 %v2831
    %3062 = vmatpush2.bf16.msra.mxu0 %v2830
    %3063 = vmatprep.subr.bf16.mxu0 %v2823
    %3064 = vmatpush2.bf16.msra.mxu0 %v2822
    %3065 = vmatprep.subr.bf16.mxu0 %v2815
    %3066 = vmatpush2.bf16.msra.mxu0 %v2814
    %3067 = vmatprep.subr.bf16.mxu0 %v2807
    %3068 = vmatpush2.bf16.msra.mxu0 %v2806
    %3069 = vmatprep.mubr.bf16.mxu0 %v1677
    %3070 = vmatmul.mubr.bf16.gmra.mxu0 %v1676
    %v3071 = vpop.f32.mrf.mxu0
    %v3072 = vadd.f32 %v2268, %v3071
    %v3073 = vpop.f32.mrf.mxu0
    %v3074 = vadd.f32 %v2270, %v3073
    %v3075 = vpop.f32.mrf.mxu0
    %v3076 = vpop.f32.mrf.mxu0
    %3077 = vdwg.mxu0
    %3078 = vmatprep.subr.bf16.mxu0 %v2801
    %3079 = vmatpush1.bf16.msra.mxu0 %v2800
    %3080 = vmatprep.subr.bf16.mxu0 %v2793
    %3081 = vmatpush1.bf16.msra.mxu0 %v2792
    %3082 = vmatprep.subr.bf16.mxu0 %v2785
    %3083 = vmatpush1.bf16.msra.mxu0 %v2784
    %3084 = vmatprep.subr.bf16.mxu0 %v2777
    %3085 = vmatpush1.bf16.msra.mxu0 %v2776
    %3086 = vmatprep.subr.bf16.mxu0 %v2769
    %3087 = vmatpush1.bf16.msra.mxu0 %v2768
    %3088 = vmatprep.subr.bf16.mxu0 %v2761
    %3089 = vmatpush1.bf16.msra.mxu0 %v2760
    %3090 = vmatprep.subr.bf16.mxu0 %v2753
    %3091 = vmatpush1.bf16.msra.mxu0 %v2752
    %3092 = vmatprep.subr.bf16.mxu0 %v2745
    %3093 = vmatpush1.bf16.msra.mxu0 %v2744
    %3094 = vmatprep.subr.bf16.mxu0 %v2865
    %3095 = vmatpush2.bf16.msra.mxu0 %v2864
    %3096 = vmatprep.subr.bf16.mxu0 %v2857
    %3097 = vmatpush2.bf16.msra.mxu0 %v2856
    %3098 = vmatprep.subr.bf16.mxu0 %v2849
    %3099 = vmatpush2.bf16.msra.mxu0 %v2848
    %3100 = vmatprep.subr.bf16.mxu0 %v2841
    %3101 = vmatpush2.bf16.msra.mxu0 %v2840
    %3102 = vmatprep.subr.bf16.mxu0 %v2833
    %3103 = vmatpush2.bf16.msra.mxu0 %v2832
    %3104 = vmatprep.subr.bf16.mxu0 %v2825
    %3105 = vmatpush2.bf16.msra.mxu0 %v2824
    %3106 = vmatprep.subr.bf16.mxu0 %v2817
    %3107 = vmatpush2.bf16.msra.mxu0 %v2816
    %3108 = vmatprep.subr.bf16.mxu0 %v2809
    %3109 = vmatpush2.bf16.msra.mxu0 %v2808
    %3110 = vmatprep.mubr.bf16.mxu0 %v1677
    %3111 = vmatmul.mubr.bf16.gmra.mxu0 %v1676
    %v3112 = vpop.f32.mrf.mxu0
    %v3113 = vadd.f32 %v2309, %v3112
    %v3114 = vpop.f32.mrf.mxu0
    %v3115 = vadd.f32 %v2311, %v3114
    %v3116 = vpop.f32.mrf.mxu0
    %v3117 = vpop.f32.mrf.mxu0
    %3118 = vdwg.mxu0
    %3119 = vmatprep.subr.bf16.mxu0 %v2803
    %3120 = vmatpush1.bf16.msra.mxu0 %v2802
    %3121 = vmatprep.subr.bf16.mxu0 %v2795
    %3122 = vmatpush1.bf16.msra.mxu0 %v2794
    %3123 = vmatprep.subr.bf16.mxu0 %v2787
    %3124 = vmatpush1.bf16.msra.mxu0 %v2786
    %3125 = vmatprep.subr.bf16.mxu0 %v2779
    %3126 = vmatpush1.bf16.msra.mxu0 %v2778
    %3127 = vmatprep.subr.bf16.mxu0 %v2771
    %3128 = vmatpush1.bf16.msra.mxu0 %v2770
    %3129 = vmatprep.subr.bf16.mxu0 %v2763
    %3130 = vmatpush1.bf16.msra.mxu0 %v2762
    %3131 = vmatprep.subr.bf16.mxu0 %v2755
    %3132 = vmatpush1.bf16.msra.mxu0 %v2754
    %3133 = vmatprep.subr.bf16.mxu0 %v2747
    %3134 = vmatpush1.bf16.msra.mxu0 %v2746
    %3135 = vmatprep.subr.bf16.mxu0 %v2867
    %3136 = vmatpush2.bf16.msra.mxu0 %v2866
    %3137 = vmatprep.subr.bf16.mxu0 %v2859
    %3138 = vmatpush2.bf16.msra.mxu0 %v2858
    %3139 = vmatprep.subr.bf16.mxu0 %v2851
    %3140 = vmatpush2.bf16.msra.mxu0 %v2850
    %3141 = vmatprep.subr.bf16.mxu0 %v2843
    %3142 = vmatpush2.bf16.msra.mxu0 %v2842
    %3143 = vmatprep.subr.bf16.mxu0 %v2835
    %3144 = vmatpush2.bf16.msra.mxu0 %v2834
    %3145 = vmatprep.subr.bf16.mxu0 %v2827
    %3146 = vmatpush2.bf16.msra.mxu0 %v2826
    %3147 = vmatprep.subr.bf16.mxu0 %v2819
    %3148 = vmatpush2.bf16.msra.mxu0 %v2818
    %3149 = vmatprep.subr.bf16.mxu0 %v2811
    %3150 = vmatpush2.bf16.msra.mxu0 %v2810
    %3151 = vmatprep.mubr.bf16.mxu0 %v1677
    %3152 = vmatmul.mubr.bf16.gmra.mxu0 %v1676
    %v3153 = vpop.f32.mrf.mxu0
    %v3154 = vadd.f32 %v2350, %v3153
    %v3155 = vpop.f32.mrf.mxu0
    %v3156 = vadd.f32 %v2352, %v3155
    %v3157 = vpop.f32.mrf.mxu0
    %v3158 = vpop.f32.mrf.mxu0
    %3159 = vdwg.mxu0
    %v3160 = vld [vmem:[#allocation17] sm:$0xff]
    %v3162 = vlaneseq
    %v3163 = vshrl.u32 %v3162, 7
    %v3164 = vsub.s32 0, %v3163
    %v3165 = vrot.slane %v3160, %v3164
    %v3166 = vlaneseq
    %v3167 = vshrl.u32 %v3166, 7
    %v3168 = vsub.s32 1, %v3167
    %v3169 = vrot.slane %v3160, %v3168
    %v3170 = vlaneseq
    %v3171 = vshrl.u32 %v3170, 7
    %v3172 = vsub.s32 2, %v3171
    %v3173 = vrot.slane %v3160, %v3172
    %v3174 = vlaneseq
    %v3175 = vshrl.u32 %v3174, 7
    %v3176 = vsub.s32 3, %v3175
    %v3177 = vrot.slane %v3160, %v3176
    %v3178 = vlaneseq
    %v3179 = vshrl.u32 %v3178, 7
    %v3180 = vsub.s32 4, %v3179
    %v3181 = vrot.slane %v3160, %v3180
    %v3182 = vlaneseq
    %v3183 = vshrl.u32 %v3182, 7
    %v3184 = vsub.s32 5, %v3183
    %v3185 = vrot.slane %v3160, %v3184
    %v3186 = vlaneseq
    %v3187 = vshrl.u32 %v3186, 7
    %v3188 = vsub.s32 6, %v3187
    %v3189 = vrot.slane %v3160, %v3188
    %v3190 = vlaneseq
    %v3191 = vshrl.u32 %v3190, 7
    %v3192 = vsub.s32 7, %v3191
    %v3193 = vrot.slane %v3160, %v3192
    %v3202 = vadd.f32 %v3031, %v3165
    %v3203 = vadd.f32 %v3033, %v3169
    %v3204 = vadd.f32 %v3072, %v3173
    %v3205 = vadd.f32 %v3074, %v3177
    %v3206 = vadd.f32 %v3113, %v3181
    %v3207 = vadd.f32 %v3115, %v3185
    %v3208 = vadd.f32 %v3154, %v3189
    %v3209 = vadd.f32 %v3156, %v3193
    %3210 = vst [vmem:[#allocation2] sm:$0xff] %v3202
    %3211 = vst [vmem:[#allocation2 + $0x8] sm:$0xff] %v3203
    %3212 = vst [vmem:[#allocation2 + $0x10] sm:$0xff] %v3204
    %3213 = vst [vmem:[#allocation2 + $0x18] sm:$0xff] %v3205
    %3214 = vst [vmem:[#allocation2 + $0x20] sm:$0xff] %v3206
    %3215 = vst [vmem:[#allocation2 + $0x28] sm:$0xff] %v3207
    %3216 = vst [vmem:[#allocation2 + $0x30] sm:$0xff] %v3208
    %3217 = vst [vmem:[#allocation2 + $0x38] sm:$0xff] %v3209
    %s3218 = smul.u32 4, 32
    %s3219 = smul.u32 %s3218, 8
    %s3220 = sshll.u32 %s3219, 4
    %3221 = dma.done [#allocation5], %s3220
    %s3222 = smul.u32 4, 64
    %s3223 = smul.u32 %s3222, 8
    %s3224 = sshll.u32 %s3223, 4
    %3225 = dma.done %s176, %s3224
    %v3226 = vld [vmem:[#allocation3] sm:$0xff]
    %v3227 = vld [vmem:[#allocation3 + $0x8] sm:$0xff]
    %v3228 = vld [vmem:[#allocation3 + $0x10] sm:$0xff]
    %v3229 = vld [vmem:[#allocation3 + $0x18] sm:$0xff]
    %v3230 = vld [vmem:[#allocation3 + $0x20] sm:$0xff]
    %v3231 = vld [vmem:[#allocation3 + $0x28] sm:$0xff]
    %v3232 = vld [vmem:[#allocation3 + $0x30] sm:$0xff]
    %v3233 = vld [vmem:[#allocation3 + $0x38] sm:$0xff]
    %v3234 = vld [vmem:[#allocation3 + $0x40] sm:$0xff]
    %v3235 = vld [vmem:[#allocation3 + $0x48] sm:$0xff]
    %v3236 = vld [vmem:[#allocation3 + $0x50] sm:$0xff]
    %v3237 = vld [vmem:[#allocation3 + $0x58] sm:$0xff]
    %v3238 = vld [vmem:[#allocation3 + $0x60] sm:$0xff]
    %v3239 = vld [vmem:[#allocation3 + $0x68] sm:$0xff]
    %v3240 = vld [vmem:[#allocation3 + $0x70] sm:$0xff]
    %v3241 = vld [vmem:[#allocation3 + $0x78] sm:$0xff]
    %v3242 = vld [vmem:[#allocation3 + $0x80] sm:$0xff]
    %v3243 = vld [vmem:[#allocation3 + $0x88] sm:$0xff]
    %v3244 = vld [vmem:[#allocation3 + $0x90] sm:$0xff]
    %v3245 = vld [vmem:[#allocation3 + $0x98] sm:$0xff]
    %v3246 = vld [vmem:[#allocation3 + $0xa0] sm:$0xff]
    %v3247 = vld [vmem:[#allocation3 + $0xa8] sm:$0xff]
    %v3248 = vld [vmem:[#allocation3 + $0xb0] sm:$0xff]
    %v3249 = vld [vmem:[#allocation3 + $0xb8] sm:$0xff]
    %v3250 = vld [vmem:[#allocation3 + $0xc0] sm:$0xff]
    %v3251 = vld [vmem:[#allocation3 + $0xc8] sm:$0xff]
    %v3252 = vld [vmem:[#allocation3 + $0xd0] sm:$0xff]
    %v3253 = vld [vmem:[#allocation3 + $0xd8] sm:$0xff]
    %v3254 = vld [vmem:[#allocation3 + $0xe0] sm:$0xff]
    %v3255 = vld [vmem:[#allocation3 + $0xe8] sm:$0xff]
    %v3256 = vld [vmem:[#allocation3 + $0xf0] sm:$0xff]
    %v3257 = vld [vmem:[#allocation3 + $0xf8] sm:$0xff]
    %v3258 = vld [vmem:[#allocation3 + $0x100] sm:$0xff]
    %v3259 = vld [vmem:[#allocation3 + $0x108] sm:$0xff]
    %v3260 = vld [vmem:[#allocation3 + $0x110] sm:$0xff]
    %v3261 = vld [vmem:[#allocation3 + $0x118] sm:$0xff]
    %v3262 = vld [vmem:[#allocation3 + $0x120] sm:$0xff]
    %v3263 = vld [vmem:[#allocation3 + $0x128] sm:$0xff]
    %v3264 = vld [vmem:[#allocation3 + $0x130] sm:$0xff]
    %v3265 = vld [vmem:[#allocation3 + $0x138] sm:$0xff]
    %v3266 = vld [vmem:[#allocation3 + $0x140] sm:$0xff]
    %v3267 = vld [vmem:[#allocation3 + $0x148] sm:$0xff]
    %v3268 = vld [vmem:[#allocation3 + $0x150] sm:$0xff]
    %v3269 = vld [vmem:[#allocation3 + $0x158] sm:$0xff]
    %v3270 = vld [vmem:[#allocation3 + $0x160] sm:$0xff]
    %v3271 = vld [vmem:[#allocation3 + $0x168] sm:$0xff]
    %v3272 = vld [vmem:[#allocation3 + $0x170] sm:$0xff]
    %v3273 = vld [vmem:[#allocation3 + $0x178] sm:$0xff]
    %v3274 = vld [vmem:[#allocation3 + $0x180] sm:$0xff]
    %v3275 = vld [vmem:[#allocation3 + $0x188] sm:$0xff]
    %v3276 = vld [vmem:[#allocation3 + $0x190] sm:$0xff]
    %v3277 = vld [vmem:[#allocation3 + $0x198] sm:$0xff]
    %v3278 = vld [vmem:[#allocation3 + $0x1a0] sm:$0xff]
    %v3279 = vld [vmem:[#allocation3 + $0x1a8] sm:$0xff]
    %v3280 = vld [vmem:[#allocation3 + $0x1b0] sm:$0xff]
    %v3281 = vld [vmem:[#allocation3 + $0x1b8] sm:$0xff]
    %v3282 = vld [vmem:[#allocation3 + $0x1c0] sm:$0xff]
    %v3283 = vld [vmem:[#allocation3 + $0x1c8] sm:$0xff]
    %v3284 = vld [vmem:[#allocation3 + $0x1d0] sm:$0xff]
    %v3285 = vld [vmem:[#allocation3 + $0x1d8] sm:$0xff]
    %v3286 = vld [vmem:[#allocation3 + $0x1e0] sm:$0xff]
    %v3287 = vld [vmem:[#allocation3 + $0x1e8] sm:$0xff]
    %v3288 = vld [vmem:[#allocation3 + $0x1f0] sm:$0xff]
    %v3289 = vld [vmem:[#allocation3 + $0x1f8] sm:$0xff]
    %v3290 = vld [vmem:[#allocation3 + $0x200] sm:$0xff]
    %v3291 = vld [vmem:[#allocation3 + $0x208] sm:$0xff]
    %v3292 = vld [vmem:[#allocation3 + $0x210] sm:$0xff]
    %v3293 = vld [vmem:[#allocation3 + $0x218] sm:$0xff]
    %v3294 = vld [vmem:[#allocation3 + $0x220] sm:$0xff]
    %v3295 = vld [vmem:[#allocation3 + $0x228] sm:$0xff]
    %v3296 = vld [vmem:[#allocation3 + $0x230] sm:$0xff]
    %v3297 = vld [vmem:[#allocation3 + $0x238] sm:$0xff]
    %v3298 = vld [vmem:[#allocation3 + $0x240] sm:$0xff]
    %v3299 = vld [vmem:[#allocation3 + $0x248] sm:$0xff]
    %v3300 = vld [vmem:[#allocation3 + $0x250] sm:$0xff]
    %v3301 = vld [vmem:[#allocation3 + $0x258] sm:$0xff]
    %v3302 = vld [vmem:[#allocation3 + $0x260] sm:$0xff]
    %v3303 = vld [vmem:[#allocation3 + $0x268] sm:$0xff]
    %v3304 = vld [vmem:[#allocation3 + $0x270] sm:$0xff]
    %v3305 = vld [vmem:[#allocation3 + $0x278] sm:$0xff]
    %v3306 = vld [vmem:[#allocation3 + $0x280] sm:$0xff]
    %v3307 = vld [vmem:[#allocation3 + $0x288] sm:$0xff]
    %v3308 = vld [vmem:[#allocation3 + $0x290] sm:$0xff]
    %v3309 = vld [vmem:[#allocation3 + $0x298] sm:$0xff]
    %v3310 = vld [vmem:[#allocation3 + $0x2a0] sm:$0xff]
    %v3311 = vld [vmem:[#allocation3 + $0x2a8] sm:$0xff]
    %v3312 = vld [vmem:[#allocation3 + $0x2b0] sm:$0xff]
    %v3313 = vld [vmem:[#allocation3 + $0x2b8] sm:$0xff]
    %v3314 = vld [vmem:[#allocation3 + $0x2c0] sm:$0xff]
    %v3315 = vld [vmem:[#allocation3 + $0x2c8] sm:$0xff]
    %v3316 = vld [vmem:[#allocation3 + $0x2d0] sm:$0xff]
    %v3317 = vld [vmem:[#allocation3 + $0x2d8] sm:$0xff]
    %v3318 = vld [vmem:[#allocation3 + $0x2e0] sm:$0xff]
    %v3319 = vld [vmem:[#allocation3 + $0x2e8] sm:$0xff]
    %v3320 = vld [vmem:[#allocation3 + $0x2f0] sm:$0xff]
    %v3321 = vld [vmem:[#allocation3 + $0x2f8] sm:$0xff]
    %v3322 = vld [vmem:[#allocation3 + $0x300] sm:$0xff]
    %v3323 = vld [vmem:[#allocation3 + $0x308] sm:$0xff]
    %v3324 = vld [vmem:[#allocation3 + $0x310] sm:$0xff]
    %v3325 = vld [vmem:[#allocation3 + $0x318] sm:$0xff]
    %v3326 = vld [vmem:[#allocation3 + $0x320] sm:$0xff]
    %v3327 = vld [vmem:[#allocation3 + $0x328] sm:$0xff]
    %v3328 = vld [vmem:[#allocation3 + $0x330] sm:$0xff]
    %v3329 = vld [vmem:[#allocation3 + $0x338] sm:$0xff]
    %v3330 = vld [vmem:[#allocation3 + $0x340] sm:$0xff]
    %v3331 = vld [vmem:[#allocation3 + $0x348] sm:$0xff]
    %v3332 = vld [vmem:[#allocation3 + $0x350] sm:$0xff]
    %v3333 = vld [vmem:[#allocation3 + $0x358] sm:$0xff]
    %v3334 = vld [vmem:[#allocation3 + $0x360] sm:$0xff]
    %v3335 = vld [vmem:[#allocation3 + $0x368] sm:$0xff]
    %v3336 = vld [vmem:[#allocation3 + $0x370] sm:$0xff]
    %v3337 = vld [vmem:[#allocation3 + $0x378] sm:$0xff]
    %v3338 = vld [vmem:[#allocation3 + $0x380] sm:$0xff]
    %v3339 = vld [vmem:[#allocation3 + $0x388] sm:$0xff]
    %v3340 = vld [vmem:[#allocation3 + $0x390] sm:$0xff]
    %v3341 = vld [vmem:[#allocation3 + $0x398] sm:$0xff]
    %v3342 = vld [vmem:[#allocation3 + $0x3a0] sm:$0xff]
    %v3343 = vld [vmem:[#allocation3 + $0x3a8] sm:$0xff]
    %v3344 = vld [vmem:[#allocation3 + $0x3b0] sm:$0xff]
    %v3345 = vld [vmem:[#allocation3 + $0x3b8] sm:$0xff]
    %v3346 = vld [vmem:[#allocation3 + $0x3c0] sm:$0xff]
    %v3347 = vld [vmem:[#allocation3 + $0x3c8] sm:$0xff]
    %v3348 = vld [vmem:[#allocation3 + $0x3d0] sm:$0xff]
    %v3349 = vld [vmem:[#allocation3 + $0x3d8] sm:$0xff]
    %v3350 = vld [vmem:[#allocation3 + $0x3e0] sm:$0xff]
    %v3351 = vld [vmem:[#allocation3 + $0x3e8] sm:$0xff]
    %v3352 = vld [vmem:[#allocation3 + $0x3f0] sm:$0xff]
    %v3353 = vld [vmem:[#allocation3 + $0x3f8] sm:$0xff]
    %v3354 = vld [vmem:[#allocation4] sm:$0xff]
    %v3355 = vld [vmem:[#allocation4 + $0x8] sm:$0xff]
    %v3356 = vld [vmem:[#allocation4 + $0x10] sm:$0xff]
    %v3357 = vld [vmem:[#allocation4 + $0x18] sm:$0xff]
    %v3358 = vld [vmem:[#allocation4 + $0x20] sm:$0xff]
    %v3359 = vld [vmem:[#allocation4 + $0x28] sm:$0xff]
    %v3360 = vld [vmem:[#allocation4 + $0x30] sm:$0xff]
    %v3361 = vld [vmem:[#allocation4 + $0x38] sm:$0xff]
    %v3362 = vld [vmem:[#allocation4 + $0x40] sm:$0xff]
    %v3363 = vld [vmem:[#allocation4 + $0x48] sm:$0xff]
    %v3364 = vld [vmem:[#allocation4 + $0x50] sm:$0xff]
    %v3365 = vld [vmem:[#allocation4 + $0x58] sm:$0xff]
    %v3366 = vld [vmem:[#allocation4 + $0x60] sm:$0xff]
    %v3367 = vld [vmem:[#allocation4 + $0x68] sm:$0xff]
    %v3368 = vld [vmem:[#allocation4 + $0x70] sm:$0xff]
    %v3369 = vld [vmem:[#allocation4 + $0x78] sm:$0xff]
    %v3370 = vld [vmem:[#allocation4 + $0x80] sm:$0xff]
    %v3371 = vld [vmem:[#allocation4 + $0x88] sm:$0xff]
    %v3372 = vld [vmem:[#allocation4 + $0x90] sm:$0xff]
    %v3373 = vld [vmem:[#allocation4 + $0x98] sm:$0xff]
    %v3374 = vld [vmem:[#allocation4 + $0xa0] sm:$0xff]
    %v3375 = vld [vmem:[#allocation4 + $0xa8] sm:$0xff]
    %v3376 = vld [vmem:[#allocation4 + $0xb0] sm:$0xff]
    %v3377 = vld [vmem:[#allocation4 + $0xb8] sm:$0xff]
    %v3378 = vld [vmem:[#allocation4 + $0xc0] sm:$0xff]
    %v3379 = vld [vmem:[#allocation4 + $0xc8] sm:$0xff]
    %v3380 = vld [vmem:[#allocation4 + $0xd0] sm:$0xff]
    %v3381 = vld [vmem:[#allocation4 + $0xd8] sm:$0xff]
    %v3382 = vld [vmem:[#allocation4 + $0xe0] sm:$0xff]
    %v3383 = vld [vmem:[#allocation4 + $0xe8] sm:$0xff]
    %v3384 = vld [vmem:[#allocation4 + $0xf0] sm:$0xff]
    %v3385 = vld [vmem:[#allocation4 + $0xf8] sm:$0xff]
    %v3386 = vld [vmem:[#allocation4 + $0x100] sm:$0xff]
    %v3387 = vld [vmem:[#allocation4 + $0x108] sm:$0xff]
    %v3388 = vld [vmem:[#allocation4 + $0x110] sm:$0xff]
    %v3389 = vld [vmem:[#allocation4 + $0x118] sm:$0xff]
    %v3390 = vld [vmem:[#allocation4 + $0x120] sm:$0xff]
    %v3391 = vld [vmem:[#allocation4 + $0x128] sm:$0xff]
    %v3392 = vld [vmem:[#allocation4 + $0x130] sm:$0xff]
    %v3393 = vld [vmem:[#allocation4 + $0x138] sm:$0xff]
    %v3394 = vld [vmem:[#allocation4 + $0x140] sm:$0xff]
    %v3395 = vld [vmem:[#allocation4 + $0x148] sm:$0xff]
    %v3396 = vld [vmem:[#allocation4 + $0x150] sm:$0xff]
    %v3397 = vld [vmem:[#allocation4 + $0x158] sm:$0xff]
    %v3398 = vld [vmem:[#allocation4 + $0x160] sm:$0xff]
    %v3399 = vld [vmem:[#allocation4 + $0x168] sm:$0xff]
    %v3400 = vld [vmem:[#allocation4 + $0x170] sm:$0xff]
    %v3401 = vld [vmem:[#allocation4 + $0x178] sm:$0xff]
    %v3402 = vld [vmem:[#allocation4 + $0x180] sm:$0xff]
    %v3403 = vld [vmem:[#allocation4 + $0x188] sm:$0xff]
    %v3404 = vld [vmem:[#allocation4 + $0x190] sm:$0xff]
    %v3405 = vld [vmem:[#allocation4 + $0x198] sm:$0xff]
    %v3406 = vld [vmem:[#allocation4 + $0x1a0] sm:$0xff]
    %v3407 = vld [vmem:[#allocation4 + $0x1a8] sm:$0xff]
    %v3408 = vld [vmem:[#allocation4 + $0x1b0] sm:$0xff]
    %v3409 = vld [vmem:[#allocation4 + $0x1b8] sm:$0xff]
    %v3410 = vld [vmem:[#allocation4 + $0x1c0] sm:$0xff]
    %v3411 = vld [vmem:[#allocation4 + $0x1c8] sm:$0xff]
    %v3412 = vld [vmem:[#allocation4 + $0x1d0] sm:$0xff]
    %v3413 = vld [vmem:[#allocation4 + $0x1d8] sm:$0xff]
    %v3414 = vld [vmem:[#allocation4 + $0x1e0] sm:$0xff]
    %v3415 = vld [vmem:[#allocation4 + $0x1e8] sm:$0xff]
    %v3416 = vld [vmem:[#allocation4 + $0x1f0] sm:$0xff]
    %v3417 = vld [vmem:[#allocation4 + $0x1f8] sm:$0xff]
    %v3418 = vld [vmem:[#allocation4 + $0x200] sm:$0xff]
    %v3419 = vld [vmem:[#allocation4 + $0x208] sm:$0xff]
    %v3420 = vld [vmem:[#allocation4 + $0x210] sm:$0xff]
    %v3421 = vld [vmem:[#allocation4 + $0x218] sm:$0xff]
    %v3422 = vld [vmem:[#allocation4 + $0x220] sm:$0xff]
    %v3423 = vld [vmem:[#allocation4 + $0x228] sm:$0xff]
    %v3424 = vld [vmem:[#allocation4 + $0x230] sm:$0xff]
    %v3425 = vld [vmem:[#allocation4 + $0x238] sm:$0xff]
    %v3426 = vld [vmem:[#allocation4 + $0x240] sm:$0xff]
    %v3427 = vld [vmem:[#allocation4 + $0x248] sm:$0xff]
    %v3428 = vld [vmem:[#allocation4 + $0x250] sm:$0xff]
    %v3429 = vld [vmem:[#allocation4 + $0x258] sm:$0xff]
    %v3430 = vld [vmem:[#allocation4 + $0x260] sm:$0xff]
    %v3431 = vld [vmem:[#allocation4 + $0x268] sm:$0xff]
    %v3432 = vld [vmem:[#allocation4 + $0x270] sm:$0xff]
    %v3433 = vld [vmem:[#allocation4 + $0x278] sm:$0xff]
    %v3434 = vld [vmem:[#allocation4 + $0x280] sm:$0xff]
    %v3435 = vld [vmem:[#allocation4 + $0x288] sm:$0xff]
    %v3436 = vld [vmem:[#allocation4 + $0x290] sm:$0xff]
    %v3437 = vld [vmem:[#allocation4 + $0x298] sm:$0xff]
    %v3438 = vld [vmem:[#allocation4 + $0x2a0] sm:$0xff]
    %v3439 = vld [vmem:[#allocation4 + $0x2a8] sm:$0xff]
    %v3440 = vld [vmem:[#allocation4 + $0x2b0] sm:$0xff]
    %v3441 = vld [vmem:[#allocation4 + $0x2b8] sm:$0xff]
    %v3442 = vld [vmem:[#allocation4 + $0x2c0] sm:$0xff]
    %v3443 = vld [vmem:[#allocation4 + $0x2c8] sm:$0xff]
    %v3444 = vld [vmem:[#allocation4 + $0x2d0] sm:$0xff]
    %v3445 = vld [vmem:[#allocation4 + $0x2d8] sm:$0xff]
    %v3446 = vld [vmem:[#allocation4 + $0x2e0] sm:$0xff]
    %v3447 = vld [vmem:[#allocation4 + $0x2e8] sm:$0xff]
    %v3448 = vld [vmem:[#allocation4 + $0x2f0] sm:$0xff]
    %v3449 = vld [vmem:[#allocation4 + $0x2f8] sm:$0xff]
    %v3450 = vld [vmem:[#allocation4 + $0x300] sm:$0xff]
    %v3451 = vld [vmem:[#allocation4 + $0x308] sm:$0xff]
    %v3452 = vld [vmem:[#allocation4 + $0x310] sm:$0xff]
    %v3453 = vld [vmem:[#allocation4 + $0x318] sm:$0xff]
    %v3454 = vld [vmem:[#allocation4 + $0x320] sm:$0xff]
    %v3455 = vld [vmem:[#allocation4 + $0x328] sm:$0xff]
    %v3456 = vld [vmem:[#allocation4 + $0x330] sm:$0xff]
    %v3457 = vld [vmem:[#allocation4 + $0x338] sm:$0xff]
    %v3458 = vld [vmem:[#allocation4 + $0x340] sm:$0xff]
    %v3459 = vld [vmem:[#allocation4 + $0x348] sm:$0xff]
    %v3460 = vld [vmem:[#allocation4 + $0x350] sm:$0xff]
    %v3461 = vld [vmem:[#allocation4 + $0x358] sm:$0xff]
    %v3462 = vld [vmem:[#allocation4 + $0x360] sm:$0xff]
    %v3463 = vld [vmem:[#allocation4 + $0x368] sm:$0xff]
    %v3464 = vld [vmem:[#allocation4 + $0x370] sm:$0xff]
    %v3465 = vld [vmem:[#allocation4 + $0x378] sm:$0xff]
    %v3466 = vld [vmem:[#allocation4 + $0x380] sm:$0xff]
    %v3467 = vld [vmem:[#allocation4 + $0x388] sm:$0xff]
    %v3468 = vld [vmem:[#allocation4 + $0x390] sm:$0xff]
    %v3469 = vld [vmem:[#allocation4 + $0x398] sm:$0xff]
    %v3470 = vld [vmem:[#allocation4 + $0x3a0] sm:$0xff]
    %v3471 = vld [vmem:[#allocation4 + $0x3a8] sm:$0xff]
    %v3472 = vld [vmem:[#allocation4 + $0x3b0] sm:$0xff]
    %v3473 = vld [vmem:[#allocation4 + $0x3b8] sm:$0xff]
    %v3474 = vld [vmem:[#allocation4 + $0x3c0] sm:$0xff]
    %v3475 = vld [vmem:[#allocation4 + $0x3c8] sm:$0xff]
    %v3476 = vld [vmem:[#allocation4 + $0x3d0] sm:$0xff]
    %v3477 = vld [vmem:[#allocation4 + $0x3d8] sm:$0xff]
    %v3478 = vld [vmem:[#allocation4 + $0x3e0] sm:$0xff]
    %v3479 = vld [vmem:[#allocation4 + $0x3e8] sm:$0xff]
    %v3480 = vld [vmem:[#allocation4 + $0x3f0] sm:$0xff]
    %v3481 = vld [vmem:[#allocation4 + $0x3f8] sm:$0xff]
    %v3482 = vld [vmem:[#allocation4 + $0x400] sm:$0xff]
    %v3483 = vld [vmem:[#allocation4 + $0x408] sm:$0xff]
    %v3484 = vld [vmem:[#allocation4 + $0x410] sm:$0xff]
    %v3485 = vld [vmem:[#allocation4 + $0x418] sm:$0xff]
    %v3486 = vld [vmem:[#allocation4 + $0x420] sm:$0xff]
    %v3487 = vld [vmem:[#allocation4 + $0x428] sm:$0xff]
    %v3488 = vld [vmem:[#allocation4 + $0x430] sm:$0xff]
    %v3489 = vld [vmem:[#allocation4 + $0x438] sm:$0xff]
    %v3490 = vld [vmem:[#allocation4 + $0x440] sm:$0xff]
    %v3491 = vld [vmem:[#allocation4 + $0x448] sm:$0xff]
    %v3492 = vld [vmem:[#allocation4 + $0x450] sm:$0xff]
    %v3493 = vld [vmem:[#allocation4 + $0x458] sm:$0xff]
    %v3494 = vld [vmem:[#allocation4 + $0x460] sm:$0xff]
    %v3495 = vld [vmem:[#allocation4 + $0x468] sm:$0xff]
    %v3496 = vld [vmem:[#allocation4 + $0x470] sm:$0xff]
    %v3497 = vld [vmem:[#allocation4 + $0x478] sm:$0xff]
    %v3498 = vld [vmem:[#allocation4 + $0x480] sm:$0xff]
    %v3499 = vld [vmem:[#allocation4 + $0x488] sm:$0xff]
    %v3500 = vld [vmem:[#allocation4 + $0x490] sm:$0xff]
    %v3501 = vld [vmem:[#allocation4 + $0x498] sm:$0xff]
    %v3502 = vld [vmem:[#allocation4 + $0x4a0] sm:$0xff]
    %v3503 = vld [vmem:[#allocation4 + $0x4a8] sm:$0xff]
    %v3504 = vld [vmem:[#allocation4 + $0x4b0] sm:$0xff]
    %v3505 = vld [vmem:[#allocation4 + $0x4b8] sm:$0xff]
    %v3506 = vld [vmem:[#allocation4 + $0x4c0] sm:$0xff]
    %v3507 = vld [vmem:[#allocation4 + $0x4c8] sm:$0xff]
    %v3508 = vld [vmem:[#allocation4 + $0x4d0] sm:$0xff]
    %v3509 = vld [vmem:[#allocation4 + $0x4d8] sm:$0xff]
    %v3510 = vld [vmem:[#allocation4 + $0x4e0] sm:$0xff]
    %v3511 = vld [vmem:[#allocation4 + $0x4e8] sm:$0xff]
    %v3512 = vld [vmem:[#allocation4 + $0x4f0] sm:$0xff]
    %v3513 = vld [vmem:[#allocation4 + $0x4f8] sm:$0xff]
    %v3514 = vld [vmem:[#allocation4 + $0x500] sm:$0xff]
    %v3515 = vld [vmem:[#allocation4 + $0x508] sm:$0xff]
    %v3516 = vld [vmem:[#allocation4 + $0x510] sm:$0xff]
    %v3517 = vld [vmem:[#allocation4 + $0x518] sm:$0xff]
    %v3518 = vld [vmem:[#allocation4 + $0x520] sm:$0xff]
    %v3519 = vld [vmem:[#allocation4 + $0x528] sm:$0xff]
    %v3520 = vld [vmem:[#allocation4 + $0x530] sm:$0xff]
    %v3521 = vld [vmem:[#allocation4 + $0x538] sm:$0xff]
    %v3522 = vld [vmem:[#allocation4 + $0x540] sm:$0xff]
    %v3523 = vld [vmem:[#allocation4 + $0x548] sm:$0xff]
    %v3524 = vld [vmem:[#allocation4 + $0x550] sm:$0xff]
    %v3525 = vld [vmem:[#allocation4 + $0x558] sm:$0xff]
    %v3526 = vld [vmem:[#allocation4 + $0x560] sm:$0xff]
    %v3527 = vld [vmem:[#allocation4 + $0x568] sm:$0xff]
    %v3528 = vld [vmem:[#allocation4 + $0x570] sm:$0xff]
    %v3529 = vld [vmem:[#allocation4 + $0x578] sm:$0xff]
    %v3530 = vld [vmem:[#allocation4 + $0x580] sm:$0xff]
    %v3531 = vld [vmem:[#allocation4 + $0x588] sm:$0xff]
    %v3532 = vld [vmem:[#allocation4 + $0x590] sm:$0xff]
    %v3533 = vld [vmem:[#allocation4 + $0x598] sm:$0xff]
    %v3534 = vld [vmem:[#allocation4 + $0x5a0] sm:$0xff]
    %v3535 = vld [vmem:[#allocation4 + $0x5a8] sm:$0xff]
    %v3536 = vld [vmem:[#allocation4 + $0x5b0] sm:$0xff]
    %v3537 = vld [vmem:[#allocation4 + $0x5b8] sm:$0xff]
    %v3538 = vld [vmem:[#allocation4 + $0x5c0] sm:$0xff]
    %v3539 = vld [vmem:[#allocation4 + $0x5c8] sm:$0xff]
    %v3540 = vld [vmem:[#allocation4 + $0x5d0] sm:$0xff]
    %v3541 = vld [vmem:[#allocation4 + $0x5d8] sm:$0xff]
    %v3542 = vld [vmem:[#allocation4 + $0x5e0] sm:$0xff]
    %v3543 = vld [vmem:[#allocation4 + $0x5e8] sm:$0xff]
    %v3544 = vld [vmem:[#allocation4 + $0x5f0] sm:$0xff]
    %v3545 = vld [vmem:[#allocation4 + $0x5f8] sm:$0xff]
    %v3546 = vld [vmem:[#allocation4 + $0x600] sm:$0xff]
    %v3547 = vld [vmem:[#allocation4 + $0x608] sm:$0xff]
    %v3548 = vld [vmem:[#allocation4 + $0x610] sm:$0xff]
    %v3549 = vld [vmem:[#allocation4 + $0x618] sm:$0xff]
    %v3550 = vld [vmem:[#allocation4 + $0x620] sm:$0xff]
    %v3551 = vld [vmem:[#allocation4 + $0x628] sm:$0xff]
    %v3552 = vld [vmem:[#allocation4 + $0x630] sm:$0xff]
    %v3553 = vld [vmem:[#allocation4 + $0x638] sm:$0xff]
    %v3554 = vld [vmem:[#allocation4 + $0x640] sm:$0xff]
    %v3555 = vld [vmem:[#allocation4 + $0x648] sm:$0xff]
    %v3556 = vld [vmem:[#allocation4 + $0x650] sm:$0xff]
    %v3557 = vld [vmem:[#allocation4 + $0x658] sm:$0xff]
    %v3558 = vld [vmem:[#allocation4 + $0x660] sm:$0xff]
    %v3559 = vld [vmem:[#allocation4 + $0x668] sm:$0xff]
    %v3560 = vld [vmem:[#allocation4 + $0x670] sm:$0xff]
    %v3561 = vld [vmem:[#allocation4 + $0x678] sm:$0xff]
    %v3562 = vld [vmem:[#allocation4 + $0x680] sm:$0xff]
    %v3563 = vld [vmem:[#allocation4 + $0x688] sm:$0xff]
    %v3564 = vld [vmem:[#allocation4 + $0x690] sm:$0xff]
    %v3565 = vld [vmem:[#allocation4 + $0x698] sm:$0xff]
    %v3566 = vld [vmem:[#allocation4 + $0x6a0] sm:$0xff]
    %v3567 = vld [vmem:[#allocation4 + $0x6a8] sm:$0xff]
    %v3568 = vld [vmem:[#allocation4 + $0x6b0] sm:$0xff]
    %v3569 = vld [vmem:[#allocation4 + $0x6b8] sm:$0xff]
    %v3570 = vld [vmem:[#allocation4 + $0x6c0] sm:$0xff]
    %v3571 = vld [vmem:[#allocation4 + $0x6c8] sm:$0xff]
    %v3572 = vld [vmem:[#allocation4 + $0x6d0] sm:$0xff]
    %v3573 = vld [vmem:[#allocation4 + $0x6d8] sm:$0xff]
    %v3574 = vld [vmem:[#allocation4 + $0x6e0] sm:$0xff]
    %v3575 = vld [vmem:[#allocation4 + $0x6e8] sm:$0xff]
    %v3576 = vld [vmem:[#allocation4 + $0x6f0] sm:$0xff]
    %v3577 = vld [vmem:[#allocation4 + $0x6f8] sm:$0xff]
    %v3578 = vld [vmem:[#allocation4 + $0x700] sm:$0xff]
    %v3579 = vld [vmem:[#allocation4 + $0x708] sm:$0xff]
    %v3580 = vld [vmem:[#allocation4 + $0x710] sm:$0xff]
    %v3581 = vld [vmem:[#allocation4 + $0x718] sm:$0xff]
    %v3582 = vld [vmem:[#allocation4 + $0x720] sm:$0xff]
    %v3583 = vld [vmem:[#allocation4 + $0x728] sm:$0xff]
    %v3584 = vld [vmem:[#allocation4 + $0x730] sm:$0xff]
    %v3585 = vld [vmem:[#allocation4 + $0x738] sm:$0xff]
    %v3586 = vld [vmem:[#allocation4 + $0x740] sm:$0xff]
    %v3587 = vld [vmem:[#allocation4 + $0x748] sm:$0xff]
    %v3588 = vld [vmem:[#allocation4 + $0x750] sm:$0xff]
    %v3589 = vld [vmem:[#allocation4 + $0x758] sm:$0xff]
    %v3590 = vld [vmem:[#allocation4 + $0x760] sm:$0xff]
    %v3591 = vld [vmem:[#allocation4 + $0x768] sm:$0xff]
    %v3592 = vld [vmem:[#allocation4 + $0x770] sm:$0xff]
    %v3593 = vld [vmem:[#allocation4 + $0x778] sm:$0xff]
    %v3594 = vld [vmem:[#allocation4 + $0x780] sm:$0xff]
    %v3595 = vld [vmem:[#allocation4 + $0x788] sm:$0xff]
    %v3596 = vld [vmem:[#allocation4 + $0x790] sm:$0xff]
    %v3597 = vld [vmem:[#allocation4 + $0x798] sm:$0xff]
    %v3598 = vld [vmem:[#allocation4 + $0x7a0] sm:$0xff]
    %v3599 = vld [vmem:[#allocation4 + $0x7a8] sm:$0xff]
    %v3600 = vld [vmem:[#allocation4 + $0x7b0] sm:$0xff]
    %v3601 = vld [vmem:[#allocation4 + $0x7b8] sm:$0xff]
    %v3602 = vld [vmem:[#allocation4 + $0x7c0] sm:$0xff]
    %v3603 = vld [vmem:[#allocation4 + $0x7c8] sm:$0xff]
    %v3604 = vld [vmem:[#allocation4 + $0x7d0] sm:$0xff]
    %v3605 = vld [vmem:[#allocation4 + $0x7d8] sm:$0xff]
    %v3606 = vld [vmem:[#allocation4 + $0x7e0] sm:$0xff]
    %v3607 = vld [vmem:[#allocation4 + $0x7e8] sm:$0xff]
    %v3608 = vld [vmem:[#allocation4 + $0x7f0] sm:$0xff]
    %v3609 = vld [vmem:[#allocation4 + $0x7f8] sm:$0xff]
    %v3610 = vld [vmem:[#allocation18] sm:$0xff]
    %v3611 = vld [vmem:[#allocation20] ss:$2 sm:$0x3]
    %v3612 = vld [vmem:[#allocation21] ss:$2 sm:$0x3]
    %s3613 = scalar_lea.vmem [#allocation20], 1
    %v3614 = vld [vmem:[%s3613] ss:$2 sm:$0x3]
    %s3615 = scalar_lea.vmem [#allocation21], 1
    %v3616 = vld [vmem:[%s3615] ss:$2 sm:$0x3]
    %v3617 = vld [vmem:[#allocation2] ss:$8 sm:$0xf]
    %v3618 = vld [vmem:[#allocation2] ss:$8 sm:$0xf0]
    %v3619 = vor.u32 %v3617, %v3618
    %v3621 = vlaneseq
    %v3622 = vshrl.u32 %v3621, 7
    %v3623 = vsub.s32 0, %v3622
    %v3624 = vrot.slane %v3611, %v3623
    %v3625 = vlaneseq
    %v3626 = vshrl.u32 %v3625, 7
    %v3627 = vsub.s32 1, %v3626
    %v3628 = vrot.slane %v3611, %v3627
    %v3631 = vpack.c.bf16 %v3624, %v3624
    %v3632 = vpack.c.bf16 %v3628, %v3628
    %v3761 = vunpack.c.l.b16 %v3226
    %v3762 = vunpack.c.h.b16 %v3226
    %v3763 = vunpack.c.l.b16 %v3227
    %v3764 = vunpack.c.h.b16 %v3227
    %v3765 = vunpack.c.l.b16 %v3228
    %v3766 = vunpack.c.h.b16 %v3228
    %v3767 = vunpack.c.l.b16 %v3229
    %v3768 = vunpack.c.h.b16 %v3229
    %v3769 = vunpack.c.l.b16 %v3230
    %v3770 = vunpack.c.h.b16 %v3230
    %v3771 = vunpack.c.l.b16 %v3231
    %v3772 = vunpack.c.h.b16 %v3231
    %v3773 = vunpack.c.l.b16 %v3232
    %v3774 = vunpack.c.h.b16 %v3232
    %v3775 = vunpack.c.l.b16 %v3233
    %v3776 = vunpack.c.h.b16 %v3233
    %v3777 = vunpack.c.l.b16 %v3234
    %v3778 = vunpack.c.h.b16 %v3234
    %v3779 = vunpack.c.l.b16 %v3235
    %v3780 = vunpack.c.h.b16 %v3235
    %v3781 = vunpack.c.l.b16 %v3236
    %v3782 = vunpack.c.h.b16 %v3236
    %v3783 = vunpack.c.l.b16 %v3237
    %v3784 = vunpack.c.h.b16 %v3237
    %v3785 = vunpack.c.l.b16 %v3238
    %v3786 = vunpack.c.h.b16 %v3238
    %v3787 = vunpack.c.l.b16 %v3239
    %v3788 = vunpack.c.h.b16 %v3239
    %v3789 = vunpack.c.l.b16 %v3240
    %v3790 = vunpack.c.h.b16 %v3240
    %v3791 = vunpack.c.l.b16 %v3241
    %v3792 = vunpack.c.h.b16 %v3241
    %v3793 = vunpack.c.l.b16 %v3242
    %v3794 = vunpack.c.h.b16 %v3242
    %v3795 = vunpack.c.l.b16 %v3243
    %v3796 = vunpack.c.h.b16 %v3243
    %v3797 = vunpack.c.l.b16 %v3244
    %v3798 = vunpack.c.h.b16 %v3244
    %v3799 = vunpack.c.l.b16 %v3245
    %v3800 = vunpack.c.h.b16 %v3245
    %v3801 = vunpack.c.l.b16 %v3246
    %v3802 = vunpack.c.h.b16 %v3246
    %v3803 = vunpack.c.l.b16 %v3247
    %v3804 = vunpack.c.h.b16 %v3247
    %v3805 = vunpack.c.l.b16 %v3248
    %v3806 = vunpack.c.h.b16 %v3248
    %v3807 = vunpack.c.l.b16 %v3249
    %v3808 = vunpack.c.h.b16 %v3249
    %v3809 = vunpack.c.l.b16 %v3250
    %v3810 = vunpack.c.h.b16 %v3250
    %v3811 = vunpack.c.l.b16 %v3251
    %v3812 = vunpack.c.h.b16 %v3251
    %v3813 = vunpack.c.l.b16 %v3252
    %v3814 = vunpack.c.h.b16 %v3252
    %v3815 = vunpack.c.l.b16 %v3253
    %v3816 = vunpack.c.h.b16 %v3253
    %v3817 = vunpack.c.l.b16 %v3254
    %v3818 = vunpack.c.h.b16 %v3254
    %v3819 = vunpack.c.l.b16 %v3255
    %v3820 = vunpack.c.h.b16 %v3255
    %v3821 = vunpack.c.l.b16 %v3256
    %v3822 = vunpack.c.h.b16 %v3256
    %v3823 = vunpack.c.l.b16 %v3257
    %v3824 = vunpack.c.h.b16 %v3257
    %v3825 = vunpack.c.l.b16 %v3258
    %v3826 = vunpack.c.h.b16 %v3258
    %v3827 = vunpack.c.l.b16 %v3259
    %v3828 = vunpack.c.h.b16 %v3259
    %v3829 = vunpack.c.l.b16 %v3260
    %v3830 = vunpack.c.h.b16 %v3260
    %v3831 = vunpack.c.l.b16 %v3261
    %v3832 = vunpack.c.h.b16 %v3261
    %v3833 = vunpack.c.l.b16 %v3262
    %v3834 = vunpack.c.h.b16 %v3262
    %v3835 = vunpack.c.l.b16 %v3263
    %v3836 = vunpack.c.h.b16 %v3263
    %v3837 = vunpack.c.l.b16 %v3264
    %v3838 = vunpack.c.h.b16 %v3264
    %v3839 = vunpack.c.l.b16 %v3265
    %v3840 = vunpack.c.h.b16 %v3265
    %v3841 = vunpack.c.l.b16 %v3266
    %v3842 = vunpack.c.h.b16 %v3266
    %v3843 = vunpack.c.l.b16 %v3267
    %v3844 = vunpack.c.h.b16 %v3267
    %v3845 = vunpack.c.l.b16 %v3268
    %v3846 = vunpack.c.h.b16 %v3268
    %v3847 = vunpack.c.l.b16 %v3269
    %v3848 = vunpack.c.h.b16 %v3269
    %v3849 = vunpack.c.l.b16 %v3270
    %v3850 = vunpack.c.h.b16 %v3270
    %v3851 = vunpack.c.l.b16 %v3271
    %v3852 = vunpack.c.h.b16 %v3271
    %v3853 = vunpack.c.l.b16 %v3272
    %v3854 = vunpack.c.h.b16 %v3272
    %v3855 = vunpack.c.l.b16 %v3273
    %v3856 = vunpack.c.h.b16 %v3273
    %v3857 = vunpack.c.l.b16 %v3274
    %v3858 = vunpack.c.h.b16 %v3274
    %v3859 = vunpack.c.l.b16 %v3275
    %v3860 = vunpack.c.h.b16 %v3275
    %v3861 = vunpack.c.l.b16 %v3276
    %v3862 = vunpack.c.h.b16 %v3276
    %v3863 = vunpack.c.l.b16 %v3277
    %v3864 = vunpack.c.h.b16 %v3277
    %v3865 = vunpack.c.l.b16 %v3278
    %v3866 = vunpack.c.h.b16 %v3278
    %v3867 = vunpack.c.l.b16 %v3279
    %v3868 = vunpack.c.h.b16 %v3279
    %v3869 = vunpack.c.l.b16 %v3280
    %v3870 = vunpack.c.h.b16 %v3280
    %v3871 = vunpack.c.l.b16 %v3281
    %v3872 = vunpack.c.h.b16 %v3281
    %v3873 = vunpack.c.l.b16 %v3282
    %v3874 = vunpack.c.h.b16 %v3282
    %v3875 = vunpack.c.l.b16 %v3283
    %v3876 = vunpack.c.h.b16 %v3283
    %v3877 = vunpack.c.l.b16 %v3284
    %v3878 = vunpack.c.h.b16 %v3284
    %v3879 = vunpack.c.l.b16 %v3285
    %v3880 = vunpack.c.h.b16 %v3285
    %v3881 = vunpack.c.l.b16 %v3286
    %v3882 = vunpack.c.h.b16 %v3286
    %v3883 = vunpack.c.l.b16 %v3287
    %v3884 = vunpack.c.h.b16 %v3287
    %v3885 = vunpack.c.l.b16 %v3288
    %v3886 = vunpack.c.h.b16 %v3288
    %v3887 = vunpack.c.l.b16 %v3289
    %v3888 = vunpack.c.h.b16 %v3289
    %v3889 = vunpack.c.l.b16 %v3290
    %v3890 = vunpack.c.h.b16 %v3290
    %v3891 = vunpack.c.l.b16 %v3291
    %v3892 = vunpack.c.h.b16 %v3291
    %v3893 = vunpack.c.l.b16 %v3292
    %v3894 = vunpack.c.h.b16 %v3292
    %v3895 = vunpack.c.l.b16 %v3293
    %v3896 = vunpack.c.h.b16 %v3293
    %v3897 = vunpack.c.l.b16 %v3294
    %v3898 = vunpack.c.h.b16 %v3294
    %v3899 = vunpack.c.l.b16 %v3295
    %v3900 = vunpack.c.h.b16 %v3295
    %v3901 = vunpack.c.l.b16 %v3296
    %v3902 = vunpack.c.h.b16 %v3296
    %v3903 = vunpack.c.l.b16 %v3297
    %v3904 = vunpack.c.h.b16 %v3297
    %v3905 = vunpack.c.l.b16 %v3298
    %v3906 = vunpack.c.h.b16 %v3298
    %v3907 = vunpack.c.l.b16 %v3299
    %v3908 = vunpack.c.h.b16 %v3299
    %v3909 = vunpack.c.l.b16 %v3300
    %v3910 = vunpack.c.h.b16 %v3300
    %v3911 = vunpack.c.l.b16 %v3301
    %v3912 = vunpack.c.h.b16 %v3301
    %v3913 = vunpack.c.l.b16 %v3302
    %v3914 = vunpack.c.h.b16 %v3302
    %v3915 = vunpack.c.l.b16 %v3303
    %v3916 = vunpack.c.h.b16 %v3303
    %v3917 = vunpack.c.l.b16 %v3304
    %v3918 = vunpack.c.h.b16 %v3304
    %v3919 = vunpack.c.l.b16 %v3305
    %v3920 = vunpack.c.h.b16 %v3305
    %v3921 = vunpack.c.l.b16 %v3306
    %v3922 = vunpack.c.h.b16 %v3306
    %v3923 = vunpack.c.l.b16 %v3307
    %v3924 = vunpack.c.h.b16 %v3307
    %v3925 = vunpack.c.l.b16 %v3308
    %v3926 = vunpack.c.h.b16 %v3308
    %v3927 = vunpack.c.l.b16 %v3309
    %v3928 = vunpack.c.h.b16 %v3309
    %v3929 = vunpack.c.l.b16 %v3310
    %v3930 = vunpack.c.h.b16 %v3310
    %v3931 = vunpack.c.l.b16 %v3311
    %v3932 = vunpack.c.h.b16 %v3311
    %v3933 = vunpack.c.l.b16 %v3312
    %v3934 = vunpack.c.h.b16 %v3312
    %v3935 = vunpack.c.l.b16 %v3313
    %v3936 = vunpack.c.h.b16 %v3313
    %v3937 = vunpack.c.l.b16 %v3314
    %v3938 = vunpack.c.h.b16 %v3314
    %v3939 = vunpack.c.l.b16 %v3315
    %v3940 = vunpack.c.h.b16 %v3315
    %v3941 = vunpack.c.l.b16 %v3316
    %v3942 = vunpack.c.h.b16 %v3316
    %v3943 = vunpack.c.l.b16 %v3317
    %v3944 = vunpack.c.h.b16 %v3317
    %v3945 = vunpack.c.l.b16 %v3318
    %v3946 = vunpack.c.h.b16 %v3318
    %v3947 = vunpack.c.l.b16 %v3319
    %v3948 = vunpack.c.h.b16 %v3319
    %v3949 = vunpack.c.l.b16 %v3320
    %v3950 = vunpack.c.h.b16 %v3320
    %v3951 = vunpack.c.l.b16 %v3321
    %v3952 = vunpack.c.h.b16 %v3321
    %v3953 = vunpack.c.l.b16 %v3322
    %v3954 = vunpack.c.h.b16 %v3322
    %v3955 = vunpack.c.l.b16 %v3323
    %v3956 = vunpack.c.h.b16 %v3323
    %v3957 = vunpack.c.l.b16 %v3324
    %v3958 = vunpack.c.h.b16 %v3324
    %v3959 = vunpack.c.l.b16 %v3325
    %v3960 = vunpack.c.h.b16 %v3325
    %v3961 = vunpack.c.l.b16 %v3326
    %v3962 = vunpack.c.h.b16 %v3326
    %v3963 = vunpack.c.l.b16 %v3327
    %v3964 = vunpack.c.h.b16 %v3327
    %v3965 = vunpack.c.l.b16 %v3328
    %v3966 = vunpack.c.h.b16 %v3328
    %v3967 = vunpack.c.l.b16 %v3329
    %v3968 = vunpack.c.h.b16 %v3329
    %v3969 = vunpack.c.l.b16 %v3330
    %v3970 = vunpack.c.h.b16 %v3330
    %v3971 = vunpack.c.l.b16 %v3331
    %v3972 = vunpack.c.h.b16 %v3331
    %v3973 = vunpack.c.l.b16 %v3332
    %v3974 = vunpack.c.h.b16 %v3332
    %v3975 = vunpack.c.l.b16 %v3333
    %v3976 = vunpack.c.h.b16 %v3333
    %v3977 = vunpack.c.l.b16 %v3334
    %v3978 = vunpack.c.h.b16 %v3334
    %v3979 = vunpack.c.l.b16 %v3335
    %v3980 = vunpack.c.h.b16 %v3335
    %v3981 = vunpack.c.l.b16 %v3336
    %v3982 = vunpack.c.h.b16 %v3336
    %v3983 = vunpack.c.l.b16 %v3337
    %v3984 = vunpack.c.h.b16 %v3337
    %v3985 = vunpack.c.l.b16 %v3338
    %v3986 = vunpack.c.h.b16 %v3338
    %v3987 = vunpack.c.l.b16 %v3339
    %v3988 = vunpack.c.h.b16 %v3339
    %v3989 = vunpack.c.l.b16 %v3340
    %v3990 = vunpack.c.h.b16 %v3340
    %v3991 = vunpack.c.l.b16 %v3341
    %v3992 = vunpack.c.h.b16 %v3341
    %v3993 = vunpack.c.l.b16 %v3342
    %v3994 = vunpack.c.h.b16 %v3342
    %v3995 = vunpack.c.l.b16 %v3343
    %v3996 = vunpack.c.h.b16 %v3343
    %v3997 = vunpack.c.l.b16 %v3344
    %v3998 = vunpack.c.h.b16 %v3344
    %v3999 = vunpack.c.l.b16 %v3345
    %v4000 = vunpack.c.h.b16 %v3345
    %v4001 = vunpack.c.l.b16 %v3346
    %v4002 = vunpack.c.h.b16 %v3346
    %v4003 = vunpack.c.l.b16 %v3347
    %v4004 = vunpack.c.h.b16 %v3347
    %v4005 = vunpack.c.l.b16 %v3348
    %v4006 = vunpack.c.h.b16 %v3348
    %v4007 = vunpack.c.l.b16 %v3349
    %v4008 = vunpack.c.h.b16 %v3349
    %v4009 = vunpack.c.l.b16 %v3350
    %v4010 = vunpack.c.h.b16 %v3350
    %v4011 = vunpack.c.l.b16 %v3351
    %v4012 = vunpack.c.h.b16 %v3351
    %v4013 = vunpack.c.l.b16 %v3352
    %v4014 = vunpack.c.h.b16 %v3352
    %v4015 = vunpack.c.l.b16 %v3353
    %v4016 = vunpack.c.h.b16 %v3353
    %v4017 = vpack.c.b16 %v3769, %v3761
    %v4018 = vpack.c.b16 %v3770, %v3762
    %v4019 = vpack.c.b16 %v3771, %v3763
    %v4020 = vpack.c.b16 %v3772, %v3764
    %v4021 = vpack.c.b16 %v3773, %v3765
    %v4022 = vpack.c.b16 %v3774, %v3766
    %v4023 = vpack.c.b16 %v3775, %v3767
    %v4024 = vpack.c.b16 %v3776, %v3768
    %v4025 = vpack.c.b16 %v3785, %v3777
    %v4026 = vpack.c.b16 %v3786, %v3778
    %v4027 = vpack.c.b16 %v3787, %v3779
    %v4028 = vpack.c.b16 %v3788, %v3780
    %v4029 = vpack.c.b16 %v3789, %v3781
    %v4030 = vpack.c.b16 %v3790, %v3782
    %v4031 = vpack.c.b16 %v3791, %v3783
    %v4032 = vpack.c.b16 %v3792, %v3784
    %v4033 = vpack.c.b16 %v3801, %v3793
    %v4034 = vpack.c.b16 %v3802, %v3794
    %v4035 = vpack.c.b16 %v3803, %v3795
    %v4036 = vpack.c.b16 %v3804, %v3796
    %v4037 = vpack.c.b16 %v3805, %v3797
    %v4038 = vpack.c.b16 %v3806, %v3798
    %v4039 = vpack.c.b16 %v3807, %v3799
    %v4040 = vpack.c.b16 %v3808, %v3800
    %v4041 = vpack.c.b16 %v3817, %v3809
    %v4042 = vpack.c.b16 %v3818, %v3810
    %v4043 = vpack.c.b16 %v3819, %v3811
    %v4044 = vpack.c.b16 %v3820, %v3812
    %v4045 = vpack.c.b16 %v3821, %v3813
    %v4046 = vpack.c.b16 %v3822, %v3814
    %v4047 = vpack.c.b16 %v3823, %v3815
    %v4048 = vpack.c.b16 %v3824, %v3816
    %v4049 = vpack.c.b16 %v3833, %v3825
    %v4050 = vpack.c.b16 %v3834, %v3826
    %v4051 = vpack.c.b16 %v3835, %v3827
    %v4052 = vpack.c.b16 %v3836, %v3828
    %v4053 = vpack.c.b16 %v3837, %v3829
    %v4054 = vpack.c.b16 %v3838, %v3830
    %v4055 = vpack.c.b16 %v3839, %v3831
    %v4056 = vpack.c.b16 %v3840, %v3832
    %v4057 = vpack.c.b16 %v3849, %v3841
    %v4058 = vpack.c.b16 %v3850, %v3842
    %v4059 = vpack.c.b16 %v3851, %v3843
    %v4060 = vpack.c.b16 %v3852, %v3844
    %v4061 = vpack.c.b16 %v3853, %v3845
    %v4062 = vpack.c.b16 %v3854, %v3846
    %v4063 = vpack.c.b16 %v3855, %v3847
    %v4064 = vpack.c.b16 %v3856, %v3848
    %v4065 = vpack.c.b16 %v3865, %v3857
    %v4066 = vpack.c.b16 %v3866, %v3858
    %v4067 = vpack.c.b16 %v3867, %v3859
    %v4068 = vpack.c.b16 %v3868, %v3860
    %v4069 = vpack.c.b16 %v3869, %v3861
    %v4070 = vpack.c.b16 %v3870, %v3862
    %v4071 = vpack.c.b16 %v3871, %v3863
    %v4072 = vpack.c.b16 %v3872, %v3864
    %v4073 = vpack.c.b16 %v3881, %v3873
    %v4074 = vpack.c.b16 %v3882, %v3874
    %v4075 = vpack.c.b16 %v3883, %v3875
    %v4076 = vpack.c.b16 %v3884, %v3876
    %v4077 = vpack.c.b16 %v3885, %v3877
    %v4078 = vpack.c.b16 %v3886, %v3878
    %v4079 = vpack.c.b16 %v3887, %v3879
    %v4080 = vpack.c.b16 %v3888, %v3880
    %v4081 = vpack.c.b16 %v3897, %v3889
    %v4082 = vpack.c.b16 %v3898, %v3890
    %v4083 = vpack.c.b16 %v3899, %v3891
    %v4084 = vpack.c.b16 %v3900, %v3892
    %v4085 = vpack.c.b16 %v3901, %v3893
    %v4086 = vpack.c.b16 %v3902, %v3894
    %v4087 = vpack.c.b16 %v3903, %v3895
    %v4088 = vpack.c.b16 %v3904, %v3896
    %v4089 = vpack.c.b16 %v3913, %v3905
    %v4090 = vpack.c.b16 %v3914, %v3906
    %v4091 = vpack.c.b16 %v3915, %v3907
    %v4092 = vpack.c.b16 %v3916, %v3908
    %v4093 = vpack.c.b16 %v3917, %v3909
    %v4094 = vpack.c.b16 %v3918, %v3910
    %v4095 = vpack.c.b16 %v3919, %v3911
    %v4096 = vpack.c.b16 %v3920, %v3912
    %v4097 = vpack.c.b16 %v3929, %v3921
    %v4098 = vpack.c.b16 %v3930, %v3922
    %v4099 = vpack.c.b16 %v3931, %v3923
    %v4100 = vpack.c.b16 %v3932, %v3924
    %v4101 = vpack.c.b16 %v3933, %v3925
    %v4102 = vpack.c.b16 %v3934, %v3926
    %v4103 = vpack.c.b16 %v3935, %v3927
    %v4104 = vpack.c.b16 %v3936, %v3928
    %v4105 = vpack.c.b16 %v3945, %v3937
    %v4106 = vpack.c.b16 %v3946, %v3938
    %v4107 = vpack.c.b16 %v3947, %v3939
    %v4108 = vpack.c.b16 %v3948, %v3940
    %v4109 = vpack.c.b16 %v3949, %v3941
    %v4110 = vpack.c.b16 %v3950, %v3942
    %v4111 = vpack.c.b16 %v3951, %v3943
    %v4112 = vpack.c.b16 %v3952, %v3944
    %v4113 = vpack.c.b16 %v3961, %v3953
    %v4114 = vpack.c.b16 %v3962, %v3954
    %v4115 = vpack.c.b16 %v3963, %v3955
    %v4116 = vpack.c.b16 %v3964, %v3956
    %v4117 = vpack.c.b16 %v3965, %v3957
    %v4118 = vpack.c.b16 %v3966, %v3958
    %v4119 = vpack.c.b16 %v3967, %v3959
    %v4120 = vpack.c.b16 %v3968, %v3960
    %v4121 = vpack.c.b16 %v3977, %v3969
    %v4122 = vpack.c.b16 %v3978, %v3970
    %v4123 = vpack.c.b16 %v3979, %v3971
    %v4124 = vpack.c.b16 %v3980, %v3972
    %v4125 = vpack.c.b16 %v3981, %v3973
    %v4126 = vpack.c.b16 %v3982, %v3974
    %v4127 = vpack.c.b16 %v3983, %v3975
    %v4128 = vpack.c.b16 %v3984, %v3976
    %v4129 = vpack.c.b16 %v3993, %v3985
    %v4130 = vpack.c.b16 %v3994, %v3986
    %v4131 = vpack.c.b16 %v3995, %v3987
    %v4132 = vpack.c.b16 %v3996, %v3988
    %v4133 = vpack.c.b16 %v3997, %v3989
    %v4134 = vpack.c.b16 %v3998, %v3990
    %v4135 = vpack.c.b16 %v3999, %v3991
    %v4136 = vpack.c.b16 %v4000, %v3992
    %v4137 = vpack.c.b16 %v4009, %v4001
    %v4138 = vpack.c.b16 %v4010, %v4002
    %v4139 = vpack.c.b16 %v4011, %v4003
    %v4140 = vpack.c.b16 %v4012, %v4004
    %v4141 = vpack.c.b16 %v4013, %v4005
    %v4142 = vpack.c.b16 %v4014, %v4006
    %v4143 = vpack.c.b16 %v4015, %v4007
    %v4144 = vpack.c.b16 %v4016, %v4008
    %4273 = vmatprep.subr.bf16.mxu0 %v4074
    %4274 = vmatpush1.bf16.msra.mxu0 %v4073
    %4275 = vmatprep.subr.bf16.mxu0 %v4066
    %4276 = vmatpush1.bf16.msra.mxu0 %v4065
    %4277 = vmatprep.subr.bf16.mxu0 %v4058
    %4278 = vmatpush1.bf16.msra.mxu0 %v4057
    %4279 = vmatprep.subr.bf16.mxu0 %v4050
    %4280 = vmatpush1.bf16.msra.mxu0 %v4049
    %4281 = vmatprep.subr.bf16.mxu0 %v4042
    %4282 = vmatpush1.bf16.msra.mxu0 %v4041
    %4283 = vmatprep.subr.bf16.mxu0 %v4034
    %4284 = vmatpush1.bf16.msra.mxu0 %v4033
    %4285 = vmatprep.subr.bf16.mxu0 %v4026
    %4286 = vmatpush1.bf16.msra.mxu0 %v4025
    %4287 = vmatprep.subr.bf16.mxu0 %v4018
    %4288 = vmatpush1.bf16.msra.mxu0 %v4017
    %4289 = vmatprep.subr.bf16.mxu0 %v4138
    %4290 = vmatpush2.bf16.msra.mxu0 %v4137
    %4291 = vmatprep.subr.bf16.mxu0 %v4130
    %4292 = vmatpush2.bf16.msra.mxu0 %v4129
    %4293 = vmatprep.subr.bf16.mxu0 %v4122
    %4294 = vmatpush2.bf16.msra.mxu0 %v4121
    %4295 = vmatprep.subr.bf16.mxu0 %v4114
    %4296 = vmatpush2.bf16.msra.mxu0 %v4113
    %4297 = vmatprep.subr.bf16.mxu0 %v4106
    %4298 = vmatpush2.bf16.msra.mxu0 %v4105
    %4299 = vmatprep.subr.bf16.mxu0 %v4098
    %4300 = vmatpush2.bf16.msra.mxu0 %v4097
    %4301 = vmatprep.subr.bf16.mxu0 %v4090
    %4302 = vmatpush2.bf16.msra.mxu0 %v4089
    %4303 = vmatprep.subr.bf16.mxu0 %v4082
    %4304 = vmatpush2.bf16.msra.mxu0 %v4081
    %4305 = vmatprep.mubr.bf16.mxu0 %v3632
    %4306 = vmatmul.mubr.bf16.gmra.mxu0 %v3631
    %v4307 = vpop.f32.mrf.mxu0
    %v4308 = vadd.f32 0.0, %v4307
    %v4309 = vpop.f32.mrf.mxu0
    %v4310 = vadd.f32 0.0, %v4309
    %v4311 = vpop.f32.mrf.mxu0
    %v4312 = vpop.f32.mrf.mxu0
    %4313 = vdwg.mxu0
    %4314 = vmatprep.subr.bf16.mxu0 %v4076
    %4315 = vmatpush1.bf16.msra.mxu0 %v4075
    %4316 = vmatprep.subr.bf16.mxu0 %v4068
    %4317 = vmatpush1.bf16.msra.mxu0 %v4067
    %4318 = vmatprep.subr.bf16.mxu0 %v4060
    %4319 = vmatpush1.bf16.msra.mxu0 %v4059
    %4320 = vmatprep.subr.bf16.mxu0 %v4052
    %4321 = vmatpush1.bf16.msra.mxu0 %v4051
    %4322 = vmatprep.subr.bf16.mxu0 %v4044
    %4323 = vmatpush1.bf16.msra.mxu0 %v4043
    %4324 = vmatprep.subr.bf16.mxu0 %v4036
    %4325 = vmatpush1.bf16.msra.mxu0 %v4035
    %4326 = vmatprep.subr.bf16.mxu0 %v4028
    %4327 = vmatpush1.bf16.msra.mxu0 %v4027
    %4328 = vmatprep.subr.bf16.mxu0 %v4020
    %4329 = vmatpush1.bf16.msra.mxu0 %v4019
    %4330 = vmatprep.subr.bf16.mxu0 %v4140
    %4331 = vmatpush2.bf16.msra.mxu0 %v4139
    %4332 = vmatprep.subr.bf16.mxu0 %v4132
    %4333 = vmatpush2.bf16.msra.mxu0 %v4131
    %4334 = vmatprep.subr.bf16.mxu0 %v4124
    %4335 = vmatpush2.bf16.msra.mxu0 %v4123
    %4336 = vmatprep.subr.bf16.mxu0 %v4116
    %4337 = vmatpush2.bf16.msra.mxu0 %v4115
    %4338 = vmatprep.subr.bf16.mxu0 %v4108
    %4339 = vmatpush2.bf16.msra.mxu0 %v4107
    %4340 = vmatprep.subr.bf16.mxu0 %v4100
    %4341 = vmatpush2.bf16.msra.mxu0 %v4099
    %4342 = vmatprep.subr.bf16.mxu0 %v4092
    %4343 = vmatpush2.bf16.msra.mxu0 %v4091
    %4344 = vmatprep.subr.bf16.mxu0 %v4084
    %4345 = vmatpush2.bf16.msra.mxu0 %v4083
    %4346 = vmatprep.mubr.bf16.mxu0 %v3632
    %4347 = vmatmul.mubr.bf16.gmra.mxu0 %v3631
    %v4348 = vpop.f32.mrf.mxu0
    %v4349 = vadd.f32 0.0, %v4348
    %v4350 = vpop.f32.mrf.mxu0
    %v4351 = vadd.f32 0.0, %v4350
    %v4352 = vpop.f32.mrf.mxu0
    %v4353 = vpop.f32.mrf.mxu0
    %4354 = vdwg.mxu0
    %4355 = vmatprep.subr.bf16.mxu0 %v4078
    %4356 = vmatpush1.bf16.msra.mxu0 %v4077
    %4357 = vmatprep.subr.bf16.mxu0 %v4070
    %4358 = vmatpush1.bf16.msra.mxu0 %v4069
    %4359 = vmatprep.subr.bf16.mxu0 %v4062
    %4360 = vmatpush1.bf16.msra.mxu0 %v4061
    %4361 = vmatprep.subr.bf16.mxu0 %v4054
    %4362 = vmatpush1.bf16.msra.mxu0 %v4053
    %4363 = vmatprep.subr.bf16.mxu0 %v4046
    %4364 = vmatpush1.bf16.msra.mxu0 %v4045
    %4365 = vmatprep.subr.bf16.mxu0 %v4038
    %4366 = vmatpush1.bf16.msra.mxu0 %v4037
    %4367 = vmatprep.subr.bf16.mxu0 %v4030
    %4368 = vmatpush1.bf16.msra.mxu0 %v4029
    %4369 = vmatprep.subr.bf16.mxu0 %v4022
    %4370 = vmatpush1.bf16.msra.mxu0 %v4021
    %4371 = vmatprep.subr.bf16.mxu0 %v4142
    %4372 = vmatpush2.bf16.msra.mxu0 %v4141
    %4373 = vmatprep.subr.bf16.mxu0 %v4134
    %4374 = vmatpush2.bf16.msra.mxu0 %v4133
    %4375 = vmatprep.subr.bf16.mxu0 %v4126
    %4376 = vmatpush2.bf16.msra.mxu0 %v4125
    %4377 = vmatprep.subr.bf16.mxu0 %v4118
    %4378 = vmatpush2.bf16.msra.mxu0 %v4117
    %4379 = vmatprep.subr.bf16.mxu0 %v4110
    %4380 = vmatpush2.bf16.msra.mxu0 %v4109
    %4381 = vmatprep.subr.bf16.mxu0 %v4102
    %4382 = vmatpush2.bf16.msra.mxu0 %v4101
    %4383 = vmatprep.subr.bf16.mxu0 %v4094
    %4384 = vmatpush2.bf16.msra.mxu0 %v4093
    %4385 = vmatprep.subr.bf16.mxu0 %v4086
    %4386 = vmatpush2.bf16.msra.mxu0 %v4085
    %4387 = vmatprep.mubr.bf16.mxu0 %v3632
    %4388 = vmatmul.mubr.bf16.gmra.mxu0 %v3631
    %v4389 = vpop.f32.mrf.mxu0
    %v4390 = vadd.f32 0.0, %v4389
    %v4391 = vpop.f32.mrf.mxu0
    %v4392 = vadd.f32 0.0, %v4391
    %v4393 = vpop.f32.mrf.mxu0
    %v4394 = vpop.f32.mrf.mxu0
    %4395 = vdwg.mxu0
    %4396 = vmatprep.subr.bf16.mxu0 %v4080
    %4397 = vmatpush1.bf16.msra.mxu0 %v4079
    %4398 = vmatprep.subr.bf16.mxu0 %v4072
    %4399 = vmatpush1.bf16.msra.mxu0 %v4071
    %4400 = vmatprep.subr.bf16.mxu0 %v4064
    %4401 = vmatpush1.bf16.msra.mxu0 %v4063
    %4402 = vmatprep.subr.bf16.mxu0 %v4056
    %4403 = vmatpush1.bf16.msra.mxu0 %v4055
    %4404 = vmatprep.subr.bf16.mxu0 %v4048
    %4405 = vmatpush1.bf16.msra.mxu0 %v4047
    %4406 = vmatprep.subr.bf16.mxu0 %v4040
    %4407 = vmatpush1.bf16.msra.mxu0 %v4039
    %4408 = vmatprep.subr.bf16.mxu0 %v4032
    %4409 = vmatpush1.bf16.msra.mxu0 %v4031
    %4410 = vmatprep.subr.bf16.mxu0 %v4024
    %4411 = vmatpush1.bf16.msra.mxu0 %v4023
    %4412 = vmatprep.subr.bf16.mxu0 %v4144
    %4413 = vmatpush2.bf16.msra.mxu0 %v4143
    %4414 = vmatprep.subr.bf16.mxu0 %v4136
    %4415 = vmatpush2.bf16.msra.mxu0 %v4135
    %4416 = vmatprep.subr.bf16.mxu0 %v4128
    %4417 = vmatpush2.bf16.msra.mxu0 %v4127
    %4418 = vmatprep.subr.bf16.mxu0 %v4120
    %4419 = vmatpush2.bf16.msra.mxu0 %v4119
    %4420 = vmatprep.subr.bf16.mxu0 %v4112
    %4421 = vmatpush2.bf16.msra.mxu0 %v4111
    %4422 = vmatprep.subr.bf16.mxu0 %v4104
    %4423 = vmatpush2.bf16.msra.mxu0 %v4103
    %4424 = vmatprep.subr.bf16.mxu0 %v4096
    %4425 = vmatpush2.bf16.msra.mxu0 %v4095
    %4426 = vmatprep.subr.bf16.mxu0 %v4088
    %4427 = vmatpush2.bf16.msra.mxu0 %v4087
    %4428 = vmatprep.mubr.bf16.mxu0 %v3632
    %4429 = vmatmul.mubr.bf16.gmra.mxu0 %v3631
    %v4430 = vpop.f32.mrf.mxu0
    %v4431 = vadd.f32 0.0, %v4430
    %v4432 = vpop.f32.mrf.mxu0
    %v4433 = vadd.f32 0.0, %v4432
    %v4434 = vpop.f32.mrf.mxu0
    %v4435 = vpop.f32.mrf.mxu0
    %4436 = vdwg.mxu0
    %v4445 = vcombine.low %v4308, %v4310
    %v4446 = vcombine.low %v4349, %v4351
    %v4447 = vcombine.low %v4390, %v4392
    %v4448 = vcombine.low %v4431, %v4433
    %v4450 = vunpack.c.l.s4 1966171168
    %v4451 = vunpack.c.0.s8 %v4450
    %v4452 = vlaneseq
    %v4453 = vshrl.u32 %v4452, 7
    %v4454 = vsub.s32 %v4451, %v4453
    %v4455 = vrot.slane %v4445, %v4454
    %v4457 = vunpack.c.l.s4 1966171168
    %v4458 = vunpack.c.0.s8 %v4457
    %v4459 = vlaneseq
    %v4460 = vshrl.u32 %v4459, 7
    %v4461 = vsub.s32 %v4458, %v4460
    %v4462 = vrot.slane %v4446, %v4461
    %v4464 = vunpack.c.l.s4 1966171168
    %v4465 = vunpack.c.0.s8 %v4464
    %v4466 = vlaneseq
    %v4467 = vshrl.u32 %v4466, 7
    %v4468 = vsub.s32 %v4465, %v4467
    %v4469 = vrot.slane %v4447, %v4468
    %v4471 = vunpack.c.l.s4 1966171168
    %v4472 = vunpack.c.0.s8 %v4471
    %v4473 = vlaneseq
    %v4474 = vshrl.u32 %v4473, 7
    %v4475 = vsub.s32 %v4472, %v4474
    %v4476 = vrot.slane %v4448, %v4475
    %v4477 = vcombine.low %v4455, %v4462
    %v4478 = vcombine.low %v4469, %v4476
    %v4480 = vunpack.c.l.s4 1966171168
    %v4481 = vunpack.c.0.s8 %v4480
    %v4482 = vlaneseq
    %v4483 = vshrl.u32 %v4482, 7
    %v4484 = vsub.s32 %v4481, %v4483
    %v4485 = vrot.slane %v4477, %v4484
    %v4487 = vunpack.c.l.s4 1966171168
    %v4488 = vunpack.c.0.s8 %v4487
    %v4489 = vlaneseq
    %v4490 = vshrl.u32 %v4489, 7
    %v4491 = vsub.s32 %v4488, %v4490
    %v4492 = vrot.slane %v4478, %v4491
    %v4493 = vcombine.low %v4485, %v4492
    %v4495 = vadd.f32 %v3619, %v4493
    %v4496 = vxor.u32 %v4495, 2147483648
    %v4497 = vmul.f32 %v4496, 1.442695
    %v4498 = vpow.pop %v4497
    %v4499 = vadd.f32 %v4498, 1.0
    %v4500 = vrcp.pop %v4499
    %v4501 = vmul.f32 1.0, %v4500
    %v4503 = vrot.slane %v4495, 6
    %v4505 = vtanh.pop %v4503
    %v4507 = vrot.slane %v4501, 2
    %v4509 = vmul.f32 %v4507, %v3612
    %v4510 = vmul.f32 %v4501, %v4505
    %v4511 = vadd.f32 %v4509, %v4510
    %v4512 = vtanh.pop %v4511
    %v4513 = vrot.slane %v4501, 4
    %v4515 = vmul.f32 %v4513, %v4512
    %v4517 = vlaneseq
    %v4518 = vshrl.u32 %v4517, 7
    %v4519 = vsub.s32 0, %v4518
    %v4520 = vrot.slane %v4515, %v4519
    %v4521 = vlaneseq
    %v4522 = vshrl.u32 %v4521, 7
    %v4523 = vsub.s32 1, %v4522
    %v4524 = vrot.slane %v4515, %v4523
    %v4528 = vlaneseq
    %v4529 = vshrl.u32 %v4528, 7
    %v4530 = vsub.s32 0, %v4529
    %v4531 = vrot.slane %v3614, %v4530
    %v4532 = vlaneseq
    %v4533 = vshrl.u32 %v4532, 7
    %v4534 = vsub.s32 1, %v4533
    %v4535 = vrot.slane %v3614, %v4534
    %v4538 = vpack.c.bf16 %v4520, %v4520
    %v4539 = vpack.c.bf16 %v4524, %v4524
    %v4540 = vpack.c.bf16 %v4531, %v4531
    %v4541 = vpack.c.bf16 %v4535, %v4535
    %v4798 = vunpack.c.l.b16 %v3354
    %v4799 = vunpack.c.h.b16 %v3354
    %v4800 = vunpack.c.l.b16 %v3355
    %v4801 = vunpack.c.h.b16 %v3355
    %v4802 = vunpack.c.l.b16 %v3356
    %v4803 = vunpack.c.h.b16 %v3356
    %v4804 = vunpack.c.l.b16 %v3357
    %v4805 = vunpack.c.h.b16 %v3357
    %v4806 = vunpack.c.l.b16 %v3358
    %v4807 = vunpack.c.h.b16 %v3358
    %v4808 = vunpack.c.l.b16 %v3359
    %v4809 = vunpack.c.h.b16 %v3359
    %v4810 = vunpack.c.l.b16 %v3360
    %v4811 = vunpack.c.h.b16 %v3360
    %v4812 = vunpack.c.l.b16 %v3361
    %v4813 = vunpack.c.h.b16 %v3361
    %v4814 = vunpack.c.l.b16 %v3362
    %v4815 = vunpack.c.h.b16 %v3362
    %v4816 = vunpack.c.l.b16 %v3363
    %v4817 = vunpack.c.h.b16 %v3363
    %v4818 = vunpack.c.l.b16 %v3364
    %v4819 = vunpack.c.h.b16 %v3364
    %v4820 = vunpack.c.l.b16 %v3365
    %v4821 = vunpack.c.h.b16 %v3365
    %v4822 = vunpack.c.l.b16 %v3366
    %v4823 = vunpack.c.h.b16 %v3366
    %v4824 = vunpack.c.l.b16 %v3367
    %v4825 = vunpack.c.h.b16 %v3367
    %v4826 = vunpack.c.l.b16 %v3368
    %v4827 = vunpack.c.h.b16 %v3368
    %v4828 = vunpack.c.l.b16 %v3369
    %v4829 = vunpack.c.h.b16 %v3369
    %v4830 = vunpack.c.l.b16 %v3370
    %v4831 = vunpack.c.h.b16 %v3370
    %v4832 = vunpack.c.l.b16 %v3371
    %v4833 = vunpack.c.h.b16 %v3371
    %v4834 = vunpack.c.l.b16 %v3372
    %v4835 = vunpack.c.h.b16 %v3372
    %v4836 = vunpack.c.l.b16 %v3373
    %v4837 = vunpack.c.h.b16 %v3373
    %v4838 = vunpack.c.l.b16 %v3374
    %v4839 = vunpack.c.h.b16 %v3374
    %v4840 = vunpack.c.l.b16 %v3375
    %v4841 = vunpack.c.h.b16 %v3375
    %v4842 = vunpack.c.l.b16 %v3376
    %v4843 = vunpack.c.h.b16 %v3376
    %v4844 = vunpack.c.l.b16 %v3377
    %v4845 = vunpack.c.h.b16 %v3377
    %v4846 = vunpack.c.l.b16 %v3378
    %v4847 = vunpack.c.h.b16 %v3378
    %v4848 = vunpack.c.l.b16 %v3379
    %v4849 = vunpack.c.h.b16 %v3379
    %v4850 = vunpack.c.l.b16 %v3380
    %v4851 = vunpack.c.h.b16 %v3380
    %v4852 = vunpack.c.l.b16 %v3381
    %v4853 = vunpack.c.h.b16 %v3381
    %v4854 = vunpack.c.l.b16 %v3382
    %v4855 = vunpack.c.h.b16 %v3382
    %v4856 = vunpack.c.l.b16 %v3383
    %v4857 = vunpack.c.h.b16 %v3383
    %v4858 = vunpack.c.l.b16 %v3384
    %v4859 = vunpack.c.h.b16 %v3384
    %v4860 = vunpack.c.l.b16 %v3385
    %v4861 = vunpack.c.h.b16 %v3385
    %v4862 = vunpack.c.l.b16 %v3386
    %v4863 = vunpack.c.h.b16 %v3386
    %v4864 = vunpack.c.l.b16 %v3387
    %v4865 = vunpack.c.h.b16 %v3387
    %v4866 = vunpack.c.l.b16 %v3388
    %v4867 = vunpack.c.h.b16 %v3388
    %v4868 = vunpack.c.l.b16 %v3389
    %v4869 = vunpack.c.h.b16 %v3389
    %v4870 = vunpack.c.l.b16 %v3390
    %v4871 = vunpack.c.h.b16 %v3390
    %v4872 = vunpack.c.l.b16 %v3391
    %v4873 = vunpack.c.h.b16 %v3391
    %v4874 = vunpack.c.l.b16 %v3392
    %v4875 = vunpack.c.h.b16 %v3392
    %v4876 = vunpack.c.l.b16 %v3393
    %v4877 = vunpack.c.h.b16 %v3393
    %v4878 = vunpack.c.l.b16 %v3394
    %v4879 = vunpack.c.h.b16 %v3394
    %v4880 = vunpack.c.l.b16 %v3395
    %v4881 = vunpack.c.h.b16 %v3395
    %v4882 = vunpack.c.l.b16 %v3396
    %v4883 = vunpack.c.h.b16 %v3396
    %v4884 = vunpack.c.l.b16 %v3397
    %v4885 = vunpack.c.h.b16 %v3397
    %v4886 = vunpack.c.l.b16 %v3398
    %v4887 = vunpack.c.h.b16 %v3398
    %v4888 = vunpack.c.l.b16 %v3399
    %v4889 = vunpack.c.h.b16 %v3399
    %v4890 = vunpack.c.l.b16 %v3400
    %v4891 = vunpack.c.h.b16 %v3400
    %v4892 = vunpack.c.l.b16 %v3401
    %v4893 = vunpack.c.h.b16 %v3401
    %v4894 = vunpack.c.l.b16 %v3402
    %v4895 = vunpack.c.h.b16 %v3402
    %v4896 = vunpack.c.l.b16 %v3403
    %v4897 = vunpack.c.h.b16 %v3403
    %v4898 = vunpack.c.l.b16 %v3404
    %v4899 = vunpack.c.h.b16 %v3404
    %v4900 = vunpack.c.l.b16 %v3405
    %v4901 = vunpack.c.h.b16 %v3405
    %v4902 = vunpack.c.l.b16 %v3406
    %v4903 = vunpack.c.h.b16 %v3406
    %v4904 = vunpack.c.l.b16 %v3407
    %v4905 = vunpack.c.h.b16 %v3407
    %v4906 = vunpack.c.l.b16 %v3408
    %v4907 = vunpack.c.h.b16 %v3408
    %v4908 = vunpack.c.l.b16 %v3409
    %v4909 = vunpack.c.h.b16 %v3409
    %v4910 = vunpack.c.l.b16 %v3410
    %v4911 = vunpack.c.h.b16 %v3410
    %v4912 = vunpack.c.l.b16 %v3411
    %v4913 = vunpack.c.h.b16 %v3411
    %v4914 = vunpack.c.l.b16 %v3412
    %v4915 = vunpack.c.h.b16 %v3412
    %v4916 = vunpack.c.l.b16 %v3413
    %v4917 = vunpack.c.h.b16 %v3413
    %v4918 = vunpack.c.l.b16 %v3414
    %v4919 = vunpack.c.h.b16 %v3414
    %v4920 = vunpack.c.l.b16 %v3415
    %v4921 = vunpack.c.h.b16 %v3415
    %v4922 = vunpack.c.l.b16 %v3416
    %v4923 = vunpack.c.h.b16 %v3416
    %v4924 = vunpack.c.l.b16 %v3417
    %v4925 = vunpack.c.h.b16 %v3417
    %v4926 = vunpack.c.l.b16 %v3418
    %v4927 = vunpack.c.h.b16 %v3418
    %v4928 = vunpack.c.l.b16 %v3419
    %v4929 = vunpack.c.h.b16 %v3419
    %v4930 = vunpack.c.l.b16 %v3420
    %v4931 = vunpack.c.h.b16 %v3420
    %v4932 = vunpack.c.l.b16 %v3421
    %v4933 = vunpack.c.h.b16 %v3421
    %v4934 = vunpack.c.l.b16 %v3422
    %v4935 = vunpack.c.h.b16 %v3422
    %v4936 = vunpack.c.l.b16 %v3423
    %v4937 = vunpack.c.h.b16 %v3423
    %v4938 = vunpack.c.l.b16 %v3424
    %v4939 = vunpack.c.h.b16 %v3424
    %v4940 = vunpack.c.l.b16 %v3425
    %v4941 = vunpack.c.h.b16 %v3425
    %v4942 = vunpack.c.l.b16 %v3426
    %v4943 = vunpack.c.h.b16 %v3426
    %v4944 = vunpack.c.l.b16 %v3427
    %v4945 = vunpack.c.h.b16 %v3427
    %v4946 = vunpack.c.l.b16 %v3428
    %v4947 = vunpack.c.h.b16 %v3428
    %v4948 = vunpack.c.l.b16 %v3429
    %v4949 = vunpack.c.h.b16 %v3429
    %v4950 = vunpack.c.l.b16 %v3430
    %v4951 = vunpack.c.h.b16 %v3430
    %v4952 = vunpack.c.l.b16 %v3431
    %v4953 = vunpack.c.h.b16 %v3431
    %v4954 = vunpack.c.l.b16 %v3432
    %v4955 = vunpack.c.h.b16 %v3432
    %v4956 = vunpack.c.l.b16 %v3433
    %v4957 = vunpack.c.h.b16 %v3433
    %v4958 = vunpack.c.l.b16 %v3434
    %v4959 = vunpack.c.h.b16 %v3434
    %v4960 = vunpack.c.l.b16 %v3435
    %v4961 = vunpack.c.h.b16 %v3435
    %v4962 = vunpack.c.l.b16 %v3436
    %v4963 = vunpack.c.h.b16 %v3436
    %v4964 = vunpack.c.l.b16 %v3437
    %v4965 = vunpack.c.h.b16 %v3437
    %v4966 = vunpack.c.l.b16 %v3438
    %v4967 = vunpack.c.h.b16 %v3438
    %v4968 = vunpack.c.l.b16 %v3439
    %v4969 = vunpack.c.h.b16 %v3439
    %v4970 = vunpack.c.l.b16 %v3440
    %v4971 = vunpack.c.h.b16 %v3440
    %v4972 = vunpack.c.l.b16 %v3441
    %v4973 = vunpack.c.h.b16 %v3441
    %v4974 = vunpack.c.l.b16 %v3442
    %v4975 = vunpack.c.h.b16 %v3442
    %v4976 = vunpack.c.l.b16 %v3443
    %v4977 = vunpack.c.h.b16 %v3443
    %v4978 = vunpack.c.l.b16 %v3444
    %v4979 = vunpack.c.h.b16 %v3444
    %v4980 = vunpack.c.l.b16 %v3445
    %v4981 = vunpack.c.h.b16 %v3445
    %v4982 = vunpack.c.l.b16 %v3446
    %v4983 = vunpack.c.h.b16 %v3446
    %v4984 = vunpack.c.l.b16 %v3447
    %v4985 = vunpack.c.h.b16 %v3447
    %v4986 = vunpack.c.l.b16 %v3448
    %v4987 = vunpack.c.h.b16 %v3448
    %v4988 = vunpack.c.l.b16 %v3449
    %v4989 = vunpack.c.h.b16 %v3449
    %v4990 = vunpack.c.l.b16 %v3450
    %v4991 = vunpack.c.h.b16 %v3450
    %v4992 = vunpack.c.l.b16 %v3451
    %v4993 = vunpack.c.h.b16 %v3451
    %v4994 = vunpack.c.l.b16 %v3452
    %v4995 = vunpack.c.h.b16 %v3452
    %v4996 = vunpack.c.l.b16 %v3453
    %v4997 = vunpack.c.h.b16 %v3453
    %v4998 = vunpack.c.l.b16 %v3454
    %v4999 = vunpack.c.h.b16 %v3454
    %v5000 = vunpack.c.l.b16 %v3455
    %v5001 = vunpack.c.h.b16 %v3455
    %v5002 = vunpack.c.l.b16 %v3456
    %v5003 = vunpack.c.h.b16 %v3456
    %v5004 = vunpack.c.l.b16 %v3457
    %v5005 = vunpack.c.h.b16 %v3457
    %v5006 = vunpack.c.l.b16 %v3458
    %v5007 = vunpack.c.h.b16 %v3458
    %v5008 = vunpack.c.l.b16 %v3459
    %v5009 = vunpack.c.h.b16 %v3459
    %v5010 = vunpack.c.l.b16 %v3460
    %v5011 = vunpack.c.h.b16 %v3460
    %v5012 = vunpack.c.l.b16 %v3461
    %v5013 = vunpack.c.h.b16 %v3461
    %v5014 = vunpack.c.l.b16 %v3462
    %v5015 = vunpack.c.h.b16 %v3462
    %v5016 = vunpack.c.l.b16 %v3463
    %v5017 = vunpack.c.h.b16 %v3463
    %v5018 = vunpack.c.l.b16 %v3464
    %v5019 = vunpack.c.h.b16 %v3464
    %v5020 = vunpack.c.l.b16 %v3465
    %v5021 = vunpack.c.h.b16 %v3465
    %v5022 = vunpack.c.l.b16 %v3466
    %v5023 = vunpack.c.h.b16 %v3466
    %v5024 = vunpack.c.l.b16 %v3467
    %v5025 = vunpack.c.h.b16 %v3467
    %v5026 = vunpack.c.l.b16 %v3468
    %v5027 = vunpack.c.h.b16 %v3468
    %v5028 = vunpack.c.l.b16 %v3469
    %v5029 = vunpack.c.h.b16 %v3469
    %v5030 = vunpack.c.l.b16 %v3470
    %v5031 = vunpack.c.h.b16 %v3470
    %v5032 = vunpack.c.l.b16 %v3471
    %v5033 = vunpack.c.h.b16 %v3471
    %v5034 = vunpack.c.l.b16 %v3472
    %v5035 = vunpack.c.h.b16 %v3472
    %v5036 = vunpack.c.l.b16 %v3473
    %v5037 = vunpack.c.h.b16 %v3473
    %v5038 = vunpack.c.l.b16 %v3474
    %v5039 = vunpack.c.h.b16 %v3474
    %v5040 = vunpack.c.l.b16 %v3475
    %v5041 = vunpack.c.h.b16 %v3475
    %v5042 = vunpack.c.l.b16 %v3476
    %v5043 = vunpack.c.h.b16 %v3476
    %v5044 = vunpack.c.l.b16 %v3477
    %v5045 = vunpack.c.h.b16 %v3477
    %v5046 = vunpack.c.l.b16 %v3478
    %v5047 = vunpack.c.h.b16 %v3478
    %v5048 = vunpack.c.l.b16 %v3479
    %v5049 = vunpack.c.h.b16 %v3479
    %v5050 = vunpack.c.l.b16 %v3480
    %v5051 = vunpack.c.h.b16 %v3480
    %v5052 = vunpack.c.l.b16 %v3481
    %v5053 = vunpack.c.h.b16 %v3481
    %v5054 = vunpack.c.l.b16 %v3482
    %v5055 = vunpack.c.h.b16 %v3482
    %v5056 = vunpack.c.l.b16 %v3483
    %v5057 = vunpack.c.h.b16 %v3483
    %v5058 = vunpack.c.l.b16 %v3484
    %v5059 = vunpack.c.h.b16 %v3484
    %v5060 = vunpack.c.l.b16 %v3485
    %v5061 = vunpack.c.h.b16 %v3485
    %v5062 = vunpack.c.l.b16 %v3486
    %v5063 = vunpack.c.h.b16 %v3486
    %v5064 = vunpack.c.l.b16 %v3487
    %v5065 = vunpack.c.h.b16 %v3487
    %v5066 = vunpack.c.l.b16 %v3488
    %v5067 = vunpack.c.h.b16 %v3488
    %v5068 = vunpack.c.l.b16 %v3489
    %v5069 = vunpack.c.h.b16 %v3489
    %v5070 = vunpack.c.l.b16 %v3490
    %v5071 = vunpack.c.h.b16 %v3490
    %v5072 = vunpack.c.l.b16 %v3491
    %v5073 = vunpack.c.h.b16 %v3491
    %v5074 = vunpack.c.l.b16 %v3492
    %v5075 = vunpack.c.h.b16 %v3492
    %v5076 = vunpack.c.l.b16 %v3493
    %v5077 = vunpack.c.h.b16 %v3493
    %v5078 = vunpack.c.l.b16 %v3494
    %v5079 = vunpack.c.h.b16 %v3494
    %v5080 = vunpack.c.l.b16 %v3495
    %v5081 = vunpack.c.h.b16 %v3495
    %v5082 = vunpack.c.l.b16 %v3496
    %v5083 = vunpack.c.h.b16 %v3496
    %v5084 = vunpack.c.l.b16 %v3497
    %v5085 = vunpack.c.h.b16 %v3497
    %v5086 = vunpack.c.l.b16 %v3498
    %v5087 = vunpack.c.h.b16 %v3498
    %v5088 = vunpack.c.l.b16 %v3499
    %v5089 = vunpack.c.h.b16 %v3499
    %v5090 = vunpack.c.l.b16 %v3500
    %v5091 = vunpack.c.h.b16 %v3500
    %v5092 = vunpack.c.l.b16 %v3501
    %v5093 = vunpack.c.h.b16 %v3501
    %v5094 = vunpack.c.l.b16 %v3502
    %v5095 = vunpack.c.h.b16 %v3502
    %v5096 = vunpack.c.l.b16 %v3503
    %v5097 = vunpack.c.h.b16 %v3503
    %v5098 = vunpack.c.l.b16 %v3504
    %v5099 = vunpack.c.h.b16 %v3504
    %v5100 = vunpack.c.l.b16 %v3505
    %v5101 = vunpack.c.h.b16 %v3505
    %v5102 = vunpack.c.l.b16 %v3506
    %v5103 = vunpack.c.h.b16 %v3506
    %v5104 = vunpack.c.l.b16 %v3507
    %v5105 = vunpack.c.h.b16 %v3507
    %v5106 = vunpack.c.l.b16 %v3508
    %v5107 = vunpack.c.h.b16 %v3508
    %v5108 = vunpack.c.l.b16 %v3509
    %v5109 = vunpack.c.h.b16 %v3509
    %v5110 = vunpack.c.l.b16 %v3510
    %v5111 = vunpack.c.h.b16 %v3510
    %v5112 = vunpack.c.l.b16 %v3511
    %v5113 = vunpack.c.h.b16 %v3511
    %v5114 = vunpack.c.l.b16 %v3512
    %v5115 = vunpack.c.h.b16 %v3512
    %v5116 = vunpack.c.l.b16 %v3513
    %v5117 = vunpack.c.h.b16 %v3513
    %v5118 = vunpack.c.l.b16 %v3514
    %v5119 = vunpack.c.h.b16 %v3514
    %v5120 = vunpack.c.l.b16 %v3515
    %v5121 = vunpack.c.h.b16 %v3515
    %v5122 = vunpack.c.l.b16 %v3516
    %v5123 = vunpack.c.h.b16 %v3516
    %v5124 = vunpack.c.l.b16 %v3517
    %v5125 = vunpack.c.h.b16 %v3517
    %v5126 = vunpack.c.l.b16 %v3518
    %v5127 = vunpack.c.h.b16 %v3518
    %v5128 = vunpack.c.l.b16 %v3519
    %v5129 = vunpack.c.h.b16 %v3519
    %v5130 = vunpack.c.l.b16 %v3520
    %v5131 = vunpack.c.h.b16 %v3520
    %v5132 = vunpack.c.l.b16 %v3521
    %v5133 = vunpack.c.h.b16 %v3521
    %v5134 = vunpack.c.l.b16 %v3522
    %v5135 = vunpack.c.h.b16 %v3522
    %v5136 = vunpack.c.l.b16 %v3523
    %v5137 = vunpack.c.h.b16 %v3523
    %v5138 = vunpack.c.l.b16 %v3524
    %v5139 = vunpack.c.h.b16 %v3524
    %v5140 = vunpack.c.l.b16 %v3525
    %v5141 = vunpack.c.h.b16 %v3525
    %v5142 = vunpack.c.l.b16 %v3526
    %v5143 = vunpack.c.h.b16 %v3526
    %v5144 = vunpack.c.l.b16 %v3527
    %v5145 = vunpack.c.h.b16 %v3527
    %v5146 = vunpack.c.l.b16 %v3528
    %v5147 = vunpack.c.h.b16 %v3528
    %v5148 = vunpack.c.l.b16 %v3529
    %v5149 = vunpack.c.h.b16 %v3529
    %v5150 = vunpack.c.l.b16 %v3530
    %v5151 = vunpack.c.h.b16 %v3530
    %v5152 = vunpack.c.l.b16 %v3531
    %v5153 = vunpack.c.h.b16 %v3531
    %v5154 = vunpack.c.l.b16 %v3532
    %v5155 = vunpack.c.h.b16 %v3532
    %v5156 = vunpack.c.l.b16 %v3533
    %v5157 = vunpack.c.h.b16 %v3533
    %v5158 = vunpack.c.l.b16 %v3534
    %v5159 = vunpack.c.h.b16 %v3534
    %v5160 = vunpack.c.l.b16 %v3535
    %v5161 = vunpack.c.h.b16 %v3535
    %v5162 = vunpack.c.l.b16 %v3536
    %v5163 = vunpack.c.h.b16 %v3536
    %v5164 = vunpack.c.l.b16 %v3537
    %v5165 = vunpack.c.h.b16 %v3537
    %v5166 = vunpack.c.l.b16 %v3538
    %v5167 = vunpack.c.h.b16 %v3538
    %v5168 = vunpack.c.l.b16 %v3539
    %v5169 = vunpack.c.h.b16 %v3539
    %v5170 = vunpack.c.l.b16 %v3540
    %v5171 = vunpack.c.h.b16 %v3540
    %v5172 = vunpack.c.l.b16 %v3541
    %v5173 = vunpack.c.h.b16 %v3541
    %v5174 = vunpack.c.l.b16 %v3542
    %v5175 = vunpack.c.h.b16 %v3542
    %v5176 = vunpack.c.l.b16 %v3543
    %v5177 = vunpack.c.h.b16 %v3543
    %v5178 = vunpack.c.l.b16 %v3544
    %v5179 = vunpack.c.h.b16 %v3544
    %v5180 = vunpack.c.l.b16 %v3545
    %v5181 = vunpack.c.h.b16 %v3545
    %v5182 = vunpack.c.l.b16 %v3546
    %v5183 = vunpack.c.h.b16 %v3546
    %v5184 = vunpack.c.l.b16 %v3547
    %v5185 = vunpack.c.h.b16 %v3547
    %v5186 = vunpack.c.l.b16 %v3548
    %v5187 = vunpack.c.h.b16 %v3548
    %v5188 = vunpack.c.l.b16 %v3549
    %v5189 = vunpack.c.h.b16 %v3549
    %v5190 = vunpack.c.l.b16 %v3550
    %v5191 = vunpack.c.h.b16 %v3550
    %v5192 = vunpack.c.l.b16 %v3551
    %v5193 = vunpack.c.h.b16 %v3551
    %v5194 = vunpack.c.l.b16 %v3552
    %v5195 = vunpack.c.h.b16 %v3552
    %v5196 = vunpack.c.l.b16 %v3553
    %v5197 = vunpack.c.h.b16 %v3553
    %v5198 = vunpack.c.l.b16 %v3554
    %v5199 = vunpack.c.h.b16 %v3554
    %v5200 = vunpack.c.l.b16 %v3555
    %v5201 = vunpack.c.h.b16 %v3555
    %v5202 = vunpack.c.l.b16 %v3556
    %v5203 = vunpack.c.h.b16 %v3556
    %v5204 = vunpack.c.l.b16 %v3557
    %v5205 = vunpack.c.h.b16 %v3557
    %v5206 = vunpack.c.l.b16 %v3558
    %v5207 = vunpack.c.h.b16 %v3558
    %v5208 = vunpack.c.l.b16 %v3559
    %v5209 = vunpack.c.h.b16 %v3559
    %v5210 = vunpack.c.l.b16 %v3560
    %v5211 = vunpack.c.h.b16 %v3560
    %v5212 = vunpack.c.l.b16 %v3561
    %v5213 = vunpack.c.h.b16 %v3561
    %v5214 = vunpack.c.l.b16 %v3562
    %v5215 = vunpack.c.h.b16 %v3562
    %v5216 = vunpack.c.l.b16 %v3563
    %v5217 = vunpack.c.h.b16 %v3563
    %v5218 = vunpack.c.l.b16 %v3564
    %v5219 = vunpack.c.h.b16 %v3564
    %v5220 = vunpack.c.l.b16 %v3565
    %v5221 = vunpack.c.h.b16 %v3565
    %v5222 = vunpack.c.l.b16 %v3566
    %v5223 = vunpack.c.h.b16 %v3566
    %v5224 = vunpack.c.l.b16 %v3567
    %v5225 = vunpack.c.h.b16 %v3567
    %v5226 = vunpack.c.l.b16 %v3568
    %v5227 = vunpack.c.h.b16 %v3568
    %v5228 = vunpack.c.l.b16 %v3569
    %v5229 = vunpack.c.h.b16 %v3569
    %v5230 = vunpack.c.l.b16 %v3570
    %v5231 = vunpack.c.h.b16 %v3570
    %v5232 = vunpack.c.l.b16 %v3571
    %v5233 = vunpack.c.h.b16 %v3571
    %v5234 = vunpack.c.l.b16 %v3572
    %v5235 = vunpack.c.h.b16 %v3572
    %v5236 = vunpack.c.l.b16 %v3573
    %v5237 = vunpack.c.h.b16 %v3573
    %v5238 = vunpack.c.l.b16 %v3574
    %v5239 = vunpack.c.h.b16 %v3574
    %v5240 = vunpack.c.l.b16 %v3575
    %v5241 = vunpack.c.h.b16 %v3575
    %v5242 = vunpack.c.l.b16 %v3576
    %v5243 = vunpack.c.h.b16 %v3576
    %v5244 = vunpack.c.l.b16 %v3577
    %v5245 = vunpack.c.h.b16 %v3577
    %v5246 = vunpack.c.l.b16 %v3578
    %v5247 = vunpack.c.h.b16 %v3578
    %v5248 = vunpack.c.l.b16 %v3579
    %v5249 = vunpack.c.h.b16 %v3579
    %v5250 = vunpack.c.l.b16 %v3580
    %v5251 = vunpack.c.h.b16 %v3580
    %v5252 = vunpack.c.l.b16 %v3581
    %v5253 = vunpack.c.h.b16 %v3581
    %v5254 = vunpack.c.l.b16 %v3582
    %v5255 = vunpack.c.h.b16 %v3582
    %v5256 = vunpack.c.l.b16 %v3583
    %v5257 = vunpack.c.h.b16 %v3583
    %v5258 = vunpack.c.l.b16 %v3584
    %v5259 = vunpack.c.h.b16 %v3584
    %v5260 = vunpack.c.l.b16 %v3585
    %v5261 = vunpack.c.h.b16 %v3585
    %v5262 = vunpack.c.l.b16 %v3586
    %v5263 = vunpack.c.h.b16 %v3586
    %v5264 = vunpack.c.l.b16 %v3587
    %v5265 = vunpack.c.h.b16 %v3587
    %v5266 = vunpack.c.l.b16 %v3588
    %v5267 = vunpack.c.h.b16 %v3588
    %v5268 = vunpack.c.l.b16 %v3589
    %v5269 = vunpack.c.h.b16 %v3589
    %v5270 = vunpack.c.l.b16 %v3590
    %v5271 = vunpack.c.h.b16 %v3590
    %v5272 = vunpack.c.l.b16 %v3591
    %v5273 = vunpack.c.h.b16 %v3591
    %v5274 = vunpack.c.l.b16 %v3592
    %v5275 = vunpack.c.h.b16 %v3592
    %v5276 = vunpack.c.l.b16 %v3593
    %v5277 = vunpack.c.h.b16 %v3593
    %v5278 = vunpack.c.l.b16 %v3594
    %v5279 = vunpack.c.h.b16 %v3594
    %v5280 = vunpack.c.l.b16 %v3595
    %v5281 = vunpack.c.h.b16 %v3595
    %v5282 = vunpack.c.l.b16 %v3596
    %v5283 = vunpack.c.h.b16 %v3596
    %v5284 = vunpack.c.l.b16 %v3597
    %v5285 = vunpack.c.h.b16 %v3597
    %v5286 = vunpack.c.l.b16 %v3598
    %v5287 = vunpack.c.h.b16 %v3598
    %v5288 = vunpack.c.l.b16 %v3599
    %v5289 = vunpack.c.h.b16 %v3599
    %v5290 = vunpack.c.l.b16 %v3600
    %v5291 = vunpack.c.h.b16 %v3600
    %v5292 = vunpack.c.l.b16 %v3601
    %v5293 = vunpack.c.h.b16 %v3601
    %v5294 = vunpack.c.l.b16 %v3602
    %v5295 = vunpack.c.h.b16 %v3602
    %v5296 = vunpack.c.l.b16 %v3603
    %v5297 = vunpack.c.h.b16 %v3603
    %v5298 = vunpack.c.l.b16 %v3604
    %v5299 = vunpack.c.h.b16 %v3604
    %v5300 = vunpack.c.l.b16 %v3605
    %v5301 = vunpack.c.h.b16 %v3605
    %v5302 = vunpack.c.l.b16 %v3606
    %v5303 = vunpack.c.h.b16 %v3606
    %v5304 = vunpack.c.l.b16 %v3607
    %v5305 = vunpack.c.h.b16 %v3607
    %v5306 = vunpack.c.l.b16 %v3608
    %v5307 = vunpack.c.h.b16 %v3608
    %v5308 = vunpack.c.l.b16 %v3609
    %v5309 = vunpack.c.h.b16 %v3609
    %v5310 = vpack.c.b16 %v4806, %v4798
    %v5311 = vpack.c.b16 %v4807, %v4799
    %v5312 = vpack.c.b16 %v4808, %v4800
    %v5313 = vpack.c.b16 %v4809, %v4801
    %v5314 = vpack.c.b16 %v4810, %v4802
    %v5315 = vpack.c.b16 %v4811, %v4803
    %v5316 = vpack.c.b16 %v4812, %v4804
    %v5317 = vpack.c.b16 %v4813, %v4805
    %v5318 = vpack.c.b16 %v4822, %v4814
    %v5319 = vpack.c.b16 %v4823, %v4815
    %v5320 = vpack.c.b16 %v4824, %v4816
    %v5321 = vpack.c.b16 %v4825, %v4817
    %v5322 = vpack.c.b16 %v4826, %v4818
    %v5323 = vpack.c.b16 %v4827, %v4819
    %v5324 = vpack.c.b16 %v4828, %v4820
    %v5325 = vpack.c.b16 %v4829, %v4821
    %v5326 = vpack.c.b16 %v4838, %v4830
    %v5327 = vpack.c.b16 %v4839, %v4831
    %v5328 = vpack.c.b16 %v4840, %v4832
    %v5329 = vpack.c.b16 %v4841, %v4833
    %v5330 = vpack.c.b16 %v4842, %v4834
    %v5331 = vpack.c.b16 %v4843, %v4835
    %v5332 = vpack.c.b16 %v4844, %v4836
    %v5333 = vpack.c.b16 %v4845, %v4837
    %v5334 = vpack.c.b16 %v4854, %v4846
    %v5335 = vpack.c.b16 %v4855, %v4847
    %v5336 = vpack.c.b16 %v4856, %v4848
    %v5337 = vpack.c.b16 %v4857, %v4849
    %v5338 = vpack.c.b16 %v4858, %v4850
    %v5339 = vpack.c.b16 %v4859, %v4851
    %v5340 = vpack.c.b16 %v4860, %v4852
    %v5341 = vpack.c.b16 %v4861, %v4853
    %v5342 = vpack.c.b16 %v4870, %v4862
    %v5343 = vpack.c.b16 %v4871, %v4863
    %v5344 = vpack.c.b16 %v4872, %v4864
    %v5345 = vpack.c.b16 %v4873, %v4865
    %v5346 = vpack.c.b16 %v4874, %v4866
    %v5347 = vpack.c.b16 %v4875, %v4867
    %v5348 = vpack.c.b16 %v4876, %v4868
    %v5349 = vpack.c.b16 %v4877, %v4869
    %v5350 = vpack.c.b16 %v4886, %v4878
    %v5351 = vpack.c.b16 %v4887, %v4879
    %v5352 = vpack.c.b16 %v4888, %v4880
    %v5353 = vpack.c.b16 %v4889, %v4881
    %v5354 = vpack.c.b16 %v4890, %v4882
    %v5355 = vpack.c.b16 %v4891, %v4883
    %v5356 = vpack.c.b16 %v4892, %v4884
    %v5357 = vpack.c.b16 %v4893, %v4885
    %v5358 = vpack.c.b16 %v4902, %v4894
    %v5359 = vpack.c.b16 %v4903, %v4895
    %v5360 = vpack.c.b16 %v4904, %v4896
    %v5361 = vpack.c.b16 %v4905, %v4897
    %v5362 = vpack.c.b16 %v4906, %v4898
    %v5363 = vpack.c.b16 %v4907, %v4899
    %v5364 = vpack.c.b16 %v4908, %v4900
    %v5365 = vpack.c.b16 %v4909, %v4901
    %v5366 = vpack.c.b16 %v4918, %v4910
    %v5367 = vpack.c.b16 %v4919, %v4911
    %v5368 = vpack.c.b16 %v4920, %v4912
    %v5369 = vpack.c.b16 %v4921, %v4913
    %v5370 = vpack.c.b16 %v4922, %v4914
    %v5371 = vpack.c.b16 %v4923, %v4915
    %v5372 = vpack.c.b16 %v4924, %v4916
    %v5373 = vpack.c.b16 %v4925, %v4917
    %v5374 = vpack.c.b16 %v4934, %v4926
    %v5375 = vpack.c.b16 %v4935, %v4927
    %v5376 = vpack.c.b16 %v4936, %v4928
    %v5377 = vpack.c.b16 %v4937, %v4929
    %v5378 = vpack.c.b16 %v4938, %v4930
    %v5379 = vpack.c.b16 %v4939, %v4931
    %v5380 = vpack.c.b16 %v4940, %v4932
    %v5381 = vpack.c.b16 %v4941, %v4933
    %v5382 = vpack.c.b16 %v4950, %v4942
    %v5383 = vpack.c.b16 %v4951, %v4943
    %v5384 = vpack.c.b16 %v4952, %v4944
    %v5385 = vpack.c.b16 %v4953, %v4945
    %v5386 = vpack.c.b16 %v4954, %v4946
    %v5387 = vpack.c.b16 %v4955, %v4947
    %v5388 = vpack.c.b16 %v4956, %v4948
    %v5389 = vpack.c.b16 %v4957, %v4949
    %v5390 = vpack.c.b16 %v4966, %v4958
    %v5391 = vpack.c.b16 %v4967, %v4959
    %v5392 = vpack.c.b16 %v4968, %v4960
    %v5393 = vpack.c.b16 %v4969, %v4961
    %v5394 = vpack.c.b16 %v4970, %v4962
    %v5395 = vpack.c.b16 %v4971, %v4963
    %v5396 = vpack.c.b16 %v4972, %v4964
    %v5397 = vpack.c.b16 %v4973, %v4965
    %v5398 = vpack.c.b16 %v4982, %v4974
    %v5399 = vpack.c.b16 %v4983, %v4975
    %v5400 = vpack.c.b16 %v4984, %v4976
    %v5401 = vpack.c.b16 %v4985, %v4977
    %v5402 = vpack.c.b16 %v4986, %v4978
    %v5403 = vpack.c.b16 %v4987, %v4979
    %v5404 = vpack.c.b16 %v4988, %v4980
    %v5405 = vpack.c.b16 %v4989, %v4981
    %v5406 = vpack.c.b16 %v4998, %v4990
    %v5407 = vpack.c.b16 %v4999, %v4991
    %v5408 = vpack.c.b16 %v5000, %v4992
    %v5409 = vpack.c.b16 %v5001, %v4993
    %v5410 = vpack.c.b16 %v5002, %v4994
    %v5411 = vpack.c.b16 %v5003, %v4995
    %v5412 = vpack.c.b16 %v5004, %v4996
    %v5413 = vpack.c.b16 %v5005, %v4997
    %v5414 = vpack.c.b16 %v5014, %v5006
    %v5415 = vpack.c.b16 %v5015, %v5007
    %v5416 = vpack.c.b16 %v5016, %v5008
    %v5417 = vpack.c.b16 %v5017, %v5009
    %v5418 = vpack.c.b16 %v5018, %v5010
    %v5419 = vpack.c.b16 %v5019, %v5011
    %v5420 = vpack.c.b16 %v5020, %v5012
    %v5421 = vpack.c.b16 %v5021, %v5013
    %v5422 = vpack.c.b16 %v5030, %v5022
    %v5423 = vpack.c.b16 %v5031, %v5023
    %v5424 = vpack.c.b16 %v5032, %v5024
    %v5425 = vpack.c.b16 %v5033, %v5025
    %v5426 = vpack.c.b16 %v5034, %v5026
    %v5427 = vpack.c.b16 %v5035, %v5027
    %v5428 = vpack.c.b16 %v5036, %v5028
    %v5429 = vpack.c.b16 %v5037, %v5029
    %v5430 = vpack.c.b16 %v5046, %v5038
    %v5431 = vpack.c.b16 %v5047, %v5039
    %v5432 = vpack.c.b16 %v5048, %v5040
    %v5433 = vpack.c.b16 %v5049, %v5041
    %v5434 = vpack.c.b16 %v5050, %v5042
    %v5435 = vpack.c.b16 %v5051, %v5043
    %v5436 = vpack.c.b16 %v5052, %v5044
    %v5437 = vpack.c.b16 %v5053, %v5045
    %v5438 = vpack.c.b16 %v5062, %v5054
    %v5439 = vpack.c.b16 %v5063, %v5055
    %v5440 = vpack.c.b16 %v5064, %v5056
    %v5441 = vpack.c.b16 %v5065, %v5057
    %v5442 = vpack.c.b16 %v5066, %v5058
    %v5443 = vpack.c.b16 %v5067, %v5059
    %v5444 = vpack.c.b16 %v5068, %v5060
    %v5445 = vpack.c.b16 %v5069, %v5061
    %v5446 = vpack.c.b16 %v5078, %v5070
    %v5447 = vpack.c.b16 %v5079, %v5071
    %v5448 = vpack.c.b16 %v5080, %v5072
    %v5449 = vpack.c.b16 %v5081, %v5073
    %v5450 = vpack.c.b16 %v5082, %v5074
    %v5451 = vpack.c.b16 %v5083, %v5075
    %v5452 = vpack.c.b16 %v5084, %v5076
    %v5453 = vpack.c.b16 %v5085, %v5077
    %v5454 = vpack.c.b16 %v5094, %v5086
    %v5455 = vpack.c.b16 %v5095, %v5087
    %v5456 = vpack.c.b16 %v5096, %v5088
    %v5457 = vpack.c.b16 %v5097, %v5089
    %v5458 = vpack.c.b16 %v5098, %v5090
    %v5459 = vpack.c.b16 %v5099, %v5091
    %v5460 = vpack.c.b16 %v5100, %v5092
    %v5461 = vpack.c.b16 %v5101, %v5093
    %v5462 = vpack.c.b16 %v5110, %v5102
    %v5463 = vpack.c.b16 %v5111, %v5103
    %v5464 = vpack.c.b16 %v5112, %v5104
    %v5465 = vpack.c.b16 %v5113, %v5105
    %v5466 = vpack.c.b16 %v5114, %v5106
    %v5467 = vpack.c.b16 %v5115, %v5107
    %v5468 = vpack.c.b16 %v5116, %v5108
    %v5469 = vpack.c.b16 %v5117, %v5109
    %v5470 = vpack.c.b16 %v5126, %v5118
    %v5471 = vpack.c.b16 %v5127, %v5119
    %v5472 = vpack.c.b16 %v5128, %v5120
    %v5473 = vpack.c.b16 %v5129, %v5121
    %v5474 = vpack.c.b16 %v5130, %v5122
    %v5475 = vpack.c.b16 %v5131, %v5123
    %v5476 = vpack.c.b16 %v5132, %v5124
    %v5477 = vpack.c.b16 %v5133, %v5125
    %v5478 = vpack.c.b16 %v5142, %v5134
    %v5479 = vpack.c.b16 %v5143, %v5135
    %v5480 = vpack.c.b16 %v5144, %v5136
    %v5481 = vpack.c.b16 %v5145, %v5137
    %v5482 = vpack.c.b16 %v5146, %v5138
    %v5483 = vpack.c.b16 %v5147, %v5139
    %v5484 = vpack.c.b16 %v5148, %v5140
    %v5485 = vpack.c.b16 %v5149, %v5141
    %v5486 = vpack.c.b16 %v5158, %v5150
    %v5487 = vpack.c.b16 %v5159, %v5151
    %v5488 = vpack.c.b16 %v5160, %v5152
    %v5489 = vpack.c.b16 %v5161, %v5153
    %v5490 = vpack.c.b16 %v5162, %v5154
    %v5491 = vpack.c.b16 %v5163, %v5155
    %v5492 = vpack.c.b16 %v5164, %v5156
    %v5493 = vpack.c.b16 %v5165, %v5157
    %v5494 = vpack.c.b16 %v5174, %v5166
    %v5495 = vpack.c.b16 %v5175, %v5167
    %v5496 = vpack.c.b16 %v5176, %v5168
    %v5497 = vpack.c.b16 %v5177, %v5169
    %v5498 = vpack.c.b16 %v5178, %v5170
    %v5499 = vpack.c.b16 %v5179, %v5171
    %v5500 = vpack.c.b16 %v5180, %v5172
    %v5501 = vpack.c.b16 %v5181, %v5173
    %v5502 = vpack.c.b16 %v5190, %v5182
    %v5503 = vpack.c.b16 %v5191, %v5183
    %v5504 = vpack.c.b16 %v5192, %v5184
    %v5505 = vpack.c.b16 %v5193, %v5185
    %v5506 = vpack.c.b16 %v5194, %v5186
    %v5507 = vpack.c.b16 %v5195, %v5187
    %v5508 = vpack.c.b16 %v5196, %v5188
    %v5509 = vpack.c.b16 %v5197, %v5189
    %v5510 = vpack.c.b16 %v5206, %v5198
    %v5511 = vpack.c.b16 %v5207, %v5199
    %v5512 = vpack.c.b16 %v5208, %v5200
    %v5513 = vpack.c.b16 %v5209, %v5201
    %v5514 = vpack.c.b16 %v5210, %v5202
    %v5515 = vpack.c.b16 %v5211, %v5203
    %v5516 = vpack.c.b16 %v5212, %v5204
    %v5517 = vpack.c.b16 %v5213, %v5205
    %v5518 = vpack.c.b16 %v5222, %v5214
    %v5519 = vpack.c.b16 %v5223, %v5215
    %v5520 = vpack.c.b16 %v5224, %v5216
    %v5521 = vpack.c.b16 %v5225, %v5217
    %v5522 = vpack.c.b16 %v5226, %v5218
    %v5523 = vpack.c.b16 %v5227, %v5219
    %v5524 = vpack.c.b16 %v5228, %v5220
    %v5525 = vpack.c.b16 %v5229, %v5221
    %v5526 = vpack.c.b16 %v5238, %v5230
    %v5527 = vpack.c.b16 %v5239, %v5231
    %v5528 = vpack.c.b16 %v5240, %v5232
    %v5529 = vpack.c.b16 %v5241, %v5233
    %v5530 = vpack.c.b16 %v5242, %v5234
    %v5531 = vpack.c.b16 %v5243, %v5235
    %v5532 = vpack.c.b16 %v5244, %v5236
    %v5533 = vpack.c.b16 %v5245, %v5237
    %v5534 = vpack.c.b16 %v5254, %v5246
    %v5535 = vpack.c.b16 %v5255, %v5247
    %v5536 = vpack.c.b16 %v5256, %v5248
    %v5537 = vpack.c.b16 %v5257, %v5249
    %v5538 = vpack.c.b16 %v5258, %v5250
    %v5539 = vpack.c.b16 %v5259, %v5251
    %v5540 = vpack.c.b16 %v5260, %v5252
    %v5541 = vpack.c.b16 %v5261, %v5253
    %v5542 = vpack.c.b16 %v5270, %v5262
    %v5543 = vpack.c.b16 %v5271, %v5263
    %v5544 = vpack.c.b16 %v5272, %v5264
    %v5545 = vpack.c.b16 %v5273, %v5265
    %v5546 = vpack.c.b16 %v5274, %v5266
    %v5547 = vpack.c.b16 %v5275, %v5267
    %v5548 = vpack.c.b16 %v5276, %v5268
    %v5549 = vpack.c.b16 %v5277, %v5269
    %v5550 = vpack.c.b16 %v5286, %v5278
    %v5551 = vpack.c.b16 %v5287, %v5279
    %v5552 = vpack.c.b16 %v5288, %v5280
    %v5553 = vpack.c.b16 %v5289, %v5281
    %v5554 = vpack.c.b16 %v5290, %v5282
    %v5555 = vpack.c.b16 %v5291, %v5283
    %v5556 = vpack.c.b16 %v5292, %v5284
    %v5557 = vpack.c.b16 %v5293, %v5285
    %v5558 = vpack.c.b16 %v5302, %v5294
    %v5559 = vpack.c.b16 %v5303, %v5295
    %v5560 = vpack.c.b16 %v5304, %v5296
    %v5561 = vpack.c.b16 %v5305, %v5297
    %v5562 = vpack.c.b16 %v5306, %v5298
    %v5563 = vpack.c.b16 %v5307, %v5299
    %v5564 = vpack.c.b16 %v5308, %v5300
    %v5565 = vpack.c.b16 %v5309, %v5301
    %v5823 = vlaneseq
    %v5824 = vshrl.u32 %v5823, 7
    %v5825 = vsub.s32 0, %v5824
    %v5826 = vrot.slane %v3610, %v5825
    %v5827 = vlaneseq
    %v5828 = vshrl.u32 %v5827, 7
    %v5829 = vsub.s32 1, %v5828
    %v5830 = vrot.slane %v3610, %v5829
    %v5831 = vlaneseq
    %v5832 = vshrl.u32 %v5831, 7
    %v5833 = vsub.s32 2, %v5832
    %v5834 = vrot.slane %v3610, %v5833
    %v5835 = vlaneseq
    %v5836 = vshrl.u32 %v5835, 7
    %v5837 = vsub.s32 3, %v5836
    %v5838 = vrot.slane %v3610, %v5837
    %v5839 = vlaneseq
    %v5840 = vshrl.u32 %v5839, 7
    %v5841 = vsub.s32 4, %v5840
    %v5842 = vrot.slane %v3610, %v5841
    %v5843 = vlaneseq
    %v5844 = vshrl.u32 %v5843, 7
    %v5845 = vsub.s32 5, %v5844
    %v5846 = vrot.slane %v3610, %v5845
    %v5847 = vlaneseq
    %v5848 = vshrl.u32 %v5847, 7
    %v5849 = vsub.s32 6, %v5848
    %v5850 = vrot.slane %v3610, %v5849
    %v5851 = vlaneseq
    %v5852 = vshrl.u32 %v5851, 7
    %v5853 = vsub.s32 7, %v5852
    %v5854 = vrot.slane %v3610, %v5853
    %5863 = vmatprep.subr.bf16.mxu0 %v5367
    %5864 = vmatpush1.bf16.msra.mxu0 %v5366
    %5865 = vmatprep.subr.bf16.mxu0 %v5359
    %5866 = vmatpush1.bf16.msra.mxu0 %v5358
    %5867 = vmatprep.subr.bf16.mxu0 %v5351
    %5868 = vmatpush1.bf16.msra.mxu0 %v5350
    %5869 = vmatprep.subr.bf16.mxu0 %v5343
    %5870 = vmatpush1.bf16.msra.mxu0 %v5342
    %5871 = vmatprep.subr.bf16.mxu0 %v5335
    %5872 = vmatpush1.bf16.msra.mxu0 %v5334
    %5873 = vmatprep.subr.bf16.mxu0 %v5327
    %5874 = vmatpush1.bf16.msra.mxu0 %v5326
    %5875 = vmatprep.subr.bf16.mxu0 %v5319
    %5876 = vmatpush1.bf16.msra.mxu0 %v5318
    %5877 = vmatprep.subr.bf16.mxu0 %v5311
    %5878 = vmatpush1.bf16.msra.mxu0 %v5310
    %5879 = vmatprep.subr.bf16.mxu0 %v5431
    %5880 = vmatpush2.bf16.msra.mxu0 %v5430
    %5881 = vmatprep.subr.bf16.mxu0 %v5423
    %5882 = vmatpush2.bf16.msra.mxu0 %v5422
    %5883 = vmatprep.subr.bf16.mxu0 %v5415
    %5884 = vmatpush2.bf16.msra.mxu0 %v5414
    %5885 = vmatprep.subr.bf16.mxu0 %v5407
    %5886 = vmatpush2.bf16.msra.mxu0 %v5406
    %5887 = vmatprep.subr.bf16.mxu0 %v5399
    %5888 = vmatpush2.bf16.msra.mxu0 %v5398
    %5889 = vmatprep.subr.bf16.mxu0 %v5391
    %5890 = vmatpush2.bf16.msra.mxu0 %v5390
    %5891 = vmatprep.subr.bf16.mxu0 %v5383
    %5892 = vmatpush2.bf16.msra.mxu0 %v5382
    %5893 = vmatprep.subr.bf16.mxu0 %v5375
    %5894 = vmatpush2.bf16.msra.mxu0 %v5374
    %5895 = vmatprep.mubr.bf16.mxu0 %v4539
    %5896 = vmatmul.mubr.bf16.gmra.mxu0 %v4538
    %v5897 = vpop.f32.mrf.mxu0
    %v5898 = vadd.f32 %v5826, %v5897
    %v5899 = vpop.f32.mrf.mxu0
    %v5900 = vadd.f32 %v5830, %v5899
    %v5901 = vpop.f32.mrf.mxu0
    %v5902 = vpop.f32.mrf.mxu0
    %5903 = vdwg.mxu0
    %5904 = vmatprep.subr.bf16.mxu0 %v5495
    %5905 = vmatpush1.bf16.msra.mxu0 %v5494
    %5906 = vmatprep.subr.bf16.mxu0 %v5487
    %5907 = vmatpush1.bf16.msra.mxu0 %v5486
    %5908 = vmatprep.subr.bf16.mxu0 %v5479
    %5909 = vmatpush1.bf16.msra.mxu0 %v5478
    %5910 = vmatprep.subr.bf16.mxu0 %v5471
    %5911 = vmatpush1.bf16.msra.mxu0 %v5470
    %5912 = vmatprep.subr.bf16.mxu0 %v5463
    %5913 = vmatpush1.bf16.msra.mxu0 %v5462
    %5914 = vmatprep.subr.bf16.mxu0 %v5455
    %5915 = vmatpush1.bf16.msra.mxu0 %v5454
    %5916 = vmatprep.subr.bf16.mxu0 %v5447
    %5917 = vmatpush1.bf16.msra.mxu0 %v5446
    %5918 = vmatprep.subr.bf16.mxu0 %v5439
    %5919 = vmatpush1.bf16.msra.mxu0 %v5438
    %5920 = vmatprep.subr.bf16.mxu0 %v5559
    %5921 = vmatpush2.bf16.msra.mxu0 %v5558
    %5922 = vmatprep.subr.bf16.mxu0 %v5551
    %5923 = vmatpush2.bf16.msra.mxu0 %v5550
    %5924 = vmatprep.subr.bf16.mxu0 %v5543
    %5925 = vmatpush2.bf16.msra.mxu0 %v5542
    %5926 = vmatprep.subr.bf16.mxu0 %v5535
    %5927 = vmatpush2.bf16.msra.mxu0 %v5534
    %5928 = vmatprep.subr.bf16.mxu0 %v5527
    %5929 = vmatpush2.bf16.msra.mxu0 %v5526
    %5930 = vmatprep.subr.bf16.mxu0 %v5519
    %5931 = vmatpush2.bf16.msra.mxu0 %v5518
    %5932 = vmatprep.subr.bf16.mxu0 %v5511
    %5933 = vmatpush2.bf16.msra.mxu0 %v5510
    %5934 = vmatprep.subr.bf16.mxu0 %v5503
    %5935 = vmatpush2.bf16.msra.mxu0 %v5502
    %5936 = vmatprep.mubr.bf16.mxu0 %v4541
    %5937 = vmatmul.mubr.bf16.gmra.mxu0 %v4540
    %v5938 = vpop.f32.mrf.mxu0
    %v5939 = vadd.f32 %v5898, %v5938
    %v5940 = vpop.f32.mrf.mxu0
    %v5941 = vadd.f32 %v5900, %v5940
    %v5942 = vpop.f32.mrf.mxu0
    %v5943 = vpop.f32.mrf.mxu0
    %5944 = vdwg.mxu0
    %5945 = vmatprep.subr.bf16.mxu0 %v5369
    %5946 = vmatpush1.bf16.msra.mxu0 %v5368
    %5947 = vmatprep.subr.bf16.mxu0 %v5361
    %5948 = vmatpush1.bf16.msra.mxu0 %v5360
    %5949 = vmatprep.subr.bf16.mxu0 %v5353
    %5950 = vmatpush1.bf16.msra.mxu0 %v5352
    %5951 = vmatprep.subr.bf16.mxu0 %v5345
    %5952 = vmatpush1.bf16.msra.mxu0 %v5344
    %5953 = vmatprep.subr.bf16.mxu0 %v5337
    %5954 = vmatpush1.bf16.msra.mxu0 %v5336
    %5955 = vmatprep.subr.bf16.mxu0 %v5329
    %5956 = vmatpush1.bf16.msra.mxu0 %v5328
    %5957 = vmatprep.subr.bf16.mxu0 %v5321
    %5958 = vmatpush1.bf16.msra.mxu0 %v5320
    %5959 = vmatprep.subr.bf16.mxu0 %v5313
    %5960 = vmatpush1.bf16.msra.mxu0 %v5312
    %5961 = vmatprep.subr.bf16.mxu0 %v5433
    %5962 = vmatpush2.bf16.msra.mxu0 %v5432
    %5963 = vmatprep.subr.bf16.mxu0 %v5425
    %5964 = vmatpush2.bf16.msra.mxu0 %v5424
    %5965 = vmatprep.subr.bf16.mxu0 %v5417
    %5966 = vmatpush2.bf16.msra.mxu0 %v5416
    %5967 = vmatprep.subr.bf16.mxu0 %v5409
    %5968 = vmatpush2.bf16.msra.mxu0 %v5408
    %5969 = vmatprep.subr.bf16.mxu0 %v5401
    %5970 = vmatpush2.bf16.msra.mxu0 %v5400
    %5971 = vmatprep.subr.bf16.mxu0 %v5393
    %5972 = vmatpush2.bf16.msra.mxu0 %v5392
    %5973 = vmatprep.subr.bf16.mxu0 %v5385
    %5974 = vmatpush2.bf16.msra.mxu0 %v5384
    %5975 = vmatprep.subr.bf16.mxu0 %v5377
    %5976 = vmatpush2.bf16.msra.mxu0 %v5376
    %5977 = vmatprep.mubr.bf16.mxu0 %v4539
    %5978 = vmatmul.mubr.bf16.gmra.mxu0 %v4538
    %v5979 = vpop.f32.mrf.mxu0
    %v5980 = vadd.f32 %v5834, %v5979
    %v5981 = vpop.f32.mrf.mxu0
    %v5982 = vadd.f32 %v5838, %v5981
    %v5983 = vpop.f32.mrf.mxu0
    %v5984 = vpop.f32.mrf.mxu0
    %5985 = vdwg.mxu0
    %5986 = vmatprep.subr.bf16.mxu0 %v5497
    %5987 = vmatpush1.bf16.msra.mxu0 %v5496
    %5988 = vmatprep.subr.bf16.mxu0 %v5489
    %5989 = vmatpush1.bf16.msra.mxu0 %v5488
    %5990 = vmatprep.subr.bf16.mxu0 %v5481
    %5991 = vmatpush1.bf16.msra.mxu0 %v5480
    %5992 = vmatprep.subr.bf16.mxu0 %v5473
    %5993 = vmatpush1.bf16.msra.mxu0 %v5472
    %5994 = vmatprep.subr.bf16.mxu0 %v5465
    %5995 = vmatpush1.bf16.msra.mxu0 %v5464
    %5996 = vmatprep.subr.bf16.mxu0 %v5457
    %5997 = vmatpush1.bf16.msra.mxu0 %v5456
    %5998 = vmatprep.subr.bf16.mxu0 %v5449
    %5999 = vmatpush1.bf16.msra.mxu0 %v5448
    %6000 = vmatprep.subr.bf16.mxu0 %v5441
    %6001 = vmatpush1.bf16.msra.mxu0 %v5440
    %6002 = vmatprep.subr.bf16.mxu0 %v5561
    %6003 = vmatpush2.bf16.msra.mxu0 %v5560
    %6004 = vmatprep.subr.bf16.mxu0 %v5553
    %6005 = vmatpush2.bf16.msra.mxu0 %v5552
    %6006 = vmatprep.subr.bf16.mxu0 %v5545
    %6007 = vmatpush2.bf16.msra.mxu0 %v5544
    %6008 = vmatprep.subr.bf16.mxu0 %v5537
    %6009 = vmatpush2.bf16.msra.mxu0 %v5536
    %6010 = vmatprep.subr.bf16.mxu0 %v5529
    %6011 = vmatpush2.bf16.msra.mxu0 %v5528
    %6012 = vmatprep.subr.bf16.mxu0 %v5521
    %6013 = vmatpush2.bf16.msra.mxu0 %v5520
    %6014 = vmatprep.subr.bf16.mxu0 %v5513
    %6015 = vmatpush2.bf16.msra.mxu0 %v5512
    %6016 = vmatprep.subr.bf16.mxu0 %v5505
    %6017 = vmatpush2.bf16.msra.mxu0 %v5504
    %6018 = vmatprep.mubr.bf16.mxu0 %v4541
    %6019 = vmatmul.mubr.bf16.gmra.mxu0 %v4540
    %v6020 = vpop.f32.mrf.mxu0
    %v6021 = vadd.f32 %v5980, %v6020
    %v6022 = vpop.f32.mrf.mxu0
    %v6023 = vadd.f32 %v5982, %v6022
    %v6024 = vpop.f32.mrf.mxu0
    %v6025 = vpop.f32.mrf.mxu0
    %6026 = vdwg.mxu0
    %6027 = vmatprep.subr.bf16.mxu0 %v5371
    %6028 = vmatpush1.bf16.msra.mxu0 %v5370
    %6029 = vmatprep.subr.bf16.mxu0 %v5363
    %6030 = vmatpush1.bf16.msra.mxu0 %v5362
    %6031 = vmatprep.subr.bf16.mxu0 %v5355
    %6032 = vmatpush1.bf16.msra.mxu0 %v5354
    %6033 = vmatprep.subr.bf16.mxu0 %v5347
    %6034 = vmatpush1.bf16.msra.mxu0 %v5346
    %6035 = vmatprep.subr.bf16.mxu0 %v5339
    %6036 = vmatpush1.bf16.msra.mxu0 %v5338
    %6037 = vmatprep.subr.bf16.mxu0 %v5331
    %6038 = vmatpush1.bf16.msra.mxu0 %v5330
    %6039 = vmatprep.subr.bf16.mxu0 %v5323
    %6040 = vmatpush1.bf16.msra.mxu0 %v5322
    %6041 = vmatprep.subr.bf16.mxu0 %v5315
    %6042 = vmatpush1.bf16.msra.mxu0 %v5314
    %6043 = vmatprep.subr.bf16.mxu0 %v5435
    %6044 = vmatpush2.bf16.msra.mxu0 %v5434
    %6045 = vmatprep.subr.bf16.mxu0 %v5427
    %6046 = vmatpush2.bf16.msra.mxu0 %v5426
    %6047 = vmatprep.subr.bf16.mxu0 %v5419
    %6048 = vmatpush2.bf16.msra.mxu0 %v5418
    %6049 = vmatprep.subr.bf16.mxu0 %v5411
    %6050 = vmatpush2.bf16.msra.mxu0 %v5410
    %6051 = vmatprep.subr.bf16.mxu0 %v5403
    %6052 = vmatpush2.bf16.msra.mxu0 %v5402
    %6053 = vmatprep.subr.bf16.mxu0 %v5395
    %6054 = vmatpush2.bf16.msra.mxu0 %v5394
    %6055 = vmatprep.subr.bf16.mxu0 %v5387
    %6056 = vmatpush2.bf16.msra.mxu0 %v5386
    %6057 = vmatprep.subr.bf16.mxu0 %v5379
    %6058 = vmatpush2.bf16.msra.mxu0 %v5378
    %6059 = vmatprep.mubr.bf16.mxu0 %v4539
    %6060 = vmatmul.mubr.bf16.gmra.mxu0 %v4538
    %v6061 = vpop.f32.mrf.mxu0
    %v6062 = vadd.f32 %v5842, %v6061
    %v6063 = vpop.f32.mrf.mxu0
    %v6064 = vadd.f32 %v5846, %v6063
    %v6065 = vpop.f32.mrf.mxu0
    %v6066 = vpop.f32.mrf.mxu0
    %6067 = vdwg.mxu0
    %6068 = vmatprep.subr.bf16.mxu0 %v5499
    %6069 = vmatpush1.bf16.msra.mxu0 %v5498
    %6070 = vmatprep.subr.bf16.mxu0 %v5491
    %6071 = vmatpush1.bf16.msra.mxu0 %v5490
    %6072 = vmatprep.subr.bf16.mxu0 %v5483
    %6073 = vmatpush1.bf16.msra.mxu0 %v5482
    %6074 = vmatprep.subr.bf16.mxu0 %v5475
    %6075 = vmatpush1.bf16.msra.mxu0 %v5474
    %6076 = vmatprep.subr.bf16.mxu0 %v5467
    %6077 = vmatpush1.bf16.msra.mxu0 %v5466
    %6078 = vmatprep.subr.bf16.mxu0 %v5459
    %6079 = vmatpush1.bf16.msra.mxu0 %v5458
    %6080 = vmatprep.subr.bf16.mxu0 %v5451
    %6081 = vmatpush1.bf16.msra.mxu0 %v5450
    %6082 = vmatprep.subr.bf16.mxu0 %v5443
    %6083 = vmatpush1.bf16.msra.mxu0 %v5442
    %6084 = vmatprep.subr.bf16.mxu0 %v5563
    %6085 = vmatpush2.bf16.msra.mxu0 %v5562
    %6086 = vmatprep.subr.bf16.mxu0 %v5555
    %6087 = vmatpush2.bf16.msra.mxu0 %v5554
    %6088 = vmatprep.subr.bf16.mxu0 %v5547
    %6089 = vmatpush2.bf16.msra.mxu0 %v5546
    %6090 = vmatprep.subr.bf16.mxu0 %v5539
    %6091 = vmatpush2.bf16.msra.mxu0 %v5538
    %6092 = vmatprep.subr.bf16.mxu0 %v5531
    %6093 = vmatpush2.bf16.msra.mxu0 %v5530
    %6094 = vmatprep.subr.bf16.mxu0 %v5523
    %6095 = vmatpush2.bf16.msra.mxu0 %v5522
    %6096 = vmatprep.subr.bf16.mxu0 %v5515
    %6097 = vmatpush2.bf16.msra.mxu0 %v5514
    %6098 = vmatprep.subr.bf16.mxu0 %v5507
    %6099 = vmatpush2.bf16.msra.mxu0 %v5506
    %6100 = vmatprep.mubr.bf16.mxu0 %v4541
    %6101 = vmatmul.mubr.bf16.gmra.mxu0 %v4540
    %v6102 = vpop.f32.mrf.mxu0
    %v6103 = vadd.f32 %v6062, %v6102
    %v6104 = vpop.f32.mrf.mxu0
    %v6105 = vadd.f32 %v6064, %v6104
    %v6106 = vpop.f32.mrf.mxu0
    %v6107 = vpop.f32.mrf.mxu0
    %6108 = vdwg.mxu0
    %6109 = vmatprep.subr.bf16.mxu0 %v5373
    %6110 = vmatpush1.bf16.msra.mxu0 %v5372
    %6111 = vmatprep.subr.bf16.mxu0 %v5365
    %6112 = vmatpush1.bf16.msra.mxu0 %v5364
    %6113 = vmatprep.subr.bf16.mxu0 %v5357
    %6114 = vmatpush1.bf16.msra.mxu0 %v5356
    %6115 = vmatprep.subr.bf16.mxu0 %v5349
    %6116 = vmatpush1.bf16.msra.mxu0 %v5348
    %6117 = vmatprep.subr.bf16.mxu0 %v5341
    %6118 = vmatpush1.bf16.msra.mxu0 %v5340
    %6119 = vmatprep.subr.bf16.mxu0 %v5333
    %6120 = vmatpush1.bf16.msra.mxu0 %v5332
    %6121 = vmatprep.subr.bf16.mxu0 %v5325
    %6122 = vmatpush1.bf16.msra.mxu0 %v5324
    %6123 = vmatprep.subr.bf16.mxu0 %v5317
    %6124 = vmatpush1.bf16.msra.mxu0 %v5316
    %6125 = vmatprep.subr.bf16.mxu0 %v5437
    %6126 = vmatpush2.bf16.msra.mxu0 %v5436
    %6127 = vmatprep.subr.bf16.mxu0 %v5429
    %6128 = vmatpush2.bf16.msra.mxu0 %v5428
    %6129 = vmatprep.subr.bf16.mxu0 %v5421
    %6130 = vmatpush2.bf16.msra.mxu0 %v5420
    %6131 = vmatprep.subr.bf16.mxu0 %v5413
    %6132 = vmatpush2.bf16.msra.mxu0 %v5412
    %6133 = vmatprep.subr.bf16.mxu0 %v5405
    %6134 = vmatpush2.bf16.msra.mxu0 %v5404
    %6135 = vmatprep.subr.bf16.mxu0 %v5397
    %6136 = vmatpush2.bf16.msra.mxu0 %v5396
    %6137 = vmatprep.subr.bf16.mxu0 %v5389
    %6138 = vmatpush2.bf16.msra.mxu0 %v5388
    %6139 = vmatprep.subr.bf16.mxu0 %v5381
    %6140 = vmatpush2.bf16.msra.mxu0 %v5380
    %6141 = vmatprep.mubr.bf16.mxu0 %v4539
    %6142 = vmatmul.mubr.bf16.gmra.mxu0 %v4538
    %v6143 = vpop.f32.mrf.mxu0
    %v6144 = vadd.f32 %v5850, %v6143
    %v6145 = vpop.f32.mrf.mxu0
    %v6146 = vadd.f32 %v5854, %v6145
    %v6147 = vpop.f32.mrf.mxu0
    %v6148 = vpop.f32.mrf.mxu0
    %6149 = vdwg.mxu0
    %6150 = vmatprep.subr.bf16.mxu0 %v5501
    %6151 = vmatpush1.bf16.msra.mxu0 %v5500
    %6152 = vmatprep.subr.bf16.mxu0 %v5493
    %6153 = vmatpush1.bf16.msra.mxu0 %v5492
    %6154 = vmatprep.subr.bf16.mxu0 %v5485
    %6155 = vmatpush1.bf16.msra.mxu0 %v5484
    %6156 = vmatprep.subr.bf16.mxu0 %v5477
    %6157 = vmatpush1.bf16.msra.mxu0 %v5476
    %6158 = vmatprep.subr.bf16.mxu0 %v5469
    %6159 = vmatpush1.bf16.msra.mxu0 %v5468
    %6160 = vmatprep.subr.bf16.mxu0 %v5461
    %6161 = vmatpush1.bf16.msra.mxu0 %v5460
    %6162 = vmatprep.subr.bf16.mxu0 %v5453
    %6163 = vmatpush1.bf16.msra.mxu0 %v5452
    %6164 = vmatprep.subr.bf16.mxu0 %v5445
    %6165 = vmatpush1.bf16.msra.mxu0 %v5444
    %6166 = vmatprep.subr.bf16.mxu0 %v5565
    %6167 = vmatpush2.bf16.msra.mxu0 %v5564
    %6168 = vmatprep.subr.bf16.mxu0 %v5557
    %6169 = vmatpush2.bf16.msra.mxu0 %v5556
    %6170 = vmatprep.subr.bf16.mxu0 %v5549
    %6171 = vmatpush2.bf16.msra.mxu0 %v5548
    %6172 = vmatprep.subr.bf16.mxu0 %v5541
    %6173 = vmatpush2.bf16.msra.mxu0 %v5540
    %6174 = vmatprep.subr.bf16.mxu0 %v5533
    %6175 = vmatpush2.bf16.msra.mxu0 %v5532
    %6176 = vmatprep.subr.bf16.mxu0 %v5525
    %6177 = vmatpush2.bf16.msra.mxu0 %v5524
    %6178 = vmatprep.subr.bf16.mxu0 %v5517
    %6179 = vmatpush2.bf16.msra.mxu0 %v5516
    %6180 = vmatprep.subr.bf16.mxu0 %v5509
    %6181 = vmatpush2.bf16.msra.mxu0 %v5508
    %6182 = vmatprep.mubr.bf16.mxu0 %v4541
    %6183 = vmatmul.mubr.bf16.gmra.mxu0 %v4540
    %v6184 = vpop.f32.mrf.mxu0
    %v6185 = vadd.f32 %v6144, %v6184
    %v6186 = vpop.f32.mrf.mxu0
    %v6187 = vadd.f32 %v6146, %v6186
    %v6188 = vpop.f32.mrf.mxu0
    %v6189 = vpop.f32.mrf.mxu0
    %6190 = vdwg.mxu0
    %v6191 = vxor.u32 %v5939, 2147483648
    %v6192 = vxor.u32 %v5941, 2147483648
    %v6193 = vxor.u32 %v6021, 2147483648
    %v6194 = vxor.u32 %v6023, 2147483648
    %v6195 = vxor.u32 %v6103, 2147483648
    %v6196 = vxor.u32 %v6105, 2147483648
    %v6197 = vmul.f32 %v6191, 1.442695
    %v6198 = vpow.pop %v6197
    %v6199 = vmul.f32 %v6192, 1.442695
    %v6200 = vpow.pop %v6199
    %v6201 = vmul.f32 %v6193, 1.442695
    %v6202 = vpow.pop %v6201
    %v6203 = vmul.f32 %v6194, 1.442695
    %v6204 = vpow.pop %v6203
    %v6205 = vmul.f32 %v6195, 1.442695
    %v6206 = vpow.pop %v6205
    %v6207 = vmul.f32 %v6196, 1.442695
    %v6208 = vpow.pop %v6207
    %v6209 = vadd.f32 %v6198, 1.0
    %v6210 = vadd.f32 %v6200, 1.0
    %v6211 = vadd.f32 %v6202, 1.0
    %v6212 = vadd.f32 %v6204, 1.0
    %v6213 = vadd.f32 %v6206, 1.0
    %v6214 = vadd.f32 %v6208, 1.0
    %v6215 = vrcp.pop %v6209
    %v6216 = vmul.f32 1.0, %v6215
    %v6217 = vrcp.pop %v6210
    %v6218 = vmul.f32 1.0, %v6217
    %v6219 = vrcp.pop %v6211
    %v6220 = vmul.f32 1.0, %v6219
    %v6221 = vrcp.pop %v6212
    %v6222 = vmul.f32 1.0, %v6221
    %v6223 = vrcp.pop %v6213
    %v6224 = vmul.f32 1.0, %v6223
    %v6225 = vrcp.pop %v6214
    %v6226 = vmul.f32 1.0, %v6225
    %v6227 = vtanh.pop %v6185
    %v6228 = vtanh.pop %v6187
    %v6230 = vlaneseq
    %v6231 = vshrl.u32 %v6230, 7
    %v6232 = vsub.s32 0, %v6231
    %v6233 = vrot.slane %v3616, %v6232
    %v6234 = vlaneseq
    %v6235 = vshrl.u32 %v6234, 7
    %v6236 = vsub.s32 1, %v6235
    %v6237 = vrot.slane %v3616, %v6236
    %v6240 = vmul.f32 %v6220, %v6233
    %v6241 = vmul.f32 %v6222, %v6237
    %v6242 = vmul.f32 %v6216, %v6227
    %v6243 = vmul.f32 %v6218, %v6228
    %v6244 = vadd.f32 %v6240, %v6242
    %v6245 = vadd.f32 %v6241, %v6243
    %v6246 = vtanh.pop %v6244
    %v6247 = vtanh.pop %v6245
    %v6248 = vmul.f32 %v6224, %v6246
    %v6249 = vmul.f32 %v6226, %v6247
    %v6252 = vcombine.low %v6248, %v6249
    %v6254 = vunpack.c.l.s4 1966171168
    %v6255 = vunpack.c.0.s8 %v6254
    %v6256 = vlaneseq
    %v6257 = vshrl.u32 %v6256, 7
    %v6258 = vsub.s32 %v6255, %v6257
    %v6259 = vrot.slane %v6252, %v6258
    %v6261 = vunpack.c.l.s4 1966171168
    %v6262 = vunpack.c.0.s8 %v6261
    %v6263 = vlaneseq
    %v6264 = vshrl.u32 %v6263, 7
    %v6265 = vsub.s32 %v6262, %v6264
    %v6266 = vrot.slane %v6259, %v6265
    %v6268 = vlaneseq
    %vm6269 = vcmp.ge.s32.totalorder %v6268, 0
    %vm6270 = vcmp.lt.s32.totalorder %v6268, 256
    %vm6271 = vmand %vm6269, %vm6270
    %6272 = vst.msk [vmem:[#allocation23] ss:$8 sm:$0x3] %vm6271, %v6266
    %6273 = vst.msk [vmem:[#allocation23] ss:$8 sm:$0x0] %vm6271, %v6266
    %s6274 = scalar_lea.vmem [#allocation2], 1
    %v6275 = vld [vmem:[%s6274] ss:$8 sm:$0xf]
    %v6276 = vld [vmem:[%s6274] ss:$8 sm:$0xf0]
    %v6277 = vor.u32 %v6275, %v6276
    %6278 = vmatprep.subr.bf16.mxu0 %v4074
    %6279 = vmatpush1.bf16.msra.mxu0 %v4073
    %6280 = vmatprep.subr.bf16.mxu0 %v4066
    %6281 = vmatpush1.bf16.msra.mxu0 %v4065
    %6282 = vmatprep.subr.bf16.mxu0 %v4058
    %6283 = vmatpush1.bf16.msra.mxu0 %v4057
    %6284 = vmatprep.subr.bf16.mxu0 %v4050
    %6285 = vmatpush1.bf16.msra.mxu0 %v4049
    %6286 = vmatprep.subr.bf16.mxu0 %v4042
    %6287 = vmatpush1.bf16.msra.mxu0 %v4041
    %6288 = vmatprep.subr.bf16.mxu0 %v4034
    %6289 = vmatpush1.bf16.msra.mxu0 %v4033
    %6290 = vmatprep.subr.bf16.mxu0 %v4026
    %6291 = vmatpush1.bf16.msra.mxu0 %v4025
    %6292 = vmatprep.subr.bf16.mxu0 %v4018
    %6293 = vmatpush1.bf16.msra.mxu0 %v4017
    %6294 = vmatprep.subr.bf16.mxu0 %v4138
    %6295 = vmatpush2.bf16.msra.mxu0 %v4137
    %6296 = vmatprep.subr.bf16.mxu0 %v4130
    %6297 = vmatpush2.bf16.msra.mxu0 %v4129
    %6298 = vmatprep.subr.bf16.mxu0 %v4122
    %6299 = vmatpush2.bf16.msra.mxu0 %v4121
    %6300 = vmatprep.subr.bf16.mxu0 %v4114
    %6301 = vmatpush2.bf16.msra.mxu0 %v4113
    %6302 = vmatprep.subr.bf16.mxu0 %v4106
    %6303 = vmatpush2.bf16.msra.mxu0 %v4105
    %6304 = vmatprep.subr.bf16.mxu0 %v4098
    %6305 = vmatpush2.bf16.msra.mxu0 %v4097
    %6306 = vmatprep.subr.bf16.mxu0 %v4090
    %6307 = vmatpush2.bf16.msra.mxu0 %v4089
    %6308 = vmatprep.subr.bf16.mxu0 %v4082
    %6309 = vmatpush2.bf16.msra.mxu0 %v4081
    %6310 = vmatprep.mubr.bf16.mxu0 %v4539
    %6311 = vmatmul.mubr.bf16.gmra.mxu0 %v4538
    %v6312 = vpop.f32.mrf.mxu0
    %v6313 = vadd.f32 0.0, %v6312
    %v6314 = vpop.f32.mrf.mxu0
    %v6315 = vadd.f32 0.0, %v6314
    %v6316 = vpop.f32.mrf.mxu0
    %v6317 = vpop.f32.mrf.mxu0
    %6318 = vdwg.mxu0
    %6319 = vmatprep.subr.bf16.mxu0 %v4076
    %6320 = vmatpush1.bf16.msra.mxu0 %v4075
    %6321 = vmatprep.subr.bf16.mxu0 %v4068
    %6322 = vmatpush1.bf16.msra.mxu0 %v4067
    %6323 = vmatprep.subr.bf16.mxu0 %v4060
    %6324 = vmatpush1.bf16.msra.mxu0 %v4059
    %6325 = vmatprep.subr.bf16.mxu0 %v4052
    %6326 = vmatpush1.bf16.msra.mxu0 %v4051
    %6327 = vmatprep.subr.bf16.mxu0 %v4044
    %6328 = vmatpush1.bf16.msra.mxu0 %v4043
    %6329 = vmatprep.subr.bf16.mxu0 %v4036
    %6330 = vmatpush1.bf16.msra.mxu0 %v4035
    %6331 = vmatprep.subr.bf16.mxu0 %v4028
    %6332 = vmatpush1.bf16.msra.mxu0 %v4027
    %6333 = vmatprep.subr.bf16.mxu0 %v4020
    %6334 = vmatpush1.bf16.msra.mxu0 %v4019
    %6335 = vmatprep.subr.bf16.mxu0 %v4140
    %6336 = vmatpush2.bf16.msra.mxu0 %v4139
    %6337 = vmatprep.subr.bf16.mxu0 %v4132
    %6338 = vmatpush2.bf16.msra.mxu0 %v4131
    %6339 = vmatprep.subr.bf16.mxu0 %v4124
    %6340 = vmatpush2.bf16.msra.mxu0 %v4123
    %6341 = vmatprep.subr.bf16.mxu0 %v4116
    %6342 = vmatpush2.bf16.msra.mxu0 %v4115
    %6343 = vmatprep.subr.bf16.mxu0 %v4108
    %6344 = vmatpush2.bf16.msra.mxu0 %v4107
    %6345 = vmatprep.subr.bf16.mxu0 %v4100
    %6346 = vmatpush2.bf16.msra.mxu0 %v4099
    %6347 = vmatprep.subr.bf16.mxu0 %v4092
    %6348 = vmatpush2.bf16.msra.mxu0 %v4091
    %6349 = vmatprep.subr.bf16.mxu0 %v4084
    %6350 = vmatpush2.bf16.msra.mxu0 %v4083
    %6351 = vmatprep.mubr.bf16.mxu0 %v4539
    %6352 = vmatmul.mubr.bf16.gmra.mxu0 %v4538
    %v6353 = vpop.f32.mrf.mxu0
    %v6354 = vadd.f32 0.0, %v6353
    %v6355 = vpop.f32.mrf.mxu0
    %v6356 = vadd.f32 0.0, %v6355
    %v6357 = vpop.f32.mrf.mxu0
    %v6358 = vpop.f32.mrf.mxu0
    %6359 = vdwg.mxu0
    %6360 = vmatprep.subr.bf16.mxu0 %v4078
    %6361 = vmatpush1.bf16.msra.mxu0 %v4077
    %6362 = vmatprep.subr.bf16.mxu0 %v4070
    %6363 = vmatpush1.bf16.msra.mxu0 %v4069
    %6364 = vmatprep.subr.bf16.mxu0 %v4062
    %6365 = vmatpush1.bf16.msra.mxu0 %v4061
    %6366 = vmatprep.subr.bf16.mxu0 %v4054
    %6367 = vmatpush1.bf16.msra.mxu0 %v4053
    %6368 = vmatprep.subr.bf16.mxu0 %v4046
    %6369 = vmatpush1.bf16.msra.mxu0 %v4045
    %6370 = vmatprep.subr.bf16.mxu0 %v4038
    %6371 = vmatpush1.bf16.msra.mxu0 %v4037
    %6372 = vmatprep.subr.bf16.mxu0 %v4030
    %6373 = vmatpush1.bf16.msra.mxu0 %v4029
    %6374 = vmatprep.subr.bf16.mxu0 %v4022
    %6375 = vmatpush1.bf16.msra.mxu0 %v4021
    %6376 = vmatprep.subr.bf16.mxu0 %v4142
    %6377 = vmatpush2.bf16.msra.mxu0 %v4141
    %6378 = vmatprep.subr.bf16.mxu0 %v4134
    %6379 = vmatpush2.bf16.msra.mxu0 %v4133
    %6380 = vmatprep.subr.bf16.mxu0 %v4126
    %6381 = vmatpush2.bf16.msra.mxu0 %v4125
    %6382 = vmatprep.subr.bf16.mxu0 %v4118
    %6383 = vmatpush2.bf16.msra.mxu0 %v4117
    %6384 = vmatprep.subr.bf16.mxu0 %v4110
    %6385 = vmatpush2.bf16.msra.mxu0 %v4109
    %6386 = vmatprep.subr.bf16.mxu0 %v4102
    %6387 = vmatpush2.bf16.msra.mxu0 %v4101
    %6388 = vmatprep.subr.bf16.mxu0 %v4094
    %6389 = vmatpush2.bf16.msra.mxu0 %v4093
    %6390 = vmatprep.subr.bf16.mxu0 %v4086
    %6391 = vmatpush2.bf16.msra.mxu0 %v4085
    %6392 = vmatprep.mubr.bf16.mxu0 %v4539
    %6393 = vmatmul.mubr.bf16.gmra.mxu0 %v4538
    %v6394 = vpop.f32.mrf.mxu0
    %v6395 = vadd.f32 0.0, %v6394
    %v6396 = vpop.f32.mrf.mxu0
    %v6397 = vadd.f32 0.0, %v6396
    %v6398 = vpop.f32.mrf.mxu0
    %v6399 = vpop.f32.mrf.mxu0
    %6400 = vdwg.mxu0
    %6401 = vmatprep.subr.bf16.mxu0 %v4080
    %6402 = vmatpush1.bf16.msra.mxu0 %v4079
    %6403 = vmatprep.subr.bf16.mxu0 %v4072
    %6404 = vmatpush1.bf16.msra.mxu0 %v4071
    %6405 = vmatprep.subr.bf16.mxu0 %v4064
    %6406 = vmatpush1.bf16.msra.mxu0 %v4063
    %6407 = vmatprep.subr.bf16.mxu0 %v4056
    %6408 = vmatpush1.bf16.msra.mxu0 %v4055
    %6409 = vmatprep.subr.bf16.mxu0 %v4048
    %6410 = vmatpush1.bf16.msra.mxu0 %v4047
    %6411 = vmatprep.subr.bf16.mxu0 %v4040
    %6412 = vmatpush1.bf16.msra.mxu0 %v4039
    %6413 = vmatprep.subr.bf16.mxu0 %v4032
    %6414 = vmatpush1.bf16.msra.mxu0 %v4031
    %6415 = vmatprep.subr.bf16.mxu0 %v4024
    %6416 = vmatpush1.bf16.msra.mxu0 %v4023
    %6417 = vmatprep.subr.bf16.mxu0 %v4144
    %6418 = vmatpush2.bf16.msra.mxu0 %v4143
    %6419 = vmatprep.subr.bf16.mxu0 %v4136
    %6420 = vmatpush2.bf16.msra.mxu0 %v4135
    %6421 = vmatprep.subr.bf16.mxu0 %v4128
    %6422 = vmatpush2.bf16.msra.mxu0 %v4127
    %6423 = vmatprep.subr.bf16.mxu0 %v4120
    %6424 = vmatpush2.bf16.msra.mxu0 %v4119
    %6425 = vmatprep.subr.bf16.mxu0 %v4112
    %6426 = vmatpush2.bf16.msra.mxu0 %v4111
    %6427 = vmatprep.subr.bf16.mxu0 %v4104
    %6428 = vmatpush2.bf16.msra.mxu0 %v4103
    %6429 = vmatprep.subr.bf16.mxu0 %v4096
    %6430 = vmatpush2.bf16.msra.mxu0 %v4095
    %6431 = vmatprep.subr.bf16.mxu0 %v4088
    %6432 = vmatpush2.bf16.msra.mxu0 %v4087
    %6433 = vmatprep.mubr.bf16.mxu0 %v4539
    %6434 = vmatmul.mubr.bf16.gmra.mxu0 %v4538
    %v6435 = vpop.f32.mrf.mxu0
    %v6436 = vadd.f32 0.0, %v6435
    %v6437 = vpop.f32.mrf.mxu0
    %v6438 = vadd.f32 0.0, %v6437
    %v6439 = vpop.f32.mrf.mxu0
    %v6440 = vpop.f32.mrf.mxu0
    %6441 = vdwg.mxu0
    %v6450 = vcombine.low %v6313, %v6315
    %v6451 = vcombine.low %v6354, %v6356
    %v6452 = vcombine.low %v6395, %v6397
    %v6453 = vcombine.low %v6436, %v6438
    %v6455 = vunpack.c.l.s4 1966171168
    %v6456 = vunpack.c.0.s8 %v6455
    %v6457 = vlaneseq
    %v6458 = vshrl.u32 %v6457, 7
    %v6459 = vsub.s32 %v6456, %v6458
    %v6460 = vrot.slane %v6450, %v6459
    %v6462 = vunpack.c.l.s4 1966171168
    %v6463 = vunpack.c.0.s8 %v6462
    %v6464 = vlaneseq
    %v6465 = vshrl.u32 %v6464, 7
    %v6466 = vsub.s32 %v6463, %v6465
    %v6467 = vrot.slane %v6451, %v6466
    %v6469 = vunpack.c.l.s4 1966171168
    %v6470 = vunpack.c.0.s8 %v6469
    %v6471 = vlaneseq
    %v6472 = vshrl.u32 %v6471, 7
    %v6473 = vsub.s32 %v6470, %v6472
    %v6474 = vrot.slane %v6452, %v6473
    %v6476 = vunpack.c.l.s4 1966171168
    %v6477 = vunpack.c.0.s8 %v6476
    %v6478 = vlaneseq
    %v6479 = vshrl.u32 %v6478, 7
    %v6480 = vsub.s32 %v6477, %v6479
    %v6481 = vrot.slane %v6453, %v6480
    %v6482 = vcombine.low %v6460, %v6467
    %v6483 = vcombine.low %v6474, %v6481
    %v6485 = vunpack.c.l.s4 1966171168
    %v6486 = vunpack.c.0.s8 %v6485
    %v6487 = vlaneseq
    %v6488 = vshrl.u32 %v6487, 7
    %v6489 = vsub.s32 %v6486, %v6488
    %v6490 = vrot.slane %v6482, %v6489
    %v6492 = vunpack.c.l.s4 1966171168
    %v6493 = vunpack.c.0.s8 %v6492
    %v6494 = vlaneseq
    %v6495 = vshrl.u32 %v6494, 7
    %v6496 = vsub.s32 %v6493, %v6495
    %v6497 = vrot.slane %v6483, %v6496
    %v6498 = vcombine.low %v6490, %v6497
    %v6500 = vadd.f32 %v6277, %v6498
    %v6501 = vxor.u32 %v6500, 2147483648
    %v6502 = vmul.f32 %v6501, 1.442695
    %v6503 = vpow.pop %v6502
    %v6504 = vadd.f32 %v6503, 1.0
    %v6505 = vrcp.pop %v6504
    %v6506 = vmul.f32 1.0, %v6505
    %v6508 = vrot.slane %v6500, 6
    %v6510 = vtanh.pop %v6508
    %v6512 = vrot.slane %v6506, 2
    %v6514 = vmul.f32 %v6512, %v4511
    %v6515 = vmul.f32 %v6506, %v6510
    %v6516 = vadd.f32 %v6514, %v6515
    %v6517 = vtanh.pop %v6516
    %v6518 = vrot.slane %v6506, 4
    %v6520 = vmul.f32 %v6518, %v6517
    %v6522 = vlaneseq
    %v6523 = vshrl.u32 %v6522, 7
    %v6524 = vsub.s32 0, %v6523
    %v6525 = vrot.slane %v6520, %v6524
    %v6526 = vlaneseq
    %v6527 = vshrl.u32 %v6526, 7
    %v6528 = vsub.s32 1, %v6527
    %v6529 = vrot.slane %v6520, %v6528
    %v6532 = vpack.c.bf16 %v6525, %v6525
    %v6533 = vpack.c.bf16 %v6529, %v6529
    %v6534 = vpack.c.bf16 %v6248, %v6248
    %v6535 = vpack.c.bf16 %v6249, %v6249
    %6536 = vmatprep.subr.bf16.mxu0 %v5367
    %6537 = vmatpush1.bf16.msra.mxu0 %v5366
    %6538 = vmatprep.subr.bf16.mxu0 %v5359
    %6539 = vmatpush1.bf16.msra.mxu0 %v5358
    %6540 = vmatprep.subr.bf16.mxu0 %v5351
    %6541 = vmatpush1.bf16.msra.mxu0 %v5350
    %6542 = vmatprep.subr.bf16.mxu0 %v5343
    %6543 = vmatpush1.bf16.msra.mxu0 %v5342
    %6544 = vmatprep.subr.bf16.mxu0 %v5335
    %6545 = vmatpush1.bf16.msra.mxu0 %v5334
    %6546 = vmatprep.subr.bf16.mxu0 %v5327
    %6547 = vmatpush1.bf16.msra.mxu0 %v5326
    %6548 = vmatprep.subr.bf16.mxu0 %v5319
    %6549 = vmatpush1.bf16.msra.mxu0 %v5318
    %6550 = vmatprep.subr.bf16.mxu0 %v5311
    %6551 = vmatpush1.bf16.msra.mxu0 %v5310
    %6552 = vmatprep.subr.bf16.mxu0 %v5431
    %6553 = vmatpush2.bf16.msra.mxu0 %v5430
    %6554 = vmatprep.subr.bf16.mxu0 %v5423
    %6555 = vmatpush2.bf16.msra.mxu0 %v5422
    %6556 = vmatprep.subr.bf16.mxu0 %v5415
    %6557 = vmatpush2.bf16.msra.mxu0 %v5414
    %6558 = vmatprep.subr.bf16.mxu0 %v5407
    %6559 = vmatpush2.bf16.msra.mxu0 %v5406
    %6560 = vmatprep.subr.bf16.mxu0 %v5399
    %6561 = vmatpush2.bf16.msra.mxu0 %v5398
    %6562 = vmatprep.subr.bf16.mxu0 %v5391
    %6563 = vmatpush2.bf16.msra.mxu0 %v5390
    %6564 = vmatprep.subr.bf16.mxu0 %v5383
    %6565 = vmatpush2.bf16.msra.mxu0 %v5382
    %6566 = vmatprep.subr.bf16.mxu0 %v5375
    %6567 = vmatpush2.bf16.msra.mxu0 %v5374
    %6568 = vmatprep.mubr.bf16.mxu0 %v6533
    %6569 = vmatmul.mubr.bf16.gmra.mxu0 %v6532
    %v6570 = vpop.f32.mrf.mxu0
    %v6571 = vadd.f32 %v5826, %v6570
    %v6572 = vpop.f32.mrf.mxu0
    %v6573 = vadd.f32 %v5830, %v6572
    %v6574 = vpop.f32.mrf.mxu0
    %v6575 = vpop.f32.mrf.mxu0
    %6576 = vdwg.mxu0
    %6577 = vmatprep.subr.bf16.mxu0 %v5495
    %6578 = vmatpush1.bf16.msra.mxu0 %v5494
    %6579 = vmatprep.subr.bf16.mxu0 %v5487
    %6580 = vmatpush1.bf16.msra.mxu0 %v5486
    %6581 = vmatprep.subr.bf16.mxu0 %v5479
    %6582 = vmatpush1.bf16.msra.mxu0 %v5478
    %6583 = vmatprep.subr.bf16.mxu0 %v5471
    %6584 = vmatpush1.bf16.msra.mxu0 %v5470
    %6585 = vmatprep.subr.bf16.mxu0 %v5463
    %6586 = vmatpush1.bf16.msra.mxu0 %v5462
    %6587 = vmatprep.subr.bf16.mxu0 %v5455
    %6588 = vmatpush1.bf16.msra.mxu0 %v5454
    %6589 = vmatprep.subr.bf16.mxu0 %v5447
    %6590 = vmatpush1.bf16.msra.mxu0 %v5446
    %6591 = vmatprep.subr.bf16.mxu0 %v5439
    %6592 = vmatpush1.bf16.msra.mxu0 %v5438
    %6593 = vmatprep.subr.bf16.mxu0 %v5559
    %6594 = vmatpush2.bf16.msra.mxu0 %v5558
    %6595 = vmatprep.subr.bf16.mxu0 %v5551
    %6596 = vmatpush2.bf16.msra.mxu0 %v5550
    %6597 = vmatprep.subr.bf16.mxu0 %v5543
    %6598 = vmatpush2.bf16.msra.mxu0 %v5542
    %6599 = vmatprep.subr.bf16.mxu0 %v5535
    %6600 = vmatpush2.bf16.msra.mxu0 %v5534
    %6601 = vmatprep.subr.bf16.mxu0 %v5527
    %6602 = vmatpush2.bf16.msra.mxu0 %v5526
    %6603 = vmatprep.subr.bf16.mxu0 %v5519
    %6604 = vmatpush2.bf16.msra.mxu0 %v5518
    %6605 = vmatprep.subr.bf16.mxu0 %v5511
    %6606 = vmatpush2.bf16.msra.mxu0 %v5510
    %6607 = vmatprep.subr.bf16.mxu0 %v5503
    %6608 = vmatpush2.bf16.msra.mxu0 %v5502
    %6609 = vmatprep.mubr.bf16.mxu0 %v6535
    %6610 = vmatmul.mubr.bf16.gmra.mxu0 %v6534
    %v6611 = vpop.f32.mrf.mxu0
    %v6612 = vadd.f32 %v6571, %v6611
    %v6613 = vpop.f32.mrf.mxu0
    %v6614 = vadd.f32 %v6573, %v6613
    %v6615 = vpop.f32.mrf.mxu0
    %v6616 = vpop.f32.mrf.mxu0
    %6617 = vdwg.mxu0
    %6618 = vmatprep.subr.bf16.mxu0 %v5369
    %6619 = vmatpush1.bf16.msra.mxu0 %v5368
    %6620 = vmatprep.subr.bf16.mxu0 %v5361
    %6621 = vmatpush1.bf16.msra.mxu0 %v5360
    %6622 = vmatprep.subr.bf16.mxu0 %v5353
    %6623 = vmatpush1.bf16.msra.mxu0 %v5352
    %6624 = vmatprep.subr.bf16.mxu0 %v5345
    %6625 = vmatpush1.bf16.msra.mxu0 %v5344
    %6626 = vmatprep.subr.bf16.mxu0 %v5337
    %6627 = vmatpush1.bf16.msra.mxu0 %v5336
    %6628 = vmatprep.subr.bf16.mxu0 %v5329
    %6629 = vmatpush1.bf16.msra.mxu0 %v5328
    %6630 = vmatprep.subr.bf16.mxu0 %v5321
    %6631 = vmatpush1.bf16.msra.mxu0 %v5320
    %6632 = vmatprep.subr.bf16.mxu0 %v5313
    %6633 = vmatpush1.bf16.msra.mxu0 %v5312
    %6634 = vmatprep.subr.bf16.mxu0 %v5433
    %6635 = vmatpush2.bf16.msra.mxu0 %v5432
    %6636 = vmatprep.subr.bf16.mxu0 %v5425
    %6637 = vmatpush2.bf16.msra.mxu0 %v5424
    %6638 = vmatprep.subr.bf16.mxu0 %v5417
    %6639 = vmatpush2.bf16.msra.mxu0 %v5416
    %6640 = vmatprep.subr.bf16.mxu0 %v5409
    %6641 = vmatpush2.bf16.msra.mxu0 %v5408
    %6642 = vmatprep.subr.bf16.mxu0 %v5401
    %6643 = vmatpush2.bf16.msra.mxu0 %v5400
    %6644 = vmatprep.subr.bf16.mxu0 %v5393
    %6645 = vmatpush2.bf16.msra.mxu0 %v5392
    %6646 = vmatprep.subr.bf16.mxu0 %v5385
    %6647 = vmatpush2.bf16.msra.mxu0 %v5384
    %6648 = vmatprep.subr.bf16.mxu0 %v5377
    %6649 = vmatpush2.bf16.msra.mxu0 %v5376
    %6650 = vmatprep.mubr.bf16.mxu0 %v6533
    %6651 = vmatmul.mubr.bf16.gmra.mxu0 %v6532
    %v6652 = vpop.f32.mrf.mxu0
    %v6653 = vadd.f32 %v5834, %v6652
    %v6654 = vpop.f32.mrf.mxu0
    %v6655 = vadd.f32 %v5838, %v6654
    %v6656 = vpop.f32.mrf.mxu0
    %v6657 = vpop.f32.mrf.mxu0
    %6658 = vdwg.mxu0
    %6659 = vmatprep.subr.bf16.mxu0 %v5497
    %6660 = vmatpush1.bf16.msra.mxu0 %v5496
    %6661 = vmatprep.subr.bf16.mxu0 %v5489
    %6662 = vmatpush1.bf16.msra.mxu0 %v5488
    %6663 = vmatprep.subr.bf16.mxu0 %v5481
    %6664 = vmatpush1.bf16.msra.mxu0 %v5480
    %6665 = vmatprep.subr.bf16.mxu0 %v5473
    %6666 = vmatpush1.bf16.msra.mxu0 %v5472
    %6667 = vmatprep.subr.bf16.mxu0 %v5465
    %6668 = vmatpush1.bf16.msra.mxu0 %v5464
    %6669 = vmatprep.subr.bf16.mxu0 %v5457
    %6670 = vmatpush1.bf16.msra.mxu0 %v5456
    %6671 = vmatprep.subr.bf16.mxu0 %v5449
    %6672 = vmatpush1.bf16.msra.mxu0 %v5448
    %6673 = vmatprep.subr.bf16.mxu0 %v5441
    %6674 = vmatpush1.bf16.msra.mxu0 %v5440
    %6675 = vmatprep.subr.bf16.mxu0 %v5561
    %6676 = vmatpush2.bf16.msra.mxu0 %v5560
    %6677 = vmatprep.subr.bf16.mxu0 %v5553
    %6678 = vmatpush2.bf16.msra.mxu0 %v5552
    %6679 = vmatprep.subr.bf16.mxu0 %v5545
    %6680 = vmatpush2.bf16.msra.mxu0 %v5544
    %6681 = vmatprep.subr.bf16.mxu0 %v5537
    %6682 = vmatpush2.bf16.msra.mxu0 %v5536
    %6683 = vmatprep.subr.bf16.mxu0 %v5529
    %6684 = vmatpush2.bf16.msra.mxu0 %v5528
    %6685 = vmatprep.subr.bf16.mxu0 %v5521
    %6686 = vmatpush2.bf16.msra.mxu0 %v5520
    %6687 = vmatprep.subr.bf16.mxu0 %v5513
    %6688 = vmatpush2.bf16.msra.mxu0 %v5512
    %6689 = vmatprep.subr.bf16.mxu0 %v5505
    %6690 = vmatpush2.bf16.msra.mxu0 %v5504
    %6691 = vmatprep.mubr.bf16.mxu0 %v6535
    %6692 = vmatmul.mubr.bf16.gmra.mxu0 %v6534
    %v6693 = vpop.f32.mrf.mxu0
    %v6694 = vadd.f32 %v6653, %v6693
    %v6695 = vpop.f32.mrf.mxu0
    %v6696 = vadd.f32 %v6655, %v6695
    %v6697 = vpop.f32.mrf.mxu0
    %v6698 = vpop.f32.mrf.mxu0
    %6699 = vdwg.mxu0
    %6700 = vmatprep.subr.bf16.mxu0 %v5371
    %6701 = vmatpush1.bf16.msra.mxu0 %v5370
    %6702 = vmatprep.subr.bf16.mxu0 %v5363
    %6703 = vmatpush1.bf16.msra.mxu0 %v5362
    %6704 = vmatprep.subr.bf16.mxu0 %v5355
    %6705 = vmatpush1.bf16.msra.mxu0 %v5354
    %6706 = vmatprep.subr.bf16.mxu0 %v5347
    %6707 = vmatpush1.bf16.msra.mxu0 %v5346
    %6708 = vmatprep.subr.bf16.mxu0 %v5339
    %6709 = vmatpush1.bf16.msra.mxu0 %v5338
    %6710 = vmatprep.subr.bf16.mxu0 %v5331
    %6711 = vmatpush1.bf16.msra.mxu0 %v5330
    %6712 = vmatprep.subr.bf16.mxu0 %v5323
    %6713 = vmatpush1.bf16.msra.mxu0 %v5322
    %6714 = vmatprep.subr.bf16.mxu0 %v5315
    %6715 = vmatpush1.bf16.msra.mxu0 %v5314
    %6716 = vmatprep.subr.bf16.mxu0 %v5435
    %6717 = vmatpush2.bf16.msra.mxu0 %v5434
    %6718 = vmatprep.subr.bf16.mxu0 %v5427
    %6719 = vmatpush2.bf16.msra.mxu0 %v5426
    %6720 = vmatprep.subr.bf16.mxu0 %v5419
    %6721 = vmatpush2.bf16.msra.mxu0 %v5418
    %6722 = vmatprep.subr.bf16.mxu0 %v5411
    %6723 = vmatpush2.bf16.msra.mxu0 %v5410
    %6724 = vmatprep.subr.bf16.mxu0 %v5403
    %6725 = vmatpush2.bf16.msra.mxu0 %v5402
    %6726 = vmatprep.subr.bf16.mxu0 %v5395
    %6727 = vmatpush2.bf16.msra.mxu0 %v5394
    %6728 = vmatprep.subr.bf16.mxu0 %v5387
    %6729 = vmatpush2.bf16.msra.mxu0 %v5386
    %6730 = vmatprep.subr.bf16.mxu0 %v5379
    %6731 = vmatpush2.bf16.msra.mxu0 %v5378
    %6732 = vmatprep.mubr.bf16.mxu0 %v6533
    %6733 = vmatmul.mubr.bf16.gmra.mxu0 %v6532
    %v6734 = vpop.f32.mrf.mxu0
    %v6735 = vadd.f32 %v5842, %v6734
    %v6736 = vpop.f32.mrf.mxu0
    %v6737 = vadd.f32 %v5846, %v6736
    %v6738 = vpop.f32.mrf.mxu0
    %v6739 = vpop.f32.mrf.mxu0
    %6740 = vdwg.mxu0
    %6741 = vmatprep.subr.bf16.mxu0 %v5499
    %6742 = vmatpush1.bf16.msra.mxu0 %v5498
    %6743 = vmatprep.subr.bf16.mxu0 %v5491
    %6744 = vmatpush1.bf16.msra.mxu0 %v5490
    %6745 = vmatprep.subr.bf16.mxu0 %v5483
    %6746 = vmatpush1.bf16.msra.mxu0 %v5482
    %6747 = vmatprep.subr.bf16.mxu0 %v5475
    %6748 = vmatpush1.bf16.msra.mxu0 %v5474
    %6749 = vmatprep.subr.bf16.mxu0 %v5467
    %6750 = vmatpush1.bf16.msra.mxu0 %v5466
    %6751 = vmatprep.subr.bf16.mxu0 %v5459
    %6752 = vmatpush1.bf16.msra.mxu0 %v5458
    %6753 = vmatprep.subr.bf16.mxu0 %v5451
    %6754 = vmatpush1.bf16.msra.mxu0 %v5450
    %6755 = vmatprep.subr.bf16.mxu0 %v5443
    %6756 = vmatpush1.bf16.msra.mxu0 %v5442
    %6757 = vmatprep.subr.bf16.mxu0 %v5563
    %6758 = vmatpush2.bf16.msra.mxu0 %v5562
    %6759 = vmatprep.subr.bf16.mxu0 %v5555
    %6760 = vmatpush2.bf16.msra.mxu0 %v5554
    %6761 = vmatprep.subr.bf16.mxu0 %v5547
    %6762 = vmatpush2.bf16.msra.mxu0 %v5546
    %6763 = vmatprep.subr.bf16.mxu0 %v5539
    %6764 = vmatpush2.bf16.msra.mxu0 %v5538
    %6765 = vmatprep.subr.bf16.mxu0 %v5531
    %6766 = vmatpush2.bf16.msra.mxu0 %v5530
    %6767 = vmatprep.subr.bf16.mxu0 %v5523
    %6768 = vmatpush2.bf16.msra.mxu0 %v5522
    %6769 = vmatprep.subr.bf16.mxu0 %v5515
    %6770 = vmatpush2.bf16.msra.mxu0 %v5514
    %6771 = vmatprep.subr.bf16.mxu0 %v5507
    %6772 = vmatpush2.bf16.msra.mxu0 %v5506
    %6773 = vmatprep.mubr.bf16.mxu0 %v6535
    %6774 = vmatmul.mubr.bf16.gmra.mxu0 %v6534
    %v6775 = vpop.f32.mrf.mxu0
    %v6776 = vadd.f32 %v6735, %v6775
    %v6777 = vpop.f32.mrf.mxu0
    %v6778 = vadd.f32 %v6737, %v6777
    %v6779 = vpop.f32.mrf.mxu0
    %v6780 = vpop.f32.mrf.mxu0
    %6781 = vdwg.mxu0
    %6782 = vmatprep.subr.bf16.mxu0 %v5373
    %6783 = vmatpush1.bf16.msra.mxu0 %v5372
    %6784 = vmatprep.subr.bf16.mxu0 %v5365
    %6785 = vmatpush1.bf16.msra.mxu0 %v5364
    %6786 = vmatprep.subr.bf16.mxu0 %v5357
    %6787 = vmatpush1.bf16.msra.mxu0 %v5356
    %6788 = vmatprep.subr.bf16.mxu0 %v5349
    %6789 = vmatpush1.bf16.msra.mxu0 %v5348
    %6790 = vmatprep.subr.bf16.mxu0 %v5341
    %6791 = vmatpush1.bf16.msra.mxu0 %v5340
    %6792 = vmatprep.subr.bf16.mxu0 %v5333
    %6793 = vmatpush1.bf16.msra.mxu0 %v5332
    %6794 = vmatprep.subr.bf16.mxu0 %v5325
    %6795 = vmatpush1.bf16.msra.mxu0 %v5324
    %6796 = vmatprep.subr.bf16.mxu0 %v5317
    %6797 = vmatpush1.bf16.msra.mxu0 %v5316
    %6798 = vmatprep.subr.bf16.mxu0 %v5437
    %6799 = vmatpush2.bf16.msra.mxu0 %v5436
    %6800 = vmatprep.subr.bf16.mxu0 %v5429
    %6801 = vmatpush2.bf16.msra.mxu0 %v5428
    %6802 = vmatprep.subr.bf16.mxu0 %v5421
    %6803 = vmatpush2.bf16.msra.mxu0 %v5420
    %6804 = vmatprep.subr.bf16.mxu0 %v5413
    %6805 = vmatpush2.bf16.msra.mxu0 %v5412
    %6806 = vmatprep.subr.bf16.mxu0 %v5405
    %6807 = vmatpush2.bf16.msra.mxu0 %v5404
    %6808 = vmatprep.subr.bf16.mxu0 %v5397
    %6809 = vmatpush2.bf16.msra.mxu0 %v5396
    %6810 = vmatprep.subr.bf16.mxu0 %v5389
    %6811 = vmatpush2.bf16.msra.mxu0 %v5388
    %6812 = vmatprep.subr.bf16.mxu0 %v5381
    %6813 = vmatpush2.bf16.msra.mxu0 %v5380
    %6814 = vmatprep.mubr.bf16.mxu0 %v6533
    %6815 = vmatmul.mubr.bf16.gmra.mxu0 %v6532
    %v6816 = vpop.f32.mrf.mxu0
    %v6817 = vadd.f32 %v5850, %v6816
    %v6818 = vpop.f32.mrf.mxu0
    %v6819 = vadd.f32 %v5854, %v6818
    %v6820 = vpop.f32.mrf.mxu0
    %v6821 = vpop.f32.mrf.mxu0
    %6822 = vdwg.mxu0
    %6823 = vmatprep.subr.bf16.mxu0 %v5501
    %6824 = vmatpush1.bf16.msra.mxu0 %v5500
    %6825 = vmatprep.subr.bf16.mxu0 %v5493
    %6826 = vmatpush1.bf16.msra.mxu0 %v5492
    %6827 = vmatprep.subr.bf16.mxu0 %v5485
    %6828 = vmatpush1.bf16.msra.mxu0 %v5484
    %6829 = vmatprep.subr.bf16.mxu0 %v5477
    %6830 = vmatpush1.bf16.msra.mxu0 %v5476
    %6831 = vmatprep.subr.bf16.mxu0 %v5469
    %6832 = vmatpush1.bf16.msra.mxu0 %v5468
    %6833 = vmatprep.subr.bf16.mxu0 %v5461
    %6834 = vmatpush1.bf16.msra.mxu0 %v5460
    %6835 = vmatprep.subr.bf16.mxu0 %v5453
    %6836 = vmatpush1.bf16.msra.mxu0 %v5452
    %6837 = vmatprep.subr.bf16.mxu0 %v5445
    %6838 = vmatpush1.bf16.msra.mxu0 %v5444
    %6839 = vmatprep.subr.bf16.mxu0 %v5565
    %6840 = vmatpush2.bf16.msra.mxu0 %v5564
    %6841 = vmatprep.subr.bf16.mxu0 %v5557
    %6842 = vmatpush2.bf16.msra.mxu0 %v5556
    %6843 = vmatprep.subr.bf16.mxu0 %v5549
    %6844 = vmatpush2.bf16.msra.mxu0 %v5548
    %6845 = vmatprep.subr.bf16.mxu0 %v5541
    %6846 = vmatpush2.bf16.msra.mxu0 %v5540
    %6847 = vmatprep.subr.bf16.mxu0 %v5533
    %6848 = vmatpush2.bf16.msra.mxu0 %v5532
    %6849 = vmatprep.subr.bf16.mxu0 %v5525
    %6850 = vmatpush2.bf16.msra.mxu0 %v5524
    %6851 = vmatprep.subr.bf16.mxu0 %v5517
    %6852 = vmatpush2.bf16.msra.mxu0 %v5516
    %6853 = vmatprep.subr.bf16.mxu0 %v5509
    %6854 = vmatpush2.bf16.msra.mxu0 %v5508
    %6855 = vmatprep.mubr.bf16.mxu0 %v6535
    %6856 = vmatmul.mubr.bf16.gmra.mxu0 %v6534
    %v6857 = vpop.f32.mrf.mxu0
    %v6858 = vadd.f32 %v6817, %v6857
    %v6859 = vpop.f32.mrf.mxu0
    %v6860 = vadd.f32 %v6819, %v6859
    %v6861 = vpop.f32.mrf.mxu0
    %v6862 = vpop.f32.mrf.mxu0
    %6863 = vdwg.mxu0
    %v6864 = vxor.u32 %v6612, 2147483648
    %v6865 = vxor.u32 %v6614, 2147483648
    %v6866 = vxor.u32 %v6694, 2147483648
    %v6867 = vxor.u32 %v6696, 2147483648
    %v6868 = vxor.u32 %v6776, 2147483648
    %v6869 = vxor.u32 %v6778, 2147483648
    %v6870 = vmul.f32 %v6864, 1.442695
    %v6871 = vpow.pop %v6870
    %v6872 = vmul.f32 %v6865, 1.442695
    %v6873 = vpow.pop %v6872
    %v6874 = vmul.f32 %v6866, 1.442695
    %v6875 = vpow.pop %v6874
    %v6876 = vmul.f32 %v6867, 1.442695
    %v6877 = vpow.pop %v6876
    %v6878 = vmul.f32 %v6868, 1.442695
    %v6879 = vpow.pop %v6878
    %v6880 = vmul.f32 %v6869, 1.442695
    %v6881 = vpow.pop %v6880
    %v6882 = vadd.f32 %v6871, 1.0
    %v6883 = vadd.f32 %v6873, 1.0
    %v6884 = vadd.f32 %v6875, 1.0
    %v6885 = vadd.f32 %v6877, 1.0
    %v6886 = vadd.f32 %v6879, 1.0
    %v6887 = vadd.f32 %v6881, 1.0
    %v6888 = vrcp.pop %v6882
    %v6889 = vmul.f32 1.0, %v6888
    %v6890 = vrcp.pop %v6883
    %v6891 = vmul.f32 1.0, %v6890
    %v6892 = vrcp.pop %v6884
    %v6893 = vmul.f32 1.0, %v6892
    %v6894 = vrcp.pop %v6885
    %v6895 = vmul.f32 1.0, %v6894
    %v6896 = vrcp.pop %v6886
    %v6897 = vmul.f32 1.0, %v6896
    %v6898 = vrcp.pop %v6887
    %v6899 = vmul.f32 1.0, %v6898
    %v6900 = vtanh.pop %v6858
    %v6901 = vtanh.pop %v6860
    %v6902 = vmul.f32 %v6893, %v6244
    %v6903 = vmul.f32 %v6895, %v6245
    %v6904 = vmul.f32 %v6889, %v6900
    %v6905 = vmul.f32 %v6891, %v6901
    %v6906 = vadd.f32 %v6902, %v6904
    %v6907 = vadd.f32 %v6903, %v6905
    %v6908 = vtanh.pop %v6906
    %v6909 = vtanh.pop %v6907
    %v6910 = vmul.f32 %v6897, %v6908
    %v6911 = vmul.f32 %v6899, %v6909
    %v6914 = vcombine.low %v6910, %v6911
    %v6916 = vunpack.c.l.s4 1966171168
    %v6917 = vunpack.c.0.s8 %v6916
    %v6918 = vlaneseq
    %v6919 = vshrl.u32 %v6918, 7
    %v6920 = vsub.s32 %v6917, %v6919
    %v6921 = vrot.slane %v6914, %v6920
    %v6923 = vunpack.c.l.s4 1966171168
    %v6924 = vunpack.c.0.s8 %v6923
    %v6925 = vlaneseq
    %v6926 = vshrl.u32 %v6925, 7
    %v6927 = vsub.s32 %v6924, %v6926
    %v6928 = vrot.slane %v6921, %v6927
    %s6930 = scalar_lea.vmem [#allocation23], 1
    %6931 = vst.msk [vmem:[%s6930] ss:$8 sm:$0x3] %vm6271, %v6928
    %6932 = vst.msk [vmem:[%s6930] ss:$8 sm:$0x0] %vm6271, %v6928
    %s6933 = scalar_lea.vmem [#allocation2], 2
    %v6934 = vld [vmem:[%s6933] ss:$8 sm:$0xf]
    %v6935 = vld [vmem:[%s6933] ss:$8 sm:$0xf0]
    %v6936 = vor.u32 %v6934, %v6935
    %6937 = vmatprep.subr.bf16.mxu0 %v4074
    %6938 = vmatpush1.bf16.msra.mxu0 %v4073
    %6939 = vmatprep.subr.bf16.mxu0 %v4066
    %6940 = vmatpush1.bf16.msra.mxu0 %v4065
    %6941 = vmatprep.subr.bf16.mxu0 %v4058
    %6942 = vmatpush1.bf16.msra.mxu0 %v4057
    %6943 = vmatprep.subr.bf16.mxu0 %v4050
    %6944 = vmatpush1.bf16.msra.mxu0 %v4049
    %6945 = vmatprep.subr.bf16.mxu0 %v4042
    %6946 = vmatpush1.bf16.msra.mxu0 %v4041
    %6947 = vmatprep.subr.bf16.mxu0 %v4034
    %6948 = vmatpush1.bf16.msra.mxu0 %v4033
    %6949 = vmatprep.subr.bf16.mxu0 %v4026
    %6950 = vmatpush1.bf16.msra.mxu0 %v4025
    %6951 = vmatprep.subr.bf16.mxu0 %v4018
    %6952 = vmatpush1.bf16.msra.mxu0 %v4017
    %6953 = vmatprep.subr.bf16.mxu0 %v4138
    %6954 = vmatpush2.bf16.msra.mxu0 %v4137
    %6955 = vmatprep.subr.bf16.mxu0 %v4130
    %6956 = vmatpush2.bf16.msra.mxu0 %v4129
    %6957 = vmatprep.subr.bf16.mxu0 %v4122
    %6958 = vmatpush2.bf16.msra.mxu0 %v4121
    %6959 = vmatprep.subr.bf16.mxu0 %v4114
    %6960 = vmatpush2.bf16.msra.mxu0 %v4113
    %6961 = vmatprep.subr.bf16.mxu0 %v4106
    %6962 = vmatpush2.bf16.msra.mxu0 %v4105
    %6963 = vmatprep.subr.bf16.mxu0 %v4098
    %6964 = vmatpush2.bf16.msra.mxu0 %v4097
    %6965 = vmatprep.subr.bf16.mxu0 %v4090
    %6966 = vmatpush2.bf16.msra.mxu0 %v4089
    %6967 = vmatprep.subr.bf16.mxu0 %v4082
    %6968 = vmatpush2.bf16.msra.mxu0 %v4081
    %6969 = vmatprep.mubr.bf16.mxu0 %v6533
    %6970 = vmatmul.mubr.bf16.gmra.mxu0 %v6532
    %v6971 = vpop.f32.mrf.mxu0
    %v6972 = vadd.f32 0.0, %v6971
    %v6973 = vpop.f32.mrf.mxu0
    %v6974 = vadd.f32 0.0, %v6973
    %v6975 = vpop.f32.mrf.mxu0
    %v6976 = vpop.f32.mrf.mxu0
    %6977 = vdwg.mxu0
    %6978 = vmatprep.subr.bf16.mxu0 %v4076
    %6979 = vmatpush1.bf16.msra.mxu0 %v4075
    %6980 = vmatprep.subr.bf16.mxu0 %v4068
    %6981 = vmatpush1.bf16.msra.mxu0 %v4067
    %6982 = vmatprep.subr.bf16.mxu0 %v4060
    %6983 = vmatpush1.bf16.msra.mxu0 %v4059
    %6984 = vmatprep.subr.bf16.mxu0 %v4052
    %6985 = vmatpush1.bf16.msra.mxu0 %v4051
    %6986 = vmatprep.subr.bf16.mxu0 %v4044
    %6987 = vmatpush1.bf16.msra.mxu0 %v4043
    %6988 = vmatprep.subr.bf16.mxu0 %v4036
    %6989 = vmatpush1.bf16.msra.mxu0 %v4035
    %6990 = vmatprep.subr.bf16.mxu0 %v4028
    %6991 = vmatpush1.bf16.msra.mxu0 %v4027
    %6992 = vmatprep.subr.bf16.mxu0 %v4020
    %6993 = vmatpush1.bf16.msra.mxu0 %v4019
    %6994 = vmatprep.subr.bf16.mxu0 %v4140
    %6995 = vmatpush2.bf16.msra.mxu0 %v4139
    %6996 = vmatprep.subr.bf16.mxu0 %v4132
    %6997 = vmatpush2.bf16.msra.mxu0 %v4131
    %6998 = vmatprep.subr.bf16.mxu0 %v4124
    %6999 = vmatpush2.bf16.msra.mxu0 %v4123
    %7000 = vmatprep.subr.bf16.mxu0 %v4116
    %7001 = vmatpush2.bf16.msra.mxu0 %v4115
    %7002 = vmatprep.subr.bf16.mxu0 %v4108
    %7003 = vmatpush2.bf16.msra.mxu0 %v4107
    %7004 = vmatprep.subr.bf16.mxu0 %v4100
    %7005 = vmatpush2.bf16.msra.mxu0 %v4099
    %7006 = vmatprep.subr.bf16.mxu0 %v4092
    %7007 = vmatpush2.bf16.msra.mxu0 %v4091
    %7008 = vmatprep.subr.bf16.mxu0 %v4084
    %7009 = vmatpush2.bf16.msra.mxu0 %v4083
    %7010 = vmatprep.mubr.bf16.mxu0 %v6533
    %7011 = vmatmul.mubr.bf16.gmra.mxu0 %v6532
    %v7012 = vpop.f32.mrf.mxu0
    %v7013 = vadd.f32 0.0, %v7012
    %v7014 = vpop.f32.mrf.mxu0
    %v7015 = vadd.f32 0.0, %v7014
    %v7016 = vpop.f32.mrf.mxu0
    %v7017 = vpop.f32.mrf.mxu0
    %7018 = vdwg.mxu0
    %7019 = vmatprep.subr.bf16.mxu0 %v4078
    %7020 = vmatpush1.bf16.msra.mxu0 %v4077
    %7021 = vmatprep.subr.bf16.mxu0 %v4070
    %7022 = vmatpush1.bf16.msra.mxu0 %v4069
    %7023 = vmatprep.subr.bf16.mxu0 %v4062
    %7024 = vmatpush1.bf16.msra.mxu0 %v4061
    %7025 = vmatprep.subr.bf16.mxu0 %v4054
    %7026 = vmatpush1.bf16.msra.mxu0 %v4053
    %7027 = vmatprep.subr.bf16.mxu0 %v4046
    %7028 = vmatpush1.bf16.msra.mxu0 %v4045
    %7029 = vmatprep.subr.bf16.mxu0 %v4038
    %7030 = vmatpush1.bf16.msra.mxu0 %v4037
    %7031 = vmatprep.subr.bf16.mxu0 %v4030
    %7032 = vmatpush1.bf16.msra.mxu0 %v4029
    %7033 = vmatprep.subr.bf16.mxu0 %v4022
    %7034 = vmatpush1.bf16.msra.mxu0 %v4021
    %7035 = vmatprep.subr.bf16.mxu0 %v4142
    %7036 = vmatpush2.bf16.msra.mxu0 %v4141
    %7037 = vmatprep.subr.bf16.mxu0 %v4134
    %7038 = vmatpush2.bf16.msra.mxu0 %v4133
    %7039 = vmatprep.subr.bf16.mxu0 %v4126
    %7040 = vmatpush2.bf16.msra.mxu0 %v4125
    %7041 = vmatprep.subr.bf16.mxu0 %v4118
    %7042 = vmatpush2.bf16.msra.mxu0 %v4117
    %7043 = vmatprep.subr.bf16.mxu0 %v4110
    %7044 = vmatpush2.bf16.msra.mxu0 %v4109
    %7045 = vmatprep.subr.bf16.mxu0 %v4102
    %7046 = vmatpush2.bf16.msra.mxu0 %v4101
    %7047 = vmatprep.subr.bf16.mxu0 %v4094
    %7048 = vmatpush2.bf16.msra.mxu0 %v4093
    %7049 = vmatprep.subr.bf16.mxu0 %v4086
    %7050 = vmatpush2.bf16.msra.mxu0 %v4085
    %7051 = vmatprep.mubr.bf16.mxu0 %v6533
    %7052 = vmatmul.mubr.bf16.gmra.mxu0 %v6532
    %v7053 = vpop.f32.mrf.mxu0
    %v7054 = vadd.f32 0.0, %v7053
    %v7055 = vpop.f32.mrf.mxu0
    %v7056 = vadd.f32 0.0, %v7055
    %v7057 = vpop.f32.mrf.mxu0
    %v7058 = vpop.f32.mrf.mxu0
    %7059 = vdwg.mxu0
    %7060 = vmatprep.subr.bf16.mxu0 %v4080
    %7061 = vmatpush1.bf16.msra.mxu0 %v4079
    %7062 = vmatprep.subr.bf16.mxu0 %v4072
    %7063 = vmatpush1.bf16.msra.mxu0 %v4071
    %7064 = vmatprep.subr.bf16.mxu0 %v4064
    %7065 = vmatpush1.bf16.msra.mxu0 %v4063
    %7066 = vmatprep.subr.bf16.mxu0 %v4056
    %7067 = vmatpush1.bf16.msra.mxu0 %v4055
    %7068 = vmatprep.subr.bf16.mxu0 %v4048
    %7069 = vmatpush1.bf16.msra.mxu0 %v4047
    %7070 = vmatprep.subr.bf16.mxu0 %v4040
    %7071 = vmatpush1.bf16.msra.mxu0 %v4039
    %7072 = vmatprep.subr.bf16.mxu0 %v4032
    %7073 = vmatpush1.bf16.msra.mxu0 %v4031
    %7074 = vmatprep.subr.bf16.mxu0 %v4024
    %7075 = vmatpush1.bf16.msra.mxu0 %v4023
    %7076 = vmatprep.subr.bf16.mxu0 %v4144
    %7077 = vmatpush2.bf16.msra.mxu0 %v4143
    %7078 = vmatprep.subr.bf16.mxu0 %v4136
    %7079 = vmatpush2.bf16.msra.mxu0 %v4135
    %7080 = vmatprep.subr.bf16.mxu0 %v4128
    %7081 = vmatpush2.bf16.msra.mxu0 %v4127
    %7082 = vmatprep.subr.bf16.mxu0 %v4120
    %7083 = vmatpush2.bf16.msra.mxu0 %v4119
    %7084 = vmatprep.subr.bf16.mxu0 %v4112
    %7085 = vmatpush2.bf16.msra.mxu0 %v4111
    %7086 = vmatprep.subr.bf16.mxu0 %v4104
    %7087 = vmatpush2.bf16.msra.mxu0 %v4103
    %7088 = vmatprep.subr.bf16.mxu0 %v4096
    %7089 = vmatpush2.bf16.msra.mxu0 %v4095
    %7090 = vmatprep.subr.bf16.mxu0 %v4088
    %7091 = vmatpush2.bf16.msra.mxu0 %v4087
    %7092 = vmatprep.mubr.bf16.mxu0 %v6533
    %7093 = vmatmul.mubr.bf16.gmra.mxu0 %v6532
    %v7094 = vpop.f32.mrf.mxu0
    %v7095 = vadd.f32 0.0, %v7094
    %v7096 = vpop.f32.mrf.mxu0
    %v7097 = vadd.f32 0.0, %v7096
    %v7098 = vpop.f32.mrf.mxu0
    %v7099 = vpop.f32.mrf.mxu0
    %7100 = vdwg.mxu0
    %v7109 = vcombine.low %v6972, %v6974
    %v7110 = vcombine.low %v7013, %v7015
    %v7111 = vcombine.low %v7054, %v7056
    %v7112 = vcombine.low %v7095, %v7097
    %v7114 = vunpack.c.l.s4 1966171168
    %v7115 = vunpack.c.0.s8 %v7114
    %v7116 = vlaneseq
    %v7117 = vshrl.u32 %v7116, 7
    %v7118 = vsub.s32 %v7115, %v7117
    %v7119 = vrot.slane %v7109, %v7118
    %v7121 = vunpack.c.l.s4 1966171168
    %v7122 = vunpack.c.0.s8 %v7121
    %v7123 = vlaneseq
    %v7124 = vshrl.u32 %v7123, 7
    %v7125 = vsub.s32 %v7122, %v7124
    %v7126 = vrot.slane %v7110, %v7125
    %v7128 = vunpack.c.l.s4 1966171168
    %v7129 = vunpack.c.0.s8 %v7128
    %v7130 = vlaneseq
    %v7131 = vshrl.u32 %v7130, 7
    %v7132 = vsub.s32 %v7129, %v7131
    %v7133 = vrot.slane %v7111, %v7132
    %v7135 = vunpack.c.l.s4 1966171168
    %v7136 = vunpack.c.0.s8 %v7135
    %v7137 = vlaneseq
    %v7138 = vshrl.u32 %v7137, 7
    %v7139 = vsub.s32 %v7136, %v7138
    %v7140 = vrot.slane %v7112, %v7139
    %v7141 = vcombine.low %v7119, %v7126
    %v7142 = vcombine.low %v7133, %v7140
    %v7144 = vunpack.c.l.s4 1966171168
    %v7145 = vunpack.c.0.s8 %v7144
    %v7146 = vlaneseq
    %v7147 = vshrl.u32 %v7146, 7
    %v7148 = vsub.s32 %v7145, %v7147
    %v7149 = vrot.slane %v7141, %v7148
    %v7151 = vunpack.c.l.s4 1966171168
    %v7152 = vunpack.c.0.s8 %v7151
    %v7153 = vlaneseq
    %v7154 = vshrl.u32 %v7153, 7
    %v7155 = vsub.s32 %v7152, %v7154
    %v7156 = vrot.slane %v7142, %v7155
    %v7157 = vcombine.low %v7149, %v7156
    %v7159 = vadd.f32 %v6936, %v7157
    %v7160 = vxor.u32 %v7159, 2147483648
    %v7161 = vmul.f32 %v7160, 1.442695
    %v7162 = vpow.pop %v7161
    %v7163 = vadd.f32 %v7162, 1.0
    %v7164 = vrcp.pop %v7163
    %v7165 = vmul.f32 1.0, %v7164
    %v7167 = vrot.slane %v7159, 6
    %v7169 = vtanh.pop %v7167
    %v7171 = vrot.slane %v7165, 2
    %v7173 = vmul.f32 %v7171, %v6516
    %v7174 = vmul.f32 %v7165, %v7169
    %v7175 = vadd.f32 %v7173, %v7174
    %v7176 = vtanh.pop %v7175
    %v7177 = vrot.slane %v7165, 4
    %v7179 = vmul.f32 %v7177, %v7176
    %v7181 = vlaneseq
    %v7182 = vshrl.u32 %v7181, 7
    %v7183 = vsub.s32 0, %v7182
    %v7184 = vrot.slane %v7179, %v7183
    %v7185 = vlaneseq
    %v7186 = vshrl.u32 %v7185, 7
    %v7187 = vsub.s32 1, %v7186
    %v7188 = vrot.slane %v7179, %v7187
    %v7191 = vpack.c.bf16 %v7184, %v7184
    %v7192 = vpack.c.bf16 %v7188, %v7188
    %v7193 = vpack.c.bf16 %v6910, %v6910
    %v7194 = vpack.c.bf16 %v6911, %v6911
    %7195 = vmatprep.subr.bf16.mxu0 %v5367
    %7196 = vmatpush1.bf16.msra.mxu0 %v5366
    %7197 = vmatprep.subr.bf16.mxu0 %v5359
    %7198 = vmatpush1.bf16.msra.mxu0 %v5358
    %7199 = vmatprep.subr.bf16.mxu0 %v5351
    %7200 = vmatpush1.bf16.msra.mxu0 %v5350
    %7201 = vmatprep.subr.bf16.mxu0 %v5343
    %7202 = vmatpush1.bf16.msra.mxu0 %v5342
    %7203 = vmatprep.subr.bf16.mxu0 %v5335
    %7204 = vmatpush1.bf16.msra.mxu0 %v5334
    %7205 = vmatprep.subr.bf16.mxu0 %v5327
    %7206 = vmatpush1.bf16.msra.mxu0 %v5326
    %7207 = vmatprep.subr.bf16.mxu0 %v5319
    %7208 = vmatpush1.bf16.msra.mxu0 %v5318
    %7209 = vmatprep.subr.bf16.mxu0 %v5311
    %7210 = vmatpush1.bf16.msra.mxu0 %v5310
    %7211 = vmatprep.subr.bf16.mxu0 %v5431
    %7212 = vmatpush2.bf16.msra.mxu0 %v5430
    %7213 = vmatprep.subr.bf16.mxu0 %v5423
    %7214 = vmatpush2.bf16.msra.mxu0 %v5422
    %7215 = vmatprep.subr.bf16.mxu0 %v5415
    %7216 = vmatpush2.bf16.msra.mxu0 %v5414
    %7217 = vmatprep.subr.bf16.mxu0 %v5407
    %7218 = vmatpush2.bf16.msra.mxu0 %v5406
    %7219 = vmatprep.subr.bf16.mxu0 %v5399
    %7220 = vmatpush2.bf16.msra.mxu0 %v5398
    %7221 = vmatprep.subr.bf16.mxu0 %v5391
    %7222 = vmatpush2.bf16.msra.mxu0 %v5390
    %7223 = vmatprep.subr.bf16.mxu0 %v5383
    %7224 = vmatpush2.bf16.msra.mxu0 %v5382
    %7225 = vmatprep.subr.bf16.mxu0 %v5375
    %7226 = vmatpush2.bf16.msra.mxu0 %v5374
    %7227 = vmatprep.mubr.bf16.mxu0 %v7192
    %7228 = vmatmul.mubr.bf16.gmra.mxu0 %v7191
    %v7229 = vpop.f32.mrf.mxu0
    %v7230 = vadd.f32 %v5826, %v7229
    %v7231 = vpop.f32.mrf.mxu0
    %v7232 = vadd.f32 %v5830, %v7231
    %v7233 = vpop.f32.mrf.mxu0
    %v7234 = vpop.f32.mrf.mxu0
    %7235 = vdwg.mxu0
    %7236 = vmatprep.subr.bf16.mxu0 %v5495
    %7237 = vmatpush1.bf16.msra.mxu0 %v5494
    %7238 = vmatprep.subr.bf16.mxu0 %v5487
    %7239 = vmatpush1.bf16.msra.mxu0 %v5486
    %7240 = vmatprep.subr.bf16.mxu0 %v5479
    %7241 = vmatpush1.bf16.msra.mxu0 %v5478
    %7242 = vmatprep.subr.bf16.mxu0 %v5471
    %7243 = vmatpush1.bf16.msra.mxu0 %v5470
    %7244 = vmatprep.subr.bf16.mxu0 %v5463
    %7245 = vmatpush1.bf16.msra.mxu0 %v5462
    %7246 = vmatprep.subr.bf16.mxu0 %v5455
    %7247 = vmatpush1.bf16.msra.mxu0 %v5454
    %7248 = vmatprep.subr.bf16.mxu0 %v5447
    %7249 = vmatpush1.bf16.msra.mxu0 %v5446
    %7250 = vmatprep.subr.bf16.mxu0 %v5439
    %7251 = vmatpush1.bf16.msra.mxu0 %v5438
    %7252 = vmatprep.subr.bf16.mxu0 %v5559
    %7253 = vmatpush2.bf16.msra.mxu0 %v5558
    %7254 = vmatprep.subr.bf16.mxu0 %v5551
    %7255 = vmatpush2.bf16.msra.mxu0 %v5550
    %7256 = vmatprep.subr.bf16.mxu0 %v5543
    %7257 = vmatpush2.bf16.msra.mxu0 %v5542
    %7258 = vmatprep.subr.bf16.mxu0 %v5535
    %7259 = vmatpush2.bf16.msra.mxu0 %v5534
    %7260 = vmatprep.subr.bf16.mxu0 %v5527
    %7261 = vmatpush2.bf16.msra.mxu0 %v5526
    %7262 = vmatprep.subr.bf16.mxu0 %v5519
    %7263 = vmatpush2.bf16.msra.mxu0 %v5518
    %7264 = vmatprep.subr.bf16.mxu0 %v5511
    %7265 = vmatpush2.bf16.msra.mxu0 %v5510
    %7266 = vmatprep.subr.bf16.mxu0 %v5503
    %7267 = vmatpush2.bf16.msra.mxu0 %v5502
    %7268 = vmatprep.mubr.bf16.mxu0 %v7194
    %7269 = vmatmul.mubr.bf16.gmra.mxu0 %v7193
    %v7270 = vpop.f32.mrf.mxu0
    %v7271 = vadd.f32 %v7230, %v7270
    %v7272 = vpop.f32.mrf.mxu0
    %v7273 = vadd.f32 %v7232, %v7272
    %v7274 = vpop.f32.mrf.mxu0
    %v7275 = vpop.f32.mrf.mxu0
    %7276 = vdwg.mxu0
    %7277 = vmatprep.subr.bf16.mxu0 %v5369
    %7278 = vmatpush1.bf16.msra.mxu0 %v5368
    %7279 = vmatprep.subr.bf16.mxu0 %v5361
    %7280 = vmatpush1.bf16.msra.mxu0 %v5360
    %7281 = vmatprep.subr.bf16.mxu0 %v5353
    %7282 = vmatpush1.bf16.msra.mxu0 %v5352
    %7283 = vmatprep.subr.bf16.mxu0 %v5345
    %7284 = vmatpush1.bf16.msra.mxu0 %v5344
    %7285 = vmatprep.subr.bf16.mxu0 %v5337
    %7286 = vmatpush1.bf16.msra.mxu0 %v5336
    %7287 = vmatprep.subr.bf16.mxu0 %v5329
    %7288 = vmatpush1.bf16.msra.mxu0 %v5328
    %7289 = vmatprep.subr.bf16.mxu0 %v5321
    %7290 = vmatpush1.bf16.msra.mxu0 %v5320
    %7291 = vmatprep.subr.bf16.mxu0 %v5313
    %7292 = vmatpush1.bf16.msra.mxu0 %v5312
    %7293 = vmatprep.subr.bf16.mxu0 %v5433
    %7294 = vmatpush2.bf16.msra.mxu0 %v5432
    %7295 = vmatprep.subr.bf16.mxu0 %v5425
    %7296 = vmatpush2.bf16.msra.mxu0 %v5424
    %7297 = vmatprep.subr.bf16.mxu0 %v5417
    %7298 = vmatpush2.bf16.msra.mxu0 %v5416
    %7299 = vmatprep.subr.bf16.mxu0 %v5409
    %7300 = vmatpush2.bf16.msra.mxu0 %v5408
    %7301 = vmatprep.subr.bf16.mxu0 %v5401
    %7302 = vmatpush2.bf16.msra.mxu0 %v5400
    %7303 = vmatprep.subr.bf16.mxu0 %v5393
    %7304 = vmatpush2.bf16.msra.mxu0 %v5392
    %7305 = vmatprep.subr.bf16.mxu0 %v5385
    %7306 = vmatpush2.bf16.msra.mxu0 %v5384
    %7307 = vmatprep.subr.bf16.mxu0 %v5377
    %7308 = vmatpush2.bf16.msra.mxu0 %v5376
    %7309 = vmatprep.mubr.bf16.mxu0 %v7192
    %7310 = vmatmul.mubr.bf16.gmra.mxu0 %v7191
    %v7311 = vpop.f32.mrf.mxu0
    %v7312 = vadd.f32 %v5834, %v7311
    %v7313 = vpop.f32.mrf.mxu0
    %v7314 = vadd.f32 %v5838, %v7313
    %v7315 = vpop.f32.mrf.mxu0
    %v7316 = vpop.f32.mrf.mxu0
    %7317 = vdwg.mxu0
    %7318 = vmatprep.subr.bf16.mxu0 %v5497
    %7319 = vmatpush1.bf16.msra.mxu0 %v5496
    %7320 = vmatprep.subr.bf16.mxu0 %v5489
    %7321 = vmatpush1.bf16.msra.mxu0 %v5488
    %7322 = vmatprep.subr.bf16.mxu0 %v5481
    %7323 = vmatpush1.bf16.msra.mxu0 %v5480
    %7324 = vmatprep.subr.bf16.mxu0 %v5473
    %7325 = vmatpush1.bf16.msra.mxu0 %v5472
    %7326 = vmatprep.subr.bf16.mxu0 %v5465
    %7327 = vmatpush1.bf16.msra.mxu0 %v5464
    %7328 = vmatprep.subr.bf16.mxu0 %v5457
    %7329 = vmatpush1.bf16.msra.mxu0 %v5456
    %7330 = vmatprep.subr.bf16.mxu0 %v5449
    %7331 = vmatpush1.bf16.msra.mxu0 %v5448
    %7332 = vmatprep.subr.bf16.mxu0 %v5441
    %7333 = vmatpush1.bf16.msra.mxu0 %v5440
    %7334 = vmatprep.subr.bf16.mxu0 %v5561
    %7335 = vmatpush2.bf16.msra.mxu0 %v5560
    %7336 = vmatprep.subr.bf16.mxu0 %v5553
    %7337 = vmatpush2.bf16.msra.mxu0 %v5552
    %7338 = vmatprep.subr.bf16.mxu0 %v5545
    %7339 = vmatpush2.bf16.msra.mxu0 %v5544
    %7340 = vmatprep.subr.bf16.mxu0 %v5537
    %7341 = vmatpush2.bf16.msra.mxu0 %v5536
    %7342 = vmatprep.subr.bf16.mxu0 %v5529
    %7343 = vmatpush2.bf16.msra.mxu0 %v5528
    %7344 = vmatprep.subr.bf16.mxu0 %v5521
    %7345 = vmatpush2.bf16.msra.mxu0 %v5520
    %7346 = vmatprep.subr.bf16.mxu0 %v5513
    %7347 = vmatpush2.bf16.msra.mxu0 %v5512
    %7348 = vmatprep.subr.bf16.mxu0 %v5505
    %7349 = vmatpush2.bf16.msra.mxu0 %v5504
    %7350 = vmatprep.mubr.bf16.mxu0 %v7194
    %7351 = vmatmul.mubr.bf16.gmra.mxu0 %v7193
    %v7352 = vpop.f32.mrf.mxu0
    %v7353 = vadd.f32 %v7312, %v7352
    %v7354 = vpop.f32.mrf.mxu0
    %v7355 = vadd.f32 %v7314, %v7354
    %v7356 = vpop.f32.mrf.mxu0
    %v7357 = vpop.f32.mrf.mxu0
    %7358 = vdwg.mxu0
    %7359 = vmatprep.subr.bf16.mxu0 %v5371
    %7360 = vmatpush1.bf16.msra.mxu0 %v5370
    %7361 = vmatprep.subr.bf16.mxu0 %v5363
    %7362 = vmatpush1.bf16.msra.mxu0 %v5362
    %7363 = vmatprep.subr.bf16.mxu0 %v5355
    %7364 = vmatpush1.bf16.msra.mxu0 %v5354
    %7365 = vmatprep.subr.bf16.mxu0 %v5347
    %7366 = vmatpush1.bf16.msra.mxu0 %v5346
    %7367 = vmatprep.subr.bf16.mxu0 %v5339
    %7368 = vmatpush1.bf16.msra.mxu0 %v5338
    %7369 = vmatprep.subr.bf16.mxu0 %v5331
    %7370 = vmatpush1.bf16.msra.mxu0 %v5330
    %7371 = vmatprep.subr.bf16.mxu0 %v5323
    %7372 = vmatpush1.bf16.msra.mxu0 %v5322
    %7373 = vmatprep.subr.bf16.mxu0 %v5315
    %7374 = vmatpush1.bf16.msra.mxu0 %v5314
    %7375 = vmatprep.subr.bf16.mxu0 %v5435
    %7376 = vmatpush2.bf16.msra.mxu0 %v5434
    %7377 = vmatprep.subr.bf16.mxu0 %v5427
    %7378 = vmatpush2.bf16.msra.mxu0 %v5426
    %7379 = vmatprep.subr.bf16.mxu0 %v5419
    %7380 = vmatpush2.bf16.msra.mxu0 %v5418
    %7381 = vmatprep.subr.bf16.mxu0 %v5411
    %7382 = vmatpush2.bf16.msra.mxu0 %v5410
    %7383 = vmatprep.subr.bf16.mxu0 %v5403
    %7384 = vmatpush2.bf16.msra.mxu0 %v5402
    %7385 = vmatprep.subr.bf16.mxu0 %v5395
    %7386 = vmatpush2.bf16.msra.mxu0 %v5394
    %7387 = vmatprep.subr.bf16.mxu0 %v5387
    %7388 = vmatpush2.bf16.msra.mxu0 %v5386
    %7389 = vmatprep.subr.bf16.mxu0 %v5379
    %7390 = vmatpush2.bf16.msra.mxu0 %v5378
    %7391 = vmatprep.mubr.bf16.mxu0 %v7192
    %7392 = vmatmul.mubr.bf16.gmra.mxu0 %v7191
    %v7393 = vpop.f32.mrf.mxu0
    %v7394 = vadd.f32 %v5842, %v7393
    %v7395 = vpop.f32.mrf.mxu0
    %v7396 = vadd.f32 %v5846, %v7395
    %v7397 = vpop.f32.mrf.mxu0
    %v7398 = vpop.f32.mrf.mxu0
    %7399 = vdwg.mxu0
    %7400 = vmatprep.subr.bf16.mxu0 %v5499
    %7401 = vmatpush1.bf16.msra.mxu0 %v5498
    %7402 = vmatprep.subr.bf16.mxu0 %v5491
    %7403 = vmatpush1.bf16.msra.mxu0 %v5490
    %7404 = vmatprep.subr.bf16.mxu0 %v5483
    %7405 = vmatpush1.bf16.msra.mxu0 %v5482
    %7406 = vmatprep.subr.bf16.mxu0 %v5475
    %7407 = vmatpush1.bf16.msra.mxu0 %v5474
    %7408 = vmatprep.subr.bf16.mxu0 %v5467
    %7409 = vmatpush1.bf16.msra.mxu0 %v5466
    %7410 = vmatprep.subr.bf16.mxu0 %v5459
    %7411 = vmatpush1.bf16.msra.mxu0 %v5458
    %7412 = vmatprep.subr.bf16.mxu0 %v5451
    %7413 = vmatpush1.bf16.msra.mxu0 %v5450
    %7414 = vmatprep.subr.bf16.mxu0 %v5443
    %7415 = vmatpush1.bf16.msra.mxu0 %v5442
    %7416 = vmatprep.subr.bf16.mxu0 %v5563
    %7417 = vmatpush2.bf16.msra.mxu0 %v5562
    %7418 = vmatprep.subr.bf16.mxu0 %v5555
    %7419 = vmatpush2.bf16.msra.mxu0 %v5554
    %7420 = vmatprep.subr.bf16.mxu0 %v5547
    %7421 = vmatpush2.bf16.msra.mxu0 %v5546
    %7422 = vmatprep.subr.bf16.mxu0 %v5539
    %7423 = vmatpush2.bf16.msra.mxu0 %v5538
    %7424 = vmatprep.subr.bf16.mxu0 %v5531
    %7425 = vmatpush2.bf16.msra.mxu0 %v5530
    %7426 = vmatprep.subr.bf16.mxu0 %v5523
    %7427 = vmatpush2.bf16.msra.mxu0 %v5522
    %7428 = vmatprep.subr.bf16.mxu0 %v5515
    %7429 = vmatpush2.bf16.msra.mxu0 %v5514
    %7430 = vmatprep.subr.bf16.mxu0 %v5507
    %7431 = vmatpush2.bf16.msra.mxu0 %v5506
    %7432 = vmatprep.mubr.bf16.mxu0 %v7194
    %7433 = vmatmul.mubr.bf16.gmra.mxu0 %v7193
    %v7434 = vpop.f32.mrf.mxu0
    %v7435 = vadd.f32 %v7394, %v7434
    %v7436 = vpop.f32.mrf.mxu0
    %v7437 = vadd.f32 %v7396, %v7436
    %v7438 = vpop.f32.mrf.mxu0
    %v7439 = vpop.f32.mrf.mxu0
    %7440 = vdwg.mxu0
    %7441 = vmatprep.subr.bf16.mxu0 %v5373
    %7442 = vmatpush1.bf16.msra.mxu0 %v5372
    %7443 = vmatprep.subr.bf16.mxu0 %v5365
    %7444 = vmatpush1.bf16.msra.mxu0 %v5364
    %7445 = vmatprep.subr.bf16.mxu0 %v5357
    %7446 = vmatpush1.bf16.msra.mxu0 %v5356
    %7447 = vmatprep.subr.bf16.mxu0 %v5349
    %7448 = vmatpush1.bf16.msra.mxu0 %v5348
    %7449 = vmatprep.subr.bf16.mxu0 %v5341
    %7450 = vmatpush1.bf16.msra.mxu0 %v5340
    %7451 = vmatprep.subr.bf16.mxu0 %v5333
    %7452 = vmatpush1.bf16.msra.mxu0 %v5332
    %7453 = vmatprep.subr.bf16.mxu0 %v5325
    %7454 = vmatpush1.bf16.msra.mxu0 %v5324
    %7455 = vmatprep.subr.bf16.mxu0 %v5317
    %7456 = vmatpush1.bf16.msra.mxu0 %v5316
    %7457 = vmatprep.subr.bf16.mxu0 %v5437
    %7458 = vmatpush2.bf16.msra.mxu0 %v5436
    %7459 = vmatprep.subr.bf16.mxu0 %v5429
    %7460 = vmatpush2.bf16.msra.mxu0 %v5428
    %7461 = vmatprep.subr.bf16.mxu0 %v5421
    %7462 = vmatpush2.bf16.msra.mxu0 %v5420
    %7463 = vmatprep.subr.bf16.mxu0 %v5413
    %7464 = vmatpush2.bf16.msra.mxu0 %v5412
    %7465 = vmatprep.subr.bf16.mxu0 %v5405
    %7466 = vmatpush2.bf16.msra.mxu0 %v5404
    %7467 = vmatprep.subr.bf16.mxu0 %v5397
    %7468 = vmatpush2.bf16.msra.mxu0 %v5396
    %7469 = vmatprep.subr.bf16.mxu0 %v5389
    %7470 = vmatpush2.bf16.msra.mxu0 %v5388
    %7471 = vmatprep.subr.bf16.mxu0 %v5381
    %7472 = vmatpush2.bf16.msra.mxu0 %v5380
    %7473 = vmatprep.mubr.bf16.mxu0 %v7192
    %7474 = vmatmul.mubr.bf16.gmra.mxu0 %v7191
    %v7475 = vpop.f32.mrf.mxu0
    %v7476 = vadd.f32 %v5850, %v7475
    %v7477 = vpop.f32.mrf.mxu0
    %v7478 = vadd.f32 %v5854, %v7477
    %v7479 = vpop.f32.mrf.mxu0
    %v7480 = vpop.f32.mrf.mxu0
    %7481 = vdwg.mxu0
    %7482 = vmatprep.subr.bf16.mxu0 %v5501
    %7483 = vmatpush1.bf16.msra.mxu0 %v5500
    %7484 = vmatprep.subr.bf16.mxu0 %v5493
    %7485 = vmatpush1.bf16.msra.mxu0 %v5492
    %7486 = vmatprep.subr.bf16.mxu0 %v5485
    %7487 = vmatpush1.bf16.msra.mxu0 %v5484
    %7488 = vmatprep.subr.bf16.mxu0 %v5477
    %7489 = vmatpush1.bf16.msra.mxu0 %v5476
    %7490 = vmatprep.subr.bf16.mxu0 %v5469
    %7491 = vmatpush1.bf16.msra.mxu0 %v5468
    %7492 = vmatprep.subr.bf16.mxu0 %v5461
    %7493 = vmatpush1.bf16.msra.mxu0 %v5460
    %7494 = vmatprep.subr.bf16.mxu0 %v5453
    %7495 = vmatpush1.bf16.msra.mxu0 %v5452
    %7496 = vmatprep.subr.bf16.mxu0 %v5445
    %7497 = vmatpush1.bf16.msra.mxu0 %v5444
    %7498 = vmatprep.subr.bf16.mxu0 %v5565
    %7499 = vmatpush2.bf16.msra.mxu0 %v5564
    %7500 = vmatprep.subr.bf16.mxu0 %v5557
    %7501 = vmatpush2.bf16.msra.mxu0 %v5556
    %7502 = vmatprep.subr.bf16.mxu0 %v5549
    %7503 = vmatpush2.bf16.msra.mxu0 %v5548
    %7504 = vmatprep.subr.bf16.mxu0 %v5541
    %7505 = vmatpush2.bf16.msra.mxu0 %v5540
    %7506 = vmatprep.subr.bf16.mxu0 %v5533
    %7507 = vmatpush2.bf16.msra.mxu0 %v5532
    %7508 = vmatprep.subr.bf16.mxu0 %v5525
    %7509 = vmatpush2.bf16.msra.mxu0 %v5524
    %7510 = vmatprep.subr.bf16.mxu0 %v5517
    %7511 = vmatpush2.bf16.msra.mxu0 %v5516
    %7512 = vmatprep.subr.bf16.mxu0 %v5509
    %7513 = vmatpush2.bf16.msra.mxu0 %v5508
    %7514 = vmatprep.mubr.bf16.mxu0 %v7194
    %7515 = vmatmul.mubr.bf16.gmra.mxu0 %v7193
    %v7516 = vpop.f32.mrf.mxu0
    %v7517 = vadd.f32 %v7476, %v7516
    %v7518 = vpop.f32.mrf.mxu0
    %v7519 = vadd.f32 %v7478, %v7518
    %v7520 = vpop.f32.mrf.mxu0
    %v7521 = vpop.f32.mrf.mxu0
    %7522 = vdwg.mxu0
    %v7523 = vxor.u32 %v7271, 2147483648
    %v7524 = vxor.u32 %v7273, 2147483648
    %v7525 = vxor.u32 %v7353, 2147483648
    %v7526 = vxor.u32 %v7355, 2147483648
    %v7527 = vxor.u32 %v7435, 2147483648
    %v7528 = vxor.u32 %v7437, 2147483648
    %v7529 = vmul.f32 %v7523, 1.442695
    %v7530 = vpow.pop %v7529
    %v7531 = vmul.f32 %v7524, 1.442695
    %v7532 = vpow.pop %v7531
    %v7533 = vmul.f32 %v7525, 1.442695
    %v7534 = vpow.pop %v7533
    %v7535 = vmul.f32 %v7526, 1.442695
    %v7536 = vpow.pop %v7535
    %v7537 = vmul.f32 %v7527, 1.442695
    %v7538 = vpow.pop %v7537
    %v7539 = vmul.f32 %v7528, 1.442695
    %v7540 = vpow.pop %v7539
    %v7541 = vadd.f32 %v7530, 1.0
    %v7542 = vadd.f32 %v7532, 1.0
    %v7543 = vadd.f32 %v7534, 1.0
    %v7544 = vadd.f32 %v7536, 1.0
    %v7545 = vadd.f32 %v7538, 1.0
    %v7546 = vadd.f32 %v7540, 1.0
    %v7547 = vrcp.pop %v7541
    %v7548 = vmul.f32 1.0, %v7547
    %v7549 = vrcp.pop %v7542
    %v7550 = vmul.f32 1.0, %v7549
    %v7551 = vrcp.pop %v7543
    %v7552 = vmul.f32 1.0, %v7551
    %v7553 = vrcp.pop %v7544
    %v7554 = vmul.f32 1.0, %v7553
    %v7555 = vrcp.pop %v7545
    %v7556 = vmul.f32 1.0, %v7555
    %v7557 = vrcp.pop %v7546
    %v7558 = vmul.f32 1.0, %v7557
    %v7559 = vtanh.pop %v7517
    %v7560 = vtanh.pop %v7519
    %v7561 = vmul.f32 %v7552, %v6906
    %v7562 = vmul.f32 %v7554, %v6907
    %v7563 = vmul.f32 %v7548, %v7559
    %v7564 = vmul.f32 %v7550, %v7560
    %v7565 = vadd.f32 %v7561, %v7563
    %v7566 = vadd.f32 %v7562, %v7564
    %v7567 = vtanh.pop %v7565
    %v7568 = vtanh.pop %v7566
    %v7569 = vmul.f32 %v7556, %v7567
    %v7570 = vmul.f32 %v7558, %v7568
    %v7573 = vcombine.low %v7569, %v7570
    %v7575 = vunpack.c.l.s4 1966171168
    %v7576 = vunpack.c.0.s8 %v7575
    %v7577 = vlaneseq
    %v7578 = vshrl.u32 %v7577, 7
    %v7579 = vsub.s32 %v7576, %v7578
    %v7580 = vrot.slane %v7573, %v7579
    %v7582 = vunpack.c.l.s4 1966171168
    %v7583 = vunpack.c.0.s8 %v7582
    %v7584 = vlaneseq
    %v7585 = vshrl.u32 %v7584, 7
    %v7586 = vsub.s32 %v7583, %v7585
    %v7587 = vrot.slane %v7580, %v7586
    %s7589 = scalar_lea.vmem [#allocation23], 2
    %7590 = vst.msk [vmem:[%s7589] ss:$8 sm:$0x3] %vm6271, %v7587
    %7591 = vst.msk [vmem:[%s7589] ss:$8 sm:$0x0] %vm6271, %v7587
    %s7592 = scalar_lea.vmem [#allocation2], 3
    %v7593 = vld [vmem:[%s7592] ss:$8 sm:$0xf]
    %v7594 = vld [vmem:[%s7592] ss:$8 sm:$0xf0]
    %v7595 = vor.u32 %v7593, %v7594
    %7596 = vmatprep.subr.bf16.mxu0 %v4074
    %7597 = vmatpush1.bf16.msra.mxu0 %v4073
    %7598 = vmatprep.subr.bf16.mxu0 %v4066
    %7599 = vmatpush1.bf16.msra.mxu0 %v4065
    %7600 = vmatprep.subr.bf16.mxu0 %v4058
    %7601 = vmatpush1.bf16.msra.mxu0 %v4057
    %7602 = vmatprep.subr.bf16.mxu0 %v4050
    %7603 = vmatpush1.bf16.msra.mxu0 %v4049
    %7604 = vmatprep.subr.bf16.mxu0 %v4042
    %7605 = vmatpush1.bf16.msra.mxu0 %v4041
    %7606 = vmatprep.subr.bf16.mxu0 %v4034
    %7607 = vmatpush1.bf16.msra.mxu0 %v4033
    %7608 = vmatprep.subr.bf16.mxu0 %v4026
    %7609 = vmatpush1.bf16.msra.mxu0 %v4025
    %7610 = vmatprep.subr.bf16.mxu0 %v4018
    %7611 = vmatpush1.bf16.msra.mxu0 %v4017
    %7612 = vmatprep.subr.bf16.mxu0 %v4138
    %7613 = vmatpush2.bf16.msra.mxu0 %v4137
    %7614 = vmatprep.subr.bf16.mxu0 %v4130
    %7615 = vmatpush2.bf16.msra.mxu0 %v4129
    %7616 = vmatprep.subr.bf16.mxu0 %v4122
    %7617 = vmatpush2.bf16.msra.mxu0 %v4121
    %7618 = vmatprep.subr.bf16.mxu0 %v4114
    %7619 = vmatpush2.bf16.msra.mxu0 %v4113
    %7620 = vmatprep.subr.bf16.mxu0 %v4106
    %7621 = vmatpush2.bf16.msra.mxu0 %v4105
    %7622 = vmatprep.subr.bf16.mxu0 %v4098
    %7623 = vmatpush2.bf16.msra.mxu0 %v4097
    %7624 = vmatprep.subr.bf16.mxu0 %v4090
    %7625 = vmatpush2.bf16.msra.mxu0 %v4089
    %7626 = vmatprep.subr.bf16.mxu0 %v4082
    %7627 = vmatpush2.bf16.msra.mxu0 %v4081
    %7628 = vmatprep.mubr.bf16.mxu0 %v7192
    %7629 = vmatmul.mubr.bf16.gmra.mxu0 %v7191
    %v7630 = vpop.f32.mrf.mxu0
    %v7631 = vadd.f32 0.0, %v7630
    %v7632 = vpop.f32.mrf.mxu0
    %v7633 = vadd.f32 0.0, %v7632
    %v7634 = vpop.f32.mrf.mxu0
    %v7635 = vpop.f32.mrf.mxu0
    %7636 = vdwg.mxu0
    %7637 = vmatprep.subr.bf16.mxu0 %v4076
    %7638 = vmatpush1.bf16.msra.mxu0 %v4075
    %7639 = vmatprep.subr.bf16.mxu0 %v4068
    %7640 = vmatpush1.bf16.msra.mxu0 %v4067
    %7641 = vmatprep.subr.bf16.mxu0 %v4060
    %7642 = vmatpush1.bf16.msra.mxu0 %v4059
    %7643 = vmatprep.subr.bf16.mxu0 %v4052
    %7644 = vmatpush1.bf16.msra.mxu0 %v4051
    %7645 = vmatprep.subr.bf16.mxu0 %v4044
    %7646 = vmatpush1.bf16.msra.mxu0 %v4043
    %7647 = vmatprep.subr.bf16.mxu0 %v4036
    %7648 = vmatpush1.bf16.msra.mxu0 %v4035
    %7649 = vmatprep.subr.bf16.mxu0 %v4028
    %7650 = vmatpush1.bf16.msra.mxu0 %v4027
    %7651 = vmatprep.subr.bf16.mxu0 %v4020
    %7652 = vmatpush1.bf16.msra.mxu0 %v4019
    %7653 = vmatprep.subr.bf16.mxu0 %v4140
    %7654 = vmatpush2.bf16.msra.mxu0 %v4139
    %7655 = vmatprep.subr.bf16.mxu0 %v4132
    %7656 = vmatpush2.bf16.msra.mxu0 %v4131
    %7657 = vmatprep.subr.bf16.mxu0 %v4124
    %7658 = vmatpush2.bf16.msra.mxu0 %v4123
    %7659 = vmatprep.subr.bf16.mxu0 %v4116
    %7660 = vmatpush2.bf16.msra.mxu0 %v4115
    %7661 = vmatprep.subr.bf16.mxu0 %v4108
    %7662 = vmatpush2.bf16.msra.mxu0 %v4107
    %7663 = vmatprep.subr.bf16.mxu0 %v4100
    %7664 = vmatpush2.bf16.msra.mxu0 %v4099
    %7665 = vmatprep.subr.bf16.mxu0 %v4092
    %7666 = vmatpush2.bf16.msra.mxu0 %v4091
    %7667 = vmatprep.subr.bf16.mxu0 %v4084
    %7668 = vmatpush2.bf16.msra.mxu0 %v4083
    %7669 = vmatprep.mubr.bf16.mxu0 %v7192
    %7670 = vmatmul.mubr.bf16.gmra.mxu0 %v7191
    %v7671 = vpop.f32.mrf.mxu0
    %v7672 = vadd.f32 0.0, %v7671
    %v7673 = vpop.f32.mrf.mxu0
    %v7674 = vadd.f32 0.0, %v7673
    %v7675 = vpop.f32.mrf.mxu0
    %v7676 = vpop.f32.mrf.mxu0
    %7677 = vdwg.mxu0
    %7678 = vmatprep.subr.bf16.mxu0 %v4078
    %7679 = vmatpush1.bf16.msra.mxu0 %v4077
    %7680 = vmatprep.subr.bf16.mxu0 %v4070
    %7681 = vmatpush1.bf16.msra.mxu0 %v4069
    %7682 = vmatprep.subr.bf16.mxu0 %v4062
    %7683 = vmatpush1.bf16.msra.mxu0 %v4061
    %7684 = vmatprep.subr.bf16.mxu0 %v4054
    %7685 = vmatpush1.bf16.msra.mxu0 %v4053
    %7686 = vmatprep.subr.bf16.mxu0 %v4046
    %7687 = vmatpush1.bf16.msra.mxu0 %v4045
    %7688 = vmatprep.subr.bf16.mxu0 %v4038
    %7689 = vmatpush1.bf16.msra.mxu0 %v4037
    %7690 = vmatprep.subr.bf16.mxu0 %v4030
    %7691 = vmatpush1.bf16.msra.mxu0 %v4029
    %7692 = vmatprep.subr.bf16.mxu0 %v4022
    %7693 = vmatpush1.bf16.msra.mxu0 %v4021
    %7694 = vmatprep.subr.bf16.mxu0 %v4142
    %7695 = vmatpush2.bf16.msra.mxu0 %v4141
    %7696 = vmatprep.subr.bf16.mxu0 %v4134
    %7697 = vmatpush2.bf16.msra.mxu0 %v4133
    %7698 = vmatprep.subr.bf16.mxu0 %v4126
    %7699 = vmatpush2.bf16.msra.mxu0 %v4125
    %7700 = vmatprep.subr.bf16.mxu0 %v4118
    %7701 = vmatpush2.bf16.msra.mxu0 %v4117
    %7702 = vmatprep.subr.bf16.mxu0 %v4110
    %7703 = vmatpush2.bf16.msra.mxu0 %v4109
    %7704 = vmatprep.subr.bf16.mxu0 %v4102
    %7705 = vmatpush2.bf16.msra.mxu0 %v4101
    %7706 = vmatprep.subr.bf16.mxu0 %v4094
    %7707 = vmatpush2.bf16.msra.mxu0 %v4093
    %7708 = vmatprep.subr.bf16.mxu0 %v4086
    %7709 = vmatpush2.bf16.msra.mxu0 %v4085
    %7710 = vmatprep.mubr.bf16.mxu0 %v7192
    %7711 = vmatmul.mubr.bf16.gmra.mxu0 %v7191
    %v7712 = vpop.f32.mrf.mxu0
    %v7713 = vadd.f32 0.0, %v7712
    %v7714 = vpop.f32.mrf.mxu0
    %v7715 = vadd.f32 0.0, %v7714
    %v7716 = vpop.f32.mrf.mxu0
    %v7717 = vpop.f32.mrf.mxu0
    %7718 = vdwg.mxu0
    %7719 = vmatprep.subr.bf16.mxu0 %v4080
    %7720 = vmatpush1.bf16.msra.mxu0 %v4079
    %7721 = vmatprep.subr.bf16.mxu0 %v4072
    %7722 = vmatpush1.bf16.msra.mxu0 %v4071
    %7723 = vmatprep.subr.bf16.mxu0 %v4064
    %7724 = vmatpush1.bf16.msra.mxu0 %v4063
    %7725 = vmatprep.subr.bf16.mxu0 %v4056
    %7726 = vmatpush1.bf16.msra.mxu0 %v4055
    %7727 = vmatprep.subr.bf16.mxu0 %v4048
    %7728 = vmatpush1.bf16.msra.mxu0 %v4047
    %7729 = vmatprep.subr.bf16.mxu0 %v4040
    %7730 = vmatpush1.bf16.msra.mxu0 %v4039
    %7731 = vmatprep.subr.bf16.mxu0 %v4032
    %7732 = vmatpush1.bf16.msra.mxu0 %v4031
    %7733 = vmatprep.subr.bf16.mxu0 %v4024
    %7734 = vmatpush1.bf16.msra.mxu0 %v4023
    %7735 = vmatprep.subr.bf16.mxu0 %v4144
    %7736 = vmatpush2.bf16.msra.mxu0 %v4143
    %7737 = vmatprep.subr.bf16.mxu0 %v4136
    %7738 = vmatpush2.bf16.msra.mxu0 %v4135
    %7739 = vmatprep.subr.bf16.mxu0 %v4128
    %7740 = vmatpush2.bf16.msra.mxu0 %v4127
    %7741 = vmatprep.subr.bf16.mxu0 %v4120
    %7742 = vmatpush2.bf16.msra.mxu0 %v4119
    %7743 = vmatprep.subr.bf16.mxu0 %v4112
    %7744 = vmatpush2.bf16.msra.mxu0 %v4111
    %7745 = vmatprep.subr.bf16.mxu0 %v4104
    %7746 = vmatpush2.bf16.msra.mxu0 %v4103
    %7747 = vmatprep.subr.bf16.mxu0 %v4096
    %7748 = vmatpush2.bf16.msra.mxu0 %v4095
    %7749 = vmatprep.subr.bf16.mxu0 %v4088
    %7750 = vmatpush2.bf16.msra.mxu0 %v4087
    %7751 = vmatprep.mubr.bf16.mxu0 %v7192
    %7752 = vmatmul.mubr.bf16.gmra.mxu0 %v7191
    %v7753 = vpop.f32.mrf.mxu0
    %v7754 = vadd.f32 0.0, %v7753
    %v7755 = vpop.f32.mrf.mxu0
    %v7756 = vadd.f32 0.0, %v7755
    %v7757 = vpop.f32.mrf.mxu0
    %v7758 = vpop.f32.mrf.mxu0
    %7759 = vdwg.mxu0
    %v7768 = vcombine.low %v7631, %v7633
    %v7769 = vcombine.low %v7672, %v7674
    %v7770 = vcombine.low %v7713, %v7715
    %v7771 = vcombine.low %v7754, %v7756
    %v7773 = vunpack.c.l.s4 1966171168
    %v7774 = vunpack.c.0.s8 %v7773
    %v7775 = vlaneseq
    %v7776 = vshrl.u32 %v7775, 7
    %v7777 = vsub.s32 %v7774, %v7776
    %v7778 = vrot.slane %v7768, %v7777
    %v7780 = vunpack.c.l.s4 1966171168
    %v7781 = vunpack.c.0.s8 %v7780
    %v7782 = vlaneseq
    %v7783 = vshrl.u32 %v7782, 7
    %v7784 = vsub.s32 %v7781, %v7783
    %v7785 = vrot.slane %v7769, %v7784
    %v7787 = vunpack.c.l.s4 1966171168
    %v7788 = vunpack.c.0.s8 %v7787
    %v7789 = vlaneseq
    %v7790 = vshrl.u32 %v7789, 7
    %v7791 = vsub.s32 %v7788, %v7790
    %v7792 = vrot.slane %v7770, %v7791
    %v7794 = vunpack.c.l.s4 1966171168
    %v7795 = vunpack.c.0.s8 %v7794
    %v7796 = vlaneseq
    %v7797 = vshrl.u32 %v7796, 7
    %v7798 = vsub.s32 %v7795, %v7797
    %v7799 = vrot.slane %v7771, %v7798
    %v7800 = vcombine.low %v7778, %v7785
    %v7801 = vcombine.low %v7792, %v7799
    %v7803 = vunpack.c.l.s4 1966171168
    %v7804 = vunpack.c.0.s8 %v7803
    %v7805 = vlaneseq
    %v7806 = vshrl.u32 %v7805, 7
    %v7807 = vsub.s32 %v7804, %v7806
    %v7808 = vrot.slane %v7800, %v7807
    %v7810 = vunpack.c.l.s4 1966171168
    %v7811 = vunpack.c.0.s8 %v7810
    %v7812 = vlaneseq
    %v7813 = vshrl.u32 %v7812, 7
    %v7814 = vsub.s32 %v7811, %v7813
    %v7815 = vrot.slane %v7801, %v7814
    %v7816 = vcombine.low %v7808, %v7815
    %v7818 = vadd.f32 %v7595, %v7816
    %v7819 = vxor.u32 %v7818, 2147483648
    %v7820 = vmul.f32 %v7819, 1.442695
    %v7821 = vpow.pop %v7820
    %v7822 = vadd.f32 %v7821, 1.0
    %v7823 = vrcp.pop %v7822
    %v7824 = vmul.f32 1.0, %v7823
    %v7826 = vrot.slane %v7818, 6
    %v7828 = vtanh.pop %v7826
    %v7830 = vrot.slane %v7824, 2
    %v7832 = vmul.f32 %v7830, %v7175
    %v7833 = vmul.f32 %v7824, %v7828
    %v7834 = vadd.f32 %v7832, %v7833
    %v7835 = vtanh.pop %v7834
    %v7836 = vrot.slane %v7824, 4
    %v7838 = vmul.f32 %v7836, %v7835
    %v7840 = vlaneseq
    %v7841 = vshrl.u32 %v7840, 7
    %v7842 = vsub.s32 0, %v7841
    %v7843 = vrot.slane %v7838, %v7842
    %v7844 = vlaneseq
    %v7845 = vshrl.u32 %v7844, 7
    %v7846 = vsub.s32 1, %v7845
    %v7847 = vrot.slane %v7838, %v7846
    %v7850 = vpack.c.bf16 %v7843, %v7843
    %v7851 = vpack.c.bf16 %v7847, %v7847
    %v7852 = vpack.c.bf16 %v7569, %v7569
    %v7853 = vpack.c.bf16 %v7570, %v7570
    %7854 = vmatprep.subr.bf16.mxu0 %v5367
    %7855 = vmatpush1.bf16.msra.mxu0 %v5366
    %7856 = vmatprep.subr.bf16.mxu0 %v5359
    %7857 = vmatpush1.bf16.msra.mxu0 %v5358
    %7858 = vmatprep.subr.bf16.mxu0 %v5351
    %7859 = vmatpush1.bf16.msra.mxu0 %v5350
    %7860 = vmatprep.subr.bf16.mxu0 %v5343
    %7861 = vmatpush1.bf16.msra.mxu0 %v5342
    %7862 = vmatprep.subr.bf16.mxu0 %v5335
    %7863 = vmatpush1.bf16.msra.mxu0 %v5334
    %7864 = vmatprep.subr.bf16.mxu0 %v5327
    %7865 = vmatpush1.bf16.msra.mxu0 %v5326
    %7866 = vmatprep.subr.bf16.mxu0 %v5319
    %7867 = vmatpush1.bf16.msra.mxu0 %v5318
    %7868 = vmatprep.subr.bf16.mxu0 %v5311
    %7869 = vmatpush1.bf16.msra.mxu0 %v5310
    %7870 = vmatprep.subr.bf16.mxu0 %v5431
    %7871 = vmatpush2.bf16.msra.mxu0 %v5430
    %7872 = vmatprep.subr.bf16.mxu0 %v5423
    %7873 = vmatpush2.bf16.msra.mxu0 %v5422
    %7874 = vmatprep.subr.bf16.mxu0 %v5415
    %7875 = vmatpush2.bf16.msra.mxu0 %v5414
    %7876 = vmatprep.subr.bf16.mxu0 %v5407
    %7877 = vmatpush2.bf16.msra.mxu0 %v5406
    %7878 = vmatprep.subr.bf16.mxu0 %v5399
    %7879 = vmatpush2.bf16.msra.mxu0 %v5398
    %7880 = vmatprep.subr.bf16.mxu0 %v5391
    %7881 = vmatpush2.bf16.msra.mxu0 %v5390
    %7882 = vmatprep.subr.bf16.mxu0 %v5383
    %7883 = vmatpush2.bf16.msra.mxu0 %v5382
    %7884 = vmatprep.subr.bf16.mxu0 %v5375
    %7885 = vmatpush2.bf16.msra.mxu0 %v5374
    %7886 = vmatprep.mubr.bf16.mxu0 %v7851
    %7887 = vmatmul.mubr.bf16.gmra.mxu0 %v7850
    %v7888 = vpop.f32.mrf.mxu0
    %v7889 = vadd.f32 %v5826, %v7888
    %v7890 = vpop.f32.mrf.mxu0
    %v7891 = vadd.f32 %v5830, %v7890
    %v7892 = vpop.f32.mrf.mxu0
    %v7893 = vpop.f32.mrf.mxu0
    %7894 = vdwg.mxu0
    %7895 = vmatprep.subr.bf16.mxu0 %v5495
    %7896 = vmatpush1.bf16.msra.mxu0 %v5494
    %7897 = vmatprep.subr.bf16.mxu0 %v5487
    %7898 = vmatpush1.bf16.msra.mxu0 %v5486
    %7899 = vmatprep.subr.bf16.mxu0 %v5479
    %7900 = vmatpush1.bf16.msra.mxu0 %v5478
    %7901 = vmatprep.subr.bf16.mxu0 %v5471
    %7902 = vmatpush1.bf16.msra.mxu0 %v5470
    %7903 = vmatprep.subr.bf16.mxu0 %v5463
    %7904 = vmatpush1.bf16.msra.mxu0 %v5462
    %7905 = vmatprep.subr.bf16.mxu0 %v5455
    %7906 = vmatpush1.bf16.msra.mxu0 %v5454
    %7907 = vmatprep.subr.bf16.mxu0 %v5447
    %7908 = vmatpush1.bf16.msra.mxu0 %v5446
    %7909 = vmatprep.subr.bf16.mxu0 %v5439
    %7910 = vmatpush1.bf16.msra.mxu0 %v5438
    %7911 = vmatprep.subr.bf16.mxu0 %v5559
    %7912 = vmatpush2.bf16.msra.mxu0 %v5558
    %7913 = vmatprep.subr.bf16.mxu0 %v5551
    %7914 = vmatpush2.bf16.msra.mxu0 %v5550
    %7915 = vmatprep.subr.bf16.mxu0 %v5543
    %7916 = vmatpush2.bf16.msra.mxu0 %v5542
    %7917 = vmatprep.subr.bf16.mxu0 %v5535
    %7918 = vmatpush2.bf16.msra.mxu0 %v5534
    %7919 = vmatprep.subr.bf16.mxu0 %v5527
    %7920 = vmatpush2.bf16.msra.mxu0 %v5526
    %7921 = vmatprep.subr.bf16.mxu0 %v5519
    %7922 = vmatpush2.bf16.msra.mxu0 %v5518
    %7923 = vmatprep.subr.bf16.mxu0 %v5511
    %7924 = vmatpush2.bf16.msra.mxu0 %v5510
    %7925 = vmatprep.subr.bf16.mxu0 %v5503
    %7926 = vmatpush2.bf16.msra.mxu0 %v5502
    %7927 = vmatprep.mubr.bf16.mxu0 %v7853
    %7928 = vmatmul.mubr.bf16.gmra.mxu0 %v7852
    %v7929 = vpop.f32.mrf.mxu0
    %v7930 = vadd.f32 %v7889, %v7929
    %v7931 = vpop.f32.mrf.mxu0
    %v7932 = vadd.f32 %v7891, %v7931
    %v7933 = vpop.f32.mrf.mxu0
    %v7934 = vpop.f32.mrf.mxu0
    %7935 = vdwg.mxu0
    %7936 = vmatprep.subr.bf16.mxu0 %v5369
    %7937 = vmatpush1.bf16.msra.mxu0 %v5368
    %7938 = vmatprep.subr.bf16.mxu0 %v5361
    %7939 = vmatpush1.bf16.msra.mxu0 %v5360
    %7940 = vmatprep.subr.bf16.mxu0 %v5353
    %7941 = vmatpush1.bf16.msra.mxu0 %v5352
    %7942 = vmatprep.subr.bf16.mxu0 %v5345
    %7943 = vmatpush1.bf16.msra.mxu0 %v5344
    %7944 = vmatprep.subr.bf16.mxu0 %v5337
    %7945 = vmatpush1.bf16.msra.mxu0 %v5336
    %7946 = vmatprep.subr.bf16.mxu0 %v5329
    %7947 = vmatpush1.bf16.msra.mxu0 %v5328
    %7948 = vmatprep.subr.bf16.mxu0 %v5321
    %7949 = vmatpush1.bf16.msra.mxu0 %v5320
    %7950 = vmatprep.subr.bf16.mxu0 %v5313
    %7951 = vmatpush1.bf16.msra.mxu0 %v5312
    %7952 = vmatprep.subr.bf16.mxu0 %v5433
    %7953 = vmatpush2.bf16.msra.mxu0 %v5432
    %7954 = vmatprep.subr.bf16.mxu0 %v5425
    %7955 = vmatpush2.bf16.msra.mxu0 %v5424
    %7956 = vmatprep.subr.bf16.mxu0 %v5417
    %7957 = vmatpush2.bf16.msra.mxu0 %v5416
    %7958 = vmatprep.subr.bf16.mxu0 %v5409
    %7959 = vmatpush2.bf16.msra.mxu0 %v5408
    %7960 = vmatprep.subr.bf16.mxu0 %v5401
    %7961 = vmatpush2.bf16.msra.mxu0 %v5400
    %7962 = vmatprep.subr.bf16.mxu0 %v5393
    %7963 = vmatpush2.bf16.msra.mxu0 %v5392
    %7964 = vmatprep.subr.bf16.mxu0 %v5385
    %7965 = vmatpush2.bf16.msra.mxu0 %v5384
    %7966 = vmatprep.subr.bf16.mxu0 %v5377
    %7967 = vmatpush2.bf16.msra.mxu0 %v5376
    %7968 = vmatprep.mubr.bf16.mxu0 %v7851
    %7969 = vmatmul.mubr.bf16.gmra.mxu0 %v7850
    %v7970 = vpop.f32.mrf.mxu0
    %v7971 = vadd.f32 %v5834, %v7970
    %v7972 = vpop.f32.mrf.mxu0
    %v7973 = vadd.f32 %v5838, %v7972
    %v7974 = vpop.f32.mrf.mxu0
    %v7975 = vpop.f32.mrf.mxu0
    %7976 = vdwg.mxu0
    %7977 = vmatprep.subr.bf16.mxu0 %v5497
    %7978 = vmatpush1.bf16.msra.mxu0 %v5496
    %7979 = vmatprep.subr.bf16.mxu0 %v5489
    %7980 = vmatpush1.bf16.msra.mxu0 %v5488
    %7981 = vmatprep.subr.bf16.mxu0 %v5481
    %7982 = vmatpush1.bf16.msra.mxu0 %v5480
    %7983 = vmatprep.subr.bf16.mxu0 %v5473
    %7984 = vmatpush1.bf16.msra.mxu0 %v5472
    %7985 = vmatprep.subr.bf16.mxu0 %v5465
    %7986 = vmatpush1.bf16.msra.mxu0 %v5464
    %7987 = vmatprep.subr.bf16.mxu0 %v5457
    %7988 = vmatpush1.bf16.msra.mxu0 %v5456
    %7989 = vmatprep.subr.bf16.mxu0 %v5449
    %7990 = vmatpush1.bf16.msra.mxu0 %v5448
    %7991 = vmatprep.subr.bf16.mxu0 %v5441
    %7992 = vmatpush1.bf16.msra.mxu0 %v5440
    %7993 = vmatprep.subr.bf16.mxu0 %v5561
    %7994 = vmatpush2.bf16.msra.mxu0 %v5560
    %7995 = vmatprep.subr.bf16.mxu0 %v5553
    %7996 = vmatpush2.bf16.msra.mxu0 %v5552
    %7997 = vmatprep.subr.bf16.mxu0 %v5545
    %7998 = vmatpush2.bf16.msra.mxu0 %v5544
    %7999 = vmatprep.subr.bf16.mxu0 %v5537
    %8000 = vmatpush2.bf16.msra.mxu0 %v5536
    %8001 = vmatprep.subr.bf16.mxu0 %v5529
    %8002 = vmatpush2.bf16.msra.mxu0 %v5528
    %8003 = vmatprep.subr.bf16.mxu0 %v5521
    %8004 = vmatpush2.bf16.msra.mxu0 %v5520
    %8005 = vmatprep.subr.bf16.mxu0 %v5513
    %8006 = vmatpush2.bf16.msra.mxu0 %v5512
    %8007 = vmatprep.subr.bf16.mxu0 %v5505
    %8008 = vmatpush2.bf16.msra.mxu0 %v5504
    %8009 = vmatprep.mubr.bf16.mxu0 %v7853
    %8010 = vmatmul.mubr.bf16.gmra.mxu0 %v7852
    %v8011 = vpop.f32.mrf.mxu0
    %v8012 = vadd.f32 %v7971, %v8011
    %v8013 = vpop.f32.mrf.mxu0
    %v8014 = vadd.f32 %v7973, %v8013
    %v8015 = vpop.f32.mrf.mxu0
    %v8016 = vpop.f32.mrf.mxu0
    %8017 = vdwg.mxu0
    %8018 = vmatprep.subr.bf16.mxu0 %v5371
    %8019 = vmatpush1.bf16.msra.mxu0 %v5370
    %8020 = vmatprep.subr.bf16.mxu0 %v5363
    %8021 = vmatpush1.bf16.msra.mxu0 %v5362
    %8022 = vmatprep.subr.bf16.mxu0 %v5355
    %8023 = vmatpush1.bf16.msra.mxu0 %v5354
    %8024 = vmatprep.subr.bf16.mxu0 %v5347
    %8025 = vmatpush1.bf16.msra.mxu0 %v5346
    %8026 = vmatprep.subr.bf16.mxu0 %v5339
    %8027 = vmatpush1.bf16.msra.mxu0 %v5338
    %8028 = vmatprep.subr.bf16.mxu0 %v5331
    %8029 = vmatpush1.bf16.msra.mxu0 %v5330
    %8030 = vmatprep.subr.bf16.mxu0 %v5323
    %8031 = vmatpush1.bf16.msra.mxu0 %v5322
    %8032 = vmatprep.subr.bf16.mxu0 %v5315
    %8033 = vmatpush1.bf16.msra.mxu0 %v5314
    %8034 = vmatprep.subr.bf16.mxu0 %v5435
    %8035 = vmatpush2.bf16.msra.mxu0 %v5434
    %8036 = vmatprep.subr.bf16.mxu0 %v5427
    %8037 = vmatpush2.bf16.msra.mxu0 %v5426
    %8038 = vmatprep.subr.bf16.mxu0 %v5419
    %8039 = vmatpush2.bf16.msra.mxu0 %v5418
    %8040 = vmatprep.subr.bf16.mxu0 %v5411
    %8041 = vmatpush2.bf16.msra.mxu0 %v5410
    %8042 = vmatprep.subr.bf16.mxu0 %v5403
    %8043 = vmatpush2.bf16.msra.mxu0 %v5402
    %8044 = vmatprep.subr.bf16.mxu0 %v5395
    %8045 = vmatpush2.bf16.msra.mxu0 %v5394
    %8046 = vmatprep.subr.bf16.mxu0 %v5387
    %8047 = vmatpush2.bf16.msra.mxu0 %v5386
    %8048 = vmatprep.subr.bf16.mxu0 %v5379
    %8049 = vmatpush2.bf16.msra.mxu0 %v5378
    %8050 = vmatprep.mubr.bf16.mxu0 %v7851
    %8051 = vmatmul.mubr.bf16.gmra.mxu0 %v7850
    %v8052 = vpop.f32.mrf.mxu0
    %v8053 = vadd.f32 %v5842, %v8052
    %v8054 = vpop.f32.mrf.mxu0
    %v8055 = vadd.f32 %v5846, %v8054
    %v8056 = vpop.f32.mrf.mxu0
    %v8057 = vpop.f32.mrf.mxu0
    %8058 = vdwg.mxu0
    %8059 = vmatprep.subr.bf16.mxu0 %v5499
    %8060 = vmatpush1.bf16.msra.mxu0 %v5498
    %8061 = vmatprep.subr.bf16.mxu0 %v5491
    %8062 = vmatpush1.bf16.msra.mxu0 %v5490
    %8063 = vmatprep.subr.bf16.mxu0 %v5483
    %8064 = vmatpush1.bf16.msra.mxu0 %v5482
    %8065 = vmatprep.subr.bf16.mxu0 %v5475
    %8066 = vmatpush1.bf16.msra.mxu0 %v5474
    %8067 = vmatprep.subr.bf16.mxu0 %v5467
    %8068 = vmatpush1.bf16.msra.mxu0 %v5466
    %8069 = vmatprep.subr.bf16.mxu0 %v5459
    %8070 = vmatpush1.bf16.msra.mxu0 %v5458
    %8071 = vmatprep.subr.bf16.mxu0 %v5451
    %8072 = vmatpush1.bf16.msra.mxu0 %v5450
    %8073 = vmatprep.subr.bf16.mxu0 %v5443
    %8074 = vmatpush1.bf16.msra.mxu0 %v5442
    %8075 = vmatprep.subr.bf16.mxu0 %v5563
    %8076 = vmatpush2.bf16.msra.mxu0 %v5562
    %8077 = vmatprep.subr.bf16.mxu0 %v5555
    %8078 = vmatpush2.bf16.msra.mxu0 %v5554
    %8079 = vmatprep.subr.bf16.mxu0 %v5547
    %8080 = vmatpush2.bf16.msra.mxu0 %v5546
    %8081 = vmatprep.subr.bf16.mxu0 %v5539
    %8082 = vmatpush2.bf16.msra.mxu0 %v5538
    %8083 = vmatprep.subr.bf16.mxu0 %v5531
    %8084 = vmatpush2.bf16.msra.mxu0 %v5530
    %8085 = vmatprep.subr.bf16.mxu0 %v5523
    %8086 = vmatpush2.bf16.msra.mxu0 %v5522
    %8087 = vmatprep.subr.bf16.mxu0 %v5515
    %8088 = vmatpush2.bf16.msra.mxu0 %v5514
    %8089 = vmatprep.subr.bf16.mxu0 %v5507
    %8090 = vmatpush2.bf16.msra.mxu0 %v5506
    %8091 = vmatprep.mubr.bf16.mxu0 %v7853
    %8092 = vmatmul.mubr.bf16.gmra.mxu0 %v7852
    %v8093 = vpop.f32.mrf.mxu0
    %v8094 = vadd.f32 %v8053, %v8093
    %v8095 = vpop.f32.mrf.mxu0
    %v8096 = vadd.f32 %v8055, %v8095
    %v8097 = vpop.f32.mrf.mxu0
    %v8098 = vpop.f32.mrf.mxu0
    %8099 = vdwg.mxu0
    %8100 = vmatprep.subr.bf16.mxu0 %v5373
    %8101 = vmatpush1.bf16.msra.mxu0 %v5372
    %8102 = vmatprep.subr.bf16.mxu0 %v5365
    %8103 = vmatpush1.bf16.msra.mxu0 %v5364
    %8104 = vmatprep.subr.bf16.mxu0 %v5357
    %8105 = vmatpush1.bf16.msra.mxu0 %v5356
    %8106 = vmatprep.subr.bf16.mxu0 %v5349
    %8107 = vmatpush1.bf16.msra.mxu0 %v5348
    %8108 = vmatprep.subr.bf16.mxu0 %v5341
    %8109 = vmatpush1.bf16.msra.mxu0 %v5340
    %8110 = vmatprep.subr.bf16.mxu0 %v5333
    %8111 = vmatpush1.bf16.msra.mxu0 %v5332
    %8112 = vmatprep.subr.bf16.mxu0 %v5325
    %8113 = vmatpush1.bf16.msra.mxu0 %v5324
    %8114 = vmatprep.subr.bf16.mxu0 %v5317
    %8115 = vmatpush1.bf16.msra.mxu0 %v5316
    %8116 = vmatprep.subr.bf16.mxu0 %v5437
    %8117 = vmatpush2.bf16.msra.mxu0 %v5436
    %8118 = vmatprep.subr.bf16.mxu0 %v5429
    %8119 = vmatpush2.bf16.msra.mxu0 %v5428
    %8120 = vmatprep.subr.bf16.mxu0 %v5421
    %8121 = vmatpush2.bf16.msra.mxu0 %v5420
    %8122 = vmatprep.subr.bf16.mxu0 %v5413
    %8123 = vmatpush2.bf16.msra.mxu0 %v5412
    %8124 = vmatprep.subr.bf16.mxu0 %v5405
    %8125 = vmatpush2.bf16.msra.mxu0 %v5404
    %8126 = vmatprep.subr.bf16.mxu0 %v5397
    %8127 = vmatpush2.bf16.msra.mxu0 %v5396
    %8128 = vmatprep.subr.bf16.mxu0 %v5389
    %8129 = vmatpush2.bf16.msra.mxu0 %v5388
    %8130 = vmatprep.subr.bf16.mxu0 %v5381
    %8131 = vmatpush2.bf16.msra.mxu0 %v5380
    %8132 = vmatprep.mubr.bf16.mxu0 %v7851
    %8133 = vmatmul.mubr.bf16.gmra.mxu0 %v7850
    %v8134 = vpop.f32.mrf.mxu0
    %v8135 = vadd.f32 %v5850, %v8134
    %v8136 = vpop.f32.mrf.mxu0
    %v8137 = vadd.f32 %v5854, %v8136
    %v8138 = vpop.f32.mrf.mxu0
    %v8139 = vpop.f32.mrf.mxu0
    %8140 = vdwg.mxu0
    %8141 = vmatprep.subr.bf16.mxu0 %v5501
    %8142 = vmatpush1.bf16.msra.mxu0 %v5500
    %8143 = vmatprep.subr.bf16.mxu0 %v5493
    %8144 = vmatpush1.bf16.msra.mxu0 %v5492
    %8145 = vmatprep.subr.bf16.mxu0 %v5485
    %8146 = vmatpush1.bf16.msra.mxu0 %v5484
    %8147 = vmatprep.subr.bf16.mxu0 %v5477
    %8148 = vmatpush1.bf16.msra.mxu0 %v5476
    %8149 = vmatprep.subr.bf16.mxu0 %v5469
    %8150 = vmatpush1.bf16.msra.mxu0 %v5468
    %8151 = vmatprep.subr.bf16.mxu0 %v5461
    %8152 = vmatpush1.bf16.msra.mxu0 %v5460
    %8153 = vmatprep.subr.bf16.mxu0 %v5453
    %8154 = vmatpush1.bf16.msra.mxu0 %v5452
    %8155 = vmatprep.subr.bf16.mxu0 %v5445
    %8156 = vmatpush1.bf16.msra.mxu0 %v5444
    %8157 = vmatprep.subr.bf16.mxu0 %v5565
    %8158 = vmatpush2.bf16.msra.mxu0 %v5564
    %8159 = vmatprep.subr.bf16.mxu0 %v5557
    %8160 = vmatpush2.bf16.msra.mxu0 %v5556
    %8161 = vmatprep.subr.bf16.mxu0 %v5549
    %8162 = vmatpush2.bf16.msra.mxu0 %v5548
    %8163 = vmatprep.subr.bf16.mxu0 %v5541
    %8164 = vmatpush2.bf16.msra.mxu0 %v5540
    %8165 = vmatprep.subr.bf16.mxu0 %v5533
    %8166 = vmatpush2.bf16.msra.mxu0 %v5532
    %8167 = vmatprep.subr.bf16.mxu0 %v5525
    %8168 = vmatpush2.bf16.msra.mxu0 %v5524
    %8169 = vmatprep.subr.bf16.mxu0 %v5517
    %8170 = vmatpush2.bf16.msra.mxu0 %v5516
    %8171 = vmatprep.subr.bf16.mxu0 %v5509
    %8172 = vmatpush2.bf16.msra.mxu0 %v5508
    %8173 = vmatprep.mubr.bf16.mxu0 %v7853
    %8174 = vmatmul.mubr.bf16.gmra.mxu0 %v7852
    %v8175 = vpop.f32.mrf.mxu0
    %v8176 = vadd.f32 %v8135, %v8175
    %v8177 = vpop.f32.mrf.mxu0
    %v8178 = vadd.f32 %v8137, %v8177
    %v8179 = vpop.f32.mrf.mxu0
    %v8180 = vpop.f32.mrf.mxu0
    %8181 = vdwg.mxu0
    %v8182 = vxor.u32 %v7930, 2147483648
    %v8183 = vxor.u32 %v7932, 2147483648
    %v8184 = vxor.u32 %v8012, 2147483648
    %v8185 = vxor.u32 %v8014, 2147483648
    %v8186 = vxor.u32 %v8094, 2147483648
    %v8187 = vxor.u32 %v8096, 2147483648
    %v8188 = vmul.f32 %v8182, 1.442695
    %v8189 = vpow.pop %v8188
    %v8190 = vmul.f32 %v8183, 1.442695
    %v8191 = vpow.pop %v8190
    %v8192 = vmul.f32 %v8184, 1.442695
    %v8193 = vpow.pop %v8192
    %v8194 = vmul.f32 %v8185, 1.442695
    %v8195 = vpow.pop %v8194
    %v8196 = vmul.f32 %v8186, 1.442695
    %v8197 = vpow.pop %v8196
    %v8198 = vmul.f32 %v8187, 1.442695
    %v8199 = vpow.pop %v8198
    %v8200 = vadd.f32 %v8189, 1.0
    %v8201 = vadd.f32 %v8191, 1.0
    %v8202 = vadd.f32 %v8193, 1.0
    %v8203 = vadd.f32 %v8195, 1.0
    %v8204 = vadd.f32 %v8197, 1.0
    %v8205 = vadd.f32 %v8199, 1.0
    %v8206 = vrcp.pop %v8200
    %v8207 = vmul.f32 1.0, %v8206
    %v8208 = vrcp.pop %v8201
    %v8209 = vmul.f32 1.0, %v8208
    %v8210 = vrcp.pop %v8202
    %v8211 = vmul.f32 1.0, %v8210
    %v8212 = vrcp.pop %v8203
    %v8213 = vmul.f32 1.0, %v8212
    %v8214 = vrcp.pop %v8204
    %v8215 = vmul.f32 1.0, %v8214
    %v8216 = vrcp.pop %v8205
    %v8217 = vmul.f32 1.0, %v8216
    %v8218 = vtanh.pop %v8176
    %v8219 = vtanh.pop %v8178
    %v8220 = vmul.f32 %v8211, %v7565
    %v8221 = vmul.f32 %v8213, %v7566
    %v8222 = vmul.f32 %v8207, %v8218
    %v8223 = vmul.f32 %v8209, %v8219
    %v8224 = vadd.f32 %v8220, %v8222
    %v8225 = vadd.f32 %v8221, %v8223
    %v8226 = vtanh.pop %v8224
    %v8227 = vtanh.pop %v8225
    %v8228 = vmul.f32 %v8215, %v8226
    %v8229 = vmul.f32 %v8217, %v8227
    %v8232 = vcombine.low %v8228, %v8229
    %v8234 = vunpack.c.l.s4 1966171168
    %v8235 = vunpack.c.0.s8 %v8234
    %v8236 = vlaneseq
    %v8237 = vshrl.u32 %v8236, 7
    %v8238 = vsub.s32 %v8235, %v8237
    %v8239 = vrot.slane %v8232, %v8238
    %v8241 = vunpack.c.l.s4 1966171168
    %v8242 = vunpack.c.0.s8 %v8241
    %v8243 = vlaneseq
    %v8244 = vshrl.u32 %v8243, 7
    %v8245 = vsub.s32 %v8242, %v8244
    %v8246 = vrot.slane %v8239, %v8245
    %s8248 = scalar_lea.vmem [#allocation23], 3
    %8249 = vst.msk [vmem:[%s8248] ss:$8 sm:$0x3] %vm6271, %v8246
    %8250 = vst.msk [vmem:[%s8248] ss:$8 sm:$0x0] %vm6271, %v8246
    %s8251 = scalar_lea.vmem [#allocation2], 4
    %v8252 = vld [vmem:[%s8251] ss:$8 sm:$0xf]
    %v8253 = vld [vmem:[%s8251] ss:$8 sm:$0xf0]
    %v8254 = vor.u32 %v8252, %v8253
    %8255 = vmatprep.subr.bf16.mxu0 %v4074
    %8256 = vmatpush1.bf16.msra.mxu0 %v4073
    %8257 = vmatprep.subr.bf16.mxu0 %v4066
    %8258 = vmatpush1.bf16.msra.mxu0 %v4065
    %8259 = vmatprep.subr.bf16.mxu0 %v4058
    %8260 = vmatpush1.bf16.msra.mxu0 %v4057
    %8261 = vmatprep.subr.bf16.mxu0 %v4050
    %8262 = vmatpush1.bf16.msra.mxu0 %v4049
    %8263 = vmatprep.subr.bf16.mxu0 %v4042
    %8264 = vmatpush1.bf16.msra.mxu0 %v4041
    %8265 = vmatprep.subr.bf16.mxu0 %v4034
    %8266 = vmatpush1.bf16.msra.mxu0 %v4033
    %8267 = vmatprep.subr.bf16.mxu0 %v4026
    %8268 = vmatpush1.bf16.msra.mxu0 %v4025
    %8269 = vmatprep.subr.bf16.mxu0 %v4018
    %8270 = vmatpush1.bf16.msra.mxu0 %v4017
    %8271 = vmatprep.subr.bf16.mxu0 %v4138
    %8272 = vmatpush2.bf16.msra.mxu0 %v4137
    %8273 = vmatprep.subr.bf16.mxu0 %v4130
    %8274 = vmatpush2.bf16.msra.mxu0 %v4129
    %8275 = vmatprep.subr.bf16.mxu0 %v4122
    %8276 = vmatpush2.bf16.msra.mxu0 %v4121
    %8277 = vmatprep.subr.bf16.mxu0 %v4114
    %8278 = vmatpush2.bf16.msra.mxu0 %v4113
    %8279 = vmatprep.subr.bf16.mxu0 %v4106
    %8280 = vmatpush2.bf16.msra.mxu0 %v4105
    %8281 = vmatprep.subr.bf16.mxu0 %v4098
    %8282 = vmatpush2.bf16.msra.mxu0 %v4097
    %8283 = vmatprep.subr.bf16.mxu0 %v4090
    %8284 = vmatpush2.bf16.msra.mxu0 %v4089
    %8285 = vmatprep.subr.bf16.mxu0 %v4082
    %8286 = vmatpush2.bf16.msra.mxu0 %v4081
    %8287 = vmatprep.mubr.bf16.mxu0 %v7851
    %8288 = vmatmul.mubr.bf16.gmra.mxu0 %v7850
    %v8289 = vpop.f32.mrf.mxu0
    %v8290 = vadd.f32 0.0, %v8289
    %v8291 = vpop.f32.mrf.mxu0
    %v8292 = vadd.f32 0.0, %v8291
    %v8293 = vpop.f32.mrf.mxu0
    %v8294 = vpop.f32.mrf.mxu0
    %8295 = vdwg.mxu0
    %8296 = vmatprep.subr.bf16.mxu0 %v4076
    %8297 = vmatpush1.bf16.msra.mxu0 %v4075
    %8298 = vmatprep.subr.bf16.mxu0 %v4068
    %8299 = vmatpush1.bf16.msra.mxu0 %v4067
    %8300 = vmatprep.subr.bf16.mxu0 %v4060
    %8301 = vmatpush1.bf16.msra.mxu0 %v4059
    %8302 = vmatprep.subr.bf16.mxu0 %v4052
    %8303 = vmatpush1.bf16.msra.mxu0 %v4051
    %8304 = vmatprep.subr.bf16.mxu0 %v4044
    %8305 = vmatpush1.bf16.msra.mxu0 %v4043
    %8306 = vmatprep.subr.bf16.mxu0 %v4036
    %8307 = vmatpush1.bf16.msra.mxu0 %v4035
    %8308 = vmatprep.subr.bf16.mxu0 %v4028
    %8309 = vmatpush1.bf16.msra.mxu0 %v4027
    %8310 = vmatprep.subr.bf16.mxu0 %v4020
    %8311 = vmatpush1.bf16.msra.mxu0 %v4019
    %8312 = vmatprep.subr.bf16.mxu0 %v4140
    %8313 = vmatpush2.bf16.msra.mxu0 %v4139
    %8314 = vmatprep.subr.bf16.mxu0 %v4132
    %8315 = vmatpush2.bf16.msra.mxu0 %v4131
    %8316 = vmatprep.subr.bf16.mxu0 %v4124
    %8317 = vmatpush2.bf16.msra.mxu0 %v4123
    %8318 = vmatprep.subr.bf16.mxu0 %v4116
    %8319 = vmatpush2.bf16.msra.mxu0 %v4115
    %8320 = vmatprep.subr.bf16.mxu0 %v4108
    %8321 = vmatpush2.bf16.msra.mxu0 %v4107
    %8322 = vmatprep.subr.bf16.mxu0 %v4100
    %8323 = vmatpush2.bf16.msra.mxu0 %v4099
    %8324 = vmatprep.subr.bf16.mxu0 %v4092
    %8325 = vmatpush2.bf16.msra.mxu0 %v4091
    %8326 = vmatprep.subr.bf16.mxu0 %v4084
    %8327 = vmatpush2.bf16.msra.mxu0 %v4083
    %8328 = vmatprep.mubr.bf16.mxu0 %v7851
    %8329 = vmatmul.mubr.bf16.gmra.mxu0 %v7850
    %v8330 = vpop.f32.mrf.mxu0
    %v8331 = vadd.f32 0.0, %v8330
    %v8332 = vpop.f32.mrf.mxu0
    %v8333 = vadd.f32 0.0, %v8332
    %v8334 = vpop.f32.mrf.mxu0
    %v8335 = vpop.f32.mrf.mxu0
    %8336 = vdwg.mxu0
    %8337 = vmatprep.subr.bf16.mxu0 %v4078
    %8338 = vmatpush1.bf16.msra.mxu0 %v4077
    %8339 = vmatprep.subr.bf16.mxu0 %v4070
    %8340 = vmatpush1.bf16.msra.mxu0 %v4069
    %8341 = vmatprep.subr.bf16.mxu0 %v4062
    %8342 = vmatpush1.bf16.msra.mxu0 %v4061
    %8343 = vmatprep.subr.bf16.mxu0 %v4054
    %8344 = vmatpush1.bf16.msra.mxu0 %v4053
    %8345 = vmatprep.subr.bf16.mxu0 %v4046
    %8346 = vmatpush1.bf16.msra.mxu0 %v4045
    %8347 = vmatprep.subr.bf16.mxu0 %v4038
    %8348 = vmatpush1.bf16.msra.mxu0 %v4037
    %8349 = vmatprep.subr.bf16.mxu0 %v4030
    %8350 = vmatpush1.bf16.msra.mxu0 %v4029
    %8351 = vmatprep.subr.bf16.mxu0 %v4022
    %8352 = vmatpush1.bf16.msra.mxu0 %v4021
    %8353 = vmatprep.subr.bf16.mxu0 %v4142
    %8354 = vmatpush2.bf16.msra.mxu0 %v4141
    %8355 = vmatprep.subr.bf16.mxu0 %v4134
    %8356 = vmatpush2.bf16.msra.mxu0 %v4133
    %8357 = vmatprep.subr.bf16.mxu0 %v4126
    %8358 = vmatpush2.bf16.msra.mxu0 %v4125
    %8359 = vmatprep.subr.bf16.mxu0 %v4118
    %8360 = vmatpush2.bf16.msra.mxu0 %v4117
    %8361 = vmatprep.subr.bf16.mxu0 %v4110
    %8362 = vmatpush2.bf16.msra.mxu0 %v4109
    %8363 = vmatprep.subr.bf16.mxu0 %v4102
    %8364 = vmatpush2.bf16.msra.mxu0 %v4101
    %8365 = vmatprep.subr.bf16.mxu0 %v4094
    %8366 = vmatpush2.bf16.msra.mxu0 %v4093
    %8367 = vmatprep.subr.bf16.mxu0 %v4086
    %8368 = vmatpush2.bf16.msra.mxu0 %v4085
    %8369 = vmatprep.mubr.bf16.mxu0 %v7851
    %8370 = vmatmul.mubr.bf16.gmra.mxu0 %v7850
    %v8371 = vpop.f32.mrf.mxu0
    %v8372 = vadd.f32 0.0, %v8371
    %v8373 = vpop.f32.mrf.mxu0
    %v8374 = vadd.f32 0.0, %v8373
    %v8375 = vpop.f32.mrf.mxu0
    %v8376 = vpop.f32.mrf.mxu0
    %8377 = vdwg.mxu0
    %8378 = vmatprep.subr.bf16.mxu0 %v4080
    %8379 = vmatpush1.bf16.msra.mxu0 %v4079
    %8380 = vmatprep.subr.bf16.mxu0 %v4072
    %8381 = vmatpush1.bf16.msra.mxu0 %v4071
    %8382 = vmatprep.subr.bf16.mxu0 %v4064
    %8383 = vmatpush1.bf16.msra.mxu0 %v4063
    %8384 = vmatprep.subr.bf16.mxu0 %v4056
    %8385 = vmatpush1.bf16.msra.mxu0 %v4055
    %8386 = vmatprep.subr.bf16.mxu0 %v4048
    %8387 = vmatpush1.bf16.msra.mxu0 %v4047
    %8388 = vmatprep.subr.bf16.mxu0 %v4040
    %8389 = vmatpush1.bf16.msra.mxu0 %v4039
    %8390 = vmatprep.subr.bf16.mxu0 %v4032
    %8391 = vmatpush1.bf16.msra.mxu0 %v4031
    %8392 = vmatprep.subr.bf16.mxu0 %v4024
    %8393 = vmatpush1.bf16.msra.mxu0 %v4023
    %8394 = vmatprep.subr.bf16.mxu0 %v4144
    %8395 = vmatpush2.bf16.msra.mxu0 %v4143
    %8396 = vmatprep.subr.bf16.mxu0 %v4136
    %8397 = vmatpush2.bf16.msra.mxu0 %v4135
    %8398 = vmatprep.subr.bf16.mxu0 %v4128
    %8399 = vmatpush2.bf16.msra.mxu0 %v4127
    %8400 = vmatprep.subr.bf16.mxu0 %v4120
    %8401 = vmatpush2.bf16.msra.mxu0 %v4119
    %8402 = vmatprep.subr.bf16.mxu0 %v4112
    %8403 = vmatpush2.bf16.msra.mxu0 %v4111
    %8404 = vmatprep.subr.bf16.mxu0 %v4104
    %8405 = vmatpush2.bf16.msra.mxu0 %v4103
    %8406 = vmatprep.subr.bf16.mxu0 %v4096
    %8407 = vmatpush2.bf16.msra.mxu0 %v4095
    %8408 = vmatprep.subr.bf16.mxu0 %v4088
    %8409 = vmatpush2.bf16.msra.mxu0 %v4087
    %8410 = vmatprep.mubr.bf16.mxu0 %v7851
    %8411 = vmatmul.mubr.bf16.gmra.mxu0 %v7850
    %v8412 = vpop.f32.mrf.mxu0
    %v8413 = vadd.f32 0.0, %v8412
    %v8414 = vpop.f32.mrf.mxu0
    %v8415 = vadd.f32 0.0, %v8414
    %v8416 = vpop.f32.mrf.mxu0
    %v8417 = vpop.f32.mrf.mxu0
    %8418 = vdwg.mxu0
    %v8427 = vcombine.low %v8290, %v8292
    %v8428 = vcombine.low %v8331, %v8333
    %v8429 = vcombine.low %v8372, %v8374
    %v8430 = vcombine.low %v8413, %v8415
    %v8432 = vunpack.c.l.s4 1966171168
    %v8433 = vunpack.c.0.s8 %v8432
    %v8434 = vlaneseq
    %v8435 = vshrl.u32 %v8434, 7
    %v8436 = vsub.s32 %v8433, %v8435
    %v8437 = vrot.slane %v8427, %v8436
    %v8439 = vunpack.c.l.s4 1966171168
    %v8440 = vunpack.c.0.s8 %v8439
    %v8441 = vlaneseq
    %v8442 = vshrl.u32 %v8441, 7
    %v8443 = vsub.s32 %v8440, %v8442
    %v8444 = vrot.slane %v8428, %v8443
    %v8446 = vunpack.c.l.s4 1966171168
    %v8447 = vunpack.c.0.s8 %v8446
    %v8448 = vlaneseq
    %v8449 = vshrl.u32 %v8448, 7
    %v8450 = vsub.s32 %v8447, %v8449
    %v8451 = vrot.slane %v8429, %v8450
    %v8453 = vunpack.c.l.s4 1966171168
    %v8454 = vunpack.c.0.s8 %v8453
    %v8455 = vlaneseq
    %v8456 = vshrl.u32 %v8455, 7
    %v8457 = vsub.s32 %v8454, %v8456
    %v8458 = vrot.slane %v8430, %v8457
    %v8459 = vcombine.low %v8437, %v8444
    %v8460 = vcombine.low %v8451, %v8458
    %v8462 = vunpack.c.l.s4 1966171168
    %v8463 = vunpack.c.0.s8 %v8462
    %v8464 = vlaneseq
    %v8465 = vshrl.u32 %v8464, 7
    %v8466 = vsub.s32 %v8463, %v8465
    %v8467 = vrot.slane %v8459, %v8466
    %v8469 = vunpack.c.l.s4 1966171168
    %v8470 = vunpack.c.0.s8 %v8469
    %v8471 = vlaneseq
    %v8472 = vshrl.u32 %v8471, 7
    %v8473 = vsub.s32 %v8470, %v8472
    %v8474 = vrot.slane %v8460, %v8473
    %v8475 = vcombine.low %v8467, %v8474
    %v8477 = vadd.f32 %v8254, %v8475
    %v8478 = vxor.u32 %v8477, 2147483648
    %v8479 = vmul.f32 %v8478, 1.442695
    %v8480 = vpow.pop %v8479
    %v8481 = vadd.f32 %v8480, 1.0
    %v8482 = vrcp.pop %v8481
    %v8483 = vmul.f32 1.0, %v8482
    %v8485 = vrot.slane %v8477, 6
    %v8487 = vtanh.pop %v8485
    %v8489 = vrot.slane %v8483, 2
    %v8491 = vmul.f32 %v8489, %v7834
    %v8492 = vmul.f32 %v8483, %v8487
    %v8493 = vadd.f32 %v8491, %v8492
    %v8494 = vtanh.pop %v8493
    %v8495 = vrot.slane %v8483, 4
    %v8497 = vmul.f32 %v8495, %v8494
    %v8499 = vlaneseq
    %v8500 = vshrl.u32 %v8499, 7
    %v8501 = vsub.s32 0, %v8500
    %v8502 = vrot.slane %v8497, %v8501
    %v8503 = vlaneseq
    %v8504 = vshrl.u32 %v8503, 7
    %v8505 = vsub.s32 1, %v8504
    %v8506 = vrot.slane %v8497, %v8505
    %v8509 = vpack.c.bf16 %v8502, %v8502
    %v8510 = vpack.c.bf16 %v8506, %v8506
    %v8511 = vpack.c.bf16 %v8228, %v8228
    %v8512 = vpack.c.bf16 %v8229, %v8229
    %8513 = vmatprep.subr.bf16.mxu0 %v5367
    %8514 = vmatpush1.bf16.msra.mxu0 %v5366
    %8515 = vmatprep.subr.bf16.mxu0 %v5359
    %8516 = vmatpush1.bf16.msra.mxu0 %v5358
    %8517 = vmatprep.subr.bf16.mxu0 %v5351
    %8518 = vmatpush1.bf16.msra.mxu0 %v5350
    %8519 = vmatprep.subr.bf16.mxu0 %v5343
    %8520 = vmatpush1.bf16.msra.mxu0 %v5342
    %8521 = vmatprep.subr.bf16.mxu0 %v5335
    %8522 = vmatpush1.bf16.msra.mxu0 %v5334
    %8523 = vmatprep.subr.bf16.mxu0 %v5327
    %8524 = vmatpush1.bf16.msra.mxu0 %v5326
    %8525 = vmatprep.subr.bf16.mxu0 %v5319
    %8526 = vmatpush1.bf16.msra.mxu0 %v5318
    %8527 = vmatprep.subr.bf16.mxu0 %v5311
    %8528 = vmatpush1.bf16.msra.mxu0 %v5310
    %8529 = vmatprep.subr.bf16.mxu0 %v5431
    %8530 = vmatpush2.bf16.msra.mxu0 %v5430
    %8531 = vmatprep.subr.bf16.mxu0 %v5423
    %8532 = vmatpush2.bf16.msra.mxu0 %v5422
    %8533 = vmatprep.subr.bf16.mxu0 %v5415
    %8534 = vmatpush2.bf16.msra.mxu0 %v5414
    %8535 = vmatprep.subr.bf16.mxu0 %v5407
    %8536 = vmatpush2.bf16.msra.mxu0 %v5406
    %8537 = vmatprep.subr.bf16.mxu0 %v5399
    %8538 = vmatpush2.bf16.msra.mxu0 %v5398
    %8539 = vmatprep.subr.bf16.mxu0 %v5391
    %8540 = vmatpush2.bf16.msra.mxu0 %v5390
    %8541 = vmatprep.subr.bf16.mxu0 %v5383
    %8542 = vmatpush2.bf16.msra.mxu0 %v5382
    %8543 = vmatprep.subr.bf16.mxu0 %v5375
    %8544 = vmatpush2.bf16.msra.mxu0 %v5374
    %8545 = vmatprep.mubr.bf16.mxu0 %v8510
    %8546 = vmatmul.mubr.bf16.gmra.mxu0 %v8509
    %v8547 = vpop.f32.mrf.mxu0
    %v8548 = vadd.f32 %v5826, %v8547
    %v8549 = vpop.f32.mrf.mxu0
    %v8550 = vadd.f32 %v5830, %v8549
    %v8551 = vpop.f32.mrf.mxu0
    %v8552 = vpop.f32.mrf.mxu0
    %8553 = vdwg.mxu0
    %8554 = vmatprep.subr.bf16.mxu0 %v5495
    %8555 = vmatpush1.bf16.msra.mxu0 %v5494
    %8556 = vmatprep.subr.bf16.mxu0 %v5487
    %8557 = vmatpush1.bf16.msra.mxu0 %v5486
    %8558 = vmatprep.subr.bf16.mxu0 %v5479
    %8559 = vmatpush1.bf16.msra.mxu0 %v5478
    %8560 = vmatprep.subr.bf16.mxu0 %v5471
    %8561 = vmatpush1.bf16.msra.mxu0 %v5470
    %8562 = vmatprep.subr.bf16.mxu0 %v5463
    %8563 = vmatpush1.bf16.msra.mxu0 %v5462
    %8564 = vmatprep.subr.bf16.mxu0 %v5455
    %8565 = vmatpush1.bf16.msra.mxu0 %v5454
    %8566 = vmatprep.subr.bf16.mxu0 %v5447
    %8567 = vmatpush1.bf16.msra.mxu0 %v5446
    %8568 = vmatprep.subr.bf16.mxu0 %v5439
    %8569 = vmatpush1.bf16.msra.mxu0 %v5438
    %8570 = vmatprep.subr.bf16.mxu0 %v5559
    %8571 = vmatpush2.bf16.msra.mxu0 %v5558
    %8572 = vmatprep.subr.bf16.mxu0 %v5551
    %8573 = vmatpush2.bf16.msra.mxu0 %v5550
    %8574 = vmatprep.subr.bf16.mxu0 %v5543
    %8575 = vmatpush2.bf16.msra.mxu0 %v5542
    %8576 = vmatprep.subr.bf16.mxu0 %v5535
    %8577 = vmatpush2.bf16.msra.mxu0 %v5534
    %8578 = vmatprep.subr.bf16.mxu0 %v5527
    %8579 = vmatpush2.bf16.msra.mxu0 %v5526
    %8580 = vmatprep.subr.bf16.mxu0 %v5519
    %8581 = vmatpush2.bf16.msra.mxu0 %v5518
    %8582 = vmatprep.subr.bf16.mxu0 %v5511
    %8583 = vmatpush2.bf16.msra.mxu0 %v5510
    %8584 = vmatprep.subr.bf16.mxu0 %v5503
    %8585 = vmatpush2.bf16.msra.mxu0 %v5502
    %8586 = vmatprep.mubr.bf16.mxu0 %v8512
    %8587 = vmatmul.mubr.bf16.gmra.mxu0 %v8511
    %v8588 = vpop.f32.mrf.mxu0
    %v8589 = vadd.f32 %v8548, %v8588
    %v8590 = vpop.f32.mrf.mxu0
    %v8591 = vadd.f32 %v8550, %v8590
    %v8592 = vpop.f32.mrf.mxu0
    %v8593 = vpop.f32.mrf.mxu0
    %8594 = vdwg.mxu0
    %8595 = vmatprep.subr.bf16.mxu0 %v5369
    %8596 = vmatpush1.bf16.msra.mxu0 %v5368
    %8597 = vmatprep.subr.bf16.mxu0 %v5361
    %8598 = vmatpush1.bf16.msra.mxu0 %v5360
    %8599 = vmatprep.subr.bf16.mxu0 %v5353
    %8600 = vmatpush1.bf16.msra.mxu0 %v5352
    %8601 = vmatprep.subr.bf16.mxu0 %v5345
    %8602 = vmatpush1.bf16.msra.mxu0 %v5344
    %8603 = vmatprep.subr.bf16.mxu0 %v5337
    %8604 = vmatpush1.bf16.msra.mxu0 %v5336
    %8605 = vmatprep.subr.bf16.mxu0 %v5329
    %8606 = vmatpush1.bf16.msra.mxu0 %v5328
    %8607 = vmatprep.subr.bf16.mxu0 %v5321
    %8608 = vmatpush1.bf16.msra.mxu0 %v5320
    %8609 = vmatprep.subr.bf16.mxu0 %v5313
    %8610 = vmatpush1.bf16.msra.mxu0 %v5312
    %8611 = vmatprep.subr.bf16.mxu0 %v5433
    %8612 = vmatpush2.bf16.msra.mxu0 %v5432
    %8613 = vmatprep.subr.bf16.mxu0 %v5425
    %8614 = vmatpush2.bf16.msra.mxu0 %v5424
    %8615 = vmatprep.subr.bf16.mxu0 %v5417
    %8616 = vmatpush2.bf16.msra.mxu0 %v5416
    %8617 = vmatprep.subr.bf16.mxu0 %v5409
    %8618 = vmatpush2.bf16.msra.mxu0 %v5408
    %8619 = vmatprep.subr.bf16.mxu0 %v5401
    %8620 = vmatpush2.bf16.msra.mxu0 %v5400
    %8621 = vmatprep.subr.bf16.mxu0 %v5393
    %8622 = vmatpush2.bf16.msra.mxu0 %v5392
    %8623 = vmatprep.subr.bf16.mxu0 %v5385
    %8624 = vmatpush2.bf16.msra.mxu0 %v5384
    %8625 = vmatprep.subr.bf16.mxu0 %v5377
    %8626 = vmatpush2.bf16.msra.mxu0 %v5376
    %8627 = vmatprep.mubr.bf16.mxu0 %v8510
    %8628 = vmatmul.mubr.bf16.gmra.mxu0 %v8509
    %v8629 = vpop.f32.mrf.mxu0
    %v8630 = vadd.f32 %v5834, %v8629
    %v8631 = vpop.f32.mrf.mxu0
    %v8632 = vadd.f32 %v5838, %v8631
    %v8633 = vpop.f32.mrf.mxu0
    %v8634 = vpop.f32.mrf.mxu0
    %8635 = vdwg.mxu0
    %8636 = vmatprep.subr.bf16.mxu0 %v5497
    %8637 = vmatpush1.bf16.msra.mxu0 %v5496
    %8638 = vmatprep.subr.bf16.mxu0 %v5489
    %8639 = vmatpush1.bf16.msra.mxu0 %v5488
    %8640 = vmatprep.subr.bf16.mxu0 %v5481
    %8641 = vmatpush1.bf16.msra.mxu0 %v5480
    %8642 = vmatprep.subr.bf16.mxu0 %v5473
    %8643 = vmatpush1.bf16.msra.mxu0 %v5472
    %8644 = vmatprep.subr.bf16.mxu0 %v5465
    %8645 = vmatpush1.bf16.msra.mxu0 %v5464
    %8646 = vmatprep.subr.bf16.mxu0 %v5457
    %8647 = vmatpush1.bf16.msra.mxu0 %v5456
    %8648 = vmatprep.subr.bf16.mxu0 %v5449
    %8649 = vmatpush1.bf16.msra.mxu0 %v5448
    %8650 = vmatprep.subr.bf16.mxu0 %v5441
    %8651 = vmatpush1.bf16.msra.mxu0 %v5440
    %8652 = vmatprep.subr.bf16.mxu0 %v5561
    %8653 = vmatpush2.bf16.msra.mxu0 %v5560
    %8654 = vmatprep.subr.bf16.mxu0 %v5553
    %8655 = vmatpush2.bf16.msra.mxu0 %v5552
    %8656 = vmatprep.subr.bf16.mxu0 %v5545
    %8657 = vmatpush2.bf16.msra.mxu0 %v5544
    %8658 = vmatprep.subr.bf16.mxu0 %v5537
    %8659 = vmatpush2.bf16.msra.mxu0 %v5536
    %8660 = vmatprep.subr.bf16.mxu0 %v5529
    %8661 = vmatpush2.bf16.msra.mxu0 %v5528
    %8662 = vmatprep.subr.bf16.mxu0 %v5521
    %8663 = vmatpush2.bf16.msra.mxu0 %v5520
    %8664 = vmatprep.subr.bf16.mxu0 %v5513
    %8665 = vmatpush2.bf16.msra.mxu0 %v5512
    %8666 = vmatprep.subr.bf16.mxu0 %v5505
    %8667 = vmatpush2.bf16.msra.mxu0 %v5504
    %8668 = vmatprep.mubr.bf16.mxu0 %v8512
    %8669 = vmatmul.mubr.bf16.gmra.mxu0 %v8511
    %v8670 = vpop.f32.mrf.mxu0
    %v8671 = vadd.f32 %v8630, %v8670
    %v8672 = vpop.f32.mrf.mxu0
    %v8673 = vadd.f32 %v8632, %v8672
    %v8674 = vpop.f32.mrf.mxu0
    %v8675 = vpop.f32.mrf.mxu0
    %8676 = vdwg.mxu0
    %8677 = vmatprep.subr.bf16.mxu0 %v5371
    %8678 = vmatpush1.bf16.msra.mxu0 %v5370
    %8679 = vmatprep.subr.bf16.mxu0 %v5363
    %8680 = vmatpush1.bf16.msra.mxu0 %v5362
    %8681 = vmatprep.subr.bf16.mxu0 %v5355
    %8682 = vmatpush1.bf16.msra.mxu0 %v5354
    %8683 = vmatprep.subr.bf16.mxu0 %v5347
    %8684 = vmatpush1.bf16.msra.mxu0 %v5346
    %8685 = vmatprep.subr.bf16.mxu0 %v5339
    %8686 = vmatpush1.bf16.msra.mxu0 %v5338
    %8687 = vmatprep.subr.bf16.mxu0 %v5331
    %8688 = vmatpush1.bf16.msra.mxu0 %v5330
    %8689 = vmatprep.subr.bf16.mxu0 %v5323
    %8690 = vmatpush1.bf16.msra.mxu0 %v5322
    %8691 = vmatprep.subr.bf16.mxu0 %v5315
    %8692 = vmatpush1.bf16.msra.mxu0 %v5314
    %8693 = vmatprep.subr.bf16.mxu0 %v5435
    %8694 = vmatpush2.bf16.msra.mxu0 %v5434
    %8695 = vmatprep.subr.bf16.mxu0 %v5427
    %8696 = vmatpush2.bf16.msra.mxu0 %v5426
    %8697 = vmatprep.subr.bf16.mxu0 %v5419
    %8698 = vmatpush2.bf16.msra.mxu0 %v5418
    %8699 = vmatprep.subr.bf16.mxu0 %v5411
    %8700 = vmatpush2.bf16.msra.mxu0 %v5410
    %8701 = vmatprep.subr.bf16.mxu0 %v5403
    %8702 = vmatpush2.bf16.msra.mxu0 %v5402
    %8703 = vmatprep.subr.bf16.mxu0 %v5395
    %8704 = vmatpush2.bf16.msra.mxu0 %v5394
    %8705 = vmatprep.subr.bf16.mxu0 %v5387
    %8706 = vmatpush2.bf16.msra.mxu0 %v5386
    %8707 = vmatprep.subr.bf16.mxu0 %v5379
    %8708 = vmatpush2.bf16.msra.mxu0 %v5378
    %8709 = vmatprep.mubr.bf16.mxu0 %v8510
    %8710 = vmatmul.mubr.bf16.gmra.mxu0 %v8509
    %v8711 = vpop.f32.mrf.mxu0
    %v8712 = vadd.f32 %v5842, %v8711
    %v8713 = vpop.f32.mrf.mxu0
    %v8714 = vadd.f32 %v5846, %v8713
    %v8715 = vpop.f32.mrf.mxu0
    %v8716 = vpop.f32.mrf.mxu0
    %8717 = vdwg.mxu0
    %8718 = vmatprep.subr.bf16.mxu0 %v5499
    %8719 = vmatpush1.bf16.msra.mxu0 %v5498
    %8720 = vmatprep.subr.bf16.mxu0 %v5491
    %8721 = vmatpush1.bf16.msra.mxu0 %v5490
    %8722 = vmatprep.subr.bf16.mxu0 %v5483
    %8723 = vmatpush1.bf16.msra.mxu0 %v5482
    %8724 = vmatprep.subr.bf16.mxu0 %v5475
    %8725 = vmatpush1.bf16.msra.mxu0 %v5474
    %8726 = vmatprep.subr.bf16.mxu0 %v5467
    %8727 = vmatpush1.bf16.msra.mxu0 %v5466
    %8728 = vmatprep.subr.bf16.mxu0 %v5459
    %8729 = vmatpush1.bf16.msra.mxu0 %v5458
    %8730 = vmatprep.subr.bf16.mxu0 %v5451
    %8731 = vmatpush1.bf16.msra.mxu0 %v5450
    %8732 = vmatprep.subr.bf16.mxu0 %v5443
    %8733 = vmatpush1.bf16.msra.mxu0 %v5442
    %8734 = vmatprep.subr.bf16.mxu0 %v5563
    %8735 = vmatpush2.bf16.msra.mxu0 %v5562
    %8736 = vmatprep.subr.bf16.mxu0 %v5555
    %8737 = vmatpush2.bf16.msra.mxu0 %v5554
    %8738 = vmatprep.subr.bf16.mxu0 %v5547
    %8739 = vmatpush2.bf16.msra.mxu0 %v5546
    %8740 = vmatprep.subr.bf16.mxu0 %v5539
    %8741 = vmatpush2.bf16.msra.mxu0 %v5538
    %8742 = vmatprep.subr.bf16.mxu0 %v5531
    %8743 = vmatpush2.bf16.msra.mxu0 %v5530
    %8744 = vmatprep.subr.bf16.mxu0 %v5523
    %8745 = vmatpush2.bf16.msra.mxu0 %v5522
    %8746 = vmatprep.subr.bf16.mxu0 %v5515
    %8747 = vmatpush2.bf16.msra.mxu0 %v5514
    %8748 = vmatprep.subr.bf16.mxu0 %v5507
    %8749 = vmatpush2.bf16.msra.mxu0 %v5506
    %8750 = vmatprep.mubr.bf16.mxu0 %v8512
    %8751 = vmatmul.mubr.bf16.gmra.mxu0 %v8511
    %v8752 = vpop.f32.mrf.mxu0
    %v8753 = vadd.f32 %v8712, %v8752
    %v8754 = vpop.f32.mrf.mxu0
    %v8755 = vadd.f32 %v8714, %v8754
    %v8756 = vpop.f32.mrf.mxu0
    %v8757 = vpop.f32.mrf.mxu0
    %8758 = vdwg.mxu0
    %8759 = vmatprep.subr.bf16.mxu0 %v5373
    %8760 = vmatpush1.bf16.msra.mxu0 %v5372
    %8761 = vmatprep.subr.bf16.mxu0 %v5365
    %8762 = vmatpush1.bf16.msra.mxu0 %v5364
    %8763 = vmatprep.subr.bf16.mxu0 %v5357
    %8764 = vmatpush1.bf16.msra.mxu0 %v5356
    %8765 = vmatprep.subr.bf16.mxu0 %v5349
    %8766 = vmatpush1.bf16.msra.mxu0 %v5348
    %8767 = vmatprep.subr.bf16.mxu0 %v5341
    %8768 = vmatpush1.bf16.msra.mxu0 %v5340
    %8769 = vmatprep.subr.bf16.mxu0 %v5333
    %8770 = vmatpush1.bf16.msra.mxu0 %v5332
    %8771 = vmatprep.subr.bf16.mxu0 %v5325
    %8772 = vmatpush1.bf16.msra.mxu0 %v5324
    %8773 = vmatprep.subr.bf16.mxu0 %v5317
    %8774 = vmatpush1.bf16.msra.mxu0 %v5316
    %8775 = vmatprep.subr.bf16.mxu0 %v5437
    %8776 = vmatpush2.bf16.msra.mxu0 %v5436
    %8777 = vmatprep.subr.bf16.mxu0 %v5429
    %8778 = vmatpush2.bf16.msra.mxu0 %v5428
    %8779 = vmatprep.subr.bf16.mxu0 %v5421
    %8780 = vmatpush2.bf16.msra.mxu0 %v5420
    %8781 = vmatprep.subr.bf16.mxu0 %v5413
    %8782 = vmatpush2.bf16.msra.mxu0 %v5412
    %8783 = vmatprep.subr.bf16.mxu0 %v5405
    %8784 = vmatpush2.bf16.msra.mxu0 %v5404
    %8785 = vmatprep.subr.bf16.mxu0 %v5397
    %8786 = vmatpush2.bf16.msra.mxu0 %v5396
    %8787 = vmatprep.subr.bf16.mxu0 %v5389
    %8788 = vmatpush2.bf16.msra.mxu0 %v5388
    %8789 = vmatprep.subr.bf16.mxu0 %v5381
    %8790 = vmatpush2.bf16.msra.mxu0 %v5380
    %8791 = vmatprep.mubr.bf16.mxu0 %v8510
    %8792 = vmatmul.mubr.bf16.gmra.mxu0 %v8509
    %v8793 = vpop.f32.mrf.mxu0
    %v8794 = vadd.f32 %v5850, %v8793
    %v8795 = vpop.f32.mrf.mxu0
    %v8796 = vadd.f32 %v5854, %v8795
    %v8797 = vpop.f32.mrf.mxu0
    %v8798 = vpop.f32.mrf.mxu0
    %8799 = vdwg.mxu0
    %8800 = vmatprep.subr.bf16.mxu0 %v5501
    %8801 = vmatpush1.bf16.msra.mxu0 %v5500
    %8802 = vmatprep.subr.bf16.mxu0 %v5493
    %8803 = vmatpush1.bf16.msra.mxu0 %v5492
    %8804 = vmatprep.subr.bf16.mxu0 %v5485
    %8805 = vmatpush1.bf16.msra.mxu0 %v5484
    %8806 = vmatprep.subr.bf16.mxu0 %v5477
    %8807 = vmatpush1.bf16.msra.mxu0 %v5476
    %8808 = vmatprep.subr.bf16.mxu0 %v5469
    %8809 = vmatpush1.bf16.msra.mxu0 %v5468
    %8810 = vmatprep.subr.bf16.mxu0 %v5461
    %8811 = vmatpush1.bf16.msra.mxu0 %v5460
    %8812 = vmatprep.subr.bf16.mxu0 %v5453
    %8813 = vmatpush1.bf16.msra.mxu0 %v5452
    %8814 = vmatprep.subr.bf16.mxu0 %v5445
    %8815 = vmatpush1.bf16.msra.mxu0 %v5444
    %8816 = vmatprep.subr.bf16.mxu0 %v5565
    %8817 = vmatpush2.bf16.msra.mxu0 %v5564
    %8818 = vmatprep.subr.bf16.mxu0 %v5557
    %8819 = vmatpush2.bf16.msra.mxu0 %v5556
    %8820 = vmatprep.subr.bf16.mxu0 %v5549
    %8821 = vmatpush2.bf16.msra.mxu0 %v5548
    %8822 = vmatprep.subr.bf16.mxu0 %v5541
    %8823 = vmatpush2.bf16.msra.mxu0 %v5540
    %8824 = vmatprep.subr.bf16.mxu0 %v5533
    %8825 = vmatpush2.bf16.msra.mxu0 %v5532
    %8826 = vmatprep.subr.bf16.mxu0 %v5525
    %8827 = vmatpush2.bf16.msra.mxu0 %v5524
    %8828 = vmatprep.subr.bf16.mxu0 %v5517
    %8829 = vmatpush2.bf16.msra.mxu0 %v5516
    %8830 = vmatprep.subr.bf16.mxu0 %v5509
    %8831 = vmatpush2.bf16.msra.mxu0 %v5508
    %8832 = vmatprep.mubr.bf16.mxu0 %v8512
    %8833 = vmatmul.mubr.bf16.gmra.mxu0 %v8511
    %v8834 = vpop.f32.mrf.mxu0
    %v8835 = vadd.f32 %v8794, %v8834
    %v8836 = vpop.f32.mrf.mxu0
    %v8837 = vadd.f32 %v8796, %v8836
    %v8838 = vpop.f32.mrf.mxu0
    %v8839 = vpop.f32.mrf.mxu0
    %8840 = vdwg.mxu0
    %v8841 = vxor.u32 %v8589, 2147483648
    %v8842 = vxor.u32 %v8591, 2147483648
    %v8843 = vxor.u32 %v8671, 2147483648
    %v8844 = vxor.u32 %v8673, 2147483648
    %v8845 = vxor.u32 %v8753, 2147483648
    %v8846 = vxor.u32 %v8755, 2147483648
    %v8847 = vmul.f32 %v8841, 1.442695
    %v8848 = vpow.pop %v8847
    %v8849 = vmul.f32 %v8842, 1.442695
    %v8850 = vpow.pop %v8849
    %v8851 = vmul.f32 %v8843, 1.442695
    %v8852 = vpow.pop %v8851
    %v8853 = vmul.f32 %v8844, 1.442695
    %v8854 = vpow.pop %v8853
    %v8855 = vmul.f32 %v8845, 1.442695
    %v8856 = vpow.pop %v8855
    %v8857 = vmul.f32 %v8846, 1.442695
    %v8858 = vpow.pop %v8857
    %v8859 = vadd.f32 %v8848, 1.0
    %v8860 = vadd.f32 %v8850, 1.0
    %v8861 = vadd.f32 %v8852, 1.0
    %v8862 = vadd.f32 %v8854, 1.0
    %v8863 = vadd.f32 %v8856, 1.0
    %v8864 = vadd.f32 %v8858, 1.0
    %v8865 = vrcp.pop %v8859
    %v8866 = vmul.f32 1.0, %v8865
    %v8867 = vrcp.pop %v8860
    %v8868 = vmul.f32 1.0, %v8867
    %v8869 = vrcp.pop %v8861
    %v8870 = vmul.f32 1.0, %v8869
    %v8871 = vrcp.pop %v8862
    %v8872 = vmul.f32 1.0, %v8871
    %v8873 = vrcp.pop %v8863
    %v8874 = vmul.f32 1.0, %v8873
    %v8875 = vrcp.pop %v8864
    %v8876 = vmul.f32 1.0, %v8875
    %v8877 = vtanh.pop %v8835
    %v8878 = vtanh.pop %v8837
    %v8879 = vmul.f32 %v8870, %v8224
    %v8880 = vmul.f32 %v8872, %v8225
    %v8881 = vmul.f32 %v8866, %v8877
    %v8882 = vmul.f32 %v8868, %v8878
    %v8883 = vadd.f32 %v8879, %v8881
    %v8884 = vadd.f32 %v8880, %v8882
    %v8885 = vtanh.pop %v8883
    %v8886 = vtanh.pop %v8884
    %v8887 = vmul.f32 %v8874, %v8885
    %v8888 = vmul.f32 %v8876, %v8886
    %v8891 = vcombine.low %v8887, %v8888
    %v8893 = vunpack.c.l.s4 1966171168
    %v8894 = vunpack.c.0.s8 %v8893
    %v8895 = vlaneseq
    %v8896 = vshrl.u32 %v8895, 7
    %v8897 = vsub.s32 %v8894, %v8896
    %v8898 = vrot.slane %v8891, %v8897
    %v8900 = vunpack.c.l.s4 1966171168
    %v8901 = vunpack.c.0.s8 %v8900
    %v8902 = vlaneseq
    %v8903 = vshrl.u32 %v8902, 7
    %v8904 = vsub.s32 %v8901, %v8903
    %v8905 = vrot.slane %v8898, %v8904
    %s8907 = scalar_lea.vmem [#allocation23], 4
    %8908 = vst.msk [vmem:[%s8907] ss:$8 sm:$0x3] %vm6271, %v8905
    %8909 = vst.msk [vmem:[%s8907] ss:$8 sm:$0x0] %vm6271, %v8905
    %s8910 = scalar_lea.vmem [#allocation2], 5
    %v8911 = vld [vmem:[%s8910] ss:$8 sm:$0xf]
    %v8912 = vld [vmem:[%s8910] ss:$8 sm:$0xf0]
    %v8913 = vor.u32 %v8911, %v8912
    %8914 = vmatprep.subr.bf16.mxu0 %v4074
    %8915 = vmatpush1.bf16.msra.mxu0 %v4073
    %8916 = vmatprep.subr.bf16.mxu0 %v4066
    %8917 = vmatpush1.bf16.msra.mxu0 %v4065
    %8918 = vmatprep.subr.bf16.mxu0 %v4058
    %8919 = vmatpush1.bf16.msra.mxu0 %v4057
    %8920 = vmatprep.subr.bf16.mxu0 %v4050
    %8921 = vmatpush1.bf16.msra.mxu0 %v4049
    %8922 = vmatprep.subr.bf16.mxu0 %v4042
    %8923 = vmatpush1.bf16.msra.mxu0 %v4041
    %8924 = vmatprep.subr.bf16.mxu0 %v4034
    %8925 = vmatpush1.bf16.msra.mxu0 %v4033
    %8926 = vmatprep.subr.bf16.mxu0 %v4026
    %8927 = vmatpush1.bf16.msra.mxu0 %v4025
    %8928 = vmatprep.subr.bf16.mxu0 %v4018
    %8929 = vmatpush1.bf16.msra.mxu0 %v4017
    %8930 = vmatprep.subr.bf16.mxu0 %v4138
    %8931 = vmatpush2.bf16.msra.mxu0 %v4137
    %8932 = vmatprep.subr.bf16.mxu0 %v4130
    %8933 = vmatpush2.bf16.msra.mxu0 %v4129
    %8934 = vmatprep.subr.bf16.mxu0 %v4122
    %8935 = vmatpush2.bf16.msra.mxu0 %v4121
    %8936 = vmatprep.subr.bf16.mxu0 %v4114
    %8937 = vmatpush2.bf16.msra.mxu0 %v4113
    %8938 = vmatprep.subr.bf16.mxu0 %v4106
    %8939 = vmatpush2.bf16.msra.mxu0 %v4105
    %8940 = vmatprep.subr.bf16.mxu0 %v4098
    %8941 = vmatpush2.bf16.msra.mxu0 %v4097
    %8942 = vmatprep.subr.bf16.mxu0 %v4090
    %8943 = vmatpush2.bf16.msra.mxu0 %v4089
    %8944 = vmatprep.subr.bf16.mxu0 %v4082
    %8945 = vmatpush2.bf16.msra.mxu0 %v4081
    %8946 = vmatprep.mubr.bf16.mxu0 %v8510
    %8947 = vmatmul.mubr.bf16.gmra.mxu0 %v8509
    %v8948 = vpop.f32.mrf.mxu0
    %v8949 = vadd.f32 0.0, %v8948
    %v8950 = vpop.f32.mrf.mxu0
    %v8951 = vadd.f32 0.0, %v8950
    %v8952 = vpop.f32.mrf.mxu0
    %v8953 = vpop.f32.mrf.mxu0
    %8954 = vdwg.mxu0
    %8955 = vmatprep.subr.bf16.mxu0 %v4076
    %8956 = vmatpush1.bf16.msra.mxu0 %v4075
    %8957 = vmatprep.subr.bf16.mxu0 %v4068
    %8958 = vmatpush1.bf16.msra.mxu0 %v4067
    %8959 = vmatprep.subr.bf16.mxu0 %v4060
    %8960 = vmatpush1.bf16.msra.mxu0 %v4059
    %8961 = vmatprep.subr.bf16.mxu0 %v4052
    %8962 = vmatpush1.bf16.msra.mxu0 %v4051
    %8963 = vmatprep.subr.bf16.mxu0 %v4044
    %8964 = vmatpush1.bf16.msra.mxu0 %v4043
    %8965 = vmatprep.subr.bf16.mxu0 %v4036
    %8966 = vmatpush1.bf16.msra.mxu0 %v4035
    %8967 = vmatprep.subr.bf16.mxu0 %v4028
    %8968 = vmatpush1.bf16.msra.mxu0 %v4027
    %8969 = vmatprep.subr.bf16.mxu0 %v4020
    %8970 = vmatpush1.bf16.msra.mxu0 %v4019
    %8971 = vmatprep.subr.bf16.mxu0 %v4140
    %8972 = vmatpush2.bf16.msra.mxu0 %v4139
    %8973 = vmatprep.subr.bf16.mxu0 %v4132
    %8974 = vmatpush2.bf16.msra.mxu0 %v4131
    %8975 = vmatprep.subr.bf16.mxu0 %v4124
    %8976 = vmatpush2.bf16.msra.mxu0 %v4123
    %8977 = vmatprep.subr.bf16.mxu0 %v4116
    %8978 = vmatpush2.bf16.msra.mxu0 %v4115
    %8979 = vmatprep.subr.bf16.mxu0 %v4108
    %8980 = vmatpush2.bf16.msra.mxu0 %v4107
    %8981 = vmatprep.subr.bf16.mxu0 %v4100
    %8982 = vmatpush2.bf16.msra.mxu0 %v4099
    %8983 = vmatprep.subr.bf16.mxu0 %v4092
    %8984 = vmatpush2.bf16.msra.mxu0 %v4091
    %8985 = vmatprep.subr.bf16.mxu0 %v4084
    %8986 = vmatpush2.bf16.msra.mxu0 %v4083
    %8987 = vmatprep.mubr.bf16.mxu0 %v8510
    %8988 = vmatmul.mubr.bf16.gmra.mxu0 %v8509
    %v8989 = vpop.f32.mrf.mxu0
    %v8990 = vadd.f32 0.0, %v8989
    %v8991 = vpop.f32.mrf.mxu0
    %v8992 = vadd.f32 0.0, %v8991
    %v8993 = vpop.f32.mrf.mxu0
    %v8994 = vpop.f32.mrf.mxu0
    %8995 = vdwg.mxu0
    %8996 = vmatprep.subr.bf16.mxu0 %v4078
    %8997 = vmatpush1.bf16.msra.mxu0 %v4077
    %8998 = vmatprep.subr.bf16.mxu0 %v4070
    %8999 = vmatpush1.bf16.msra.mxu0 %v4069
    %9000 = vmatprep.subr.bf16.mxu0 %v4062
    %9001 = vmatpush1.bf16.msra.mxu0 %v4061
    %9002 = vmatprep.subr.bf16.mxu0 %v4054
    %9003 = vmatpush1.bf16.msra.mxu0 %v4053
    %9004 = vmatprep.subr.bf16.mxu0 %v4046
    %9005 = vmatpush1.bf16.msra.mxu0 %v4045
    %9006 = vmatprep.subr.bf16.mxu0 %v4038
    %9007 = vmatpush1.bf16.msra.mxu0 %v4037
    %9008 = vmatprep.subr.bf16.mxu0 %v4030
    %9009 = vmatpush1.bf16.msra.mxu0 %v4029
    %9010 = vmatprep.subr.bf16.mxu0 %v4022
    %9011 = vmatpush1.bf16.msra.mxu0 %v4021
    %9012 = vmatprep.subr.bf16.mxu0 %v4142
    %9013 = vmatpush2.bf16.msra.mxu0 %v4141
    %9014 = vmatprep.subr.bf16.mxu0 %v4134
    %9015 = vmatpush2.bf16.msra.mxu0 %v4133
    %9016 = vmatprep.subr.bf16.mxu0 %v4126
    %9017 = vmatpush2.bf16.msra.mxu0 %v4125
    %9018 = vmatprep.subr.bf16.mxu0 %v4118
    %9019 = vmatpush2.bf16.msra.mxu0 %v4117
    %9020 = vmatprep.subr.bf16.mxu0 %v4110
    %9021 = vmatpush2.bf16.msra.mxu0 %v4109
    %9022 = vmatprep.subr.bf16.mxu0 %v4102
    %9023 = vmatpush2.bf16.msra.mxu0 %v4101
    %9024 = vmatprep.subr.bf16.mxu0 %v4094
    %9025 = vmatpush2.bf16.msra.mxu0 %v4093
    %9026 = vmatprep.subr.bf16.mxu0 %v4086
    %9027 = vmatpush2.bf16.msra.mxu0 %v4085
    %9028 = vmatprep.mubr.bf16.mxu0 %v8510
    %9029 = vmatmul.mubr.bf16.gmra.mxu0 %v8509
    %v9030 = vpop.f32.mrf.mxu0
    %v9031 = vadd.f32 0.0, %v9030
    %v9032 = vpop.f32.mrf.mxu0
    %v9033 = vadd.f32 0.0, %v9032
    %v9034 = vpop.f32.mrf.mxu0
    %v9035 = vpop.f32.mrf.mxu0
    %9036 = vdwg.mxu0
    %9037 = vmatprep.subr.bf16.mxu0 %v4080
    %9038 = vmatpush1.bf16.msra.mxu0 %v4079
    %9039 = vmatprep.subr.bf16.mxu0 %v4072
    %9040 = vmatpush1.bf16.msra.mxu0 %v4071
    %9041 = vmatprep.subr.bf16.mxu0 %v4064
    %9042 = vmatpush1.bf16.msra.mxu0 %v4063
    %9043 = vmatprep.subr.bf16.mxu0 %v4056
    %9044 = vmatpush1.bf16.msra.mxu0 %v4055
    %9045 = vmatprep.subr.bf16.mxu0 %v4048
    %9046 = vmatpush1.bf16.msra.mxu0 %v4047
    %9047 = vmatprep.subr.bf16.mxu0 %v4040
    %9048 = vmatpush1.bf16.msra.mxu0 %v4039
    %9049 = vmatprep.subr.bf16.mxu0 %v4032
    %9050 = vmatpush1.bf16.msra.mxu0 %v4031
    %9051 = vmatprep.subr.bf16.mxu0 %v4024
    %9052 = vmatpush1.bf16.msra.mxu0 %v4023
    %9053 = vmatprep.subr.bf16.mxu0 %v4144
    %9054 = vmatpush2.bf16.msra.mxu0 %v4143
    %9055 = vmatprep.subr.bf16.mxu0 %v4136
    %9056 = vmatpush2.bf16.msra.mxu0 %v4135
    %9057 = vmatprep.subr.bf16.mxu0 %v4128
    %9058 = vmatpush2.bf16.msra.mxu0 %v4127
    %9059 = vmatprep.subr.bf16.mxu0 %v4120
    %9060 = vmatpush2.bf16.msra.mxu0 %v4119
    %9061 = vmatprep.subr.bf16.mxu0 %v4112
    %9062 = vmatpush2.bf16.msra.mxu0 %v4111
    %9063 = vmatprep.subr.bf16.mxu0 %v4104
    %9064 = vmatpush2.bf16.msra.mxu0 %v4103
    %9065 = vmatprep.subr.bf16.mxu0 %v4096
    %9066 = vmatpush2.bf16.msra.mxu0 %v4095
    %9067 = vmatprep.subr.bf16.mxu0 %v4088
    %9068 = vmatpush2.bf16.msra.mxu0 %v4087
    %9069 = vmatprep.mubr.bf16.mxu0 %v8510
    %9070 = vmatmul.mubr.bf16.gmra.mxu0 %v8509
    %v9071 = vpop.f32.mrf.mxu0
    %v9072 = vadd.f32 0.0, %v9071
    %v9073 = vpop.f32.mrf.mxu0
    %v9074 = vadd.f32 0.0, %v9073
    %v9075 = vpop.f32.mrf.mxu0
    %v9076 = vpop.f32.mrf.mxu0
    %9077 = vdwg.mxu0
    %v9086 = vcombine.low %v8949, %v8951
    %v9087 = vcombine.low %v8990, %v8992
    %v9088 = vcombine.low %v9031, %v9033
    %v9089 = vcombine.low %v9072, %v9074
    %v9091 = vunpack.c.l.s4 1966171168
    %v9092 = vunpack.c.0.s8 %v9091
    %v9093 = vlaneseq
    %v9094 = vshrl.u32 %v9093, 7
    %v9095 = vsub.s32 %v9092, %v9094
    %v9096 = vrot.slane %v9086, %v9095
    %v9098 = vunpack.c.l.s4 1966171168
    %v9099 = vunpack.c.0.s8 %v9098
    %v9100 = vlaneseq
    %v9101 = vshrl.u32 %v9100, 7
    %v9102 = vsub.s32 %v9099, %v9101
    %v9103 = vrot.slane %v9087, %v9102
    %v9105 = vunpack.c.l.s4 1966171168
    %v9106 = vunpack.c.0.s8 %v9105
    %v9107 = vlaneseq
    %v9108 = vshrl.u32 %v9107, 7
    %v9109 = vsub.s32 %v9106, %v9108
    %v9110 = vrot.slane %v9088, %v9109
    %v9112 = vunpack.c.l.s4 1966171168
    %v9113 = vunpack.c.0.s8 %v9112
    %v9114 = vlaneseq
    %v9115 = vshrl.u32 %v9114, 7
    %v9116 = vsub.s32 %v9113, %v9115
    %v9117 = vrot.slane %v9089, %v9116
    %v9118 = vcombine.low %v9096, %v9103
    %v9119 = vcombine.low %v9110, %v9117
    %v9121 = vunpack.c.l.s4 1966171168
    %v9122 = vunpack.c.0.s8 %v9121
    %v9123 = vlaneseq
    %v9124 = vshrl.u32 %v9123, 7
    %v9125 = vsub.s32 %v9122, %v9124
    %v9126 = vrot.slane %v9118, %v9125
    %v9128 = vunpack.c.l.s4 1966171168
    %v9129 = vunpack.c.0.s8 %v9128
    %v9130 = vlaneseq
    %v9131 = vshrl.u32 %v9130, 7
    %v9132 = vsub.s32 %v9129, %v9131
    %v9133 = vrot.slane %v9119, %v9132
    %v9134 = vcombine.low %v9126, %v9133
    %v9136 = vadd.f32 %v8913, %v9134
    %v9137 = vxor.u32 %v9136, 2147483648
    %v9138 = vmul.f32 %v9137, 1.442695
    %v9139 = vpow.pop %v9138
    %v9140 = vadd.f32 %v9139, 1.0
    %v9141 = vrcp.pop %v9140
    %v9142 = vmul.f32 1.0, %v9141
    %v9144 = vrot.slane %v9136, 6
    %v9146 = vtanh.pop %v9144
    %v9148 = vrot.slane %v9142, 2
    %v9150 = vmul.f32 %v9148, %v8493
    %v9151 = vmul.f32 %v9142, %v9146
    %v9152 = vadd.f32 %v9150, %v9151
    %v9153 = vtanh.pop %v9152
    %v9154 = vrot.slane %v9142, 4
    %v9156 = vmul.f32 %v9154, %v9153
    %v9158 = vlaneseq
    %v9159 = vshrl.u32 %v9158, 7
    %v9160 = vsub.s32 0, %v9159
    %v9161 = vrot.slane %v9156, %v9160
    %v9162 = vlaneseq
    %v9163 = vshrl.u32 %v9162, 7
    %v9164 = vsub.s32 1, %v9163
    %v9165 = vrot.slane %v9156, %v9164
    %v9168 = vpack.c.bf16 %v9161, %v9161
    %v9169 = vpack.c.bf16 %v9165, %v9165
    %v9170 = vpack.c.bf16 %v8887, %v8887
    %v9171 = vpack.c.bf16 %v8888, %v8888
    %9172 = vmatprep.subr.bf16.mxu0 %v5367
    %9173 = vmatpush1.bf16.msra.mxu0 %v5366
    %9174 = vmatprep.subr.bf16.mxu0 %v5359
    %9175 = vmatpush1.bf16.msra.mxu0 %v5358
    %9176 = vmatprep.subr.bf16.mxu0 %v5351
    %9177 = vmatpush1.bf16.msra.mxu0 %v5350
    %9178 = vmatprep.subr.bf16.mxu0 %v5343
    %9179 = vmatpush1.bf16.msra.mxu0 %v5342
    %9180 = vmatprep.subr.bf16.mxu0 %v5335
    %9181 = vmatpush1.bf16.msra.mxu0 %v5334
    %9182 = vmatprep.subr.bf16.mxu0 %v5327
    %9183 = vmatpush1.bf16.msra.mxu0 %v5326
    %9184 = vmatprep.subr.bf16.mxu0 %v5319
    %9185 = vmatpush1.bf16.msra.mxu0 %v5318
    %9186 = vmatprep.subr.bf16.mxu0 %v5311
    %9187 = vmatpush1.bf16.msra.mxu0 %v5310
    %9188 = vmatprep.subr.bf16.mxu0 %v5431
    %9189 = vmatpush2.bf16.msra.mxu0 %v5430
    %9190 = vmatprep.subr.bf16.mxu0 %v5423
    %9191 = vmatpush2.bf16.msra.mxu0 %v5422
    %9192 = vmatprep.subr.bf16.mxu0 %v5415
    %9193 = vmatpush2.bf16.msra.mxu0 %v5414
    %9194 = vmatprep.subr.bf16.mxu0 %v5407
    %9195 = vmatpush2.bf16.msra.mxu0 %v5406
    %9196 = vmatprep.subr.bf16.mxu0 %v5399
    %9197 = vmatpush2.bf16.msra.mxu0 %v5398
    %9198 = vmatprep.subr.bf16.mxu0 %v5391
    %9199 = vmatpush2.bf16.msra.mxu0 %v5390
    %9200 = vmatprep.subr.bf16.mxu0 %v5383
    %9201 = vmatpush2.bf16.msra.mxu0 %v5382
    %9202 = vmatprep.subr.bf16.mxu0 %v5375
    %9203 = vmatpush2.bf16.msra.mxu0 %v5374
    %9204 = vmatprep.mubr.bf16.mxu0 %v9169
    %9205 = vmatmul.mubr.bf16.gmra.mxu0 %v9168
    %v9206 = vpop.f32.mrf.mxu0
    %v9207 = vadd.f32 %v5826, %v9206
    %v9208 = vpop.f32.mrf.mxu0
    %v9209 = vadd.f32 %v5830, %v9208
    %v9210 = vpop.f32.mrf.mxu0
    %v9211 = vpop.f32.mrf.mxu0
    %9212 = vdwg.mxu0
    %9213 = vmatprep.subr.bf16.mxu0 %v5495
    %9214 = vmatpush1.bf16.msra.mxu0 %v5494
    %9215 = vmatprep.subr.bf16.mxu0 %v5487
    %9216 = vmatpush1.bf16.msra.mxu0 %v5486
    %9217 = vmatprep.subr.bf16.mxu0 %v5479
    %9218 = vmatpush1.bf16.msra.mxu0 %v5478
    %9219 = vmatprep.subr.bf16.mxu0 %v5471
    %9220 = vmatpush1.bf16.msra.mxu0 %v5470
    %9221 = vmatprep.subr.bf16.mxu0 %v5463
    %9222 = vmatpush1.bf16.msra.mxu0 %v5462
    %9223 = vmatprep.subr.bf16.mxu0 %v5455
    %9224 = vmatpush1.bf16.msra.mxu0 %v5454
    %9225 = vmatprep.subr.bf16.mxu0 %v5447
    %9226 = vmatpush1.bf16.msra.mxu0 %v5446
    %9227 = vmatprep.subr.bf16.mxu0 %v5439
    %9228 = vmatpush1.bf16.msra.mxu0 %v5438
    %9229 = vmatprep.subr.bf16.mxu0 %v5559
    %9230 = vmatpush2.bf16.msra.mxu0 %v5558
    %9231 = vmatprep.subr.bf16.mxu0 %v5551
    %9232 = vmatpush2.bf16.msra.mxu0 %v5550
    %9233 = vmatprep.subr.bf16.mxu0 %v5543
    %9234 = vmatpush2.bf16.msra.mxu0 %v5542
    %9235 = vmatprep.subr.bf16.mxu0 %v5535
    %9236 = vmatpush2.bf16.msra.mxu0 %v5534
    %9237 = vmatprep.subr.bf16.mxu0 %v5527
    %9238 = vmatpush2.bf16.msra.mxu0 %v5526
    %9239 = vmatprep.subr.bf16.mxu0 %v5519
    %9240 = vmatpush2.bf16.msra.mxu0 %v5518
    %9241 = vmatprep.subr.bf16.mxu0 %v5511
    %9242 = vmatpush2.bf16.msra.mxu0 %v5510
    %9243 = vmatprep.subr.bf16.mxu0 %v5503
    %9244 = vmatpush2.bf16.msra.mxu0 %v5502
    %9245 = vmatprep.mubr.bf16.mxu0 %v9171
    %9246 = vmatmul.mubr.bf16.gmra.mxu0 %v9170
    %v9247 = vpop.f32.mrf.mxu0
    %v9248 = vadd.f32 %v9207, %v9247
    %v9249 = vpop.f32.mrf.mxu0
    %v9250 = vadd.f32 %v9209, %v9249
    %v9251 = vpop.f32.mrf.mxu0
    %v9252 = vpop.f32.mrf.mxu0
    %9253 = vdwg.mxu0
    %9254 = vmatprep.subr.bf16.mxu0 %v5369
    %9255 = vmatpush1.bf16.msra.mxu0 %v5368
    %9256 = vmatprep.subr.bf16.mxu0 %v5361
    %9257 = vmatpush1.bf16.msra.mxu0 %v5360
    %9258 = vmatprep.subr.bf16.mxu0 %v5353
    %9259 = vmatpush1.bf16.msra.mxu0 %v5352
    %9260 = vmatprep.subr.bf16.mxu0 %v5345
    %9261 = vmatpush1.bf16.msra.mxu0 %v5344
    %9262 = vmatprep.subr.bf16.mxu0 %v5337
    %9263 = vmatpush1.bf16.msra.mxu0 %v5336
    %9264 = vmatprep.subr.bf16.mxu0 %v5329
    %9265 = vmatpush1.bf16.msra.mxu0 %v5328
    %9266 = vmatprep.subr.bf16.mxu0 %v5321
    %9267 = vmatpush1.bf16.msra.mxu0 %v5320
    %9268 = vmatprep.subr.bf16.mxu0 %v5313
    %9269 = vmatpush1.bf16.msra.mxu0 %v5312
    %9270 = vmatprep.subr.bf16.mxu0 %v5433
    %9271 = vmatpush2.bf16.msra.mxu0 %v5432
    %9272 = vmatprep.subr.bf16.mxu0 %v5425
    %9273 = vmatpush2.bf16.msra.mxu0 %v5424
    %9274 = vmatprep.subr.bf16.mxu0 %v5417
    %9275 = vmatpush2.bf16.msra.mxu0 %v5416
    %9276 = vmatprep.subr.bf16.mxu0 %v5409
    %9277 = vmatpush2.bf16.msra.mxu0 %v5408
    %9278 = vmatprep.subr.bf16.mxu0 %v5401
    %9279 = vmatpush2.bf16.msra.mxu0 %v5400
    %9280 = vmatprep.subr.bf16.mxu0 %v5393
    %9281 = vmatpush2.bf16.msra.mxu0 %v5392
    %9282 = vmatprep.subr.bf16.mxu0 %v5385
    %9283 = vmatpush2.bf16.msra.mxu0 %v5384
    %9284 = vmatprep.subr.bf16.mxu0 %v5377
    %9285 = vmatpush2.bf16.msra.mxu0 %v5376
    %9286 = vmatprep.mubr.bf16.mxu0 %v9169
    %9287 = vmatmul.mubr.bf16.gmra.mxu0 %v9168
    %v9288 = vpop.f32.mrf.mxu0
    %v9289 = vadd.f32 %v5834, %v9288
    %v9290 = vpop.f32.mrf.mxu0
    %v9291 = vadd.f32 %v5838, %v9290
    %v9292 = vpop.f32.mrf.mxu0
    %v9293 = vpop.f32.mrf.mxu0
    %9294 = vdwg.mxu0
    %9295 = vmatprep.subr.bf16.mxu0 %v5497
    %9296 = vmatpush1.bf16.msra.mxu0 %v5496
    %9297 = vmatprep.subr.bf16.mxu0 %v5489
    %9298 = vmatpush1.bf16.msra.mxu0 %v5488
    %9299 = vmatprep.subr.bf16.mxu0 %v5481
    %9300 = vmatpush1.bf16.msra.mxu0 %v5480
    %9301 = vmatprep.subr.bf16.mxu0 %v5473
    %9302 = vmatpush1.bf16.msra.mxu0 %v5472
    %9303 = vmatprep.subr.bf16.mxu0 %v5465
    %9304 = vmatpush1.bf16.msra.mxu0 %v5464
    %9305 = vmatprep.subr.bf16.mxu0 %v5457
    %9306 = vmatpush1.bf16.msra.mxu0 %v5456
    %9307 = vmatprep.subr.bf16.mxu0 %v5449
    %9308 = vmatpush1.bf16.msra.mxu0 %v5448
    %9309 = vmatprep.subr.bf16.mxu0 %v5441
    %9310 = vmatpush1.bf16.msra.mxu0 %v5440
    %9311 = vmatprep.subr.bf16.mxu0 %v5561
    %9312 = vmatpush2.bf16.msra.mxu0 %v5560
    %9313 = vmatprep.subr.bf16.mxu0 %v5553
    %9314 = vmatpush2.bf16.msra.mxu0 %v5552
    %9315 = vmatprep.subr.bf16.mxu0 %v5545
    %9316 = vmatpush2.bf16.msra.mxu0 %v5544
    %9317 = vmatprep.subr.bf16.mxu0 %v5537
    %9318 = vmatpush2.bf16.msra.mxu0 %v5536
    %9319 = vmatprep.subr.bf16.mxu0 %v5529
    %9320 = vmatpush2.bf16.msra.mxu0 %v5528
    %9321 = vmatprep.subr.bf16.mxu0 %v5521
    %9322 = vmatpush2.bf16.msra.mxu0 %v5520
    %9323 = vmatprep.subr.bf16.mxu0 %v5513
    %9324 = vmatpush2.bf16.msra.mxu0 %v5512
    %9325 = vmatprep.subr.bf16.mxu0 %v5505
    %9326 = vmatpush2.bf16.msra.mxu0 %v5504
    %9327 = vmatprep.mubr.bf16.mxu0 %v9171
    %9328 = vmatmul.mubr.bf16.gmra.mxu0 %v9170
    %v9329 = vpop.f32.mrf.mxu0
    %v9330 = vadd.f32 %v9289, %v9329
    %v9331 = vpop.f32.mrf.mxu0
    %v9332 = vadd.f32 %v9291, %v9331
    %v9333 = vpop.f32.mrf.mxu0
    %v9334 = vpop.f32.mrf.mxu0
    %9335 = vdwg.mxu0
    %9336 = vmatprep.subr.bf16.mxu0 %v5371
    %9337 = vmatpush1.bf16.msra.mxu0 %v5370
    %9338 = vmatprep.subr.bf16.mxu0 %v5363
    %9339 = vmatpush1.bf16.msra.mxu0 %v5362
    %9340 = vmatprep.subr.bf16.mxu0 %v5355
    %9341 = vmatpush1.bf16.msra.mxu0 %v5354
    %9342 = vmatprep.subr.bf16.mxu0 %v5347
    %9343 = vmatpush1.bf16.msra.mxu0 %v5346
    %9344 = vmatprep.subr.bf16.mxu0 %v5339
    %9345 = vmatpush1.bf16.msra.mxu0 %v5338
    %9346 = vmatprep.subr.bf16.mxu0 %v5331
    %9347 = vmatpush1.bf16.msra.mxu0 %v5330
    %9348 = vmatprep.subr.bf16.mxu0 %v5323
    %9349 = vmatpush1.bf16.msra.mxu0 %v5322
    %9350 = vmatprep.subr.bf16.mxu0 %v5315
    %9351 = vmatpush1.bf16.msra.mxu0 %v5314
    %9352 = vmatprep.subr.bf16.mxu0 %v5435
    %9353 = vmatpush2.bf16.msra.mxu0 %v5434
    %9354 = vmatprep.subr.bf16.mxu0 %v5427
    %9355 = vmatpush2.bf16.msra.mxu0 %v5426
    %9356 = vmatprep.subr.bf16.mxu0 %v5419
    %9357 = vmatpush2.bf16.msra.mxu0 %v5418
    %9358 = vmatprep.subr.bf16.mxu0 %v5411
    %9359 = vmatpush2.bf16.msra.mxu0 %v5410
    %9360 = vmatprep.subr.bf16.mxu0 %v5403
    %9361 = vmatpush2.bf16.msra.mxu0 %v5402
    %9362 = vmatprep.subr.bf16.mxu0 %v5395
    %9363 = vmatpush2.bf16.msra.mxu0 %v5394
    %9364 = vmatprep.subr.bf16.mxu0 %v5387
    %9365 = vmatpush2.bf16.msra.mxu0 %v5386
    %9366 = vmatprep.subr.bf16.mxu0 %v5379
    %9367 = vmatpush2.bf16.msra.mxu0 %v5378
    %9368 = vmatprep.mubr.bf16.mxu0 %v9169
    %9369 = vmatmul.mubr.bf16.gmra.mxu0 %v9168
    %v9370 = vpop.f32.mrf.mxu0
    %v9371 = vadd.f32 %v5842, %v9370
    %v9372 = vpop.f32.mrf.mxu0
    %v9373 = vadd.f32 %v5846, %v9372
    %v9374 = vpop.f32.mrf.mxu0
    %v9375 = vpop.f32.mrf.mxu0
    %9376 = vdwg.mxu0
    %9377 = vmatprep.subr.bf16.mxu0 %v5499
    %9378 = vmatpush1.bf16.msra.mxu0 %v5498
    %9379 = vmatprep.subr.bf16.mxu0 %v5491
    %9380 = vmatpush1.bf16.msra.mxu0 %v5490
    %9381 = vmatprep.subr.bf16.mxu0 %v5483
    %9382 = vmatpush1.bf16.msra.mxu0 %v5482
    %9383 = vmatprep.subr.bf16.mxu0 %v5475
    %9384 = vmatpush1.bf16.msra.mxu0 %v5474
    %9385 = vmatprep.subr.bf16.mxu0 %v5467
    %9386 = vmatpush1.bf16.msra.mxu0 %v5466
    %9387 = vmatprep.subr.bf16.mxu0 %v5459
    %9388 = vmatpush1.bf16.msra.mxu0 %v5458
    %9389 = vmatprep.subr.bf16.mxu0 %v5451
    %9390 = vmatpush1.bf16.msra.mxu0 %v5450
    %9391 = vmatprep.subr.bf16.mxu0 %v5443
    %9392 = vmatpush1.bf16.msra.mxu0 %v5442
    %9393 = vmatprep.subr.bf16.mxu0 %v5563
    %9394 = vmatpush2.bf16.msra.mxu0 %v5562
    %9395 = vmatprep.subr.bf16.mxu0 %v5555
    %9396 = vmatpush2.bf16.msra.mxu0 %v5554
    %9397 = vmatprep.subr.bf16.mxu0 %v5547
    %9398 = vmatpush2.bf16.msra.mxu0 %v5546
    %9399 = vmatprep.subr.bf16.mxu0 %v5539
    %9400 = vmatpush2.bf16.msra.mxu0 %v5538
    %9401 = vmatprep.subr.bf16.mxu0 %v5531
    %9402 = vmatpush2.bf16.msra.mxu0 %v5530
    %9403 = vmatprep.subr.bf16.mxu0 %v5523
    %9404 = vmatpush2.bf16.msra.mxu0 %v5522
    %9405 = vmatprep.subr.bf16.mxu0 %v5515
    %9406 = vmatpush2.bf16.msra.mxu0 %v5514
    %9407 = vmatprep.subr.bf16.mxu0 %v5507
    %9408 = vmatpush2.bf16.msra.mxu0 %v5506
    %9409 = vmatprep.mubr.bf16.mxu0 %v9171
    %9410 = vmatmul.mubr.bf16.gmra.mxu0 %v9170
    %v9411 = vpop.f32.mrf.mxu0
    %v9412 = vadd.f32 %v9371, %v9411
    %v9413 = vpop.f32.mrf.mxu0
    %v9414 = vadd.f32 %v9373, %v9413
    %v9415 = vpop.f32.mrf.mxu0
    %v9416 = vpop.f32.mrf.mxu0
    %9417 = vdwg.mxu0
    %9418 = vmatprep.subr.bf16.mxu0 %v5373
    %9419 = vmatpush1.bf16.msra.mxu0 %v5372
    %9420 = vmatprep.subr.bf16.mxu0 %v5365
    %9421 = vmatpush1.bf16.msra.mxu0 %v5364
    %9422 = vmatprep.subr.bf16.mxu0 %v5357
    %9423 = vmatpush1.bf16.msra.mxu0 %v5356
    %9424 = vmatprep.subr.bf16.mxu0 %v5349
    %9425 = vmatpush1.bf16.msra.mxu0 %v5348
    %9426 = vmatprep.subr.bf16.mxu0 %v5341
    %9427 = vmatpush1.bf16.msra.mxu0 %v5340
    %9428 = vmatprep.subr.bf16.mxu0 %v5333
    %9429 = vmatpush1.bf16.msra.mxu0 %v5332
    %9430 = vmatprep.subr.bf16.mxu0 %v5325
    %9431 = vmatpush1.bf16.msra.mxu0 %v5324
    %9432 = vmatprep.subr.bf16.mxu0 %v5317
    %9433 = vmatpush1.bf16.msra.mxu0 %v5316
    %9434 = vmatprep.subr.bf16.mxu0 %v5437
    %9435 = vmatpush2.bf16.msra.mxu0 %v5436
    %9436 = vmatprep.subr.bf16.mxu0 %v5429
    %9437 = vmatpush2.bf16.msra.mxu0 %v5428
    %9438 = vmatprep.subr.bf16.mxu0 %v5421
    %9439 = vmatpush2.bf16.msra.mxu0 %v5420
    %9440 = vmatprep.subr.bf16.mxu0 %v5413
    %9441 = vmatpush2.bf16.msra.mxu0 %v5412
    %9442 = vmatprep.subr.bf16.mxu0 %v5405
    %9443 = vmatpush2.bf16.msra.mxu0 %v5404
    %9444 = vmatprep.subr.bf16.mxu0 %v5397
    %9445 = vmatpush2.bf16.msra.mxu0 %v5396
    %9446 = vmatprep.subr.bf16.mxu0 %v5389
    %9447 = vmatpush2.bf16.msra.mxu0 %v5388
    %9448 = vmatprep.subr.bf16.mxu0 %v5381
    %9449 = vmatpush2.bf16.msra.mxu0 %v5380
    %9450 = vmatprep.mubr.bf16.mxu0 %v9169
    %9451 = vmatmul.mubr.bf16.gmra.mxu0 %v9168
    %v9452 = vpop.f32.mrf.mxu0
    %v9453 = vadd.f32 %v5850, %v9452
    %v9454 = vpop.f32.mrf.mxu0
    %v9455 = vadd.f32 %v5854, %v9454
    %v9456 = vpop.f32.mrf.mxu0
    %v9457 = vpop.f32.mrf.mxu0
    %9458 = vdwg.mxu0
    %9459 = vmatprep.subr.bf16.mxu0 %v5501
    %9460 = vmatpush1.bf16.msra.mxu0 %v5500
    %9461 = vmatprep.subr.bf16.mxu0 %v5493
    %9462 = vmatpush1.bf16.msra.mxu0 %v5492
    %9463 = vmatprep.subr.bf16.mxu0 %v5485
    %9464 = vmatpush1.bf16.msra.mxu0 %v5484
    %9465 = vmatprep.subr.bf16.mxu0 %v5477
    %9466 = vmatpush1.bf16.msra.mxu0 %v5476
    %9467 = vmatprep.subr.bf16.mxu0 %v5469
    %9468 = vmatpush1.bf16.msra.mxu0 %v5468
    %9469 = vmatprep.subr.bf16.mxu0 %v5461
    %9470 = vmatpush1.bf16.msra.mxu0 %v5460
    %9471 = vmatprep.subr.bf16.mxu0 %v5453
    %9472 = vmatpush1.bf16.msra.mxu0 %v5452
    %9473 = vmatprep.subr.bf16.mxu0 %v5445
    %9474 = vmatpush1.bf16.msra.mxu0 %v5444
    %9475 = vmatprep.subr.bf16.mxu0 %v5565
    %9476 = vmatpush2.bf16.msra.mxu0 %v5564
    %9477 = vmatprep.subr.bf16.mxu0 %v5557
    %9478 = vmatpush2.bf16.msra.mxu0 %v5556
    %9479 = vmatprep.subr.bf16.mxu0 %v5549
    %9480 = vmatpush2.bf16.msra.mxu0 %v5548
    %9481 = vmatprep.subr.bf16.mxu0 %v5541
    %9482 = vmatpush2.bf16.msra.mxu0 %v5540
    %9483 = vmatprep.subr.bf16.mxu0 %v5533
    %9484 = vmatpush2.bf16.msra.mxu0 %v5532
    %9485 = vmatprep.subr.bf16.mxu0 %v5525
    %9486 = vmatpush2.bf16.msra.mxu0 %v5524
    %9487 = vmatprep.subr.bf16.mxu0 %v5517
    %9488 = vmatpush2.bf16.msra.mxu0 %v5516
    %9489 = vmatprep.subr.bf16.mxu0 %v5509
    %9490 = vmatpush2.bf16.msra.mxu0 %v5508
    %9491 = vmatprep.mubr.bf16.mxu0 %v9171
    %9492 = vmatmul.mubr.bf16.gmra.mxu0 %v9170
    %v9493 = vpop.f32.mrf.mxu0
    %v9494 = vadd.f32 %v9453, %v9493
    %v9495 = vpop.f32.mrf.mxu0
    %v9496 = vadd.f32 %v9455, %v9495
    %v9497 = vpop.f32.mrf.mxu0
    %v9498 = vpop.f32.mrf.mxu0
    %9499 = vdwg.mxu0
    %v9500 = vxor.u32 %v9248, 2147483648
    %v9501 = vxor.u32 %v9250, 2147483648
    %v9502 = vxor.u32 %v9330, 2147483648
    %v9503 = vxor.u32 %v9332, 2147483648
    %v9504 = vxor.u32 %v9412, 2147483648
    %v9505 = vxor.u32 %v9414, 2147483648
    %v9506 = vmul.f32 %v9500, 1.442695
    %v9507 = vpow.pop %v9506
    %v9508 = vmul.f32 %v9501, 1.442695
    %v9509 = vpow.pop %v9508
    %v9510 = vmul.f32 %v9502, 1.442695
    %v9511 = vpow.pop %v9510
    %v9512 = vmul.f32 %v9503, 1.442695
    %v9513 = vpow.pop %v9512
    %v9514 = vmul.f32 %v9504, 1.442695
    %v9515 = vpow.pop %v9514
    %v9516 = vmul.f32 %v9505, 1.442695
    %v9517 = vpow.pop %v9516
    %v9518 = vadd.f32 %v9507, 1.0
    %v9519 = vadd.f32 %v9509, 1.0
    %v9520 = vadd.f32 %v9511, 1.0
    %v9521 = vadd.f32 %v9513, 1.0
    %v9522 = vadd.f32 %v9515, 1.0
    %v9523 = vadd.f32 %v9517, 1.0
    %v9524 = vrcp.pop %v9518
    %v9525 = vmul.f32 1.0, %v9524
    %v9526 = vrcp.pop %v9519
    %v9527 = vmul.f32 1.0, %v9526
    %v9528 = vrcp.pop %v9520
    %v9529 = vmul.f32 1.0, %v9528
    %v9530 = vrcp.pop %v9521
    %v9531 = vmul.f32 1.0, %v9530
    %v9532 = vrcp.pop %v9522
    %v9533 = vmul.f32 1.0, %v9532
    %v9534 = vrcp.pop %v9523
    %v9535 = vmul.f32 1.0, %v9534
    %v9536 = vtanh.pop %v9494
    %v9537 = vtanh.pop %v9496
    %v9538 = vmul.f32 %v9529, %v8883
    %v9539 = vmul.f32 %v9531, %v8884
    %v9540 = vmul.f32 %v9525, %v9536
    %v9541 = vmul.f32 %v9527, %v9537
    %v9542 = vadd.f32 %v9538, %v9540
    %v9543 = vadd.f32 %v9539, %v9541
    %v9544 = vtanh.pop %v9542
    %v9545 = vtanh.pop %v9543
    %v9546 = vmul.f32 %v9533, %v9544
    %v9547 = vmul.f32 %v9535, %v9545
    %v9550 = vcombine.low %v9546, %v9547
    %v9552 = vunpack.c.l.s4 1966171168
    %v9553 = vunpack.c.0.s8 %v9552
    %v9554 = vlaneseq
    %v9555 = vshrl.u32 %v9554, 7
    %v9556 = vsub.s32 %v9553, %v9555
    %v9557 = vrot.slane %v9550, %v9556
    %v9559 = vunpack.c.l.s4 1966171168
    %v9560 = vunpack.c.0.s8 %v9559
    %v9561 = vlaneseq
    %v9562 = vshrl.u32 %v9561, 7
    %v9563 = vsub.s32 %v9560, %v9562
    %v9564 = vrot.slane %v9557, %v9563
    %s9566 = scalar_lea.vmem [#allocation23], 5
    %9567 = vst.msk [vmem:[%s9566] ss:$8 sm:$0x3] %vm6271, %v9564
    %9568 = vst.msk [vmem:[%s9566] ss:$8 sm:$0x0] %vm6271, %v9564
    %s9569 = scalar_lea.vmem [#allocation2], 6
    %v9570 = vld [vmem:[%s9569] ss:$8 sm:$0xf]
    %v9571 = vld [vmem:[%s9569] ss:$8 sm:$0xf0]
    %v9572 = vor.u32 %v9570, %v9571
    %9573 = vmatprep.subr.bf16.mxu0 %v4074
    %9574 = vmatpush1.bf16.msra.mxu0 %v4073
    %9575 = vmatprep.subr.bf16.mxu0 %v4066
    %9576 = vmatpush1.bf16.msra.mxu0 %v4065
    %9577 = vmatprep.subr.bf16.mxu0 %v4058
    %9578 = vmatpush1.bf16.msra.mxu0 %v4057
    %9579 = vmatprep.subr.bf16.mxu0 %v4050
    %9580 = vmatpush1.bf16.msra.mxu0 %v4049
    %9581 = vmatprep.subr.bf16.mxu0 %v4042
    %9582 = vmatpush1.bf16.msra.mxu0 %v4041
    %9583 = vmatprep.subr.bf16.mxu0 %v4034
    %9584 = vmatpush1.bf16.msra.mxu0 %v4033
    %9585 = vmatprep.subr.bf16.mxu0 %v4026
    %9586 = vmatpush1.bf16.msra.mxu0 %v4025
    %9587 = vmatprep.subr.bf16.mxu0 %v4018
    %9588 = vmatpush1.bf16.msra.mxu0 %v4017
    %9589 = vmatprep.subr.bf16.mxu0 %v4138
    %9590 = vmatpush2.bf16.msra.mxu0 %v4137
    %9591 = vmatprep.subr.bf16.mxu0 %v4130
    %9592 = vmatpush2.bf16.msra.mxu0 %v4129
    %9593 = vmatprep.subr.bf16.mxu0 %v4122
    %9594 = vmatpush2.bf16.msra.mxu0 %v4121
    %9595 = vmatprep.subr.bf16.mxu0 %v4114
    %9596 = vmatpush2.bf16.msra.mxu0 %v4113
    %9597 = vmatprep.subr.bf16.mxu0 %v4106
    %9598 = vmatpush2.bf16.msra.mxu0 %v4105
    %9599 = vmatprep.subr.bf16.mxu0 %v4098
    %9600 = vmatpush2.bf16.msra.mxu0 %v4097
    %9601 = vmatprep.subr.bf16.mxu0 %v4090
    %9602 = vmatpush2.bf16.msra.mxu0 %v4089
    %9603 = vmatprep.subr.bf16.mxu0 %v4082
    %9604 = vmatpush2.bf16.msra.mxu0 %v4081
    %9605 = vmatprep.mubr.bf16.mxu0 %v9169
    %9606 = vmatmul.mubr.bf16.gmra.mxu0 %v9168
    %v9607 = vpop.f32.mrf.mxu0
    %v9608 = vadd.f32 0.0, %v9607
    %v9609 = vpop.f32.mrf.mxu0
    %v9610 = vadd.f32 0.0, %v9609
    %v9611 = vpop.f32.mrf.mxu0
    %v9612 = vpop.f32.mrf.mxu0
    %9613 = vdwg.mxu0
    %9614 = vmatprep.subr.bf16.mxu0 %v4076
    %9615 = vmatpush1.bf16.msra.mxu0 %v4075
    %9616 = vmatprep.subr.bf16.mxu0 %v4068
    %9617 = vmatpush1.bf16.msra.mxu0 %v4067
    %9618 = vmatprep.subr.bf16.mxu0 %v4060
    %9619 = vmatpush1.bf16.msra.mxu0 %v4059
    %9620 = vmatprep.subr.bf16.mxu0 %v4052
    %9621 = vmatpush1.bf16.msra.mxu0 %v4051
    %9622 = vmatprep.subr.bf16.mxu0 %v4044
    %9623 = vmatpush1.bf16.msra.mxu0 %v4043
    %9624 = vmatprep.subr.bf16.mxu0 %v4036
    %9625 = vmatpush1.bf16.msra.mxu0 %v4035
    %9626 = vmatprep.subr.bf16.mxu0 %v4028
    %9627 = vmatpush1.bf16.msra.mxu0 %v4027
    %9628 = vmatprep.subr.bf16.mxu0 %v4020
    %9629 = vmatpush1.bf16.msra.mxu0 %v4019
    %9630 = vmatprep.subr.bf16.mxu0 %v4140
    %9631 = vmatpush2.bf16.msra.mxu0 %v4139
    %9632 = vmatprep.subr.bf16.mxu0 %v4132
    %9633 = vmatpush2.bf16.msra.mxu0 %v4131
    %9634 = vmatprep.subr.bf16.mxu0 %v4124
    %9635 = vmatpush2.bf16.msra.mxu0 %v4123
    %9636 = vmatprep.subr.bf16.mxu0 %v4116
    %9637 = vmatpush2.bf16.msra.mxu0 %v4115
    %9638 = vmatprep.subr.bf16.mxu0 %v4108
    %9639 = vmatpush2.bf16.msra.mxu0 %v4107
    %9640 = vmatprep.subr.bf16.mxu0 %v4100
    %9641 = vmatpush2.bf16.msra.mxu0 %v4099
    %9642 = vmatprep.subr.bf16.mxu0 %v4092
    %9643 = vmatpush2.bf16.msra.mxu0 %v4091
    %9644 = vmatprep.subr.bf16.mxu0 %v4084
    %9645 = vmatpush2.bf16.msra.mxu0 %v4083
    %9646 = vmatprep.mubr.bf16.mxu0 %v9169
    %9647 = vmatmul.mubr.bf16.gmra.mxu0 %v9168
    %v9648 = vpop.f32.mrf.mxu0
    %v9649 = vadd.f32 0.0, %v9648
    %v9650 = vpop.f32.mrf.mxu0
    %v9651 = vadd.f32 0.0, %v9650
    %v9652 = vpop.f32.mrf.mxu0
    %v9653 = vpop.f32.mrf.mxu0
    %9654 = vdwg.mxu0
    %9655 = vmatprep.subr.bf16.mxu0 %v4078
    %9656 = vmatpush1.bf16.msra.mxu0 %v4077
    %9657 = vmatprep.subr.bf16.mxu0 %v4070
    %9658 = vmatpush1.bf16.msra.mxu0 %v4069
    %9659 = vmatprep.subr.bf16.mxu0 %v4062
    %9660 = vmatpush1.bf16.msra.mxu0 %v4061
    %9661 = vmatprep.subr.bf16.mxu0 %v4054
    %9662 = vmatpush1.bf16.msra.mxu0 %v4053
    %9663 = vmatprep.subr.bf16.mxu0 %v4046
    %9664 = vmatpush1.bf16.msra.mxu0 %v4045
    %9665 = vmatprep.subr.bf16.mxu0 %v4038
    %9666 = vmatpush1.bf16.msra.mxu0 %v4037
    %9667 = vmatprep.subr.bf16.mxu0 %v4030
    %9668 = vmatpush1.bf16.msra.mxu0 %v4029
    %9669 = vmatprep.subr.bf16.mxu0 %v4022
    %9670 = vmatpush1.bf16.msra.mxu0 %v4021
    %9671 = vmatprep.subr.bf16.mxu0 %v4142
    %9672 = vmatpush2.bf16.msra.mxu0 %v4141
    %9673 = vmatprep.subr.bf16.mxu0 %v4134
    %9674 = vmatpush2.bf16.msra.mxu0 %v4133
    %9675 = vmatprep.subr.bf16.mxu0 %v4126
    %9676 = vmatpush2.bf16.msra.mxu0 %v4125
    %9677 = vmatprep.subr.bf16.mxu0 %v4118
    %9678 = vmatpush2.bf16.msra.mxu0 %v4117
    %9679 = vmatprep.subr.bf16.mxu0 %v4110
    %9680 = vmatpush2.bf16.msra.mxu0 %v4109
    %9681 = vmatprep.subr.bf16.mxu0 %v4102
    %9682 = vmatpush2.bf16.msra.mxu0 %v4101
    %9683 = vmatprep.subr.bf16.mxu0 %v4094
    %9684 = vmatpush2.bf16.msra.mxu0 %v4093
    %9685 = vmatprep.subr.bf16.mxu0 %v4086
    %9686 = vmatpush2.bf16.msra.mxu0 %v4085
    %9687 = vmatprep.mubr.bf16.mxu0 %v9169
    %9688 = vmatmul.mubr.bf16.gmra.mxu0 %v9168
    %v9689 = vpop.f32.mrf.mxu0
    %v9690 = vadd.f32 0.0, %v9689
    %v9691 = vpop.f32.mrf.mxu0
    %v9692 = vadd.f32 0.0, %v9691
    %v9693 = vpop.f32.mrf.mxu0
    %v9694 = vpop.f32.mrf.mxu0
    %9695 = vdwg.mxu0
    %9696 = vmatprep.subr.bf16.mxu0 %v4080
    %9697 = vmatpush1.bf16.msra.mxu0 %v4079
    %9698 = vmatprep.subr.bf16.mxu0 %v4072
    %9699 = vmatpush1.bf16.msra.mxu0 %v4071
    %9700 = vmatprep.subr.bf16.mxu0 %v4064
    %9701 = vmatpush1.bf16.msra.mxu0 %v4063
    %9702 = vmatprep.subr.bf16.mxu0 %v4056
    %9703 = vmatpush1.bf16.msra.mxu0 %v4055
    %9704 = vmatprep.subr.bf16.mxu0 %v4048
    %9705 = vmatpush1.bf16.msra.mxu0 %v4047
    %9706 = vmatprep.subr.bf16.mxu0 %v4040
    %9707 = vmatpush1.bf16.msra.mxu0 %v4039
    %9708 = vmatprep.subr.bf16.mxu0 %v4032
    %9709 = vmatpush1.bf16.msra.mxu0 %v4031
    %9710 = vmatprep.subr.bf16.mxu0 %v4024
    %9711 = vmatpush1.bf16.msra.mxu0 %v4023
    %9712 = vmatprep.subr.bf16.mxu0 %v4144
    %9713 = vmatpush2.bf16.msra.mxu0 %v4143
    %9714 = vmatprep.subr.bf16.mxu0 %v4136
    %9715 = vmatpush2.bf16.msra.mxu0 %v4135
    %9716 = vmatprep.subr.bf16.mxu0 %v4128
    %9717 = vmatpush2.bf16.msra.mxu0 %v4127
    %9718 = vmatprep.subr.bf16.mxu0 %v4120
    %9719 = vmatpush2.bf16.msra.mxu0 %v4119
    %9720 = vmatprep.subr.bf16.mxu0 %v4112
    %9721 = vmatpush2.bf16.msra.mxu0 %v4111
    %9722 = vmatprep.subr.bf16.mxu0 %v4104
    %9723 = vmatpush2.bf16.msra.mxu0 %v4103
    %9724 = vmatprep.subr.bf16.mxu0 %v4096
    %9725 = vmatpush2.bf16.msra.mxu0 %v4095
    %9726 = vmatprep.subr.bf16.mxu0 %v4088
    %9727 = vmatpush2.bf16.msra.mxu0 %v4087
    %9728 = vmatprep.mubr.bf16.mxu0 %v9169
    %9729 = vmatmul.mubr.bf16.gmra.mxu0 %v9168
    %v9730 = vpop.f32.mrf.mxu0
    %v9731 = vadd.f32 0.0, %v9730
    %v9732 = vpop.f32.mrf.mxu0
    %v9733 = vadd.f32 0.0, %v9732
    %v9734 = vpop.f32.mrf.mxu0
    %v9735 = vpop.f32.mrf.mxu0
    %9736 = vdwg.mxu0
    %v9745 = vcombine.low %v9608, %v9610
    %v9746 = vcombine.low %v9649, %v9651
    %v9747 = vcombine.low %v9690, %v9692
    %v9748 = vcombine.low %v9731, %v9733
    %v9750 = vunpack.c.l.s4 1966171168
    %v9751 = vunpack.c.0.s8 %v9750
    %v9752 = vlaneseq
    %v9753 = vshrl.u32 %v9752, 7
    %v9754 = vsub.s32 %v9751, %v9753
    %v9755 = vrot.slane %v9745, %v9754
    %v9757 = vunpack.c.l.s4 1966171168
    %v9758 = vunpack.c.0.s8 %v9757
    %v9759 = vlaneseq
    %v9760 = vshrl.u32 %v9759, 7
    %v9761 = vsub.s32 %v9758, %v9760
    %v9762 = vrot.slane %v9746, %v9761
    %v9764 = vunpack.c.l.s4 1966171168
    %v9765 = vunpack.c.0.s8 %v9764
    %v9766 = vlaneseq
    %v9767 = vshrl.u32 %v9766, 7
    %v9768 = vsub.s32 %v9765, %v9767
    %v9769 = vrot.slane %v9747, %v9768
    %v9771 = vunpack.c.l.s4 1966171168
    %v9772 = vunpack.c.0.s8 %v9771
    %v9773 = vlaneseq
    %v9774 = vshrl.u32 %v9773, 7
    %v9775 = vsub.s32 %v9772, %v9774
    %v9776 = vrot.slane %v9748, %v9775
    %v9777 = vcombine.low %v9755, %v9762
    %v9778 = vcombine.low %v9769, %v9776
    %v9780 = vunpack.c.l.s4 1966171168
    %v9781 = vunpack.c.0.s8 %v9780
    %v9782 = vlaneseq
    %v9783 = vshrl.u32 %v9782, 7
    %v9784 = vsub.s32 %v9781, %v9783
    %v9785 = vrot.slane %v9777, %v9784
    %v9787 = vunpack.c.l.s4 1966171168
    %v9788 = vunpack.c.0.s8 %v9787
    %v9789 = vlaneseq
    %v9790 = vshrl.u32 %v9789, 7
    %v9791 = vsub.s32 %v9788, %v9790
    %v9792 = vrot.slane %v9778, %v9791
    %v9793 = vcombine.low %v9785, %v9792
    %v9795 = vadd.f32 %v9572, %v9793
    %v9796 = vxor.u32 %v9795, 2147483648
    %v9797 = vmul.f32 %v9796, 1.442695
    %v9798 = vpow.pop %v9797
    %v9799 = vadd.f32 %v9798, 1.0
    %v9800 = vrcp.pop %v9799
    %v9801 = vmul.f32 1.0, %v9800
    %v9803 = vrot.slane %v9795, 6
    %v9805 = vtanh.pop %v9803
    %v9807 = vrot.slane %v9801, 2
    %v9809 = vmul.f32 %v9807, %v9152
    %v9810 = vmul.f32 %v9801, %v9805
    %v9811 = vadd.f32 %v9809, %v9810
    %v9812 = vtanh.pop %v9811
    %v9813 = vrot.slane %v9801, 4
    %v9815 = vmul.f32 %v9813, %v9812
    %v9817 = vlaneseq
    %v9818 = vshrl.u32 %v9817, 7
    %v9819 = vsub.s32 0, %v9818
    %v9820 = vrot.slane %v9815, %v9819
    %v9821 = vlaneseq
    %v9822 = vshrl.u32 %v9821, 7
    %v9823 = vsub.s32 1, %v9822
    %v9824 = vrot.slane %v9815, %v9823
    %v9827 = vpack.c.bf16 %v9820, %v9820
    %v9828 = vpack.c.bf16 %v9824, %v9824
    %v9829 = vpack.c.bf16 %v9546, %v9546
    %v9830 = vpack.c.bf16 %v9547, %v9547
    %9831 = vmatprep.subr.bf16.mxu0 %v5367
    %9832 = vmatpush1.bf16.msra.mxu0 %v5366
    %9833 = vmatprep.subr.bf16.mxu0 %v5359
    %9834 = vmatpush1.bf16.msra.mxu0 %v5358
    %9835 = vmatprep.subr.bf16.mxu0 %v5351
    %9836 = vmatpush1.bf16.msra.mxu0 %v5350
    %9837 = vmatprep.subr.bf16.mxu0 %v5343
    %9838 = vmatpush1.bf16.msra.mxu0 %v5342
    %9839 = vmatprep.subr.bf16.mxu0 %v5335
    %9840 = vmatpush1.bf16.msra.mxu0 %v5334
    %9841 = vmatprep.subr.bf16.mxu0 %v5327
    %9842 = vmatpush1.bf16.msra.mxu0 %v5326
    %9843 = vmatprep.subr.bf16.mxu0 %v5319
    %9844 = vmatpush1.bf16.msra.mxu0 %v5318
    %9845 = vmatprep.subr.bf16.mxu0 %v5311
    %9846 = vmatpush1.bf16.msra.mxu0 %v5310
    %9847 = vmatprep.subr.bf16.mxu0 %v5431
    %9848 = vmatpush2.bf16.msra.mxu0 %v5430
    %9849 = vmatprep.subr.bf16.mxu0 %v5423
    %9850 = vmatpush2.bf16.msra.mxu0 %v5422
    %9851 = vmatprep.subr.bf16.mxu0 %v5415
    %9852 = vmatpush2.bf16.msra.mxu0 %v5414
    %9853 = vmatprep.subr.bf16.mxu0 %v5407
    %9854 = vmatpush2.bf16.msra.mxu0 %v5406
    %9855 = vmatprep.subr.bf16.mxu0 %v5399
    %9856 = vmatpush2.bf16.msra.mxu0 %v5398
    %9857 = vmatprep.subr.bf16.mxu0 %v5391
    %9858 = vmatpush2.bf16.msra.mxu0 %v5390
    %9859 = vmatprep.subr.bf16.mxu0 %v5383
    %9860 = vmatpush2.bf16.msra.mxu0 %v5382
    %9861 = vmatprep.subr.bf16.mxu0 %v5375
    %9862 = vmatpush2.bf16.msra.mxu0 %v5374
    %9863 = vmatprep.mubr.bf16.mxu0 %v9828
    %9864 = vmatmul.mubr.bf16.gmra.mxu0 %v9827
    %v9865 = vpop.f32.mrf.mxu0
    %v9866 = vadd.f32 %v5826, %v9865
    %v9867 = vpop.f32.mrf.mxu0
    %v9868 = vadd.f32 %v5830, %v9867
    %v9869 = vpop.f32.mrf.mxu0
    %v9870 = vpop.f32.mrf.mxu0
    %9871 = vdwg.mxu0
    %9872 = vmatprep.subr.bf16.mxu0 %v5495
    %9873 = vmatpush1.bf16.msra.mxu0 %v5494
    %9874 = vmatprep.subr.bf16.mxu0 %v5487
    %9875 = vmatpush1.bf16.msra.mxu0 %v5486
    %9876 = vmatprep.subr.bf16.mxu0 %v5479
    %9877 = vmatpush1.bf16.msra.mxu0 %v5478
    %9878 = vmatprep.subr.bf16.mxu0 %v5471
    %9879 = vmatpush1.bf16.msra.mxu0 %v5470
    %9880 = vmatprep.subr.bf16.mxu0 %v5463
    %9881 = vmatpush1.bf16.msra.mxu0 %v5462
    %9882 = vmatprep.subr.bf16.mxu0 %v5455
    %9883 = vmatpush1.bf16.msra.mxu0 %v5454
    %9884 = vmatprep.subr.bf16.mxu0 %v5447
    %9885 = vmatpush1.bf16.msra.mxu0 %v5446
    %9886 = vmatprep.subr.bf16.mxu0 %v5439
    %9887 = vmatpush1.bf16.msra.mxu0 %v5438
    %9888 = vmatprep.subr.bf16.mxu0 %v5559
    %9889 = vmatpush2.bf16.msra.mxu0 %v5558
    %9890 = vmatprep.subr.bf16.mxu0 %v5551
    %9891 = vmatpush2.bf16.msra.mxu0 %v5550
    %9892 = vmatprep.subr.bf16.mxu0 %v5543
    %9893 = vmatpush2.bf16.msra.mxu0 %v5542
    %9894 = vmatprep.subr.bf16.mxu0 %v5535
    %9895 = vmatpush2.bf16.msra.mxu0 %v5534
    %9896 = vmatprep.subr.bf16.mxu0 %v5527
    %9897 = vmatpush2.bf16.msra.mxu0 %v5526
    %9898 = vmatprep.subr.bf16.mxu0 %v5519
    %9899 = vmatpush2.bf16.msra.mxu0 %v5518
    %9900 = vmatprep.subr.bf16.mxu0 %v5511
    %9901 = vmatpush2.bf16.msra.mxu0 %v5510
    %9902 = vmatprep.subr.bf16.mxu0 %v5503
    %9903 = vmatpush2.bf16.msra.mxu0 %v5502
    %9904 = vmatprep.mubr.bf16.mxu0 %v9830
    %9905 = vmatmul.mubr.bf16.gmra.mxu0 %v9829
    %v9906 = vpop.f32.mrf.mxu0
    %v9907 = vadd.f32 %v9866, %v9906
    %v9908 = vpop.f32.mrf.mxu0
    %v9909 = vadd.f32 %v9868, %v9908
    %v9910 = vpop.f32.mrf.mxu0
    %v9911 = vpop.f32.mrf.mxu0
    %9912 = vdwg.mxu0
    %9913 = vmatprep.subr.bf16.mxu0 %v5369
    %9914 = vmatpush1.bf16.msra.mxu0 %v5368
    %9915 = vmatprep.subr.bf16.mxu0 %v5361
    %9916 = vmatpush1.bf16.msra.mxu0 %v5360
    %9917 = vmatprep.subr.bf16.mxu0 %v5353
    %9918 = vmatpush1.bf16.msra.mxu0 %v5352
    %9919 = vmatprep.subr.bf16.mxu0 %v5345
    %9920 = vmatpush1.bf16.msra.mxu0 %v5344
    %9921 = vmatprep.subr.bf16.mxu0 %v5337
    %9922 = vmatpush1.bf16.msra.mxu0 %v5336
    %9923 = vmatprep.subr.bf16.mxu0 %v5329
    %9924 = vmatpush1.bf16.msra.mxu0 %v5328
    %9925 = vmatprep.subr.bf16.mxu0 %v5321
    %9926 = vmatpush1.bf16.msra.mxu0 %v5320
    %9927 = vmatprep.subr.bf16.mxu0 %v5313
    %9928 = vmatpush1.bf16.msra.mxu0 %v5312
    %9929 = vmatprep.subr.bf16.mxu0 %v5433
    %9930 = vmatpush2.bf16.msra.mxu0 %v5432
    %9931 = vmatprep.subr.bf16.mxu0 %v5425
    %9932 = vmatpush2.bf16.msra.mxu0 %v5424
    %9933 = vmatprep.subr.bf16.mxu0 %v5417
    %9934 = vmatpush2.bf16.msra.mxu0 %v5416
    %9935 = vmatprep.subr.bf16.mxu0 %v5409
    %9936 = vmatpush2.bf16.msra.mxu0 %v5408
    %9937 = vmatprep.subr.bf16.mxu0 %v5401
    %9938 = vmatpush2.bf16.msra.mxu0 %v5400
    %9939 = vmatprep.subr.bf16.mxu0 %v5393
    %9940 = vmatpush2.bf16.msra.mxu0 %v5392
    %9941 = vmatprep.subr.bf16.mxu0 %v5385
    %9942 = vmatpush2.bf16.msra.mxu0 %v5384
    %9943 = vmatprep.subr.bf16.mxu0 %v5377
    %9944 = vmatpush2.bf16.msra.mxu0 %v5376
    %9945 = vmatprep.mubr.bf16.mxu0 %v9828
    %9946 = vmatmul.mubr.bf16.gmra.mxu0 %v9827
    %v9947 = vpop.f32.mrf.mxu0
    %v9948 = vadd.f32 %v5834, %v9947
    %v9949 = vpop.f32.mrf.mxu0
    %v9950 = vadd.f32 %v5838, %v9949
    %v9951 = vpop.f32.mrf.mxu0
    %v9952 = vpop.f32.mrf.mxu0
    %9953 = vdwg.mxu0
    %9954 = vmatprep.subr.bf16.mxu0 %v5497
    %9955 = vmatpush1.bf16.msra.mxu0 %v5496
    %9956 = vmatprep.subr.bf16.mxu0 %v5489
    %9957 = vmatpush1.bf16.msra.mxu0 %v5488
    %9958 = vmatprep.subr.bf16.mxu0 %v5481
    %9959 = vmatpush1.bf16.msra.mxu0 %v5480
    %9960 = vmatprep.subr.bf16.mxu0 %v5473
    %9961 = vmatpush1.bf16.msra.mxu0 %v5472
    %9962 = vmatprep.subr.bf16.mxu0 %v5465
    %9963 = vmatpush1.bf16.msra.mxu0 %v5464
    %9964 = vmatprep.subr.bf16.mxu0 %v5457
    %9965 = vmatpush1.bf16.msra.mxu0 %v5456
    %9966 = vmatprep.subr.bf16.mxu0 %v5449
    %9967 = vmatpush1.bf16.msra.mxu0 %v5448
    %9968 = vmatprep.subr.bf16.mxu0 %v5441
    %9969 = vmatpush1.bf16.msra.mxu0 %v5440
    %9970 = vmatprep.subr.bf16.mxu0 %v5561
    %9971 = vmatpush2.bf16.msra.mxu0 %v5560
    %9972 = vmatprep.subr.bf16.mxu0 %v5553
    %9973 = vmatpush2.bf16.msra.mxu0 %v5552
    %9974 = vmatprep.subr.bf16.mxu0 %v5545
    %9975 = vmatpush2.bf16.msra.mxu0 %v5544
    %9976 = vmatprep.subr.bf16.mxu0 %v5537
    %9977 = vmatpush2.bf16.msra.mxu0 %v5536
    %9978 = vmatprep.subr.bf16.mxu0 %v5529
    %9979 = vmatpush2.bf16.msra.mxu0 %v5528
    %9980 = vmatprep.subr.bf16.mxu0 %v5521
    %9981 = vmatpush2.bf16.msra.mxu0 %v5520
    %9982 = vmatprep.subr.bf16.mxu0 %v5513
    %9983 = vmatpush2.bf16.msra.mxu0 %v5512
    %9984 = vmatprep.subr.bf16.mxu0 %v5505
    %9985 = vmatpush2.bf16.msra.mxu0 %v5504
    %9986 = vmatprep.mubr.bf16.mxu0 %v9830
    %9987 = vmatmul.mubr.bf16.gmra.mxu0 %v9829
    %v9988 = vpop.f32.mrf.mxu0
    %v9989 = vadd.f32 %v9948, %v9988
    %v9990 = vpop.f32.mrf.mxu0
    %v9991 = vadd.f32 %v9950, %v9990
    %v9992 = vpop.f32.mrf.mxu0
    %v9993 = vpop.f32.mrf.mxu0
    %9994 = vdwg.mxu0
    %9995 = vmatprep.subr.bf16.mxu0 %v5371
    %9996 = vmatpush1.bf16.msra.mxu0 %v5370
    %9997 = vmatprep.subr.bf16.mxu0 %v5363
    %9998 = vmatpush1.bf16.msra.mxu0 %v5362
    %9999 = vmatprep.subr.bf16.mxu0 %v5355
    %10000 = vmatpush1.bf16.msra.mxu0 %v5354
    %10001 = vmatprep.subr.bf16.mxu0 %v5347
    %10002 = vmatpush1.bf16.msra.mxu0 %v5346
    %10003 = vmatprep.subr.bf16.mxu0 %v5339
    %10004 = vmatpush1.bf16.msra.mxu0 %v5338
    %10005 = vmatprep.subr.bf16.mxu0 %v5331
    %10006 = vmatpush1.bf16.msra.mxu0 %v5330
    %10007 = vmatprep.subr.bf16.mxu0 %v5323
    %10008 = vmatpush1.bf16.msra.mxu0 %v5322
    %10009 = vmatprep.subr.bf16.mxu0 %v5315
    %10010 = vmatpush1.bf16.msra.mxu0 %v5314
    %10011 = vmatprep.subr.bf16.mxu0 %v5435
    %10012 = vmatpush2.bf16.msra.mxu0 %v5434
    %10013 = vmatprep.subr.bf16.mxu0 %v5427
    %10014 = vmatpush2.bf16.msra.mxu0 %v5426
    %10015 = vmatprep.subr.bf16.mxu0 %v5419
    %10016 = vmatpush2.bf16.msra.mxu0 %v5418
    %10017 = vmatprep.subr.bf16.mxu0 %v5411
    %10018 = vmatpush2.bf16.msra.mxu0 %v5410
    %10019 = vmatprep.subr.bf16.mxu0 %v5403
    %10020 = vmatpush2.bf16.msra.mxu0 %v5402
    %10021 = vmatprep.subr.bf16.mxu0 %v5395
    %10022 = vmatpush2.bf16.msra.mxu0 %v5394
    %10023 = vmatprep.subr.bf16.mxu0 %v5387
    %10024 = vmatpush2.bf16.msra.mxu0 %v5386
    %10025 = vmatprep.subr.bf16.mxu0 %v5379
    %10026 = vmatpush2.bf16.msra.mxu0 %v5378
    %10027 = vmatprep.mubr.bf16.mxu0 %v9828
    %10028 = vmatmul.mubr.bf16.gmra.mxu0 %v9827
    %v10029 = vpop.f32.mrf.mxu0
    %v10030 = vadd.f32 %v5842, %v10029
    %v10031 = vpop.f32.mrf.mxu0
    %v10032 = vadd.f32 %v5846, %v10031
    %v10033 = vpop.f32.mrf.mxu0
    %v10034 = vpop.f32.mrf.mxu0
    %10035 = vdwg.mxu0
    %10036 = vmatprep.subr.bf16.mxu0 %v5499
    %10037 = vmatpush1.bf16.msra.mxu0 %v5498
    %10038 = vmatprep.subr.bf16.mxu0 %v5491
    %10039 = vmatpush1.bf16.msra.mxu0 %v5490
    %10040 = vmatprep.subr.bf16.mxu0 %v5483
    %10041 = vmatpush1.bf16.msra.mxu0 %v5482
    %10042 = vmatprep.subr.bf16.mxu0 %v5475
    %10043 = vmatpush1.bf16.msra.mxu0 %v5474
    %10044 = vmatprep.subr.bf16.mxu0 %v5467
    %10045 = vmatpush1.bf16.msra.mxu0 %v5466
    %10046 = vmatprep.subr.bf16.mxu0 %v5459
    %10047 = vmatpush1.bf16.msra.mxu0 %v5458
    %10048 = vmatprep.subr.bf16.mxu0 %v5451
    %10049 = vmatpush1.bf16.msra.mxu0 %v5450
    %10050 = vmatprep.subr.bf16.mxu0 %v5443
    %10051 = vmatpush1.bf16.msra.mxu0 %v5442
    %10052 = vmatprep.subr.bf16.mxu0 %v5563
    %10053 = vmatpush2.bf16.msra.mxu0 %v5562
    %10054 = vmatprep.subr.bf16.mxu0 %v5555
    %10055 = vmatpush2.bf16.msra.mxu0 %v5554
    %10056 = vmatprep.subr.bf16.mxu0 %v5547
    %10057 = vmatpush2.bf16.msra.mxu0 %v5546
    %10058 = vmatprep.subr.bf16.mxu0 %v5539
    %10059 = vmatpush2.bf16.msra.mxu0 %v5538
    %10060 = vmatprep.subr.bf16.mxu0 %v5531
    %10061 = vmatpush2.bf16.msra.mxu0 %v5530
    %10062 = vmatprep.subr.bf16.mxu0 %v5523
    %10063 = vmatpush2.bf16.msra.mxu0 %v5522
    %10064 = vmatprep.subr.bf16.mxu0 %v5515
    %10065 = vmatpush2.bf16.msra.mxu0 %v5514
    %10066 = vmatprep.subr.bf16.mxu0 %v5507
    %10067 = vmatpush2.bf16.msra.mxu0 %v5506
    %10068 = vmatprep.mubr.bf16.mxu0 %v9830
    %10069 = vmatmul.mubr.bf16.gmra.mxu0 %v9829
    %v10070 = vpop.f32.mrf.mxu0
    %v10071 = vadd.f32 %v10030, %v10070
    %v10072 = vpop.f32.mrf.mxu0
    %v10073 = vadd.f32 %v10032, %v10072
    %v10074 = vpop.f32.mrf.mxu0
    %v10075 = vpop.f32.mrf.mxu0
    %10076 = vdwg.mxu0
    %10077 = vmatprep.subr.bf16.mxu0 %v5373
    %10078 = vmatpush1.bf16.msra.mxu0 %v5372
    %10079 = vmatprep.subr.bf16.mxu0 %v5365
    %10080 = vmatpush1.bf16.msra.mxu0 %v5364
    %10081 = vmatprep.subr.bf16.mxu0 %v5357
    %10082 = vmatpush1.bf16.msra.mxu0 %v5356
    %10083 = vmatprep.subr.bf16.mxu0 %v5349
    %10084 = vmatpush1.bf16.msra.mxu0 %v5348
    %10085 = vmatprep.subr.bf16.mxu0 %v5341
    %10086 = vmatpush1.bf16.msra.mxu0 %v5340
    %10087 = vmatprep.subr.bf16.mxu0 %v5333
    %10088 = vmatpush1.bf16.msra.mxu0 %v5332
    %10089 = vmatprep.subr.bf16.mxu0 %v5325
    %10090 = vmatpush1.bf16.msra.mxu0 %v5324
    %10091 = vmatprep.subr.bf16.mxu0 %v5317
    %10092 = vmatpush1.bf16.msra.mxu0 %v5316
    %10093 = vmatprep.subr.bf16.mxu0 %v5437
    %10094 = vmatpush2.bf16.msra.mxu0 %v5436
    %10095 = vmatprep.subr.bf16.mxu0 %v5429
    %10096 = vmatpush2.bf16.msra.mxu0 %v5428
    %10097 = vmatprep.subr.bf16.mxu0 %v5421
    %10098 = vmatpush2.bf16.msra.mxu0 %v5420
    %10099 = vmatprep.subr.bf16.mxu0 %v5413
    %10100 = vmatpush2.bf16.msra.mxu0 %v5412
    %10101 = vmatprep.subr.bf16.mxu0 %v5405
    %10102 = vmatpush2.bf16.msra.mxu0 %v5404
    %10103 = vmatprep.subr.bf16.mxu0 %v5397
    %10104 = vmatpush2.bf16.msra.mxu0 %v5396
    %10105 = vmatprep.subr.bf16.mxu0 %v5389
    %10106 = vmatpush2.bf16.msra.mxu0 %v5388
    %10107 = vmatprep.subr.bf16.mxu0 %v5381
    %10108 = vmatpush2.bf16.msra.mxu0 %v5380
    %10109 = vmatprep.mubr.bf16.mxu0 %v9828
    %10110 = vmatmul.mubr.bf16.gmra.mxu0 %v9827
    %v10111 = vpop.f32.mrf.mxu0
    %v10112 = vadd.f32 %v5850, %v10111
    %v10113 = vpop.f32.mrf.mxu0
    %v10114 = vadd.f32 %v5854, %v10113
    %v10115 = vpop.f32.mrf.mxu0
    %v10116 = vpop.f32.mrf.mxu0
    %10117 = vdwg.mxu0
    %10118 = vmatprep.subr.bf16.mxu0 %v5501
    %10119 = vmatpush1.bf16.msra.mxu0 %v5500
    %10120 = vmatprep.subr.bf16.mxu0 %v5493
    %10121 = vmatpush1.bf16.msra.mxu0 %v5492
    %10122 = vmatprep.subr.bf16.mxu0 %v5485
    %10123 = vmatpush1.bf16.msra.mxu0 %v5484
    %10124 = vmatprep.subr.bf16.mxu0 %v5477
    %10125 = vmatpush1.bf16.msra.mxu0 %v5476
    %10126 = vmatprep.subr.bf16.mxu0 %v5469
    %10127 = vmatpush1.bf16.msra.mxu0 %v5468
    %10128 = vmatprep.subr.bf16.mxu0 %v5461
    %10129 = vmatpush1.bf16.msra.mxu0 %v5460
    %10130 = vmatprep.subr.bf16.mxu0 %v5453
    %10131 = vmatpush1.bf16.msra.mxu0 %v5452
    %10132 = vmatprep.subr.bf16.mxu0 %v5445
    %10133 = vmatpush1.bf16.msra.mxu0 %v5444
    %10134 = vmatprep.subr.bf16.mxu0 %v5565
    %10135 = vmatpush2.bf16.msra.mxu0 %v5564
    %10136 = vmatprep.subr.bf16.mxu0 %v5557
    %10137 = vmatpush2.bf16.msra.mxu0 %v5556
    %10138 = vmatprep.subr.bf16.mxu0 %v5549
    %10139 = vmatpush2.bf16.msra.mxu0 %v5548
    %10140 = vmatprep.subr.bf16.mxu0 %v5541
    %10141 = vmatpush2.bf16.msra.mxu0 %v5540
    %10142 = vmatprep.subr.bf16.mxu0 %v5533
    %10143 = vmatpush2.bf16.msra.mxu0 %v5532
    %10144 = vmatprep.subr.bf16.mxu0 %v5525
    %10145 = vmatpush2.bf16.msra.mxu0 %v5524
    %10146 = vmatprep.subr.bf16.mxu0 %v5517
    %10147 = vmatpush2.bf16.msra.mxu0 %v5516
    %10148 = vmatprep.subr.bf16.mxu0 %v5509
    %10149 = vmatpush2.bf16.msra.mxu0 %v5508
    %10150 = vmatprep.mubr.bf16.mxu0 %v9830
    %10151 = vmatmul.mubr.bf16.gmra.mxu0 %v9829
    %v10152 = vpop.f32.mrf.mxu0
    %v10153 = vadd.f32 %v10112, %v10152
    %v10154 = vpop.f32.mrf.mxu0
    %v10155 = vadd.f32 %v10114, %v10154
    %v10156 = vpop.f32.mrf.mxu0
    %v10157 = vpop.f32.mrf.mxu0
    %10158 = vdwg.mxu0
    %v10159 = vxor.u32 %v9907, 2147483648
    %v10160 = vxor.u32 %v9909, 2147483648
    %v10161 = vxor.u32 %v9989, 2147483648
    %v10162 = vxor.u32 %v9991, 2147483648
    %v10163 = vxor.u32 %v10071, 2147483648
    %v10164 = vxor.u32 %v10073, 2147483648
    %v10165 = vmul.f32 %v10159, 1.442695
    %v10166 = vpow.pop %v10165
    %v10167 = vmul.f32 %v10160, 1.442695
    %v10168 = vpow.pop %v10167
    %v10169 = vmul.f32 %v10161, 1.442695
    %v10170 = vpow.pop %v10169
    %v10171 = vmul.f32 %v10162, 1.442695
    %v10172 = vpow.pop %v10171
    %v10173 = vmul.f32 %v10163, 1.442695
    %v10174 = vpow.pop %v10173
    %v10175 = vmul.f32 %v10164, 1.442695
    %v10176 = vpow.pop %v10175
    %v10177 = vadd.f32 %v10166, 1.0
    %v10178 = vadd.f32 %v10168, 1.0
    %v10179 = vadd.f32 %v10170, 1.0
    %v10180 = vadd.f32 %v10172, 1.0
    %v10181 = vadd.f32 %v10174, 1.0
    %v10182 = vadd.f32 %v10176, 1.0
    %v10183 = vrcp.pop %v10177
    %v10184 = vmul.f32 1.0, %v10183
    %v10185 = vrcp.pop %v10178
    %v10186 = vmul.f32 1.0, %v10185
    %v10187 = vrcp.pop %v10179
    %v10188 = vmul.f32 1.0, %v10187
    %v10189 = vrcp.pop %v10180
    %v10190 = vmul.f32 1.0, %v10189
    %v10191 = vrcp.pop %v10181
    %v10192 = vmul.f32 1.0, %v10191
    %v10193 = vrcp.pop %v10182
    %v10194 = vmul.f32 1.0, %v10193
    %v10195 = vtanh.pop %v10153
    %v10196 = vtanh.pop %v10155
    %v10197 = vmul.f32 %v10188, %v9542
    %v10198 = vmul.f32 %v10190, %v9543
    %v10199 = vmul.f32 %v10184, %v10195
    %v10200 = vmul.f32 %v10186, %v10196
    %v10201 = vadd.f32 %v10197, %v10199
    %v10202 = vadd.f32 %v10198, %v10200
    %v10203 = vtanh.pop %v10201
    %v10204 = vtanh.pop %v10202
    %v10205 = vmul.f32 %v10192, %v10203
    %v10206 = vmul.f32 %v10194, %v10204
    %v10209 = vcombine.low %v10205, %v10206
    %v10211 = vunpack.c.l.s4 1966171168
    %v10212 = vunpack.c.0.s8 %v10211
    %v10213 = vlaneseq
    %v10214 = vshrl.u32 %v10213, 7
    %v10215 = vsub.s32 %v10212, %v10214
    %v10216 = vrot.slane %v10209, %v10215
    %v10218 = vunpack.c.l.s4 1966171168
    %v10219 = vunpack.c.0.s8 %v10218
    %v10220 = vlaneseq
    %v10221 = vshrl.u32 %v10220, 7
    %v10222 = vsub.s32 %v10219, %v10221
    %v10223 = vrot.slane %v10216, %v10222
    %s10225 = scalar_lea.vmem [#allocation23], 6
    %10226 = vst.msk [vmem:[%s10225] ss:$8 sm:$0x3] %vm6271, %v10223
    %10227 = vst.msk [vmem:[%s10225] ss:$8 sm:$0x0] %vm6271, %v10223
    %s10228 = scalar_lea.vmem [#allocation2], 7
    %v10229 = vld [vmem:[%s10228] ss:$8 sm:$0xf]
    %v10230 = vld [vmem:[%s10228] ss:$8 sm:$0xf0]
    %v10231 = vor.u32 %v10229, %v10230
    %10232 = vmatprep.subr.bf16.mxu0 %v4074
    %10233 = vmatpush1.bf16.msra.mxu0 %v4073
    %10234 = vmatprep.subr.bf16.mxu0 %v4066
    %10235 = vmatpush1.bf16.msra.mxu0 %v4065
    %10236 = vmatprep.subr.bf16.mxu0 %v4058
    %10237 = vmatpush1.bf16.msra.mxu0 %v4057
    %10238 = vmatprep.subr.bf16.mxu0 %v4050
    %10239 = vmatpush1.bf16.msra.mxu0 %v4049
    %10240 = vmatprep.subr.bf16.mxu0 %v4042
    %10241 = vmatpush1.bf16.msra.mxu0 %v4041
    %10242 = vmatprep.subr.bf16.mxu0 %v4034
    %10243 = vmatpush1.bf16.msra.mxu0 %v4033
    %10244 = vmatprep.subr.bf16.mxu0 %v4026
    %10245 = vmatpush1.bf16.msra.mxu0 %v4025
    %10246 = vmatprep.subr.bf16.mxu0 %v4018
    %10247 = vmatpush1.bf16.msra.mxu0 %v4017
    %10248 = vmatprep.subr.bf16.mxu0 %v4138
    %10249 = vmatpush2.bf16.msra.mxu0 %v4137
    %10250 = vmatprep.subr.bf16.mxu0 %v4130
    %10251 = vmatpush2.bf16.msra.mxu0 %v4129
    %10252 = vmatprep.subr.bf16.mxu0 %v4122
    %10253 = vmatpush2.bf16.msra.mxu0 %v4121
    %10254 = vmatprep.subr.bf16.mxu0 %v4114
    %10255 = vmatpush2.bf16.msra.mxu0 %v4113
    %10256 = vmatprep.subr.bf16.mxu0 %v4106
    %10257 = vmatpush2.bf16.msra.mxu0 %v4105
    %10258 = vmatprep.subr.bf16.mxu0 %v4098
    %10259 = vmatpush2.bf16.msra.mxu0 %v4097
    %10260 = vmatprep.subr.bf16.mxu0 %v4090
    %10261 = vmatpush2.bf16.msra.mxu0 %v4089
    %10262 = vmatprep.subr.bf16.mxu0 %v4082
    %10263 = vmatpush2.bf16.msra.mxu0 %v4081
    %10264 = vmatprep.mubr.bf16.mxu0 %v9828
    %10265 = vmatmul.mubr.bf16.gmra.mxu0 %v9827
    %v10266 = vpop.f32.mrf.mxu0
    %v10267 = vadd.f32 0.0, %v10266
    %v10268 = vpop.f32.mrf.mxu0
    %v10269 = vadd.f32 0.0, %v10268
    %v10270 = vpop.f32.mrf.mxu0
    %v10271 = vpop.f32.mrf.mxu0
    %10272 = vdwg.mxu0
    %10273 = vmatprep.subr.bf16.mxu0 %v4076
    %10274 = vmatpush1.bf16.msra.mxu0 %v4075
    %10275 = vmatprep.subr.bf16.mxu0 %v4068
    %10276 = vmatpush1.bf16.msra.mxu0 %v4067
    %10277 = vmatprep.subr.bf16.mxu0 %v4060
    %10278 = vmatpush1.bf16.msra.mxu0 %v4059
    %10279 = vmatprep.subr.bf16.mxu0 %v4052
    %10280 = vmatpush1.bf16.msra.mxu0 %v4051
    %10281 = vmatprep.subr.bf16.mxu0 %v4044
    %10282 = vmatpush1.bf16.msra.mxu0 %v4043
    %10283 = vmatprep.subr.bf16.mxu0 %v4036
    %10284 = vmatpush1.bf16.msra.mxu0 %v4035
    %10285 = vmatprep.subr.bf16.mxu0 %v4028
    %10286 = vmatpush1.bf16.msra.mxu0 %v4027
    %10287 = vmatprep.subr.bf16.mxu0 %v4020
    %10288 = vmatpush1.bf16.msra.mxu0 %v4019
    %10289 = vmatprep.subr.bf16.mxu0 %v4140
    %10290 = vmatpush2.bf16.msra.mxu0 %v4139
    %10291 = vmatprep.subr.bf16.mxu0 %v4132
    %10292 = vmatpush2.bf16.msra.mxu0 %v4131
    %10293 = vmatprep.subr.bf16.mxu0 %v4124
    %10294 = vmatpush2.bf16.msra.mxu0 %v4123
    %10295 = vmatprep.subr.bf16.mxu0 %v4116
    %10296 = vmatpush2.bf16.msra.mxu0 %v4115
    %10297 = vmatprep.subr.bf16.mxu0 %v4108
    %10298 = vmatpush2.bf16.msra.mxu0 %v4107
    %10299 = vmatprep.subr.bf16.mxu0 %v4100
    %10300 = vmatpush2.bf16.msra.mxu0 %v4099
    %10301 = vmatprep.subr.bf16.mxu0 %v4092
    %10302 = vmatpush2.bf16.msra.mxu0 %v4091
    %10303 = vmatprep.subr.bf16.mxu0 %v4084
    %10304 = vmatpush2.bf16.msra.mxu0 %v4083
    %10305 = vmatprep.mubr.bf16.mxu0 %v9828
    %10306 = vmatmul.mubr.bf16.gmra.mxu0 %v9827
    %v10307 = vpop.f32.mrf.mxu0
    %v10308 = vadd.f32 0.0, %v10307
    %v10309 = vpop.f32.mrf.mxu0
    %v10310 = vadd.f32 0.0, %v10309
    %v10311 = vpop.f32.mrf.mxu0
    %v10312 = vpop.f32.mrf.mxu0
    %10313 = vdwg.mxu0
    %10314 = vmatprep.subr.bf16.mxu0 %v4078
    %10315 = vmatpush1.bf16.msra.mxu0 %v4077
    %10316 = vmatprep.subr.bf16.mxu0 %v4070
    %10317 = vmatpush1.bf16.msra.mxu0 %v4069
    %10318 = vmatprep.subr.bf16.mxu0 %v4062
    %10319 = vmatpush1.bf16.msra.mxu0 %v4061
    %10320 = vmatprep.subr.bf16.mxu0 %v4054
    %10321 = vmatpush1.bf16.msra.mxu0 %v4053
    %10322 = vmatprep.subr.bf16.mxu0 %v4046
    %10323 = vmatpush1.bf16.msra.mxu0 %v4045
    %10324 = vmatprep.subr.bf16.mxu0 %v4038
    %10325 = vmatpush1.bf16.msra.mxu0 %v4037
    %10326 = vmatprep.subr.bf16.mxu0 %v4030
    %10327 = vmatpush1.bf16.msra.mxu0 %v4029
    %10328 = vmatprep.subr.bf16.mxu0 %v4022
    %10329 = vmatpush1.bf16.msra.mxu0 %v4021
    %10330 = vmatprep.subr.bf16.mxu0 %v4142
    %10331 = vmatpush2.bf16.msra.mxu0 %v4141
    %10332 = vmatprep.subr.bf16.mxu0 %v4134
    %10333 = vmatpush2.bf16.msra.mxu0 %v4133
    %10334 = vmatprep.subr.bf16.mxu0 %v4126
    %10335 = vmatpush2.bf16.msra.mxu0 %v4125
    %10336 = vmatprep.subr.bf16.mxu0 %v4118
    %10337 = vmatpush2.bf16.msra.mxu0 %v4117
    %10338 = vmatprep.subr.bf16.mxu0 %v4110
    %10339 = vmatpush2.bf16.msra.mxu0 %v4109
    %10340 = vmatprep.subr.bf16.mxu0 %v4102
    %10341 = vmatpush2.bf16.msra.mxu0 %v4101
    %10342 = vmatprep.subr.bf16.mxu0 %v4094
    %10343 = vmatpush2.bf16.msra.mxu0 %v4093
    %10344 = vmatprep.subr.bf16.mxu0 %v4086
    %10345 = vmatpush2.bf16.msra.mxu0 %v4085
    %10346 = vmatprep.mubr.bf16.mxu0 %v9828
    %10347 = vmatmul.mubr.bf16.gmra.mxu0 %v9827
    %v10348 = vpop.f32.mrf.mxu0
    %v10349 = vadd.f32 0.0, %v10348
    %v10350 = vpop.f32.mrf.mxu0
    %v10351 = vadd.f32 0.0, %v10350
    %v10352 = vpop.f32.mrf.mxu0
    %v10353 = vpop.f32.mrf.mxu0
    %10354 = vdwg.mxu0
    %10355 = vmatprep.subr.bf16.mxu0 %v4080
    %10356 = vmatpush1.bf16.msra.mxu0 %v4079
    %10357 = vmatprep.subr.bf16.mxu0 %v4072
    %10358 = vmatpush1.bf16.msra.mxu0 %v4071
    %10359 = vmatprep.subr.bf16.mxu0 %v4064
    %10360 = vmatpush1.bf16.msra.mxu0 %v4063
    %10361 = vmatprep.subr.bf16.mxu0 %v4056
    %10362 = vmatpush1.bf16.msra.mxu0 %v4055
    %10363 = vmatprep.subr.bf16.mxu0 %v4048
    %10364 = vmatpush1.bf16.msra.mxu0 %v4047
    %10365 = vmatprep.subr.bf16.mxu0 %v4040
    %10366 = vmatpush1.bf16.msra.mxu0 %v4039
    %10367 = vmatprep.subr.bf16.mxu0 %v4032
    %10368 = vmatpush1.bf16.msra.mxu0 %v4031
    %10369 = vmatprep.subr.bf16.mxu0 %v4024
    %10370 = vmatpush1.bf16.msra.mxu0 %v4023
    %10371 = vmatprep.subr.bf16.mxu0 %v4144
    %10372 = vmatpush2.bf16.msra.mxu0 %v4143
    %10373 = vmatprep.subr.bf16.mxu0 %v4136
    %10374 = vmatpush2.bf16.msra.mxu0 %v4135
    %10375 = vmatprep.subr.bf16.mxu0 %v4128
    %10376 = vmatpush2.bf16.msra.mxu0 %v4127
    %10377 = vmatprep.subr.bf16.mxu0 %v4120
    %10378 = vmatpush2.bf16.msra.mxu0 %v4119
    %10379 = vmatprep.subr.bf16.mxu0 %v4112
    %10380 = vmatpush2.bf16.msra.mxu0 %v4111
    %10381 = vmatprep.subr.bf16.mxu0 %v4104
    %10382 = vmatpush2.bf16.msra.mxu0 %v4103
    %10383 = vmatprep.subr.bf16.mxu0 %v4096
    %10384 = vmatpush2.bf16.msra.mxu0 %v4095
    %10385 = vmatprep.subr.bf16.mxu0 %v4088
    %10386 = vmatpush2.bf16.msra.mxu0 %v4087
    %10387 = vmatprep.mubr.bf16.mxu0 %v9828
    %10388 = vmatmul.mubr.bf16.gmra.mxu0 %v9827
    %v10389 = vpop.f32.mrf.mxu0
    %v10390 = vadd.f32 0.0, %v10389
    %v10391 = vpop.f32.mrf.mxu0
    %v10392 = vadd.f32 0.0, %v10391
    %v10393 = vpop.f32.mrf.mxu0
    %v10394 = vpop.f32.mrf.mxu0
    %10395 = vdwg.mxu0
    %v10404 = vcombine.low %v10267, %v10269
    %v10405 = vcombine.low %v10308, %v10310
    %v10406 = vcombine.low %v10349, %v10351
    %v10407 = vcombine.low %v10390, %v10392
    %v10409 = vunpack.c.l.s4 1966171168
    %v10410 = vunpack.c.0.s8 %v10409
    %v10411 = vlaneseq
    %v10412 = vshrl.u32 %v10411, 7
    %v10413 = vsub.s32 %v10410, %v10412
    %v10414 = vrot.slane %v10404, %v10413
    %v10416 = vunpack.c.l.s4 1966171168
    %v10417 = vunpack.c.0.s8 %v10416
    %v10418 = vlaneseq
    %v10419 = vshrl.u32 %v10418, 7
    %v10420 = vsub.s32 %v10417, %v10419
    %v10421 = vrot.slane %v10405, %v10420
    %v10423 = vunpack.c.l.s4 1966171168
    %v10424 = vunpack.c.0.s8 %v10423
    %v10425 = vlaneseq
    %v10426 = vshrl.u32 %v10425, 7
    %v10427 = vsub.s32 %v10424, %v10426
    %v10428 = vrot.slane %v10406, %v10427
    %v10430 = vunpack.c.l.s4 1966171168
    %v10431 = vunpack.c.0.s8 %v10430
    %v10432 = vlaneseq
    %v10433 = vshrl.u32 %v10432, 7
    %v10434 = vsub.s32 %v10431, %v10433
    %v10435 = vrot.slane %v10407, %v10434
    %v10436 = vcombine.low %v10414, %v10421
    %v10437 = vcombine.low %v10428, %v10435
    %v10439 = vunpack.c.l.s4 1966171168
    %v10440 = vunpack.c.0.s8 %v10439
    %v10441 = vlaneseq
    %v10442 = vshrl.u32 %v10441, 7
    %v10443 = vsub.s32 %v10440, %v10442
    %v10444 = vrot.slane %v10436, %v10443
    %v10446 = vunpack.c.l.s4 1966171168
    %v10447 = vunpack.c.0.s8 %v10446
    %v10448 = vlaneseq
    %v10449 = vshrl.u32 %v10448, 7
    %v10450 = vsub.s32 %v10447, %v10449
    %v10451 = vrot.slane %v10437, %v10450
    %v10452 = vcombine.low %v10444, %v10451
    %v10454 = vadd.f32 %v10231, %v10452
    %v10455 = vxor.u32 %v10454, 2147483648
    %v10456 = vmul.f32 %v10455, 1.442695
    %v10457 = vpow.pop %v10456
    %v10458 = vadd.f32 %v10457, 1.0
    %v10459 = vrcp.pop %v10458
    %v10460 = vmul.f32 1.0, %v10459
    %v10462 = vrot.slane %v10454, 6
    %v10464 = vtanh.pop %v10462
    %v10466 = vrot.slane %v10460, 2
    %v10468 = vmul.f32 %v10466, %v9811
    %v10469 = vmul.f32 %v10460, %v10464
    %v10470 = vadd.f32 %v10468, %v10469
    %v10471 = vtanh.pop %v10470
    %v10472 = vrot.slane %v10460, 4
    %v10474 = vmul.f32 %v10472, %v10471
    %v10476 = vlaneseq
    %v10477 = vshrl.u32 %v10476, 7
    %v10478 = vsub.s32 0, %v10477
    %v10479 = vrot.slane %v10474, %v10478
    %v10480 = vlaneseq
    %v10481 = vshrl.u32 %v10480, 7
    %v10482 = vsub.s32 1, %v10481
    %v10483 = vrot.slane %v10474, %v10482
    %v10486 = vpack.c.bf16 %v10479, %v10479
    %v10487 = vpack.c.bf16 %v10483, %v10483
    %v10488 = vpack.c.bf16 %v10205, %v10205
    %v10489 = vpack.c.bf16 %v10206, %v10206
    %10490 = vmatprep.subr.bf16.mxu0 %v5367
    %10491 = vmatpush1.bf16.msra.mxu0 %v5366
    %10492 = vmatprep.subr.bf16.mxu0 %v5359
    %10493 = vmatpush1.bf16.msra.mxu0 %v5358
    %10494 = vmatprep.subr.bf16.mxu0 %v5351
    %10495 = vmatpush1.bf16.msra.mxu0 %v5350
    %10496 = vmatprep.subr.bf16.mxu0 %v5343
    %10497 = vmatpush1.bf16.msra.mxu0 %v5342
    %10498 = vmatprep.subr.bf16.mxu0 %v5335
    %10499 = vmatpush1.bf16.msra.mxu0 %v5334
    %10500 = vmatprep.subr.bf16.mxu0 %v5327
    %10501 = vmatpush1.bf16.msra.mxu0 %v5326
    %10502 = vmatprep.subr.bf16.mxu0 %v5319
    %10503 = vmatpush1.bf16.msra.mxu0 %v5318
    %10504 = vmatprep.subr.bf16.mxu0 %v5311
    %10505 = vmatpush1.bf16.msra.mxu0 %v5310
    %10506 = vmatprep.subr.bf16.mxu0 %v5431
    %10507 = vmatpush2.bf16.msra.mxu0 %v5430
    %10508 = vmatprep.subr.bf16.mxu0 %v5423
    %10509 = vmatpush2.bf16.msra.mxu0 %v5422
    %10510 = vmatprep.subr.bf16.mxu0 %v5415
    %10511 = vmatpush2.bf16.msra.mxu0 %v5414
    %10512 = vmatprep.subr.bf16.mxu0 %v5407
    %10513 = vmatpush2.bf16.msra.mxu0 %v5406
    %10514 = vmatprep.subr.bf16.mxu0 %v5399
    %10515 = vmatpush2.bf16.msra.mxu0 %v5398
    %10516 = vmatprep.subr.bf16.mxu0 %v5391
    %10517 = vmatpush2.bf16.msra.mxu0 %v5390
    %10518 = vmatprep.subr.bf16.mxu0 %v5383
    %10519 = vmatpush2.bf16.msra.mxu0 %v5382
    %10520 = vmatprep.subr.bf16.mxu0 %v5375
    %10521 = vmatpush2.bf16.msra.mxu0 %v5374
    %10522 = vmatprep.mubr.bf16.mxu0 %v10487
    %10523 = vmatmul.mubr.bf16.gmra.mxu0 %v10486
    %v10524 = vpop.f32.mrf.mxu0
    %v10525 = vadd.f32 %v5826, %v10524
    %v10526 = vpop.f32.mrf.mxu0
    %v10527 = vadd.f32 %v5830, %v10526
    %v10528 = vpop.f32.mrf.mxu0
    %v10529 = vpop.f32.mrf.mxu0
    %10530 = vdwg.mxu0
    %10531 = vmatprep.subr.bf16.mxu0 %v5495
    %10532 = vmatpush1.bf16.msra.mxu0 %v5494
    %10533 = vmatprep.subr.bf16.mxu0 %v5487
    %10534 = vmatpush1.bf16.msra.mxu0 %v5486
    %10535 = vmatprep.subr.bf16.mxu0 %v5479
    %10536 = vmatpush1.bf16.msra.mxu0 %v5478
    %10537 = vmatprep.subr.bf16.mxu0 %v5471
    %10538 = vmatpush1.bf16.msra.mxu0 %v5470
    %10539 = vmatprep.subr.bf16.mxu0 %v5463
    %10540 = vmatpush1.bf16.msra.mxu0 %v5462
    %10541 = vmatprep.subr.bf16.mxu0 %v5455
    %10542 = vmatpush1.bf16.msra.mxu0 %v5454
    %10543 = vmatprep.subr.bf16.mxu0 %v5447
    %10544 = vmatpush1.bf16.msra.mxu0 %v5446
    %10545 = vmatprep.subr.bf16.mxu0 %v5439
    %10546 = vmatpush1.bf16.msra.mxu0 %v5438
    %10547 = vmatprep.subr.bf16.mxu0 %v5559
    %10548 = vmatpush2.bf16.msra.mxu0 %v5558
    %10549 = vmatprep.subr.bf16.mxu0 %v5551
    %10550 = vmatpush2.bf16.msra.mxu0 %v5550
    %10551 = vmatprep.subr.bf16.mxu0 %v5543
    %10552 = vmatpush2.bf16.msra.mxu0 %v5542
    %10553 = vmatprep.subr.bf16.mxu0 %v5535
    %10554 = vmatpush2.bf16.msra.mxu0 %v5534
    %10555 = vmatprep.subr.bf16.mxu0 %v5527
    %10556 = vmatpush2.bf16.msra.mxu0 %v5526
    %10557 = vmatprep.subr.bf16.mxu0 %v5519
    %10558 = vmatpush2.bf16.msra.mxu0 %v5518
    %10559 = vmatprep.subr.bf16.mxu0 %v5511
    %10560 = vmatpush2.bf16.msra.mxu0 %v5510
    %10561 = vmatprep.subr.bf16.mxu0 %v5503
    %10562 = vmatpush2.bf16.msra.mxu0 %v5502
    %10563 = vmatprep.mubr.bf16.mxu0 %v10489
    %10564 = vmatmul.mubr.bf16.gmra.mxu0 %v10488
    %v10565 = vpop.f32.mrf.mxu0
    %v10566 = vadd.f32 %v10525, %v10565
    %v10567 = vpop.f32.mrf.mxu0
    %v10568 = vadd.f32 %v10527, %v10567
    %v10569 = vpop.f32.mrf.mxu0
    %v10570 = vpop.f32.mrf.mxu0
    %10571 = vdwg.mxu0
    %10572 = vmatprep.subr.bf16.mxu0 %v5369
    %10573 = vmatpush1.bf16.msra.mxu0 %v5368
    %10574 = vmatprep.subr.bf16.mxu0 %v5361
    %10575 = vmatpush1.bf16.msra.mxu0 %v5360
    %10576 = vmatprep.subr.bf16.mxu0 %v5353
    %10577 = vmatpush1.bf16.msra.mxu0 %v5352
    %10578 = vmatprep.subr.bf16.mxu0 %v5345
    %10579 = vmatpush1.bf16.msra.mxu0 %v5344
    %10580 = vmatprep.subr.bf16.mxu0 %v5337
    %10581 = vmatpush1.bf16.msra.mxu0 %v5336
    %10582 = vmatprep.subr.bf16.mxu0 %v5329
    %10583 = vmatpush1.bf16.msra.mxu0 %v5328
    %10584 = vmatprep.subr.bf16.mxu0 %v5321
    %10585 = vmatpush1.bf16.msra.mxu0 %v5320
    %10586 = vmatprep.subr.bf16.mxu0 %v5313
    %10587 = vmatpush1.bf16.msra.mxu0 %v5312
    %10588 = vmatprep.subr.bf16.mxu0 %v5433
    %10589 = vmatpush2.bf16.msra.mxu0 %v5432
    %10590 = vmatprep.subr.bf16.mxu0 %v5425
    %10591 = vmatpush2.bf16.msra.mxu0 %v5424
    %10592 = vmatprep.subr.bf16.mxu0 %v5417
    %10593 = vmatpush2.bf16.msra.mxu0 %v5416
    %10594 = vmatprep.subr.bf16.mxu0 %v5409
    %10595 = vmatpush2.bf16.msra.mxu0 %v5408
    %10596 = vmatprep.subr.bf16.mxu0 %v5401
    %10597 = vmatpush2.bf16.msra.mxu0 %v5400
    %10598 = vmatprep.subr.bf16.mxu0 %v5393
    %10599 = vmatpush2.bf16.msra.mxu0 %v5392
    %10600 = vmatprep.subr.bf16.mxu0 %v5385
    %10601 = vmatpush2.bf16.msra.mxu0 %v5384
    %10602 = vmatprep.subr.bf16.mxu0 %v5377
    %10603 = vmatpush2.bf16.msra.mxu0 %v5376
    %10604 = vmatprep.mubr.bf16.mxu0 %v10487
    %10605 = vmatmul.mubr.bf16.gmra.mxu0 %v10486
    %v10606 = vpop.f32.mrf.mxu0
    %v10607 = vadd.f32 %v5834, %v10606
    %v10608 = vpop.f32.mrf.mxu0
    %v10609 = vadd.f32 %v5838, %v10608
    %v10610 = vpop.f32.mrf.mxu0
    %v10611 = vpop.f32.mrf.mxu0
    %10612 = vdwg.mxu0
    %10613 = vmatprep.subr.bf16.mxu0 %v5497
    %10614 = vmatpush1.bf16.msra.mxu0 %v5496
    %10615 = vmatprep.subr.bf16.mxu0 %v5489
    %10616 = vmatpush1.bf16.msra.mxu0 %v5488
    %10617 = vmatprep.subr.bf16.mxu0 %v5481
    %10618 = vmatpush1.bf16.msra.mxu0 %v5480
    %10619 = vmatprep.subr.bf16.mxu0 %v5473
    %10620 = vmatpush1.bf16.msra.mxu0 %v5472
    %10621 = vmatprep.subr.bf16.mxu0 %v5465
    %10622 = vmatpush1.bf16.msra.mxu0 %v5464
    %10623 = vmatprep.subr.bf16.mxu0 %v5457
    %10624 = vmatpush1.bf16.msra.mxu0 %v5456
    %10625 = vmatprep.subr.bf16.mxu0 %v5449
    %10626 = vmatpush1.bf16.msra.mxu0 %v5448
    %10627 = vmatprep.subr.bf16.mxu0 %v5441
    %10628 = vmatpush1.bf16.msra.mxu0 %v5440
    %10629 = vmatprep.subr.bf16.mxu0 %v5561
    %10630 = vmatpush2.bf16.msra.mxu0 %v5560
    %10631 = vmatprep.subr.bf16.mxu0 %v5553
    %10632 = vmatpush2.bf16.msra.mxu0 %v5552
    %10633 = vmatprep.subr.bf16.mxu0 %v5545
    %10634 = vmatpush2.bf16.msra.mxu0 %v5544
    %10635 = vmatprep.subr.bf16.mxu0 %v5537
    %10636 = vmatpush2.bf16.msra.mxu0 %v5536
    %10637 = vmatprep.subr.bf16.mxu0 %v5529
    %10638 = vmatpush2.bf16.msra.mxu0 %v5528
    %10639 = vmatprep.subr.bf16.mxu0 %v5521
    %10640 = vmatpush2.bf16.msra.mxu0 %v5520
    %10641 = vmatprep.subr.bf16.mxu0 %v5513
    %10642 = vmatpush2.bf16.msra.mxu0 %v5512
    %10643 = vmatprep.subr.bf16.mxu0 %v5505
    %10644 = vmatpush2.bf16.msra.mxu0 %v5504
    %10645 = vmatprep.mubr.bf16.mxu0 %v10489
    %10646 = vmatmul.mubr.bf16.gmra.mxu0 %v10488
    %v10647 = vpop.f32.mrf.mxu0
    %v10648 = vadd.f32 %v10607, %v10647
    %v10649 = vpop.f32.mrf.mxu0
    %v10650 = vadd.f32 %v10609, %v10649
    %v10651 = vpop.f32.mrf.mxu0
    %v10652 = vpop.f32.mrf.mxu0
    %10653 = vdwg.mxu0
    %10654 = vmatprep.subr.bf16.mxu0 %v5371
    %10655 = vmatpush1.bf16.msra.mxu0 %v5370
    %10656 = vmatprep.subr.bf16.mxu0 %v5363
    %10657 = vmatpush1.bf16.msra.mxu0 %v5362
    %10658 = vmatprep.subr.bf16.mxu0 %v5355
    %10659 = vmatpush1.bf16.msra.mxu0 %v5354
    %10660 = vmatprep.subr.bf16.mxu0 %v5347
    %10661 = vmatpush1.bf16.msra.mxu0 %v5346
    %10662 = vmatprep.subr.bf16.mxu0 %v5339
    %10663 = vmatpush1.bf16.msra.mxu0 %v5338
    %10664 = vmatprep.subr.bf16.mxu0 %v5331
    %10665 = vmatpush1.bf16.msra.mxu0 %v5330
    %10666 = vmatprep.subr.bf16.mxu0 %v5323
    %10667 = vmatpush1.bf16.msra.mxu0 %v5322
    %10668 = vmatprep.subr.bf16.mxu0 %v5315
    %10669 = vmatpush1.bf16.msra.mxu0 %v5314
    %10670 = vmatprep.subr.bf16.mxu0 %v5435
    %10671 = vmatpush2.bf16.msra.mxu0 %v5434
    %10672 = vmatprep.subr.bf16.mxu0 %v5427
    %10673 = vmatpush2.bf16.msra.mxu0 %v5426
    %10674 = vmatprep.subr.bf16.mxu0 %v5419
    %10675 = vmatpush2.bf16.msra.mxu0 %v5418
    %10676 = vmatprep.subr.bf16.mxu0 %v5411
    %10677 = vmatpush2.bf16.msra.mxu0 %v5410
    %10678 = vmatprep.subr.bf16.mxu0 %v5403
    %10679 = vmatpush2.bf16.msra.mxu0 %v5402
    %10680 = vmatprep.subr.bf16.mxu0 %v5395
    %10681 = vmatpush2.bf16.msra.mxu0 %v5394
    %10682 = vmatprep.subr.bf16.mxu0 %v5387
    %10683 = vmatpush2.bf16.msra.mxu0 %v5386
    %10684 = vmatprep.subr.bf16.mxu0 %v5379
    %10685 = vmatpush2.bf16.msra.mxu0 %v5378
    %10686 = vmatprep.mubr.bf16.mxu0 %v10487
    %10687 = vmatmul.mubr.bf16.gmra.mxu0 %v10486
    %v10688 = vpop.f32.mrf.mxu0
    %v10689 = vadd.f32 %v5842, %v10688
    %v10690 = vpop.f32.mrf.mxu0
    %v10691 = vadd.f32 %v5846, %v10690
    %v10692 = vpop.f32.mrf.mxu0
    %v10693 = vpop.f32.mrf.mxu0
    %10694 = vdwg.mxu0
    %10695 = vmatprep.subr.bf16.mxu0 %v5499
    %10696 = vmatpush1.bf16.msra.mxu0 %v5498
    %10697 = vmatprep.subr.bf16.mxu0 %v5491
    %10698 = vmatpush1.bf16.msra.mxu0 %v5490
    %10699 = vmatprep.subr.bf16.mxu0 %v5483
    %10700 = vmatpush1.bf16.msra.mxu0 %v5482
    %10701 = vmatprep.subr.bf16.mxu0 %v5475
    %10702 = vmatpush1.bf16.msra.mxu0 %v5474
    %10703 = vmatprep.subr.bf16.mxu0 %v5467
    %10704 = vmatpush1.bf16.msra.mxu0 %v5466
    %10705 = vmatprep.subr.bf16.mxu0 %v5459
    %10706 = vmatpush1.bf16.msra.mxu0 %v5458
    %10707 = vmatprep.subr.bf16.mxu0 %v5451
    %10708 = vmatpush1.bf16.msra.mxu0 %v5450
    %10709 = vmatprep.subr.bf16.mxu0 %v5443
    %10710 = vmatpush1.bf16.msra.mxu0 %v5442
    %10711 = vmatprep.subr.bf16.mxu0 %v5563
    %10712 = vmatpush2.bf16.msra.mxu0 %v5562
    %10713 = vmatprep.subr.bf16.mxu0 %v5555
    %10714 = vmatpush2.bf16.msra.mxu0 %v5554
    %10715 = vmatprep.subr.bf16.mxu0 %v5547
    %10716 = vmatpush2.bf16.msra.mxu0 %v5546
    %10717 = vmatprep.subr.bf16.mxu0 %v5539
    %10718 = vmatpush2.bf16.msra.mxu0 %v5538
    %10719 = vmatprep.subr.bf16.mxu0 %v5531
    %10720 = vmatpush2.bf16.msra.mxu0 %v5530
    %10721 = vmatprep.subr.bf16.mxu0 %v5523
    %10722 = vmatpush2.bf16.msra.mxu0 %v5522
    %10723 = vmatprep.subr.bf16.mxu0 %v5515
    %10724 = vmatpush2.bf16.msra.mxu0 %v5514
    %10725 = vmatprep.subr.bf16.mxu0 %v5507
    %10726 = vmatpush2.bf16.msra.mxu0 %v5506
    %10727 = vmatprep.mubr.bf16.mxu0 %v10489
    %10728 = vmatmul.mubr.bf16.gmra.mxu0 %v10488
    %v10729 = vpop.f32.mrf.mxu0
    %v10730 = vadd.f32 %v10689, %v10729
    %v10731 = vpop.f32.mrf.mxu0
    %v10732 = vadd.f32 %v10691, %v10731
    %v10733 = vpop.f32.mrf.mxu0
    %v10734 = vpop.f32.mrf.mxu0
    %10735 = vdwg.mxu0
    %10736 = vmatprep.subr.bf16.mxu0 %v5373
    %10737 = vmatpush1.bf16.msra.mxu0 %v5372
    %10738 = vmatprep.subr.bf16.mxu0 %v5365
    %10739 = vmatpush1.bf16.msra.mxu0 %v5364
    %10740 = vmatprep.subr.bf16.mxu0 %v5357
    %10741 = vmatpush1.bf16.msra.mxu0 %v5356
    %10742 = vmatprep.subr.bf16.mxu0 %v5349
    %10743 = vmatpush1.bf16.msra.mxu0 %v5348
    %10744 = vmatprep.subr.bf16.mxu0 %v5341
    %10745 = vmatpush1.bf16.msra.mxu0 %v5340
    %10746 = vmatprep.subr.bf16.mxu0 %v5333
    %10747 = vmatpush1.bf16.msra.mxu0 %v5332
    %10748 = vmatprep.subr.bf16.mxu0 %v5325
    %10749 = vmatpush1.bf16.msra.mxu0 %v5324
    %10750 = vmatprep.subr.bf16.mxu0 %v5317
    %10751 = vmatpush1.bf16.msra.mxu0 %v5316
    %10752 = vmatprep.subr.bf16.mxu0 %v5437
    %10753 = vmatpush2.bf16.msra.mxu0 %v5436
    %10754 = vmatprep.subr.bf16.mxu0 %v5429
    %10755 = vmatpush2.bf16.msra.mxu0 %v5428
    %10756 = vmatprep.subr.bf16.mxu0 %v5421
    %10757 = vmatpush2.bf16.msra.mxu0 %v5420
    %10758 = vmatprep.subr.bf16.mxu0 %v5413
    %10759 = vmatpush2.bf16.msra.mxu0 %v5412
    %10760 = vmatprep.subr.bf16.mxu0 %v5405
    %10761 = vmatpush2.bf16.msra.mxu0 %v5404
    %10762 = vmatprep.subr.bf16.mxu0 %v5397
    %10763 = vmatpush2.bf16.msra.mxu0 %v5396
    %10764 = vmatprep.subr.bf16.mxu0 %v5389
    %10765 = vmatpush2.bf16.msra.mxu0 %v5388
    %10766 = vmatprep.subr.bf16.mxu0 %v5381
    %10767 = vmatpush2.bf16.msra.mxu0 %v5380
    %10768 = vmatprep.mubr.bf16.mxu0 %v10487
    %10769 = vmatmul.mubr.bf16.gmra.mxu0 %v10486
    %v10770 = vpop.f32.mrf.mxu0
    %v10771 = vadd.f32 %v5850, %v10770
    %v10772 = vpop.f32.mrf.mxu0
    %v10773 = vadd.f32 %v5854, %v10772
    %v10774 = vpop.f32.mrf.mxu0
    %v10775 = vpop.f32.mrf.mxu0
    %10776 = vdwg.mxu0
    %10777 = vmatprep.subr.bf16.mxu0 %v5501
    %10778 = vmatpush1.bf16.msra.mxu0 %v5500
    %10779 = vmatprep.subr.bf16.mxu0 %v5493
    %10780 = vmatpush1.bf16.msra.mxu0 %v5492
    %10781 = vmatprep.subr.bf16.mxu0 %v5485
    %10782 = vmatpush1.bf16.msra.mxu0 %v5484
    %10783 = vmatprep.subr.bf16.mxu0 %v5477
    %10784 = vmatpush1.bf16.msra.mxu0 %v5476
    %10785 = vmatprep.subr.bf16.mxu0 %v5469
    %10786 = vmatpush1.bf16.msra.mxu0 %v5468
    %10787 = vmatprep.subr.bf16.mxu0 %v5461
    %10788 = vmatpush1.bf16.msra.mxu0 %v5460
    %10789 = vmatprep.subr.bf16.mxu0 %v5453
    %10790 = vmatpush1.bf16.msra.mxu0 %v5452
    %10791 = vmatprep.subr.bf16.mxu0 %v5445
    %10792 = vmatpush1.bf16.msra.mxu0 %v5444
    %10793 = vmatprep.subr.bf16.mxu0 %v5565
    %10794 = vmatpush2.bf16.msra.mxu0 %v5564
    %10795 = vmatprep.subr.bf16.mxu0 %v5557
    %10796 = vmatpush2.bf16.msra.mxu0 %v5556
    %10797 = vmatprep.subr.bf16.mxu0 %v5549
    %10798 = vmatpush2.bf16.msra.mxu0 %v5548
    %10799 = vmatprep.subr.bf16.mxu0 %v5541
    %10800 = vmatpush2.bf16.msra.mxu0 %v5540
    %10801 = vmatprep.subr.bf16.mxu0 %v5533
    %10802 = vmatpush2.bf16.msra.mxu0 %v5532
    %10803 = vmatprep.subr.bf16.mxu0 %v5525
    %10804 = vmatpush2.bf16.msra.mxu0 %v5524
    %10805 = vmatprep.subr.bf16.mxu0 %v5517
    %10806 = vmatpush2.bf16.msra.mxu0 %v5516
    %10807 = vmatprep.subr.bf16.mxu0 %v5509
    %10808 = vmatpush2.bf16.msra.mxu0 %v5508
    %10809 = vmatprep.mubr.bf16.mxu0 %v10489
    %10810 = vmatmul.mubr.bf16.gmra.mxu0 %v10488
    %v10811 = vpop.f32.mrf.mxu0
    %v10812 = vadd.f32 %v10771, %v10811
    %v10813 = vpop.f32.mrf.mxu0
    %v10814 = vadd.f32 %v10773, %v10813
    %v10815 = vpop.f32.mrf.mxu0
    %v10816 = vpop.f32.mrf.mxu0
    %10817 = vdwg.mxu0
    %v10818 = vxor.u32 %v10566, 2147483648
    %v10819 = vxor.u32 %v10568, 2147483648
    %v10820 = vxor.u32 %v10648, 2147483648
    %v10821 = vxor.u32 %v10650, 2147483648
    %v10822 = vxor.u32 %v10730, 2147483648
    %v10823 = vxor.u32 %v10732, 2147483648
    %v10824 = vmul.f32 %v10818, 1.442695
    %v10825 = vpow.pop %v10824
    %v10826 = vmul.f32 %v10819, 1.442695
    %v10827 = vpow.pop %v10826
    %v10828 = vmul.f32 %v10820, 1.442695
    %v10829 = vpow.pop %v10828
    %v10830 = vmul.f32 %v10821, 1.442695
    %v10831 = vpow.pop %v10830
    %v10832 = vmul.f32 %v10822, 1.442695
    %v10833 = vpow.pop %v10832
    %v10834 = vmul.f32 %v10823, 1.442695
    %v10835 = vpow.pop %v10834
    %v10836 = vadd.f32 %v10825, 1.0
    %v10837 = vadd.f32 %v10827, 1.0
    %v10838 = vadd.f32 %v10829, 1.0
    %v10839 = vadd.f32 %v10831, 1.0
    %v10840 = vadd.f32 %v10833, 1.0
    %v10841 = vadd.f32 %v10835, 1.0
    %v10842 = vrcp.pop %v10836
    %v10843 = vmul.f32 1.0, %v10842
    %v10844 = vrcp.pop %v10837
    %v10845 = vmul.f32 1.0, %v10844
    %v10846 = vrcp.pop %v10838
    %v10847 = vmul.f32 1.0, %v10846
    %v10848 = vrcp.pop %v10839
    %v10849 = vmul.f32 1.0, %v10848
    %v10850 = vrcp.pop %v10840
    %v10851 = vmul.f32 1.0, %v10850
    %v10852 = vrcp.pop %v10841
    %v10853 = vmul.f32 1.0, %v10852
    %v10854 = vtanh.pop %v10812
    %v10855 = vtanh.pop %v10814
    %v10856 = vmul.f32 %v10847, %v10201
    %v10857 = vmul.f32 %v10849, %v10202
    %v10858 = vmul.f32 %v10843, %v10854
    %v10859 = vmul.f32 %v10845, %v10855
    %v10860 = vadd.f32 %v10856, %v10858
    %v10861 = vadd.f32 %v10857, %v10859
    %v10862 = vtanh.pop %v10860
    %v10863 = vtanh.pop %v10861
    %v10864 = vmul.f32 %v10851, %v10862
    %v10865 = vmul.f32 %v10853, %v10863
    %v10868 = vcombine.low %v10864, %v10865
    %v10870 = vunpack.c.l.s4 1966171168
    %v10871 = vunpack.c.0.s8 %v10870
    %v10872 = vlaneseq
    %v10873 = vshrl.u32 %v10872, 7
    %v10874 = vsub.s32 %v10871, %v10873
    %v10875 = vrot.slane %v10868, %v10874
    %v10877 = vunpack.c.l.s4 1966171168
    %v10878 = vunpack.c.0.s8 %v10877
    %v10879 = vlaneseq
    %v10880 = vshrl.u32 %v10879, 7
    %v10881 = vsub.s32 %v10878, %v10880
    %v10882 = vrot.slane %v10875, %v10881
    %s10884 = scalar_lea.vmem [#allocation23], 7
    %10885 = vst.msk [vmem:[%s10884] ss:$8 sm:$0x3] %vm6271, %v10882
    %10886 = vst.msk [vmem:[%s10884] ss:$8 sm:$0x0] %vm6271, %v10882
    %10887 = vst.msk [vmem:[#allocation24] ss:$2 sm:$0x3] %vm6271, %v10474
    %s10888 = scalar_lea.vmem [#allocation24], 1
    %10889 = vst.msk [vmem:[%s10888] ss:$2 sm:$0x3] %vm6271, %v10882
    %10890 = vst.msk [vmem:[#allocation26] ss:$2 sm:$0x3] %vm6271, %v10470
    %v10893 = vcombine.low %v10860, %v10861
    %v10895 = vunpack.c.l.s4 1966171168
    %v10896 = vunpack.c.0.s8 %v10895
    %v10897 = vlaneseq
    %v10898 = vshrl.u32 %v10897, 7
    %v10899 = vsub.s32 %v10896, %v10898
    %v10900 = vrot.slane %v10893, %v10899
    %v10902 = vunpack.c.l.s4 1966171168
    %v10903 = vunpack.c.0.s8 %v10902
    %v10904 = vlaneseq
    %v10905 = vshrl.u32 %v10904, 7
    %v10906 = vsub.s32 %v10903, %v10905
    %v10907 = vrot.slane %v10900, %v10906
    %s10909 = scalar_lea.vmem [#allocation26], 1
    %10910 = vst.msk [vmem:[%s10909] ss:$2 sm:$0x3] %vm6271, %v10907
    // Predicated region
    $region90: #{tpu_custom_call.1} parent=1 // pred_check
      _
    $region91: #{tpu_custom_call.1} parent=1 // pred_check_branch
      %10912 = sbr.rel (0) target = $region93
    $region92: #{tpu_custom_call.1} parent=1 // pred_region
      %s10914 = ssub.s32 256, 256
      %10915 = vsyncadd [#allocation8], %s10914
      %s10917 = sshll.u32 [#allocation23], 4
      %s10918 = int_to_ptr.vmem [resolvable:$true] %s10917
      %10920 = dma.vmem_to_hbm [thread:$0]  %s10918, 256, %s12, [#allocation8]
    $region93: #{tpu_custom_call.1} parent=1 // pred_fallthru
      _
    // Predicated region
    $region94: #{tpu_custom_call.1} parent=1 // pred_check
      _
    $region95: #{tpu_custom_call.1} parent=1 // pred_check_branch
      %10922 = sbr.rel (0) target = $region97
    $region96: #{tpu_custom_call.1} parent=1 // pred_region
      %s10924 = ssub.s32 64, 64
      %10925 = vsyncadd [#allocation25], %s10924
      %s10927 = sshll.u32 [#allocation24], 4
      %s10928 = int_to_ptr.vmem [resolvable:$true] %s10927
      %10930 = dma.vmem_to_hbm [thread:$0]  %s10928, 64, %s13, [#allocation25]
    $region97: #{tpu_custom_call.1} parent=1 // pred_fallthru
      _
    // Predicated region
    $region98: #{tpu_custom_call.1} parent=1 // pred_check
      _
    $region99: #{tpu_custom_call.1} parent=1 // pred_check_branch
      %10932 = sbr.rel (0) target = $region101
    $region100: #{tpu_custom_call.1} parent=1 // pred_region
      %s10934 = ssub.s32 64, 64
      %10935 = vsyncadd [#allocation25], %s10934
      %s10937 = sshll.u32 [#allocation26], 4
      %s10938 = int_to_ptr.vmem [resolvable:$true] %s10937
      %10940 = dma.vmem_to_hbm [thread:$0]  %s10938, 64, %s14, [#allocation25]
    $region101: #{tpu_custom_call.1} parent=1 // pred_fallthru
      _
    // Predicated region
    $region102: #{tpu_custom_call.1} parent=1 // pred_check
      _
    $region103: #{tpu_custom_call.1} parent=1 // pred_check_branch
      %10942 = sbr.rel (0) target = $region105
    $region104: #{tpu_custom_call.1} parent=1 // pred_region
      %10943 = dma.done [#allocation8], 256
    $region105: #{tpu_custom_call.1} parent=1 // pred_fallthru
      _
    // Predicated region
    $region106: #{tpu_custom_call.1} parent=1 // pred_check
      _
    $region107: #{tpu_custom_call.1} parent=1 // pred_check_branch
      %10945 = sbr.rel (0) target = $region109
    $region108: #{tpu_custom_call.1} parent=1 // pred_region
      %10946 = dma.done [#allocation25], 64
    $region109: #{tpu_custom_call.1} parent=1 // pred_fallthru
      _
    // Predicated region
    $region110: #{tpu_custom_call.1} parent=1 // pred_check
      _
    $region111: #{tpu_custom_call.1} parent=1 // pred_check_branch
      %10948 = sbr.rel (0) target = $region113
    $region112: #{tpu_custom_call.1} parent=1 // pred_region
      %10949 = dma.done [#allocation25], 64
    $region113: #{tpu_custom_call.1} parent=1 // pred_fallthru
      _
    %10950 = vsyncpa [#allocation7], 1
    %10951 = vsyncpa [#allocation10], 1
    %10952 = vsyncpa [#allocation13], 1
    %10953 = vsyncpa [#allocation16], 1
    %10954 = vsyncpa [#allocation19], 1
    %10955 = vsyncpa [#allocation22], 1
    %10956 = vsyncpa [#allocation8], 1
    %10957 = vsyncpa [#allocation25], 1
  %10958 = vsyncmov [#allocation5]
  %s10959 = vpop.sfrf %10958
  %p10960 = scmp.eq.s32.totalorder %s10959, 0
  %p10961 = pneg %p10960
  %10963 = shalt.err (%p10961)
  %s10964 = scalar_lea.sflag [#allocation5], 1
  %10965 = vsyncmov %s10964
  %s10966 = vpop.sfrf %10965
  %p10967 = scmp.eq.s32.totalorder %s10966, 0
  %p10968 = pneg %p10967
  %10970 = shalt.err (%p10968)

</llo_original>
